<compile_context>
chip_gen: v7x
topology: tpu7x:2x2x1
jax: 0.10.0
libtpu: 0.0.40
codegen_flags: <defaults>
</compile_context>

<pallas_src>
import functools

import numpy as np
import jax
import jax.numpy as jnp
from jax.experimental import pallas as pl
from jax.experimental.pallas import tpu as pltpu


LEAKY_SLOPE = 0.1          # nn.LeakyReLU(0.1) in the reference module
DEFAULT_TILE = 512         # row tile for small-cin (<= C) linears
CONV_TILE = 256            # row tile for the 27C-wide conv matmuls


def _round_up(v, m):
    return ((v + m - 1) // m) * m


def _tile_for(n, tile_m):
    return min(tile_m, max(8, _round_up(n, 8)))


def _leaky(x):
    return jnp.where(x > 0, x, LEAKY_SLOPE * x)


# ----------------------------------------------------------------------------
# Pallas kernels (bf16 MXU operands, f32 accumulation / epilogues)
# ----------------------------------------------------------------------------
def _sfe_conv1_kernel(xg_ref, feat_ref, w1_ref, win_ref, out_ref, id_ref):
    """3x3x3 subm conv (gathered bf16 input) + fused 1x1x1 identity conv."""
    out = jnp.dot(xg_ref[...], w1_ref[...], preferred_element_type=jnp.float32)
    idr = jnp.dot(feat_ref[...], win_ref[...], preferred_element_type=jnp.float32)
    out_ref[...] = out.astype(out_ref.dtype)
    id_ref[...] = idr.astype(id_ref.dtype)


def _sfe_conv2_kernel(xg_ref, w_ref, out_ref):
    """Second 3x3x3 subm conv (input already BN+leaky normalized, bf16)."""
    out = jnp.dot(xg_ref[...], w_ref[...], preferred_element_type=jnp.float32)
    out_ref[...] = out.astype(out_ref.dtype)


def _sgfe_reduce_kernel(id_ref, out_ref, s1_ref, s2_ref, sh_ref, w_ref, b_ref,
                        o_ref):
    """Fused SFE epilogue + SGFE feature_reduce:
       relu( leaky( BN(identity) + BN(conv2) ) @ W + b )."""
    x = (id_ref[...].astype(jnp.float32) * s1_ref[...]
         + out_ref[...].astype(jnp.float32) * s2_ref[...]
         + sh_ref[...])
    x = jnp.where(x > 0, x, LEAKY_SLOPE * x)
    acc = jnp.dot(x.astype(jnp.bfloat16), w_ref[...],
                  preferred_element_type=jnp.float32)
    o_ref[...] = jnp.maximum(acc + b_ref[...], 0.0)


def _sgfe_fc_batched_kernel(x_ref, w_ref, b_ref, o_ref):
    """Per-scale fc_list branch: relu(fkm @ W + b), one grid axis over scales."""
    acc = jnp.dot(x_ref[0].astype(jnp.bfloat16), w_ref[0],
                  preferred_element_type=jnp.float32)
    acc = jnp.maximum(acc + b_ref[0], 0.0)
    o_ref[0] = acc.astype(o_ref.dtype)


def _sgfe_tail_kernel(att_ref, red_ref, fc_w_ref, fcs_w_ref, fcs_b_ref,
                      outfc_w_ref, lin0a_ref, lin0b_ref, lin1_w_ref, lin1_b_ref,
                      o_ref):
    """Whole SGFE tail fused: fc -> fcs -> sigmoid -> weighted pool -> out_fc ->
       split concat-linear -> relu -> final linear.  All 64-lane intermediates
       stay in VMEM; only the lane-dense [tile, C] projection is stored."""
    num_scales = att_ref.shape[0]
    a = [att_ref[s].astype(jnp.float32) for s in range(num_scales)]
    feat_s = a[0]
    for s in range(1, num_scales):
        feat_s = feat_s + a[s]
    feat_z = jnp.dot(feat_s.astype(jnp.bfloat16), fc_w_ref[...],
                     preferred_element_type=jnp.float32)
    feat_z = jnp.maximum(feat_z, 0.0).astype(jnp.bfloat16)
    pooled = None
    for s in range(num_scales):
        attn_s = jnp.dot(feat_z, fcs_w_ref[s],
                         preferred_element_type=jnp.float32)
        attn_s = jax.nn.sigmoid(attn_s + fcs_b_ref[s])
        term = a[s] * attn_s
        pooled = term if pooled is None else pooled + term
    scale_out = jnp.dot(pooled.astype(jnp.bfloat16), outfc_w_ref[...],
                        preferred_element_type=jnp.float32)
    h = jnp.dot(red_ref[...].astype(jnp.bfloat16), lin0a_ref[...],
                preferred_element_type=jnp.float32)
    h = h + jnp.dot(scale_out.astype(jnp.bfloat16), lin0b_ref[...],
                    preferred_element_type=jnp.float32)
    h = jnp.maximum(h, 0.0)
    proj = jnp.dot(h.astype(jnp.bfloat16), lin1_w_ref[...],
                   preferred_element_type=jnp.float32)
    o_ref[...] = proj + lin1_b_ref[...]


def _fc_out_kernel(x1_ref, x2_ref, x3_ref, w1_ref, w2_ref, w3_ref, b_ref, o_ref):
    """Final fc_out on the implicit concat [vw, proj_vw1, proj_vw2[inv]]."""
    acc = jnp.dot(x1_ref[...].astype(jnp.bfloat16), w1_ref[...],
                  preferred_element_type=jnp.float32)
    acc = acc + jnp.dot(x2_ref[...].astype(jnp.bfloat16), w2_ref[...],
                        preferred_element_type=jnp.float32)
    acc = acc + jnp.dot(x3_ref[...].astype(jnp.bfloat16), w3_ref[...],
                        preferred_element_type=jnp.float32)
    o_ref[...] = acc + b_ref[...]


# ----------------------------------------------------------------------------
# pallas_call wrappers
# ----------------------------------------------------------------------------
def sfe_conv1(xg, feat, w1, w_in, tile_m=CONV_TILE):
    n, k = xg.shape
    c = w1.shape[1]
    tile = _tile_for(n, tile_m)
    return pl.pallas_call(
        _sfe_conv1_kernel,
        out_shape=(jax.ShapeDtypeStruct((n, c), jnp.bfloat16),
                   jax.ShapeDtypeStruct((n, c), jnp.bfloat16)),
        grid_spec=pltpu.PrefetchScalarGridSpec(
            num_scalar_prefetch=0,
            grid=(pl.cdiv(n, tile),),
            in_specs=[
                pl.BlockSpec((tile, k), lambda i: (i, 0)),
                pl.BlockSpec((tile, c), lambda i: (i, 0)),
                pl.BlockSpec((k, c), lambda i: (0, 0)),
                pl.BlockSpec((c, c), lambda i: (0, 0)),
            ],
            out_specs=(pl.BlockSpec((tile, c), lambda i: (i, 0)),
                       pl.BlockSpec((tile, c), lambda i: (i, 0))),
        ),
        compiler_params=pltpu.CompilerParams(dimension_semantics=("parallel",)),
    )(xg, feat, w1, w_in)


def sfe_conv2(xg, w2, tile_m=CONV_TILE):
    n, k = xg.shape
    c = w2.shape[1]
    tile = _tile_for(n, tile_m)
    return pl.pallas_call(
        _sfe_conv2_kernel,
        out_shape=jax.ShapeDtypeStruct((n, c), jnp.bfloat16),
        grid_spec=pltpu.PrefetchScalarGridSpec(
            num_scalar_prefetch=0,
            grid=(pl.cdiv(n, tile),),
            in_specs=[
                pl.BlockSpec((tile, k), lambda i: (i, 0)),
                pl.BlockSpec((k, c), lambda i: (0, 0)),
            ],
            out_specs=pl.BlockSpec((tile, c), lambda i: (i, 0)),
        ),
        compiler_params=pltpu.CompilerParams(dimension_semantics=("parallel",)),
    )(xg, w2)


def sgfe_reduce(id_raw, out2, s_id, s_out, shift, w, b, tile_m=DEFAULT_TILE):
    n, c = id_raw.shape
    cout = w.shape[1]
    tile = _tile_for(n, tile_m)
    return pl.pallas_call(
        _sgfe_reduce_kernel,
        out_shape=jax.ShapeDtypeStruct((n, cout), jnp.float32),
        grid_spec=pltpu.PrefetchScalarGridSpec(
            num_scalar_prefetch=0,
            grid=(pl.cdiv(n, tile),),
            in_specs=[
                pl.BlockSpec((tile, c), lambda i: (i, 0)),
                pl.BlockSpec((tile, c), lambda i: (i, 0)),
                pl.BlockSpec((1, c), lambda i: (0, 0)),
                pl.BlockSpec((1, c), lambda i: (0, 0)),
                pl.BlockSpec((1, c), lambda i: (0, 0)),
                pl.BlockSpec((c, cout), lambda i: (0, 0)),
                pl.BlockSpec((1, cout), lambda i: (0, 0)),
            ],
            out_specs=pl.BlockSpec((tile, cout), lambda i: (i, 0)),
        ),
        compiler_params=pltpu.CompilerParams(dimension_semantics=("parallel",)),
    )(id_raw, out2, s_id, s_out, shift, w, b)


def sgfe_fc_batched(fkm, w, b, tile_m=DEFAULT_TILE):
    g, n, cin = fkm.shape
    cout = w.shape[2]
    tile = _tile_for(n, tile_m)
    return pl.pallas_call(
        _sgfe_fc_batched_kernel,
        out_shape=jax.ShapeDtypeStruct((g, n, cout), jnp.bfloat16),
        grid_spec=pltpu.PrefetchScalarGridSpec(
            num_scalar_prefetch=0,
            grid=(g, pl.cdiv(n, tile)),
            in_specs=[
                pl.BlockSpec((1, tile, cin), lambda gi, i: (gi, i, 0)),
                pl.BlockSpec((1, cin, cout), lambda gi, i: (gi, 0, 0)),
                pl.BlockSpec((1, 1, cout), lambda gi, i: (gi, 0, 0)),
            ],
            out_specs=pl.BlockSpec((1, tile, cout), lambda gi, i: (gi, i, 0)),
        ),
        compiler_params=pltpu.CompilerParams(
            dimension_semantics=("parallel", "parallel")),
    )(fkm, w, b)


def sgfe_tail(att, reduced, fc_w, fcs_w, fcs_b, outfc_w, lin0a, lin0b, lin1_w,
              lin1_b, tile_m=DEFAULT_TILE):
    s, n, c2 = att.shape
    c = reduced.shape[1]
    tile = _tile_for(n, tile_m)

    def const(shape):
        return pl.BlockSpec(shape, lambda i, _s=len(shape): (0,) * _s)

    return pl.pallas_call(
        _sgfe_tail_kernel,
        out_shape=jax.ShapeDtypeStruct((n, c), jnp.float32),
        grid_spec=pltpu.PrefetchScalarGridSpec(
            num_scalar_prefetch=0,
            grid=(pl.cdiv(n, tile),),
            in_specs=[
                pl.BlockSpec((s, tile, c2), lambda i: (0, i, 0)),
                pl.BlockSpec((tile, c), lambda i: (i, 0)),
                const((c2, c2)),          # fc
                const((s, c2, c2)),       # fcs weights
                const((s, 1, c2)),        # fcs biases
                const((c2, c)),           # out_fc
                const((c, c)),            # linear_output[0] rows for `reduced`
                const((c, c)),            # linear_output[0] rows for `scale_out`
                const((c, c)),            # linear_output[2] weight
                const((1, c)),            # linear_output[2] bias
            ],
            out_specs=pl.BlockSpec((tile, c), lambda i: (i, 0)),
        ),
        compiler_params=pltpu.CompilerParams(dimension_semantics=("parallel",)),
    )(att, reduced, fc_w, fcs_w, fcs_b, outfc_w, lin0a, lin0b, lin1_w, lin1_b)


def fc_out_fused(x1, x2, x3, w1, w2, w3, b, tile_m=DEFAULT_TILE):
    n, c1 = x1.shape
    c2_, c3_ = x2.shape[1], x3.shape[1]
    cout = w1.shape[1]
    tile = _tile_for(n, tile_m)
    return pl.pallas_call(
        _fc_out_kernel,
        out_shape=jax.ShapeDtypeStruct((n, cout), jnp.float32),
        grid_spec=pltpu.PrefetchScalarGridSpec(
            num_scalar_prefetch=0,
            grid=(pl.cdiv(n, tile),),
            in_specs=[
                pl.BlockSpec((tile, c1), lambda i: (i, 0)),
                pl.BlockSpec((tile, c2_), lambda i: (i, 0)),
                pl.BlockSpec((tile, c3_), lambda i: (i, 0)),
                pl.BlockSpec((c1, cout), lambda i: (0, 0)),
                pl.BlockSpec((c2_, cout), lambda i: (0, 0)),
                pl.BlockSpec((c3_, cout), lambda i: (0, 0)),
                pl.BlockSpec((1, cout), lambda i: (0, 0)),
            ],
            out_specs=pl.BlockSpec((tile, cout), lambda i: (i, 0)),
        ),
        compiler_params=pltpu.CompilerParams(dimension_semantics=("parallel",)),
    )(x1, x2, x3, w1, w2, w3, b)


# ----------------------------------------------------------------------------
# Plain-JAX glue (all inside the single jitted forward)
# ----------------------------------------------------------------------------
def _bn_moments(x, mask=None, eps=1e-5):
    """BatchNorm1d training-mode batch statistics (weight=1, bias=0).
    Returns (mean [1,C], rsqrt(var+eps) [1,C]) in f32; `mask` restricts the
    statistics to valid rows (padded down-path)."""
    xf = x.astype(jnp.float32)
    if mask is None:
        mean = jnp.mean(xf, axis=0, keepdims=True)
        var = jnp.mean(jnp.square(xf - mean), axis=0, keepdims=True)
    else:
        m = mask.astype(jnp.float32)[:, None]
        cnt = jnp.maximum(jnp.sum(m), 1.0)
        mean = jnp.sum(xf * m, axis=0, keepdims=True) / cnt
        var = jnp.sum(jnp.square(xf - mean) * m, axis=0, keepdims=True) / cnt
    return mean, jax.lax.rsqrt(var + eps)


def build_neighbor_table(coords, spatial_shape, num_slabs, n):
    """[N, 27] int32 neighbor row indices (value n == 'missing' -> zero pad row).
    Channel-free dense int32 index volume, shared by both convs of a block."""
    Z, Y, X = spatial_shape
    vol = jnp.full((num_slabs, Z + 2, Y + 2, X + 2), n, jnp.int32)
    b_ = coords[:, 0]
    z_ = coords[:, 1] + 1
    y_ = coords[:, 2] + 1
    x_ = coords[:, 3] + 1
    vol = vol.at[b_, z_, y_, x_].set(jnp.arange(n, dtype=jnp.int32))
    cols = []
    for dz in (-1, 0, 1):
        for dy in (-1, 0, 1):
            for dx in (-1, 0, 1):
                cols.append(vol[b_, z_ + dz, y_ + dy, x_ + dx])
    return jnp.stack(cols, axis=1)


# ----------------------------------------------------------------------------
# Parameter initialization (torch-like uniform fan-in scaling, bf16 weights)
# ----------------------------------------------------------------------------
def _uniform(key, shape, fan_in):
    s = 1.0 / np.sqrt(fan_in)
    return jax.random.uniform(key, shape, jnp.float32, -s, s)


def init_sfe(key, c):
    k1, k2, k3 = jax.random.split(key, 3)
    return {
        "w_in": _uniform(k1, (c, c), c).astype(jnp.bfloat16),          # 1x1x1
        "w1": _uniform(k2, (27 * c, c), 27 * c).astype(jnp.bfloat16),  # 3x3x3
        "w2": _uniform(k3, (27 * c, c), 27 * c).astype(jnp.bfloat16),  # 3x3x3
    }


def init_sgfe(key, c):
    c2 = c // 2
    keys = jax.random.split(key, 24)
    p = {}
    p["fr_w"] = _uniform(keys[0], (c, c), c).astype(jnp.bfloat16)
    p["fr_b"] = _uniform(keys[1], (1, c), c)
    p["fc_list_w"] = jnp.stack(
        [_uniform(keys[2 + j], (c, c2), c) for j in range(4)]).astype(jnp.bfloat16)
    p["fc_list_b"] = jnp.stack(
        [_uniform(keys[6 + j], (1, c2), c) for j in range(4)])
    p["fcs_w"] = jnp.stack(
        [_uniform(keys[10 + j], (c2, c2), c2) for j in range(4)]).astype(jnp.bfloat16)
    p["fcs_b"] = jnp.stack(
        [_uniform(keys[14 + j], (1, c2), c2) for j in range(4)])
    p["fc_w"] = _uniform(keys[18], (c2, c2), c2).astype(jnp.bfloat16)      # bias=False
    p["out_fc_w"] = _uniform(keys[19], (c2, c), c2).astype(jnp.bfloat16)   # bias=False
    lin0 = _uniform(keys[20], (2 * c, c), 2 * c)                           # bias=False
    p["lin0_w_top"] = lin0[:c].astype(jnp.bfloat16)    # rows multiplying `reduced`
    p["lin0_w_bot"] = lin0[c:].astype(jnp.bfloat16)    # rows multiplying `scale_out`
    p["lin1_w"] = _uniform(keys[21], (c, c), c).astype(jnp.bfloat16)
    p["lin1_b"] = _uniform(keys[22], (1, c), c)
    # NOTE: scale_selection exists in the torch __init__ but is unused in forward.
    return p


def init_fc_out(key, c):
    kw, kb = jax.random.split(key)
    w = _uniform(kw, (3 * c, c), 3 * c)
    return {
        "w1": w[:c].astype(jnp.bfloat16),
        "w2": w[c:2 * c].astype(jnp.bfloat16),
        "w3": w[2 * c:].astype(jnp.bfloat16),
        "b": _uniform(kb, (1, c), 3 * c),
    }


def init_sgb_params(key, c):
    k1, k2, k3, k4, k5 = jax.random.split(key, 5)
    return {
        "conv_block": init_sfe(k1, c),
        "proj_block": init_sgfe(k2, c),
        "conv_block_down": init_sfe(k3, c),
        "proj_block_down": init_sgfe(k4, c),
        "fc_out": init_fc_out(k5, c),
    }


# ----------------------------------------------------------------------------
# Module forwards
# ----------------------------------------------------------------------------
def sfe_forward(params, features, coords, spatial_shape, num_slabs, mask=None):
    """SFE = one BasicBlock (layer_num=1).  The block's final
    leaky(BN(identity) + BN(conv2)) is NOT materialized here; its per-channel
    scale/shift is returned and applied inside the SGFE feature_reduce kernel."""
    n, c = features.shape
    nbr = build_neighbor_table(coords, spatial_shape, num_slabs, n)
    feat_bf = features.astype(jnp.bfloat16)
    pad = jnp.zeros((1, c), jnp.bfloat16)

    # TODO(synk): XLA gather -> [N, 27C] bf16 intermediate (see header comment).
    xg1 = jnp.concatenate([feat_bf, pad], axis=0)[nbr].reshape(n, 27 * c)
    out1, id_raw = sfe_conv1(xg1, feat_bf, params["w1"], params["w_in"])

    # BN stats (read-only) + fused normalize/leaky/cast pass, pad row stays 0.
    mu1, r1 = _bn_moments(out1, mask)
    h1 = _leaky((out1.astype(jnp.float32) - mu1) * r1).astype(jnp.bfloat16)

    xg2 = jnp.concatenate([h1, pad], axis=0)[nbr].reshape(n, 27 * c)
    out2 = sfe_conv2(xg2, params["w2"])

    mu_i, r_i = _bn_moments(id_raw, mask)
    mu_o, r_o = _bn_moments(out2, mask)
    shift = -(mu_i * r_i + mu_o * r_o)
    return id_raw, out2, r_i, r_o, shift


def sgfe_forward(params, sfe_out, input_coords, p_scale=(2, 4, 6, 8)):
    id_raw, out2, s_id, s_out, shift = sfe_out
    n = id_raw.shape[0]

    # Fused SFE epilogue + feature_reduce: relu(leaky(BN(id)+BN(out2)) @ W + b).
    reduced = sgfe_reduce(id_raw, out2, s_id, s_out, shift,
                          params["fr_w"], params["fr_b"])

    fkm_list, inv_list = [], []
    for ps in p_scale:
        index = jnp.concatenate(
            [input_coords[:, :1], input_coords[:, 1:] // ps], axis=1)
        _, inv = jnp.unique(index, axis=0, return_inverse=True, size=n)
        inv = inv.reshape(-1)
        sums = jax.ops.segment_sum(reduced, inv, num_segments=n)
        cnt = jax.ops.segment_sum(
            jnp.ones((n, 1), reduced.dtype), inv, num_segments=n)
        fkm_list.append(sums / jnp.maximum(cnt, 1.0))   # scatter-mean
        inv_list.append(inv)
    fkm = jnp.stack(fkm_list, axis=0)        # [S, N, c] f32
    inv_all = jnp.stack(inv_list, axis=0)    # [S, N]

    # 4 per-scale fc_list branches in one batched kernel (bf16 output).
    att_seg = sgfe_fc_batched(fkm, params["fc_list_w"], params["fc_list_b"])
    att = jnp.take_along_axis(att_seg, inv_all[:, :, None], axis=1)  # [S,N,c/2]

    # Whole SGFE tail fused into one kernel.
    return sgfe_tail(att, reduced, params["fc_w"], params["fcs_w"],
                     params["fcs_b"], params["out_fc_w"], params["lin0_w_top"],
                     params["lin0_w_bot"], params["lin1_w"], params["lin1_b"])


@functools.partial(jax.jit, static_argnames=("sizes", "batch_size"))
def _sgb_forward_impl(params, vw_features, coord_ind, *, sizes, batch_size):
    n = vw_features.shape[0]
    coord_ind = coord_ind.astype(jnp.int32)
    # coord_ind rows are [b, x, y, z]; keep [b, z, y, x]
    coord = jnp.concatenate(
        [coord_ind[:, :1], jnp.flip(coord_ind, axis=1)[:, :3]], axis=1)
    spatial = tuple(int(v) for v in np.array(sizes, np.int64)[::-1])            # (Z,Y,X)
    spatial_down = tuple(int(v) for v in (np.array(sizes, np.int64) // 2)[::-1])

    sfe1 = sfe_forward(params["conv_block"], vw_features, coord,
                       spatial, batch_size)
    proj_vw1 = sgfe_forward(params["proj_block"], sfe1, coord)

    # Downsample: unique of halved coords, scatter-max of features (static
    # size=n bound keeps everything jittable; unused segments masked below).
    index = jnp.concatenate([coord[:, :1], coord[:, 1:] // 2], axis=1)
    unq, inv = jnp.unique(index, axis=0, return_inverse=True, size=n)
    inv = inv.reshape(-1)
    seg_cnt = jax.ops.segment_sum(jnp.ones((n,), jnp.float32), inv, num_segments=n)
    valid = seg_cnt > 0
    # Padded segments: zero features, coords routed to a dead batch slab so they
    # never alias real voxels in the down-path neighbor table; down-path BN
    # statistics are masked to valid rows only.
    safe_coord = jnp.array([batch_size, 0, 0, 0], jnp.int32)
    unq = jnp.where(valid[:, None], unq.astype(jnp.int32), safe_coord)
    proj_vw1_down = jax.ops.segment_max(proj_vw1, inv, num_segments=n)
    proj_vw1_down = jnp.where(valid[:, None], proj_vw1_down, 0.0)

    sfe2 = sfe_forward(params["conv_block_down"], proj_vw1_down, unq,
                       spatial_down, batch_size + 1, mask=valid)
    proj_vw2 = sgfe_forward(params["proj_block_down"], sfe2, unq)

    # fc_out on the implicit concat [vw_features, proj_vw1, proj_vw2[inv]].
    fo = params["fc_out"]
    return fc_out_fused(vw_features, proj_vw1, proj_vw2[inv],
                        fo["w1"], fo["w2"], fo["w3"], fo["b"])


def sgb_forward(params, vw_features, coord_ind, sizes, batch_size=None):
    if batch_size is None:
        # Data-dependent fallback (one host sync); prefer passing batch_size
        # statically from the data loader so successive forwards overlap dispatch.
        batch_size = int(jnp.max(coord_ind[:, 0])) + 1
    return _sgb_forward_impl(params, vw_features, coord_ind,
                             sizes=tuple(int(s) for s in sizes),
                             batch_size=int(batch_size))


# ----------------------------------------------------------------------------
# Example run
# ----------------------------------------------------------------------------
if __name__ == "__main__":
    key = jax.random.PRNGKey(0)
    c = 32                      # channels (128 in the original module)
    sizes = [16, 16, 8]         # (X, Y, Z) voxel grid extents
    B = 2
    n_per_batch = 128
    X, Y, Z = sizes

    kf, kc0, kc1, kp = jax.random.split(key, 4)
    coord_keys = [kc0, kc1]
    coord_rows = []
    for b in range(B):
        flat = jax.random.permutation(coord_keys[b], X * Y * Z)[:n_per_batch]
        xs = flat // (Y * Z)
        ys = (flat // Z) % Y
        zs = flat % Z
        bcol = jnp.full((n_per_batch,), b, jnp.int32)
        coord_rows.append(
            jnp.stack([bcol, xs, ys, zs], axis=1).astype(jnp.int32))
    coord_ind = jnp.concatenate(coord_rows, axis=0)       # [N, 4] = [b, x, y, z]
    N = coord_ind.shape[0]
    vw_features = jax.random.normal(kf, (N, c), jnp.float32)

    params = init_sgb_params(kp, c)
    out = sgb_forward(params, vw_features, coord_ind, sizes, batch_size=B)
    out = jax.block_until_ready(out)
    assert out.shape == (N, c), out.shape
    assert bool(jnp.all(jnp.isfinite(out)))
    print("KERNEL_OK")
</pallas_src>

<mosaic_0001>
module attributes {stable_mosaic.version = 11 : i64} {
  func.func private @main(%arg0: i32) attributes {dimension_semantics = [#tpu.dimension_semantics<core_parallel>], iteration_bounds = array<i64: 2>, tpu.core_type = #tpu.core_type<sc_scalar_subcore>, window_params = []} {
    return
  }
}

module attributes {stable_mosaic.version = 11 : i64} {
  func.func private @main(%arg0: i32) attributes {dimension_semantics = [#tpu.dimension_semantics<core_parallel>], iteration_bounds = array<i64: 2>, tpu.core_type = #tpu.core_type<sc_scalar_subcore>, window_params = []} {
    return
  }
}

module attributes {stable_mosaic.version = 11 : i64} {
  func.func @_sfe_conv1_kernel(%arg0: i32, %arg1: memref<256x864xbf16, #tpu.memory_space<vmem>>, %arg2: memref<256x32xbf16, #tpu.memory_space<vmem>>, %arg3: memref<864x32xbf16, #tpu.memory_space<vmem>>, %arg4: memref<32x32xbf16, #tpu.memory_space<vmem>>, %arg5: memref<256x32xbf16, #tpu.memory_space<vmem>>, %arg6: memref<256x32xbf16, #tpu.memory_space<vmem>>) attributes {dimension_semantics = [#tpu.dimension_semantics<parallel>], iteration_bounds = array<i64: 1>, scalar_prefetch = 0 : i64, scratch_operands = 0 : i64, tpu.core_type = #tpu.core_type<tc>, window_params = [{transform_indices = @transform_0, window_bounds = array<i64: 256, 864>}, {transform_indices = @transform_1, window_bounds = array<i64: 256, 32>}, {pipeline_mode = #tpu.pipeline_mode<synchronous>, transform_indices = @transform_2, window_bounds = array<i64: 864, 32>}, {pipeline_mode = #tpu.pipeline_mode<synchronous>, transform_indices = @transform_3, window_bounds = array<i64: 32, 32>}, {transform_indices = @transform_4, window_bounds = array<i64: 256, 32>}, {transform_indices = @transform_5, window_bounds = array<i64: 256, 32>}]} {
    %c0 = arith.constant 0 : index
    %c0_0 = arith.constant 0 : index
    %0 = vector.load %arg1[%c0, %c0_0] : memref<256x864xbf16, #tpu.memory_space<vmem>>, vector<256x864xbf16>
    %c0_1 = arith.constant 0 : index
    %c0_2 = arith.constant 0 : index
    %1 = vector.load %arg3[%c0_1, %c0_2] : memref<864x32xbf16, #tpu.memory_space<vmem>>, vector<864x32xbf16>
    %cst = arith.constant dense<0.000000e+00> : vector<256x32xf32>
    %2 = tpu.matmul %0, %1, %cst {dimension_numbers = #tpu.dot_dimension_numbers<[1], [0], [0], [1], [0, 0, 1, 1], [], []>} : vector<256x864xbf16>, vector<864x32xbf16>, vector<256x32xf32> -> vector<256x32xf32>
    %c0_3 = arith.constant 0 : index
    %c0_4 = arith.constant 0 : index
    %3 = vector.load %arg2[%c0_3, %c0_4] : memref<256x32xbf16, #tpu.memory_space<vmem>>, vector<256x32xbf16>
    %c0_5 = arith.constant 0 : index
    %c0_6 = arith.constant 0 : index
    %4 = vector.load %arg4[%c0_5, %c0_6] : memref<32x32xbf16, #tpu.memory_space<vmem>>, vector<32x32xbf16>
    %cst_7 = arith.constant dense<0.000000e+00> : vector<256x32xf32>
    %5 = tpu.matmul %3, %4, %cst_7 {dimension_numbers = #tpu.dot_dimension_numbers<[1], [0], [0], [1], [0, 0, 1, 1], [], []>} : vector<256x32xbf16>, vector<32x32xbf16>, vector<256x32xf32> -> vector<256x32xf32>
    %6 = arith.truncf %2 : vector<256x32xf32> to vector<256x32xbf16>
    %c0_8 = arith.constant 0 : index
    %c0_9 = arith.constant 0 : index
    %7 = vector.load %arg5[%c0_8, %c0_9] : memref<256x32xbf16, #tpu.memory_space<vmem>>, vector<256x32xbf16>
    tpu.vector_store %arg5[%c0_8, %c0_9], %6 {strides = array<i32>} : memref<256x32xbf16, #tpu.memory_space<vmem>>, vector<256x32xbf16>,
    %8 = arith.truncf %5 : vector<256x32xf32> to vector<256x32xbf16>
    %c0_10 = arith.constant 0 : index
    %c0_11 = arith.constant 0 : index
    %9 = vector.load %arg6[%c0_10, %c0_11] : memref<256x32xbf16, #tpu.memory_space<vmem>>, vector<256x32xbf16>
    tpu.vector_store %arg6[%c0_10, %c0_11], %8 {strides = array<i32>} : memref<256x32xbf16, #tpu.memory_space<vmem>>, vector<256x32xbf16>,
    return
  }
  func.func @transform_0(%arg0: i32) -> (i32, i32) {
    %c0_i32 = arith.constant 0 : i32
    %c0_i32_0 = arith.constant 0 : i32
    return %arg0, %c0_i32 : i32, i32
  }
  func.func @transform_1(%arg0: i32) -> (i32, i32) {
    %c0_i32 = arith.constant 0 : i32
    %c0_i32_0 = arith.constant 0 : i32
    return %arg0, %c0_i32 : i32, i32
  }
  func.func @transform_2(%arg0: i32) -> (i32, i32) {
    %c0_i32 = arith.constant 0 : i32
    %c0_i32_0 = arith.constant 0 : i32
    %c0_i32_1 = arith.constant 0 : i32
    return %c0_i32, %c0_i32_0 : i32, i32
  }
  func.func @transform_3(%arg0: i32) -> (i32, i32) {
    %c0_i32 = arith.constant 0 : i32
    %c0_i32_0 = arith.constant 0 : i32
    %c0_i32_1 = arith.constant 0 : i32
    return %c0_i32, %c0_i32_0 : i32, i32
  }
  func.func @transform_4(%arg0: i32) -> (i32, i32) {
    %c0_i32 = arith.constant 0 : i32
    %c0_i32_0 = arith.constant 0 : i32
    return %arg0, %c0_i32 : i32, i32
  }
  func.func @transform_5(%arg0: i32) -> (i32, i32) {
    %c0_i32 = arith.constant 0 : i32
    %c0_i32_0 = arith.constant 0 : i32
    return %arg0, %c0_i32 : i32, i32
  }
}

module attributes {stable_mosaic.version = 11 : i64} {
  func.func @_sfe_conv2_kernel(%arg0: i32, %arg1: memref<256x864xbf16, #tpu.memory_space<vmem>>, %arg2: memref<864x32xbf16, #tpu.memory_space<vmem>>, %arg3: memref<256x32xbf16, #tpu.memory_space<vmem>>) attributes {dimension_semantics = [#tpu.dimension_semantics<parallel>], iteration_bounds = array<i64: 1>, scalar_prefetch = 0 : i64, scratch_operands = 0 : i64, tpu.core_type = #tpu.core_type<tc>, window_params = [{transform_indices = @transform_0, window_bounds = array<i64: 256, 864>}, {pipeline_mode = #tpu.pipeline_mode<synchronous>, transform_indices = @transform_1, window_bounds = array<i64: 864, 32>}, {transform_indices = @transform_2, window_bounds = array<i64: 256, 32>}]} {
    %c0 = arith.constant 0 : index
    %c0_0 = arith.constant 0 : index
    %0 = vector.load %arg1[%c0, %c0_0] : memref<256x864xbf16, #tpu.memory_space<vmem>>, vector<256x864xbf16>
    %c0_1 = arith.constant 0 : index
    %c0_2 = arith.constant 0 : index
    %1 = vector.load %arg2[%c0_1, %c0_2] : memref<864x32xbf16, #tpu.memory_space<vmem>>, vector<864x32xbf16>
    %cst = arith.constant dense<0.000000e+00> : vector<256x32xf32>
    %2 = tpu.matmul %0, %1, %cst {dimension_numbers = #tpu.dot_dimension_numbers<[1], [0], [0], [1], [0, 0, 1, 1], [], []>} : vector<256x864xbf16>, vector<864x32xbf16>, vector<256x32xf32> -> vector<256x32xf32>
    %3 = arith.truncf %2 : vector<256x32xf32> to vector<256x32xbf16>
    %c0_3 = arith.constant 0 : index
    %c0_4 = arith.constant 0 : index
    %4 = vector.load %arg3[%c0_3, %c0_4] : memref<256x32xbf16, #tpu.memory_space<vmem>>, vector<256x32xbf16>
    tpu.vector_store %arg3[%c0_3, %c0_4], %3 {strides = array<i32>} : memref<256x32xbf16, #tpu.memory_space<vmem>>, vector<256x32xbf16>,
    return
  }
  func.func @transform_0(%arg0: i32) -> (i32, i32) {
    %c0_i32 = arith.constant 0 : i32
    %c0_i32_0 = arith.constant 0 : i32
    return %arg0, %c0_i32 : i32, i32
  }
  func.func @transform_1(%arg0: i32) -> (i32, i32) {
    %c0_i32 = arith.constant 0 : i32
    %c0_i32_0 = arith.constant 0 : i32
    %c0_i32_1 = arith.constant 0 : i32
    return %c0_i32, %c0_i32_0 : i32, i32
  }
  func.func @transform_2(%arg0: i32) -> (i32, i32) {
    %c0_i32 = arith.constant 0 : i32
    %c0_i32_0 = arith.constant 0 : i32
    return %arg0, %c0_i32 : i32, i32
  }
}

module attributes {stable_mosaic.version = 11 : i64} {
  func.func @_sgfe_reduce_kernel(%arg0: i32, %arg1: memref<256x32xbf16, #tpu.memory_space<vmem>>, %arg2: memref<256x32xbf16, #tpu.memory_space<vmem>>, %arg3: memref<1x32xf32, #tpu.memory_space<vmem>>, %arg4: memref<1x32xf32, #tpu.memory_space<vmem>>, %arg5: memref<1x32xf32, #tpu.memory_space<vmem>>, %arg6: memref<32x32xbf16, #tpu.memory_space<vmem>>, %arg7: memref<1x32xf32, #tpu.memory_space<vmem>>, %arg8: memref<256x32xf32, #tpu.memory_space<vmem>>) attributes {dimension_semantics = [#tpu.dimension_semantics<parallel>], iteration_bounds = array<i64: 1>, scalar_prefetch = 0 : i64, scratch_operands = 0 : i64, tpu.core_type = #tpu.core_type<tc>, window_params = [{transform_indices = @transform_0, window_bounds = array<i64: 256, 32>}, {transform_indices = @transform_1, window_bounds = array<i64: 256, 32>}, {pipeline_mode = #tpu.pipeline_mode<synchronous>, transform_indices = @transform_2, window_bounds = array<i64: 1, 32>}, {pipeline_mode = #tpu.pipeline_mode<synchronous>, transform_indices = @transform_3, window_bounds = array<i64: 1, 32>}, {pipeline_mode = #tpu.pipeline_mode<synchronous>, transform_indices = @transform_4, window_bounds = array<i64: 1, 32>}, {pipeline_mode = #tpu.pipeline_mode<synchronous>, transform_indices = @transform_5, window_bounds = array<i64: 32, 32>}, {pipeline_mode = #tpu.pipeline_mode<synchronous>, transform_indices = @transform_6, window_bounds = array<i64: 1, 32>}, {transform_indices = @transform_7, window_bounds = array<i64: 256, 32>}]} {
    %c0 = arith.constant 0 : index
    %c0_0 = arith.constant 0 : index
    %0 = vector.load %arg1[%c0, %c0_0] : memref<256x32xbf16, #tpu.memory_space<vmem>>, vector<256x32xbf16>
    %1 = arith.extf %0 : vector<256x32xbf16> to vector<256x32xf32>
    %c0_1 = arith.constant 0 : index
    %c0_2 = arith.constant 0 : index
    %2 = vector.load %arg3[%c0_1, %c0_2] : memref<1x32xf32, #tpu.memory_space<vmem>>, vector<1x32xf32>
    %3 = vector.broadcast %2 : vector<1x32xf32> to vector<256x32xf32>
    %4 = arith.mulf %1, %3 : vector<256x32xf32>
    %c0_3 = arith.constant 0 : index
    %c0_4 = arith.constant 0 : index
    %5 = vector.load %arg2[%c0_3, %c0_4] : memref<256x32xbf16, #tpu.memory_space<vmem>>, vector<256x32xbf16>
    %6 = arith.extf %5 : vector<256x32xbf16> to vector<256x32xf32>
    %c0_5 = arith.constant 0 : index
    %c0_6 = arith.constant 0 : index
    %7 = vector.load %arg4[%c0_5, %c0_6] : memref<1x32xf32, #tpu.memory_space<vmem>>, vector<1x32xf32>
    %8 = vector.broadcast %7 : vector<1x32xf32> to vector<256x32xf32>
    %9 = arith.mulf %6, %8 : vector<256x32xf32>
    %10 = arith.addf %4, %9 : vector<256x32xf32>
    %c0_7 = arith.constant 0 : index
    %c0_8 = arith.constant 0 : index
    %11 = vector.load %arg5[%c0_7, %c0_8] : memref<1x32xf32, #tpu.memory_space<vmem>>, vector<1x32xf32>
    %12 = vector.broadcast %11 : vector<1x32xf32> to vector<256x32xf32>
    %13 = arith.addf %10, %12 : vector<256x32xf32>
    %cst = arith.constant 0.000000e+00 : f32
    %14 = vector.broadcast %cst : f32 to vector<256x32xf32>
    %15 = arith.cmpf ogt, %13, %14 : vector<256x32xf32>
    %cst_9 = arith.constant 1.000000e-01 : f32
    %16 = vector.broadcast %cst_9 : f32 to vector<256x32xf32>
    %17 = arith.mulf %16, %13 : vector<256x32xf32>
    %18 = arith.select %15, %13, %17 : vector<256x32xi1>, vector<256x32xf32>
    %19 = arith.truncf %18 : vector<256x32xf32> to vector<256x32xbf16>
    %c0_10 = arith.constant 0 : index
    %c0_11 = arith.constant 0 : index
    %20 = vector.load %arg6[%c0_10, %c0_11] : memref<32x32xbf16, #tpu.memory_space<vmem>>, vector<32x32xbf16>
    %cst_12 = arith.constant dense<0.000000e+00> : vector<256x32xf32>
    %21 = tpu.matmul %19, %20, %cst_12 {dimension_numbers = #tpu.dot_dimension_numbers<[1], [0], [0], [1], [0, 0, 1, 1], [], []>} : vector<256x32xbf16>, vector<32x32xbf16>, vector<256x32xf32> -> vector<256x32xf32>
    %c0_13 = arith.constant 0 : index
    %c0_14 = arith.constant 0 : index
    %22 = vector.load %arg7[%c0_13, %c0_14] : memref<1x32xf32, #tpu.memory_space<vmem>>, vector<1x32xf32>
    %23 = vector.broadcast %22 : vector<1x32xf32> to vector<256x32xf32>
    %24 = arith.addf %21, %23 : vector<256x32xf32>
    %cst_15 = arith.constant 0.000000e+00 : f32
    %25 = vector.broadcast %cst_15 : f32 to vector<256x32xf32>
    %26 = arith.maximumf %24, %25 : vector<256x32xf32>
    %c0_16 = arith.constant 0 : index
    %c0_17 = arith.constant 0 : index
    %27 = vector.load %arg8[%c0_16, %c0_17] : memref<256x32xf32, #tpu.memory_space<vmem>>, vector<256x32xf32>
    tpu.vector_store %arg8[%c0_16, %c0_17], %26 {strides = array<i32>} : memref<256x32xf32, #tpu.memory_space<vmem>>, vector<256x32xf32>,
    return
  }
  func.func @transform_0(%arg0: i32) -> (i32, i32) {
    %c0_i32 = arith.constant 0 : i32
    %c0_i32_0 = arith.constant 0 : i32
    return %arg0, %c0_i32 : i32, i32
  }
  func.func @transform_1(%arg0: i32) -> (i32, i32) {
    %c0_i32 = arith.constant 0 : i32
    %c0_i32_0 = arith.constant 0 : i32
    return %arg0, %c0_i32 : i32, i32
  }
  func.func @transform_2(%arg0: i32) -> (i32, i32) {
    %c0_i32 = arith.constant 0 : i32
    %c0_i32_0 = arith.constant 0 : i32
    %c0_i32_1 = arith.constant 0 : i32
    return %c0_i32, %c0_i32_0 : i32, i32
  }
  func.func @transform_3(%arg0: i32) -> (i32, i32) {
    %c0_i32 = arith.constant 0 : i32
    %c0_i32_0 = arith.constant 0 : i32
    %c0_i32_1 = arith.constant 0 : i32
    return %c0_i32, %c0_i32_0 : i32, i32
  }
  func.func @transform_4(%arg0: i32) -> (i32, i32) {
    %c0_i32 = arith.constant 0 : i32
    %c0_i32_0 = arith.constant 0 : i32
    %c0_i32_1 = arith.constant 0 : i32
    return %c0_i32, %c0_i32_0 : i32, i32
  }
  func.func @transform_5(%arg0: i32) -> (i32, i32) {
    %c0_i32 = arith.constant 0 : i32
    %c0_i32_0 = arith.constant 0 : i32
    %c0_i32_1 = arith.constant 0 : i32
    return %c0_i32, %c0_i32_0 : i32, i32
  }
  func.func @transform_6(%arg0: i32) -> (i32, i32) {
    %c0_i32 = arith.constant 0 : i32
    %c0_i32_0 = arith.constant 0 : i32
    %c0_i32_1 = arith.constant 0 : i32
    return %c0_i32, %c0_i32_0 : i32, i32
  }
  func.func @transform_7(%arg0: i32) -> (i32, i32) {
    %c0_i32 = arith.constant 0 : i32
    %c0_i32_0 = arith.constant 0 : i32
    return %arg0, %c0_i32 : i32, i32
  }
}

module attributes {stable_mosaic.version = 11 : i64} {
  func.func @_sgfe_fc_batched_kernel(%arg0: i32, %arg1: i32, %arg2: memref<1x256x32xf32, #tpu.memory_space<vmem>>, %arg3: memref<1x32x16xbf16, #tpu.memory_space<vmem>>, %arg4: memref<1x1x16xf32, #tpu.memory_space<vmem>>, %arg5: memref<1x256x16xbf16, #tpu.memory_space<vmem>>) attributes {dimension_semantics = [#tpu.dimension_semantics<parallel>, #tpu.dimension_semantics<parallel>], iteration_bounds = array<i64: 4, 1>, scalar_prefetch = 0 : i64, scratch_operands = 0 : i64, tpu.core_type = #tpu.core_type<tc>, window_params = [{transform_indices = @transform_0, window_bounds = array<i64: 1, 256, 32>}, {transform_indices = @transform_1, window_bounds = array<i64: 1, 32, 16>}, {transform_indices = @transform_2, window_bounds = array<i64: 1, 1, 16>}, {transform_indices = @transform_3, window_bounds = array<i64: 1, 256, 16>}]} {
    %c0 = arith.constant 0 : index
    %c0_0 = arith.constant 0 : index
    %c0_1 = arith.constant 0 : index
    %0 = vector.load %arg2[%c0, %c0_0, %c0_1] : memref<1x256x32xf32, #tpu.memory_space<vmem>>, vector<1x256x32xf32>
    %1 = vector.shape_cast %0 : vector<1x256x32xf32> to vector<256x32xf32>
    %2 = arith.truncf %1 : vector<256x32xf32> to vector<256x32xbf16>
    %c0_2 = arith.constant 0 : index
    %c0_3 = arith.constant 0 : index
    %c0_4 = arith.constant 0 : index
    %3 = vector.load %arg3[%c0_2, %c0_3, %c0_4] : memref<1x32x16xbf16, #tpu.memory_space<vmem>>, vector<1x32x16xbf16>
    %4 = vector.shape_cast %3 : vector<1x32x16xbf16> to vector<32x16xbf16>
    %cst = arith.constant dense<0.000000e+00> : vector<256x16xf32>
    %5 = tpu.matmul %2, %4, %cst {dimension_numbers = #tpu.dot_dimension_numbers<[1], [0], [0], [1], [0, 0, 1, 1], [], []>} : vector<256x32xbf16>, vector<32x16xbf16>, vector<256x16xf32> -> vector<256x16xf32>
    %c0_5 = arith.constant 0 : index
    %c0_6 = arith.constant 0 : index
    %c0_7 = arith.constant 0 : index
    %6 = vector.load %arg4[%c0_5, %c0_6, %c0_7] : memref<1x1x16xf32, #tpu.memory_space<vmem>>, vector<1x1x16xf32>
    %7 = vector.shape_cast %6 : vector<1x1x16xf32> to vector<1x16xf32>
    %8 = vector.broadcast %7 : vector<1x16xf32> to vector<256x16xf32>
    %9 = arith.addf %5, %8 : vector<256x16xf32>
    %cst_8 = arith.constant 0.000000e+00 : f32
    %10 = vector.broadcast %cst_8 : f32 to vector<256x16xf32>
    %11 = arith.maximumf %9, %10 : vector<256x16xf32>
    %12 = arith.truncf %11 : vector<256x16xf32> to vector<256x16xbf16>
    %c0_9 = arith.constant 0 : index
    %c0_10 = arith.constant 0 : index
    %c0_11 = arith.constant 0 : index
    %13 = vector.load %arg5[%c0_9, %c0_10, %c0_11] : memref<1x256x16xbf16, #tpu.memory_space<vmem>>, vector<1x256x16xbf16>
    %14 = vector.shape_cast %13 : vector<1x256x16xbf16> to vector<256x16xbf16>
    %15 = vector.shape_cast %12 : vector<256x16xbf16> to vector<1x256x16xbf16>
    tpu.vector_store %arg5[%c0_9, %c0_10, %c0_11], %15 {strides = array<i32>} : memref<1x256x16xbf16, #tpu.memory_space<vmem>>, vector<1x256x16xbf16>,
    return
  }
  func.func @transform_0(%arg0: i32, %arg1: i32) -> (i32, i32, i32) {
    %c0_i32 = arith.constant 0 : i32
    %c0_i32_0 = arith.constant 0 : i32
    return %arg0, %arg1, %c0_i32 : i32, i32, i32
  }
  func.func @transform_1(%arg0: i32, %arg1: i32) -> (i32, i32, i32) {
    %c0_i32 = arith.constant 0 : i32
    %c0_i32_0 = arith.constant 0 : i32
    %c0_i32_1 = arith.constant 0 : i32
    return %arg0, %c0_i32, %c0_i32_0 : i32, i32, i32
  }
  func.func @transform_2(%arg0: i32, %arg1: i32) -> (i32, i32, i32) {
    %c0_i32 = arith.constant 0 : i32
    %c0_i32_0 = arith.constant 0 : i32
    %c0_i32_1 = arith.constant 0 : i32
    return %arg0, %c0_i32, %c0_i32_0 : i32, i32, i32
  }
  func.func @transform_3(%arg0: i32, %arg1: i32) -> (i32, i32, i32) {
    %c0_i32 = arith.constant 0 : i32
    %c0_i32_0 = arith.constant 0 : i32
    return %arg0, %arg1, %c0_i32 : i32, i32, i32
  }
}

module attributes {stable_mosaic.version = 11 : i64} {
  func.func @_sgfe_tail_kernel(%arg0: i32, %arg1: memref<4x256x16xbf16, #tpu.memory_space<vmem>>, %arg2: memref<256x32xf32, #tpu.memory_space<vmem>>, %arg3: memref<16x16xbf16, #tpu.memory_space<vmem>>, %arg4: memref<4x16x16xbf16, #tpu.memory_space<vmem>>, %arg5: memref<4x1x16xf32, #tpu.memory_space<vmem>>, %arg6: memref<16x32xbf16, #tpu.memory_space<vmem>>, %arg7: memref<32x32xbf16, #tpu.memory_space<vmem>>, %arg8: memref<32x32xbf16, #tpu.memory_space<vmem>>, %arg9: memref<32x32xbf16, #tpu.memory_space<vmem>>, %arg10: memref<1x32xf32, #tpu.memory_space<vmem>>, %arg11: memref<256x32xf32, #tpu.memory_space<vmem>>) attributes {dimension_semantics = [#tpu.dimension_semantics<parallel>], iteration_bounds = array<i64: 1>, scalar_prefetch = 0 : i64, scratch_operands = 0 : i64, tpu.core_type = #tpu.core_type<tc>, window_params = [{transform_indices = @transform_0, window_bounds = array<i64: 4, 256, 16>}, {transform_indices = @transform_1, window_bounds = array<i64: 256, 32>}, {pipeline_mode = #tpu.pipeline_mode<synchronous>, transform_indices = @transform_2, window_bounds = array<i64: 16, 16>}, {pipeline_mode = #tpu.pipeline_mode<synchronous>, transform_indices = @transform_3, window_bounds = array<i64: 4, 16, 16>}, {pipeline_mode = #tpu.pipeline_mode<synchronous>, transform_indices = @transform_4, window_bounds = array<i64: 4, 1, 16>}, {pipeline_mode = #tpu.pipeline_mode<synchronous>, transform_indices = @transform_5, window_bounds = array<i64: 16, 32>}, {pipeline_mode = #tpu.pipeline_mode<synchronous>, transform_indices = @transform_6, window_bounds = array<i64: 32, 32>}, {pipeline_mode = #tpu.pipeline_mode<synchronous>, transform_indices = @transform_7, window_bounds = array<i64: 32, 32>}, {pipeline_mode = #tpu.pipeline_mode<synchronous>, transform_indices = @transform_8, window_bounds = array<i64: 32, 32>}, {pipeline_mode = #tpu.pipeline_mode<synchronous>, transform_indices = @transform_9, window_bounds = array<i64: 1, 32>}, {transform_indices = @transform_10, window_bounds = array<i64: 256, 32>}]} {
    %c0 = arith.constant 0 : index
    %c0_0 = arith.constant 0 : index
    %c0_1 = arith.constant 0 : index
    %0 = vector.load %arg1[%c0, %c0_0, %c0_1] : memref<4x256x16xbf16, #tpu.memory_space<vmem>>, vector<1x256x16xbf16>
    %1 = vector.shape_cast %0 : vector<1x256x16xbf16> to vector<256x16xbf16>
    %2 = arith.extf %1 : vector<256x16xbf16> to vector<256x16xf32>
    %c1 = arith.constant 1 : index
    %c0_2 = arith.constant 0 : index
    %c0_3 = arith.constant 0 : index
    %3 = vector.load %arg1[%c1, %c0_2, %c0_3] : memref<4x256x16xbf16, #tpu.memory_space<vmem>>, vector<1x256x16xbf16>
    %4 = vector.shape_cast %3 : vector<1x256x16xbf16> to vector<256x16xbf16>
    %5 = arith.extf %4 : vector<256x16xbf16> to vector<256x16xf32>
    %c2 = arith.constant 2 : index
    %c0_4 = arith.constant 0 : index
    %c0_5 = arith.constant 0 : index
    %6 = vector.load %arg1[%c2, %c0_4, %c0_5] : memref<4x256x16xbf16, #tpu.memory_space<vmem>>, vector<1x256x16xbf16>
    %7 = vector.shape_cast %6 : vector<1x256x16xbf16> to vector<256x16xbf16>
    %8 = arith.extf %7 : vector<256x16xbf16> to vector<256x16xf32>
    %c3 = arith.constant 3 : index
    %c0_6 = arith.constant 0 : index
    %c0_7 = arith.constant 0 : index
    %9 = vector.load %arg1[%c3, %c0_6, %c0_7] : memref<4x256x16xbf16, #tpu.memory_space<vmem>>, vector<1x256x16xbf16>
    %10 = vector.shape_cast %9 : vector<1x256x16xbf16> to vector<256x16xbf16>
    %11 = arith.extf %10 : vector<256x16xbf16> to vector<256x16xf32>
    %12 = arith.addf %2, %5 : vector<256x16xf32>
    %13 = arith.addf %12, %8 : vector<256x16xf32>
    %14 = arith.addf %13, %11 : vector<256x16xf32>
    %15 = arith.truncf %14 : vector<256x16xf32> to vector<256x16xbf16>
    %c0_8 = arith.constant 0 : index
    %c0_9 = arith.constant 0 : index
    %16 = vector.load %arg3[%c0_8, %c0_9] : memref<16x16xbf16, #tpu.memory_space<vmem>>, vector<16x16xbf16>
    %cst = arith.constant dense<0.000000e+00> : vector<256x16xf32>
    %17 = tpu.matmul %15, %16, %cst {dimension_numbers = #tpu.dot_dimension_numbers<[1], [0], [0], [1], [0, 0, 1, 1], [], []>} : vector<256x16xbf16>, vector<16x16xbf16>, vector<256x16xf32> -> vector<256x16xf32>
    %cst_10 = arith.constant 0.000000e+00 : f32
    %18 = vector.broadcast %cst_10 : f32 to vector<256x16xf32>
    %19 = arith.maximumf %17, %18 : vector<256x16xf32>
    %20 = arith.truncf %19 : vector<256x16xf32> to vector<256x16xbf16>
    %c0_11 = arith.constant 0 : index
    %c0_12 = arith.constant 0 : index
    %c0_13 = arith.constant 0 : index
    %21 = vector.load %arg4[%c0_11, %c0_12, %c0_13] : memref<4x16x16xbf16, #tpu.memory_space<vmem>>, vector<1x16x16xbf16>
    %22 = vector.shape_cast %21 : vector<1x16x16xbf16> to vector<16x16xbf16>
    %cst_14 = arith.constant dense<0.000000e+00> : vector<256x16xf32>
    %23 = tpu.matmul %20, %22, %cst_14 {dimension_numbers = #tpu.dot_dimension_numbers<[1], [0], [0], [1], [0, 0, 1, 1], [], []>} : vector<256x16xbf16>, vector<16x16xbf16>, vector<256x16xf32> -> vector<256x16xf32>
    %c0_15 = arith.constant 0 : index
    %c0_16 = arith.constant 0 : index
    %c0_17 = arith.constant 0 : index
    %24 = vector.load %arg5[%c0_15, %c0_16, %c0_17] : memref<4x1x16xf32, #tpu.memory_space<vmem>>, vector<1x1x16xf32>
    %25 = vector.shape_cast %24 : vector<1x1x16xf32> to vector<1x16xf32>
    %26 = vector.broadcast %25 : vector<1x16xf32> to vector<256x16xf32>
    %27 = arith.addf %23, %26 : vector<256x16xf32>
    %28 = arith.negf %27 : vector<256x16xf32>
    %29 = math.exp %28 : vector<256x16xf32>
    %cst_18 = arith.constant 1.000000e+00 : f32
    %30 = vector.broadcast %cst_18 : f32 to vector<256x16xf32>
    %31 = arith.addf %30, %29 : vector<256x16xf32>
    %32 = arith.divf %30, %31 : vector<256x16xf32>
    %33 = arith.mulf %2, %32 : vector<256x16xf32>
    %c1_19 = arith.constant 1 : index
    %c0_20 = arith.constant 0 : index
    %c0_21 = arith.constant 0 : index
    %34 = vector.load %arg4[%c1_19, %c0_20, %c0_21] : memref<4x16x16xbf16, #tpu.memory_space<vmem>>, vector<1x16x16xbf16>
    %35 = vector.shape_cast %34 : vector<1x16x16xbf16> to vector<16x16xbf16>
    %cst_22 = arith.constant dense<0.000000e+00> : vector<256x16xf32>
    %36 = tpu.matmul %20, %35, %cst_22 {dimension_numbers = #tpu.dot_dimension_numbers<[1], [0], [0], [1], [0, 0, 1, 1], [], []>} : vector<256x16xbf16>, vector<16x16xbf16>, vector<256x16xf32> -> vector<256x16xf32>
    %c1_23 = arith.constant 1 : index
    %c0_24 = arith.constant 0 : index
    %c0_25 = arith.constant 0 : index
    %37 = vector.load %arg5[%c1_23, %c0_24, %c0_25] : memref<4x1x16xf32, #tpu.memory_space<vmem>>, vector<1x1x16xf32>
    %38 = vector.shape_cast %37 : vector<1x1x16xf32> to vector<1x16xf32>
    %39 = vector.broadcast %38 : vector<1x16xf32> to vector<256x16xf32>
    %40 = arith.addf %36, %39 : vector<256x16xf32>
    %41 = arith.negf %40 : vector<256x16xf32>
    %42 = math.exp %41 : vector<256x16xf32>
    %cst_26 = arith.constant 1.000000e+00 : f32
    %43 = vector.broadcast %cst_26 : f32 to vector<256x16xf32>
    %44 = arith.addf %43, %42 : vector<256x16xf32>
    %45 = arith.divf %43, %44 : vector<256x16xf32>
    %46 = arith.mulf %5, %45 : vector<256x16xf32>
    %47 = arith.addf %33, %46 : vector<256x16xf32>
    %c2_27 = arith.constant 2 : index
    %c0_28 = arith.constant 0 : index
    %c0_29 = arith.constant 0 : index
    %48 = vector.load %arg4[%c2_27, %c0_28, %c0_29] : memref<4x16x16xbf16, #tpu.memory_space<vmem>>, vector<1x16x16xbf16>
    %49 = vector.shape_cast %48 : vector<1x16x16xbf16> to vector<16x16xbf16>
    %cst_30 = arith.constant dense<0.000000e+00> : vector<256x16xf32>
    %50 = tpu.matmul %20, %49, %cst_30 {dimension_numbers = #tpu.dot_dimension_numbers<[1], [0], [0], [1], [0, 0, 1, 1], [], []>} : vector<256x16xbf16>, vector<16x16xbf16>, vector<256x16xf32> -> vector<256x16xf32>
    %c2_31 = arith.constant 2 : index
    %c0_32 = arith.constant 0 : index
    %c0_33 = arith.constant 0 : index
    %51 = vector.load %arg5[%c2_31, %c0_32, %c0_33] : memref<4x1x16xf32, #tpu.memory_space<vmem>>, vector<1x1x16xf32>
    %52 = vector.shape_cast %51 : vector<1x1x16xf32> to vector<1x16xf32>
    %53 = vector.broadcast %52 : vector<1x16xf32> to vector<256x16xf32>
    %54 = arith.addf %50, %53 : vector<256x16xf32>
    %55 = arith.negf %54 : vector<256x16xf32>
    %56 = math.exp %55 : vector<256x16xf32>
    %cst_34 = arith.constant 1.000000e+00 : f32
    %57 = vector.broadcast %cst_34 : f32 to vector<256x16xf32>
    %58 = arith.addf %57, %56 : vector<256x16xf32>
    %59 = arith.divf %57, %58 : vector<256x16xf32>
    %60 = arith.mulf %8, %59 : vector<256x16xf32>
    %61 = arith.addf %47, %60 : vector<256x16xf32>
    %c3_35 = arith.constant 3 : index
    %c0_36 = arith.constant 0 : index
    %c0_37 = arith.constant 0 : index
    %62 = vector.load %arg4[%c3_35, %c0_36, %c0_37] : memref<4x16x16xbf16, #tpu.memory_space<vmem>>, vector<1x16x16xbf16>
    %63 = vector.shape_cast %62 : vector<1x16x16xbf16> to vector<16x16xbf16>
    %cst_38 = arith.constant dense<0.000000e+00> : vector<256x16xf32>
    %64 = tpu.matmul %20, %63, %cst_38 {dimension_numbers = #tpu.dot_dimension_numbers<[1], [0], [0], [1], [0, 0, 1, 1], [], []>} : vector<256x16xbf16>, vector<16x16xbf16>, vector<256x16xf32> -> vector<256x16xf32>
    %c3_39 = arith.constant 3 : index
    %c0_40 = arith.constant 0 : index
    %c0_41 = arith.constant 0 : index
    %65 = vector.load %arg5[%c3_39, %c0_40, %c0_41] : memref<4x1x16xf32, #tpu.memory_space<vmem>>, vector<1x1x16xf32>
    %66 = vector.shape_cast %65 : vector<1x1x16xf32> to vector<1x16xf32>
    %67 = vector.broadcast %66 : vector<1x16xf32> to vector<256x16xf32>
    %68 = arith.addf %64, %67 : vector<256x16xf32>
    %69 = arith.negf %68 : vector<256x16xf32>
    %70 = math.exp %69 : vector<256x16xf32>
    %cst_42 = arith.constant 1.000000e+00 : f32
    %71 = vector.broadcast %cst_42 : f32 to vector<256x16xf32>
    %72 = arith.addf %71, %70 : vector<256x16xf32>
    %73 = arith.divf %71, %72 : vector<256x16xf32>
    %74 = arith.mulf %11, %73 : vector<256x16xf32>
    %75 = arith.addf %61, %74 : vector<256x16xf32>
    %76 = arith.truncf %75 : vector<256x16xf32> to vector<256x16xbf16>
    %c0_43 = arith.constant 0 : index
    %c0_44 = arith.constant 0 : index
    %77 = vector.load %arg6[%c0_43, %c0_44] : memref<16x32xbf16, #tpu.memory_space<vmem>>, vector<16x32xbf16>
    %cst_45 = arith.constant dense<0.000000e+00> : vector<256x32xf32>
    %78 = tpu.matmul %76, %77, %cst_45 {dimension_numbers = #tpu.dot_dimension_numbers<[1], [0], [0], [1], [0, 0, 1, 1], [], []>} : vector<256x16xbf16>, vector<16x32xbf16>, vector<256x32xf32> -> vector<256x32xf32>
    %c0_46 = arith.constant 0 : index
    %c0_47 = arith.constant 0 : index
    %79 = vector.load %arg2[%c0_46, %c0_47] : memref<256x32xf32, #tpu.memory_space<vmem>>, vector<256x32xf32>
    %80 = arith.truncf %79 : vector<256x32xf32> to vector<256x32xbf16>
    %c0_48 = arith.constant 0 : index
    %c0_49 = arith.constant 0 : index
    %81 = vector.load %arg7[%c0_48, %c0_49] : memref<32x32xbf16, #tpu.memory_space<vmem>>, vector<32x32xbf16>
    %cst_50 = arith.constant dense<0.000000e+00> : vector<256x32xf32>
    %82 = tpu.matmul %80, %81, %cst_50 {dimension_numbers = #tpu.dot_dimension_numbers<[1], [0], [0], [1], [0, 0, 1, 1], [], []>} : vector<256x32xbf16>, vector<32x32xbf16>, vector<256x32xf32> -> vector<256x32xf32>
    %83 = arith.truncf %78 : vector<256x32xf32> to vector<256x32xbf16>
    %c0_51 = arith.constant 0 : index
    %c0_52 = arith.constant 0 : index
    %84 = vector.load %arg8[%c0_51, %c0_52] : memref<32x32xbf16, #tpu.memory_space<vmem>>, vector<32x32xbf16>
    %cst_53 = arith.constant dense<0.000000e+00> : vector<256x32xf32>
    %85 = tpu.matmul %83, %84, %cst_53 {dimension_numbers = #tpu.dot_dimension_numbers<[1], [0], [0], [1], [0, 0, 1, 1], [], []>} : vector<256x32xbf16>, vector<32x32xbf16>, vector<256x32xf32> -> vector<256x32xf32>
    %86 = arith.addf %82, %85 : vector<256x32xf32>
    %cst_54 = arith.constant 0.000000e+00 : f32
    %87 = vector.broadcast %cst_54 : f32 to vector<256x32xf32>
    %88 = arith.maximumf %86, %87 : vector<256x32xf32>
    %89 = arith.truncf %88 : vector<256x32xf32> to vector<256x32xbf16>
    %c0_55 = arith.constant 0 : index
    %c0_56 = arith.constant 0 : index
    %90 = vector.load %arg9[%c0_55, %c0_56] : memref<32x32xbf16, #tpu.memory_space<vmem>>, vector<32x32xbf16>
    %cst_57 = arith.constant dense<0.000000e+00> : vector<256x32xf32>
    %91 = tpu.matmul %89, %90, %cst_57 {dimension_numbers = #tpu.dot_dimension_numbers<[1], [0], [0], [1], [0, 0, 1, 1], [], []>} : vector<256x32xbf16>, vector<32x32xbf16>, vector<256x32xf32> -> vector<256x32xf32>
    %c0_58 = arith.constant 0 : index
    %c0_59 = arith.constant 0 : index
    %92 = vector.load %arg10[%c0_58, %c0_59] : memref<1x32xf32, #tpu.memory_space<vmem>>, vector<1x32xf32>
    %93 = vector.broadcast %92 : vector<1x32xf32> to vector<256x32xf32>
    %94 = arith.addf %91, %93 : vector<256x32xf32>
    %c0_60 = arith.constant 0 : index
    %c0_61 = arith.constant 0 : index
    %95 = vector.load %arg11[%c0_60, %c0_61] : memref<256x32xf32, #tpu.memory_space<vmem>>, vector<256x32xf32>
    tpu.vector_store %arg11[%c0_60, %c0_61], %94 {strides = array<i32>} : memref<256x32xf32, #tpu.memory_space<vmem>>, vector<256x32xf32>,
    return
  }
  func.func @transform_0(%arg0: i32) -> (i32, i32, i32) {
    %c0_i32 = arith.constant 0 : i32
    %c0_i32_0 = arith.constant 0 : i32
    %c0_i32_1 = arith.constant 0 : i32
    return %c0_i32, %arg0, %c0_i32_0 : i32, i32, i32
  }
  func.func @transform_1(%arg0: i32) -> (i32, i32) {
    %c0_i32 = arith.constant 0 : i32
    %c0_i32_0 = arith.constant 0 : i32
    return %arg0, %c0_i32 : i32, i32
  }
  func.func @transform_2(%arg0: i32) -> (i32, i32) {
    %c0_i32 = arith.constant 0 : i32
    %c0_i32_0 = arith.constant 0 : i32
    %c0_i32_1 = arith.constant 0 : i32
    return %c0_i32, %c0_i32_0 : i32, i32
  }
  func.func @transform_3(%arg0: i32) -> (i32, i32, i32) {
    %c0_i32 = arith.constant 0 : i32
    %c0_i32_0 = arith.constant 0 : i32
    %c0_i32_1 = arith.constant 0 : i32
    %c0_i32_2 = arith.constant 0 : i32
    return %c0_i32, %c0_i32_0, %c0_i32_1 : i32, i32, i32
  }
  func.func @transform_4(%arg0: i32) -> (i32, i32, i32) {
    %c0_i32 = arith.constant 0 : i32
    %c0_i32_0 = arith.constant 0 : i32
    %c0_i32_1 = arith.constant 0 : i32
    %c0_i32_2 = arith.constant 0 : i32
    return %c0_i32, %c0_i32_0, %c0_i32_1 : i32, i32, i32
  }
  func.func @transform_5(%arg0: i32) -> (i32, i32) {
    %c0_i32 = arith.constant 0 : i32
    %c0_i32_0 = arith.constant 0 : i32
    %c0_i32_1 = arith.constant 0 : i32
    return %c0_i32, %c0_i32_0 : i32, i32
  }
  func.func @transform_6(%arg0: i32) -> (i32, i32) {
    %c0_i32 = arith.constant 0 : i32
    %c0_i32_0 = arith.constant 0 : i32
    %c0_i32_1 = arith.constant 0 : i32
    return %c0_i32, %c0_i32_0 : i32, i32
  }
  func.func @transform_7(%arg0: i32) -> (i32, i32) {
    %c0_i32 = arith.constant 0 : i32
    %c0_i32_0 = arith.constant 0 : i32
    %c0_i32_1 = arith.constant 0 : i32
    return %c0_i32, %c0_i32_0 : i32, i32
  }
  func.func @transform_8(%arg0: i32) -> (i32, i32) {
    %c0_i32 = arith.constant 0 : i32
    %c0_i32_0 = arith.constant 0 : i32
    %c0_i32_1 = arith.constant 0 : i32
    return %c0_i32, %c0_i32_0 : i32, i32
  }
  func.func @transform_9(%arg0: i32) -> (i32, i32) {
    %c0_i32 = arith.constant 0 : i32
    %c0_i32_0 = arith.constant 0 : i32
    %c0_i32_1 = arith.constant 0 : i32
    return %c0_i32, %c0_i32_0 : i32, i32
  }
  func.func @transform_10(%arg0: i32) -> (i32, i32) {
    %c0_i32 = arith.constant 0 : i32
    %c0_i32_0 = arith.constant 0 : i32
    return %arg0, %c0_i32 : i32, i32
  }
}

module attributes {stable_mosaic.version = 11 : i64} {
  func.func @_fc_out_kernel(%arg0: i32, %arg1: memref<256x32xf32, #tpu.memory_space<vmem>>, %arg2: memref<256x32xf32, #tpu.memory_space<vmem>>, %arg3: memref<256x32xf32, #tpu.memory_space<vmem>>, %arg4: memref<32x32xbf16, #tpu.memory_space<vmem>>, %arg5: memref<32x32xbf16, #tpu.memory_space<vmem>>, %arg6: memref<32x32xbf16, #tpu.memory_space<vmem>>, %arg7: memref<1x32xf32, #tpu.memory_space<vmem>>, %arg8: memref<256x32xf32, #tpu.memory_space<vmem>>) attributes {dimension_semantics = [#tpu.dimension_semantics<parallel>], iteration_bounds = array<i64: 1>, scalar_prefetch = 0 : i64, scratch_operands = 0 : i64, tpu.core_type = #tpu.core_type<tc>, window_params = [{transform_indices = @transform_0, window_bounds = array<i64: 256, 32>}, {transform_indices = @transform_1, window_bounds = array<i64: 256, 32>}, {transform_indices = @transform_2, window_bounds = array<i64: 256, 32>}, {pipeline_mode = #tpu.pipeline_mode<synchronous>, transform_indices = @transform_3, window_bounds = array<i64: 32, 32>}, {pipeline_mode = #tpu.pipeline_mode<synchronous>, transform_indices = @transform_4, window_bounds = array<i64: 32, 32>}, {pipeline_mode = #tpu.pipeline_mode<synchronous>, transform_indices = @transform_5, window_bounds = array<i64: 32, 32>}, {pipeline_mode = #tpu.pipeline_mode<synchronous>, transform_indices = @transform_6, window_bounds = array<i64: 1, 32>}, {transform_indices = @transform_7, window_bounds = array<i64: 256, 32>}]} {
    %c0 = arith.constant 0 : index
    %c0_0 = arith.constant 0 : index
    %0 = vector.load %arg1[%c0, %c0_0] : memref<256x32xf32, #tpu.memory_space<vmem>>, vector<256x32xf32>
    %1 = arith.truncf %0 : vector<256x32xf32> to vector<256x32xbf16>
    %c0_1 = arith.constant 0 : index
    %c0_2 = arith.constant 0 : index
    %2 = vector.load %arg4[%c0_1, %c0_2] : memref<32x32xbf16, #tpu.memory_space<vmem>>, vector<32x32xbf16>
    %cst = arith.constant dense<0.000000e+00> : vector<256x32xf32>
    %3 = tpu.matmul %1, %2, %cst {dimension_numbers = #tpu.dot_dimension_numbers<[1], [0], [0], [1], [0, 0, 1, 1], [], []>} : vector<256x32xbf16>, vector<32x32xbf16>, vector<256x32xf32> -> vector<256x32xf32>
    %c0_3 = arith.constant 0 : index
    %c0_4 = arith.constant 0 : index
    %4 = vector.load %arg2[%c0_3, %c0_4] : memref<256x32xf32, #tpu.memory_space<vmem>>, vector<256x32xf32>
    %5 = arith.truncf %4 : vector<256x32xf32> to vector<256x32xbf16>
    %c0_5 = arith.constant 0 : index
    %c0_6 = arith.constant 0 : index
    %6 = vector.load %arg5[%c0_5, %c0_6] : memref<32x32xbf16, #tpu.memory_space<vmem>>, vector<32x32xbf16>
    %cst_7 = arith.constant dense<0.000000e+00> : vector<256x32xf32>
    %7 = tpu.matmul %5, %6, %cst_7 {dimension_numbers = #tpu.dot_dimension_numbers<[1], [0], [0], [1], [0, 0, 1, 1], [], []>} : vector<256x32xbf16>, vector<32x32xbf16>, vector<256x32xf32> -> vector<256x32xf32>
    %8 = arith.addf %3, %7 : vector<256x32xf32>
    %c0_8 = arith.constant 0 : index
    %c0_9 = arith.constant 0 : index
    %9 = vector.load %arg3[%c0_8, %c0_9] : memref<256x32xf32, #tpu.memory_space<vmem>>, vector<256x32xf32>
    %10 = arith.truncf %9 : vector<256x32xf32> to vector<256x32xbf16>
    %c0_10 = arith.constant 0 : index
    %c0_11 = arith.constant 0 : index
    %11 = vector.load %arg6[%c0_10, %c0_11] : memref<32x32xbf16, #tpu.memory_space<vmem>>, vector<32x32xbf16>
    %cst_12 = arith.constant dense<0.000000e+00> : vector<256x32xf32>
    %12 = tpu.matmul %10, %11, %cst_12 {dimension_numbers = #tpu.dot_dimension_numbers<[1], [0], [0], [1], [0, 0, 1, 1], [], []>} : vector<256x32xbf16>, vector<32x32xbf16>, vector<256x32xf32> -> vector<256x32xf32>
    %13 = arith.addf %8, %12 : vector<256x32xf32>
    %c0_13 = arith.constant 0 : index
    %c0_14 = arith.constant 0 : index
    %14 = vector.load %arg7[%c0_13, %c0_14] : memref<1x32xf32, #tpu.memory_space<vmem>>, vector<1x32xf32>
    %15 = vector.broadcast %14 : vector<1x32xf32> to vector<256x32xf32>
    %16 = arith.addf %13, %15 : vector<256x32xf32>
    %c0_15 = arith.constant 0 : index
    %c0_16 = arith.constant 0 : index
    %17 = vector.load %arg8[%c0_15, %c0_16] : memref<256x32xf32, #tpu.memory_space<vmem>>, vector<256x32xf32>
    tpu.vector_store %arg8[%c0_15, %c0_16], %16 {strides = array<i32>} : memref<256x32xf32, #tpu.memory_space<vmem>>, vector<256x32xf32>,
    return
  }
  func.func @transform_0(%arg0: i32) -> (i32, i32) {
    %c0_i32 = arith.constant 0 : i32
    %c0_i32_0 = arith.constant 0 : i32
    return %arg0, %c0_i32 : i32, i32
  }
  func.func @transform_1(%arg0: i32) -> (i32, i32) {
    %c0_i32 = arith.constant 0 : i32
    %c0_i32_0 = arith.constant 0 : i32
    return %arg0, %c0_i32 : i32, i32
  }
  func.func @transform_2(%arg0: i32) -> (i32, i32) {
    %c0_i32 = arith.constant 0 : i32
    %c0_i32_0 = arith.constant 0 : i32
    return %arg0, %c0_i32 : i32, i32
  }
  func.func @transform_3(%arg0: i32) -> (i32, i32) {
    %c0_i32 = arith.constant 0 : i32
    %c0_i32_0 = arith.constant 0 : i32
    %c0_i32_1 = arith.constant 0 : i32
    return %c0_i32, %c0_i32_0 : i32, i32
  }
  func.func @transform_4(%arg0: i32) -> (i32, i32) {
    %c0_i32 = arith.constant 0 : i32
    %c0_i32_0 = arith.constant 0 : i32
    %c0_i32_1 = arith.constant 0 : i32
    return %c0_i32, %c0_i32_0 : i32, i32
  }
  func.func @transform_5(%arg0: i32) -> (i32, i32) {
    %c0_i32 = arith.constant 0 : i32
    %c0_i32_0 = arith.constant 0 : i32
    %c0_i32_1 = arith.constant 0 : i32
    return %c0_i32, %c0_i32_0 : i32, i32
  }
  func.func @transform_6(%arg0: i32) -> (i32, i32) {
    %c0_i32 = arith.constant 0 : i32
    %c0_i32_0 = arith.constant 0 : i32
    %c0_i32_1 = arith.constant 0 : i32
    return %c0_i32, %c0_i32_0 : i32, i32
  }
  func.func @transform_7(%arg0: i32) -> (i32, i32) {
    %c0_i32 = arith.constant 0 : i32
    %c0_i32_0 = arith.constant 0 : i32
    return %arg0, %c0_i32 : i32, i32
  }
}

</mosaic_0001>

<llo_original>
// kernel: reverse.4
$region0: #{reverse.4}
  %s0 = inlined_call_operand.vmem [shape: s32[256,3], index: 0, kind: input, shape index: {}]
  %s1 = inlined_call_operand.vmem [shape: s32[256,3], index: 1, kind: output, shape index: {}]
  %v2 = vlaneseq
  %v3 = vsub.s32 2, %v2
  %4 = vset.pattern.permute.xlu0 %v3
  $region1: #{reverse.4} parent=0
    #allocation0 [shape = 'u8[131072]{0}', space=vmem, size = 0x20000, scoped, tag = 'operand span for operand 0']
    #allocation1 [shape = 'u8[131072]{0}', space=vmem, size = 0x20000, scoped, tag = 'operand span for operand 1']
    loop: start=0, step=1, limit=4
    $region2: #{reverse.4} parent=1 // loop_pre_header
      _
    $region3: #{reverse.4} parent=1 // loop_header
      %s6 = sphi 0, %s10
      %p7 = scmp.ge.s32.totalorder %s6, 4
      %s13 = sphi 0, %s25
      %s14 = sphi 0, %s21
      %s15 = sphi 0, %s13
      %s16 = sphi 0, %s14
      %s17 = sphi 0, %s15
      %s18 = sphi 0, %s16
    $region4: #{reverse.4} parent=1 // loop_header_branch
      %9 = sbr.rel (%p7) target = $region8
    $region5: #{reverse.4} parent=1 // loop_body
      %s11 = ssub.s32 %s6, 1
      %s12 = ssub.s32 %s6, 2
      %s19 = sadd.s32 1, %s14
      %p20 = scmp.ge.s32.totalorder %s19, 1
      %s21 = scalar_select %p20, 0, %s19
      %s22 = sadd.s32 1, %s13
      %s23 = scalar_select %p20, %s22, %s13
      %p24 = scmp.ge.s32.totalorder %s23, 2
      %s25 = scalar_select %p24, 0, %s23
      %p26 = scmp.le.s32.totalorder 1, %s6
      %p27 = scmp.lt.s32.totalorder %s6, 3
      %p28 = pnand %p26, %p27
      %p29 = pneg %p28
      // Predicated region
      $region9: #{reverse.4} parent=5 // pred_check
        _
      $region10: #{reverse.4} parent=5 // pred_check_branch
        %31 = sbr.rel (%p28) target = $region12
      $region11: #{reverse.4} parent=5 // pred_region
        %s32 = ssub.s32 %s6, 1
      $region12: #{reverse.4} parent=5 // pred_fallthru
        _
      %p33 = scmp.lt.s32.totalorder %s6, 2
      // Predicated region
      $region13: #{reverse.4} parent=5 // pred_check
        %p34 = pneg %p33
      $region14: #{reverse.4} parent=5 // pred_check_branch
        %36 = sbr.rel (%p34) target = $region16
      $region15: #{reverse.4} parent=5 // pred_region
        %s37 = sand.u32 %s6, 1
        %s38 = sand.u32 %s6, 1
        %s39 = smul.addr %s38, 128
        %s40 = scalar_lea.vmem [#allocation0], %s39
        %s41 = ssub.s32 0, %s14
        %s42 = smul.u32 16, %s13
        %s43 = sadd.s32 %s41, %s42
        %s44 = smul.addr %s43, 8
        %s45 = scalar_lea.vmem %s0, %s44
        // Predicated region
        $region17: #{reverse.4} parent=15 // pred_check
          _
        $region18: #{reverse.4} parent=15 // pred_check_branch
          %47 = sbr.rel (0) target = $region20
        $region19: #{reverse.4} parent=15 // pred_region
          // Predicated region
          $region21: #{reverse.4} parent=19 // pred_check
            _
          $region22: #{reverse.4} parent=19 // pred_check_branch
            %49 = sbr.rel (0) target = $region24
          $region23: #{reverse.4} parent=19 // pred_region
            // Predicated region
            $region36: #{reverse.4} parent=23 // pred_check
              _
            $region37: #{reverse.4} parent=23 // pred_check_branch
              %94 = sbr.rel (0) target = $region39
            $region38: #{reverse.4} parent=23 // pred_region
              loop: start=0, step=1, limit=1
              $region40: #{reverse.4} parent=38 // loop_pre_header
                _
              $region41: #{reverse.4} parent=38 // loop_header
                %s96 = sphi 0, %s100
                %p97 = scmp.ge.s32.totalorder %s96, 1
                %s101 = sphi %s45, %s45
                %s102 = sphi %s40, %s40
              $region42: #{reverse.4} parent=38 // loop_header_branch
                %99 = sbr.rel (%p97) target = $region46
              $region43: #{reverse.4} parent=38 // loop_body
                %v103 = vld [vmem:[%s101] sm:$0xff]
                %104 = vst [vmem:[%s102] sm:$0xff] %v103
                %v105 = vld [vmem:[%s101 + $0x8] sm:$0xff]
                %106 = vst [vmem:[%s102 + $0x8] sm:$0xff] %v105
                %v107 = vld [vmem:[%s101 + $0x10] sm:$0xff]
                %108 = vst [vmem:[%s102 + $0x10] sm:$0xff] %v107
                %v109 = vld [vmem:[%s101 + $0x18] sm:$0xff]
                %110 = vst [vmem:[%s102 + $0x18] sm:$0xff] %v109
                %v111 = vld [vmem:[%s101 + $0x20] sm:$0xff]
                %112 = vst [vmem:[%s102 + $0x20] sm:$0xff] %v111
                %v113 = vld [vmem:[%s101 + $0x28] sm:$0xff]
                %114 = vst [vmem:[%s102 + $0x28] sm:$0xff] %v113
                %v115 = vld [vmem:[%s101 + $0x30] sm:$0xff]
                %116 = vst [vmem:[%s102 + $0x30] sm:$0xff] %v115
                %v117 = vld [vmem:[%s101 + $0x38] sm:$0xff]
                %118 = vst [vmem:[%s102 + $0x38] sm:$0xff] %v117
                %v119 = vld [vmem:[%s101 + $0x40] sm:$0xff]
                %120 = vst [vmem:[%s102 + $0x40] sm:$0xff] %v119
                %v121 = vld [vmem:[%s101 + $0x48] sm:$0xff]
                %122 = vst [vmem:[%s102 + $0x48] sm:$0xff] %v121
                %v123 = vld [vmem:[%s101 + $0x50] sm:$0xff]
                %124 = vst [vmem:[%s102 + $0x50] sm:$0xff] %v123
                %v125 = vld [vmem:[%s101 + $0x58] sm:$0xff]
                %126 = vst [vmem:[%s102 + $0x58] sm:$0xff] %v125
                %v127 = vld [vmem:[%s101 + $0x60] sm:$0xff]
                %128 = vst [vmem:[%s102 + $0x60] sm:$0xff] %v127
                %v129 = vld [vmem:[%s101 + $0x68] sm:$0xff]
                %130 = vst [vmem:[%s102 + $0x68] sm:$0xff] %v129
                %v131 = vld [vmem:[%s101 + $0x70] sm:$0xff]
                %132 = vst [vmem:[%s102 + $0x70] sm:$0xff] %v131
                %v133 = vld [vmem:[%s101 + $0x78] sm:$0xff]
                %134 = vst [vmem:[%s102 + $0x78] sm:$0xff] %v133
              $region44: #{reverse.4} parent=38 // loop_footer
                %s100 = sadd.s32 1, %s96
              $region45: #{reverse.4} parent=38 // loop_footer_branch
                %95 = sbr.rel target = $region41
              $region46: #{reverse.4} parent=38 // loop_exit
                _
            $region39: #{reverse.4} parent=23 // pred_fallthru
              _
            // Predicated region
            $region47: #{reverse.4} parent=23 // pred_check
              _
            $region48: #{reverse.4} parent=23 // pred_check_branch
              %136 = sbr.rel target = $region50
            $region49: #{reverse.4} parent=23 // pred_region
              _
            $region50: #{reverse.4} parent=23 // pred_fallthru
              _
          $region24: #{reverse.4} parent=19 // pred_fallthru
            _
          // Predicated region
          $region25: #{reverse.4} parent=19 // pred_check
            _
          $region26: #{reverse.4} parent=19 // pred_check_branch
            %51 = sbr.rel target = $region28
          $region27: #{reverse.4} parent=19 // pred_region
            loop: start=0, step=1, limit=1
            $region29: #{reverse.4} parent=27 // loop_pre_header
              _
            $region30: #{reverse.4} parent=27 // loop_header
              %s54 = sphi 0, %s58
              %p55 = scmp.ge.s32.totalorder %s54, 1
              %s59 = sphi %s45, %s45
              %s60 = sphi %s40, %s40
            $region31: #{reverse.4} parent=27 // loop_header_branch
              %57 = sbr.rel (%p55) target = $region35
            $region32: #{reverse.4} parent=27 // loop_body
              %v61 = vld [vmem:[%s59] sm:$0xff]
              %62 = vst [vmem:[%s60] sm:$0xff] %v61
              %v63 = vld [vmem:[%s59 + $0x8] sm:$0xff]
              %64 = vst [vmem:[%s60 + $0x8] sm:$0xff] %v63
              %v65 = vld [vmem:[%s59 + $0x10] sm:$0xff]
              %66 = vst [vmem:[%s60 + $0x10] sm:$0xff] %v65
              %v67 = vld [vmem:[%s59 + $0x18] sm:$0xff]
              %68 = vst [vmem:[%s60 + $0x18] sm:$0xff] %v67
              %v69 = vld [vmem:[%s59 + $0x20] sm:$0xff]
              %70 = vst [vmem:[%s60 + $0x20] sm:$0xff] %v69
              %v71 = vld [vmem:[%s59 + $0x28] sm:$0xff]
              %72 = vst [vmem:[%s60 + $0x28] sm:$0xff] %v71
              %v73 = vld [vmem:[%s59 + $0x30] sm:$0xff]
              %74 = vst [vmem:[%s60 + $0x30] sm:$0xff] %v73
              %v75 = vld [vmem:[%s59 + $0x38] sm:$0xff]
              %76 = vst [vmem:[%s60 + $0x38] sm:$0xff] %v75
              %v77 = vld [vmem:[%s59 + $0x40] sm:$0xff]
              %78 = vst [vmem:[%s60 + $0x40] sm:$0xff] %v77
              %v79 = vld [vmem:[%s59 + $0x48] sm:$0xff]
              %80 = vst [vmem:[%s60 + $0x48] sm:$0xff] %v79
              %v81 = vld [vmem:[%s59 + $0x50] sm:$0xff]
              %82 = vst [vmem:[%s60 + $0x50] sm:$0xff] %v81
              %v83 = vld [vmem:[%s59 + $0x58] sm:$0xff]
              %84 = vst [vmem:[%s60 + $0x58] sm:$0xff] %v83
              %v85 = vld [vmem:[%s59 + $0x60] sm:$0xff]
              %86 = vst [vmem:[%s60 + $0x60] sm:$0xff] %v85
              %v87 = vld [vmem:[%s59 + $0x68] sm:$0xff]
              %88 = vst [vmem:[%s60 + $0x68] sm:$0xff] %v87
              %v89 = vld [vmem:[%s59 + $0x70] sm:$0xff]
              %90 = vst [vmem:[%s60 + $0x70] sm:$0xff] %v89
              %v91 = vld [vmem:[%s59 + $0x78] sm:$0xff]
              %92 = vst [vmem:[%s60 + $0x78] sm:$0xff] %v91
            $region33: #{reverse.4} parent=27 // loop_footer
              %s58 = sadd.s32 1, %s54
            $region34: #{reverse.4} parent=27 // loop_footer_branch
              %53 = sbr.rel target = $region30
            $region35: #{reverse.4} parent=27 // loop_exit
              _
          $region28: #{reverse.4} parent=19 // pred_fallthru
            _
        $region20: #{reverse.4} parent=15 // pred_fallthru
          _
        %137 = vnop
      $region16: #{reverse.4} parent=5 // pred_fallthru
        _
      %p138 = scmp.le.s32.totalorder 1, %s6
      %p139 = scmp.lt.s32.totalorder %s6, 3
      %p140 = pnand %p138, %p139
      %p141 = pneg %p140
      // Predicated region
      $region51: #{reverse.4} parent=5 // pred_check
        _
      $region52: #{reverse.4} parent=5 // pred_check_branch
        %143 = sbr.rel (%p140) target = $region54
      $region53: #{reverse.4} parent=5 // pred_region
        %s144 = ssub.s32 %s6, 1
        %s145 = sand.u32 %s11, 1
        %s146 = sand.u32 %s11, 1
        %s147 = smul.addr %s146, 128
        %s148 = scalar_lea.vmem [#allocation0], %s147
        %s149 = sand.u32 %s11, 1
        %s150 = sand.u32 %s11, 1
        %s151 = smul.addr %s150, 128
        %s152 = scalar_lea.vmem [#allocation0], %s151
        %s153 = sand.u32 %s11, 1
        %s154 = sand.u32 %s11, 1
        %s155 = smul.addr %s154, 128
        %s156 = scalar_lea.vmem [#allocation1], %s155
        %s157 = ssub.s32 0, %s16
        %s158 = smul.u32 16, %s15
        %s159 = smul.u32 16, %s15
        %v160 = vld [vmem:[%s148] sm:$0xff]
        %161 = vperm.xlu0 %4, %v160
        %v162 = vpop.permute.xlu0 %161
        %163 = vst [vmem:[%s156] sm:$0xff] %v162
        %s164 = scalar_lea.vmem %s156, 8 [#allocation1]
        %s165 = scalar_lea.vmem %s148, 8 [#allocation0]
        %v166 = vld [vmem:[%s165] sm:$0xff]
        %167 = vperm.xlu0 %4, %v166
        %v168 = vpop.permute.xlu0 %167
        %169 = vst [vmem:[%s164] sm:$0xff] %v168
        %s170 = scalar_lea.vmem %s156, 16 [#allocation1]
        %s171 = scalar_lea.vmem %s148, 16 [#allocation0]
        %v172 = vld [vmem:[%s171] sm:$0xff]
        %173 = vperm.xlu0 %4, %v172
        %v174 = vpop.permute.xlu0 %173
        %175 = vst [vmem:[%s170] sm:$0xff] %v174
        %s176 = scalar_lea.vmem %s156, 24 [#allocation1]
        %s177 = scalar_lea.vmem %s148, 24 [#allocation0]
        %v178 = vld [vmem:[%s177] sm:$0xff]
        %179 = vperm.xlu0 %4, %v178
        %v180 = vpop.permute.xlu0 %179
        %181 = vst [vmem:[%s176] sm:$0xff] %v180
        %s182 = scalar_lea.vmem %s156, 32 [#allocation1]
        %s183 = scalar_lea.vmem %s148, 32 [#allocation0]
        %v184 = vld [vmem:[%s183] sm:$0xff]
        %185 = vperm.xlu0 %4, %v184
        %v186 = vpop.permute.xlu0 %185
        %187 = vst [vmem:[%s182] sm:$0xff] %v186
        %s188 = scalar_lea.vmem %s156, 40 [#allocation1]
        %s189 = scalar_lea.vmem %s148, 40 [#allocation0]
        %v190 = vld [vmem:[%s189] sm:$0xff]
        %191 = vperm.xlu0 %4, %v190
        %v192 = vpop.permute.xlu0 %191
        %193 = vst [vmem:[%s188] sm:$0xff] %v192
        %s194 = scalar_lea.vmem %s156, 48 [#allocation1]
        %s195 = scalar_lea.vmem %s148, 48 [#allocation0]
        %v196 = vld [vmem:[%s195] sm:$0xff]
        %197 = vperm.xlu0 %4, %v196
        %v198 = vpop.permute.xlu0 %197
        %199 = vst [vmem:[%s194] sm:$0xff] %v198
        %s200 = scalar_lea.vmem %s156, 56 [#allocation1]
        %s201 = scalar_lea.vmem %s148, 56 [#allocation0]
        %v202 = vld [vmem:[%s201] sm:$0xff]
        %203 = vperm.xlu0 %4, %v202
        %v204 = vpop.permute.xlu0 %203
        %205 = vst [vmem:[%s200] sm:$0xff] %v204
        %s206 = scalar_lea.vmem %s156, 64 [#allocation1]
        %s207 = scalar_lea.vmem %s148, 64 [#allocation0]
        %v208 = vld [vmem:[%s207] sm:$0xff]
        %209 = vperm.xlu0 %4, %v208
        %v210 = vpop.permute.xlu0 %209
        %211 = vst [vmem:[%s206] sm:$0xff] %v210
        %s212 = scalar_lea.vmem %s156, 72 [#allocation1]
        %s213 = scalar_lea.vmem %s148, 72 [#allocation0]
        %v214 = vld [vmem:[%s213] sm:$0xff]
        %215 = vperm.xlu0 %4, %v214
        %v216 = vpop.permute.xlu0 %215
        %217 = vst [vmem:[%s212] sm:$0xff] %v216
        %s218 = scalar_lea.vmem %s156, 80 [#allocation1]
        %s219 = scalar_lea.vmem %s148, 80 [#allocation0]
        %v220 = vld [vmem:[%s219] sm:$0xff]
        %221 = vperm.xlu0 %4, %v220
        %v222 = vpop.permute.xlu0 %221
        %223 = vst [vmem:[%s218] sm:$0xff] %v222
        %s224 = scalar_lea.vmem %s156, 88 [#allocation1]
        %s225 = scalar_lea.vmem %s148, 88 [#allocation0]
        %v226 = vld [vmem:[%s225] sm:$0xff]
        %227 = vperm.xlu0 %4, %v226
        %v228 = vpop.permute.xlu0 %227
        %229 = vst [vmem:[%s224] sm:$0xff] %v228
        %s230 = scalar_lea.vmem %s156, 96 [#allocation1]
        %s231 = scalar_lea.vmem %s148, 96 [#allocation0]
        %v232 = vld [vmem:[%s231] sm:$0xff]
        %233 = vperm.xlu0 %4, %v232
        %v234 = vpop.permute.xlu0 %233
        %235 = vst [vmem:[%s230] sm:$0xff] %v234
        %s236 = scalar_lea.vmem %s156, 104 [#allocation1]
        %s237 = scalar_lea.vmem %s148, 104 [#allocation0]
        %v238 = vld [vmem:[%s237] sm:$0xff]
        %239 = vperm.xlu0 %4, %v238
        %v240 = vpop.permute.xlu0 %239
        %241 = vst [vmem:[%s236] sm:$0xff] %v240
        %s242 = scalar_lea.vmem %s156, 112 [#allocation1]
        %s243 = scalar_lea.vmem %s148, 112 [#allocation0]
        %v244 = vld [vmem:[%s243] sm:$0xff]
        %245 = vperm.xlu0 %4, %v244
        %v246 = vpop.permute.xlu0 %245
        %247 = vst [vmem:[%s242] sm:$0xff] %v246
        %s248 = scalar_lea.vmem %s156, 120 [#allocation1]
        %s249 = scalar_lea.vmem %s148, 120 [#allocation0]
        %v250 = vld [vmem:[%s249] sm:$0xff]
        %251 = vperm.xlu0 %4, %v250
        %v252 = vpop.permute.xlu0 %251
        %253 = vst [vmem:[%s248] sm:$0xff] %v252
        %s254 = sand.u32 %s11, 1
        %s255 = sand.u32 %s11, 1
        %s256 = smul.addr %s255, 128
        %s257 = scalar_lea.vmem [#allocation1], %s256
        %s258 = smul.u32 16, %s15
        %s259 = sadd.s32 %s16, %s258
        %s260 = smul.addr %s259, 8
        %s261 = scalar_lea.vmem %s1, %s260
        // Predicated region
        $region55: #{reverse.4} parent=53 // pred_check
          _
        $region56: #{reverse.4} parent=53 // pred_check_branch
          %263 = sbr.rel (0) target = $region58
        $region57: #{reverse.4} parent=53 // pred_region
          // Predicated region
          $region59: #{reverse.4} parent=57 // pred_check
            _
          $region60: #{reverse.4} parent=57 // pred_check_branch
            %265 = sbr.rel (0) target = $region62
          $region61: #{reverse.4} parent=57 // pred_region
            // Predicated region
            $region74: #{reverse.4} parent=61 // pred_check
              _
            $region75: #{reverse.4} parent=61 // pred_check_branch
              %310 = sbr.rel (0) target = $region77
            $region76: #{reverse.4} parent=61 // pred_region
              loop: start=0, step=1, limit=1
              $region78: #{reverse.4} parent=76 // loop_pre_header
                _
              $region79: #{reverse.4} parent=76 // loop_header
                %s312 = sphi 0, %s316
                %p313 = scmp.ge.s32.totalorder %s312, 1
                %s317 = sphi %s257, %s257
                %s318 = sphi %s261, %s261
              $region80: #{reverse.4} parent=76 // loop_header_branch
                %315 = sbr.rel (%p313) target = $region84
              $region81: #{reverse.4} parent=76 // loop_body
                %v319 = vld [vmem:[%s317] sm:$0xff]
                %320 = vst [vmem:[%s318] sm:$0xff] %v319
                %v321 = vld [vmem:[%s317 + $0x8] sm:$0xff]
                %322 = vst [vmem:[%s318 + $0x8] sm:$0xff] %v321
                %v323 = vld [vmem:[%s317 + $0x10] sm:$0xff]
                %324 = vst [vmem:[%s318 + $0x10] sm:$0xff] %v323
                %v325 = vld [vmem:[%s317 + $0x18] sm:$0xff]
                %326 = vst [vmem:[%s318 + $0x18] sm:$0xff] %v325
                %v327 = vld [vmem:[%s317 + $0x20] sm:$0xff]
                %328 = vst [vmem:[%s318 + $0x20] sm:$0xff] %v327
                %v329 = vld [vmem:[%s317 + $0x28] sm:$0xff]
                %330 = vst [vmem:[%s318 + $0x28] sm:$0xff] %v329
                %v331 = vld [vmem:[%s317 + $0x30] sm:$0xff]
                %332 = vst [vmem:[%s318 + $0x30] sm:$0xff] %v331
                %v333 = vld [vmem:[%s317 + $0x38] sm:$0xff]
                %334 = vst [vmem:[%s318 + $0x38] sm:$0xff] %v333
                %v335 = vld [vmem:[%s317 + $0x40] sm:$0xff]
                %336 = vst [vmem:[%s318 + $0x40] sm:$0xff] %v335
                %v337 = vld [vmem:[%s317 + $0x48] sm:$0xff]
                %338 = vst [vmem:[%s318 + $0x48] sm:$0xff] %v337
                %v339 = vld [vmem:[%s317 + $0x50] sm:$0xff]
                %340 = vst [vmem:[%s318 + $0x50] sm:$0xff] %v339
                %v341 = vld [vmem:[%s317 + $0x58] sm:$0xff]
                %342 = vst [vmem:[%s318 + $0x58] sm:$0xff] %v341
                %v343 = vld [vmem:[%s317 + $0x60] sm:$0xff]
                %344 = vst [vmem:[%s318 + $0x60] sm:$0xff] %v343
                %v345 = vld [vmem:[%s317 + $0x68] sm:$0xff]
                %346 = vst [vmem:[%s318 + $0x68] sm:$0xff] %v345
                %v347 = vld [vmem:[%s317 + $0x70] sm:$0xff]
                %348 = vst [vmem:[%s318 + $0x70] sm:$0xff] %v347
                %v349 = vld [vmem:[%s317 + $0x78] sm:$0xff]
                %350 = vst [vmem:[%s318 + $0x78] sm:$0xff] %v349
              $region82: #{reverse.4} parent=76 // loop_footer
                %s316 = sadd.s32 1, %s312
              $region83: #{reverse.4} parent=76 // loop_footer_branch
                %311 = sbr.rel target = $region79
              $region84: #{reverse.4} parent=76 // loop_exit
                _
            $region77: #{reverse.4} parent=61 // pred_fallthru
              _
            // Predicated region
            $region85: #{reverse.4} parent=61 // pred_check
              _
            $region86: #{reverse.4} parent=61 // pred_check_branch
              %352 = sbr.rel target = $region88
            $region87: #{reverse.4} parent=61 // pred_region
              _
            $region88: #{reverse.4} parent=61 // pred_fallthru
              _
          $region62: #{reverse.4} parent=57 // pred_fallthru
            _
          // Predicated region
          $region63: #{reverse.4} parent=57 // pred_check
            _
          $region64: #{reverse.4} parent=57 // pred_check_branch
            %267 = sbr.rel target = $region66
          $region65: #{reverse.4} parent=57 // pred_region
            loop: start=0, step=1, limit=1
            $region67: #{reverse.4} parent=65 // loop_pre_header
              _
            $region68: #{reverse.4} parent=65 // loop_header
              %s270 = sphi 0, %s274
              %p271 = scmp.ge.s32.totalorder %s270, 1
              %s275 = sphi %s257, %s257
              %s276 = sphi %s261, %s261
            $region69: #{reverse.4} parent=65 // loop_header_branch
              %273 = sbr.rel (%p271) target = $region73
            $region70: #{reverse.4} parent=65 // loop_body
              %v277 = vld [vmem:[%s275] sm:$0xff]
              %278 = vst [vmem:[%s276] sm:$0xff] %v277
              %v279 = vld [vmem:[%s275 + $0x8] sm:$0xff]
              %280 = vst [vmem:[%s276 + $0x8] sm:$0xff] %v279
              %v281 = vld [vmem:[%s275 + $0x10] sm:$0xff]
              %282 = vst [vmem:[%s276 + $0x10] sm:$0xff] %v281
              %v283 = vld [vmem:[%s275 + $0x18] sm:$0xff]
              %284 = vst [vmem:[%s276 + $0x18] sm:$0xff] %v283
              %v285 = vld [vmem:[%s275 + $0x20] sm:$0xff]
              %286 = vst [vmem:[%s276 + $0x20] sm:$0xff] %v285
              %v287 = vld [vmem:[%s275 + $0x28] sm:$0xff]
              %288 = vst [vmem:[%s276 + $0x28] sm:$0xff] %v287
              %v289 = vld [vmem:[%s275 + $0x30] sm:$0xff]
              %290 = vst [vmem:[%s276 + $0x30] sm:$0xff] %v289
              %v291 = vld [vmem:[%s275 + $0x38] sm:$0xff]
              %292 = vst [vmem:[%s276 + $0x38] sm:$0xff] %v291
              %v293 = vld [vmem:[%s275 + $0x40] sm:$0xff]
              %294 = vst [vmem:[%s276 + $0x40] sm:$0xff] %v293
              %v295 = vld [vmem:[%s275 + $0x48] sm:$0xff]
              %296 = vst [vmem:[%s276 + $0x48] sm:$0xff] %v295
              %v297 = vld [vmem:[%s275 + $0x50] sm:$0xff]
              %298 = vst [vmem:[%s276 + $0x50] sm:$0xff] %v297
              %v299 = vld [vmem:[%s275 + $0x58] sm:$0xff]
              %300 = vst [vmem:[%s276 + $0x58] sm:$0xff] %v299
              %v301 = vld [vmem:[%s275 + $0x60] sm:$0xff]
              %302 = vst [vmem:[%s276 + $0x60] sm:$0xff] %v301
              %v303 = vld [vmem:[%s275 + $0x68] sm:$0xff]
              %304 = vst [vmem:[%s276 + $0x68] sm:$0xff] %v303
              %v305 = vld [vmem:[%s275 + $0x70] sm:$0xff]
              %306 = vst [vmem:[%s276 + $0x70] sm:$0xff] %v305
              %v307 = vld [vmem:[%s275 + $0x78] sm:$0xff]
              %308 = vst [vmem:[%s276 + $0x78] sm:$0xff] %v307
            $region71: #{reverse.4} parent=65 // loop_footer
              %s274 = sadd.s32 1, %s270
            $region72: #{reverse.4} parent=65 // loop_footer_branch
              %269 = sbr.rel target = $region68
            $region73: #{reverse.4} parent=65 // loop_exit
              _
          $region66: #{reverse.4} parent=57 // pred_fallthru
            _
        $region58: #{reverse.4} parent=53 // pred_fallthru
          _
        %353 = vnop
      $region54: #{reverse.4} parent=5 // pred_fallthru
        _
      %p354 = scmp.le.s32.totalorder 2, %s6
      // Predicated region
      $region89: #{reverse.4} parent=5 // pred_check
        %p355 = pneg %p354
      $region90: #{reverse.4} parent=5 // pred_check_branch
        %357 = sbr.rel (%p355) target = $region92
      $region91: #{reverse.4} parent=5 // pred_region
        %s358 = ssub.s32 %s6, 2
        %s359 = sand.u32 %s12, 1
        %s360 = sand.u32 %s12, 1
        %s361 = smul.addr %s360, 128
        %s362 = scalar_lea.vmem [#allocation1], %s361
      $region92: #{reverse.4} parent=5 // pred_fallthru
        _
    $region6: #{reverse.4} parent=1 // loop_footer
      %s10 = sadd.s32 1, %s6
    $region7: #{reverse.4} parent=1 // loop_footer_branch
      %5 = sbr.rel target = $region3
    $region8: #{reverse.4} parent=1 // loop_exit
      _

// kernel: _sgb_forward_impl.11
$region0: #{_sgb_forward_impl.11}
  #allocation0 [shape = 'u32[]', space=smem, size = 0x4, offset = 0x4, fixed_abs, tag = 'smem constant byte address 0x4 - core index']
  #allocation1 [shape = 'u32[144,128]{1,0:T(1,128)}', space=vmem, size = 0x12000, scoped, tag = 'internal scratch']
  %s0 = inlined_call_operand.vmem [shape: bf16[256,864], index: 0, kind: input, shape index: {}]
  %s1 = inlined_call_operand.vmem [shape: bf16[256,32], index: 1, kind: input, shape index: {}]
  %s2 = inlined_call_operand.vmem [shape: bf16[864,32], index: 2, kind: input, shape index: {}]
  %s3 = inlined_call_operand.vmem [shape: bf16[32,32], index: 3, kind: input, shape index: {}]
  %s4 = inlined_call_operand.vmem [shape: bf16[256,32], index: 4, kind: output, shape index: {0}]
  %s5 = inlined_call_operand.vmem [shape: bf16[256,32], index: 5, kind: output, shape index: {1}]
  %6 = xla_tuple %s4, %s5
  %s7 = sld [smem:[#allocation0]]
  $region34: #{_sgb_forward_impl.11} parent=0
    _
  %s9 = ssub.s32 1, %s7
  %s10 = scalar_select 0, %s9, %s7
  // Predicated region
  $region2: #{_sgb_forward_impl.11} parent=0 // pred_check
    _
  $region3: #{_sgb_forward_impl.11} parent=0 // pred_check_branch
    %12 = sbr.rel (0) target = $region5
  $region4: #{_sgb_forward_impl.11} parent=0 // pred_region
    _
  $region5: #{_sgb_forward_impl.11} parent=0 // pred_fallthru
    _
  // Predicated region
  $region6: #{_sgb_forward_impl.11} parent=0 // pred_check
    _
  $region7: #{_sgb_forward_impl.11} parent=0 // pred_check_branch
    %14 = sbr.rel (0) target = $region9
  $region8: #{_sgb_forward_impl.11} parent=0 // pred_region
    _
  $region9: #{_sgb_forward_impl.11} parent=0 // pred_fallthru
    _
  // Predicated region
  $region10: #{_sgb_forward_impl.11} parent=0 // pred_check
    _
  $region11: #{_sgb_forward_impl.11} parent=0 // pred_check_branch
    %16 = sbr.rel (0) target = $region13
  $region12: #{_sgb_forward_impl.11} parent=0 // pred_region
    _
  $region13: #{_sgb_forward_impl.11} parent=0 // pred_fallthru
    _
  // Predicated region
  $region14: #{_sgb_forward_impl.11} parent=0 // pred_check
    _
  $region15: #{_sgb_forward_impl.11} parent=0 // pred_check_branch
    %18 = sbr.rel (0) target = $region17
  $region16: #{_sgb_forward_impl.11} parent=0 // pred_region
    _
  $region17: #{_sgb_forward_impl.11} parent=0 // pred_fallthru
    _
  %v20 = vld [vmem:[%s0] sm:$0xff]
  %v21 = vld [vmem:[%s0 + $0x8] sm:$0xff]
  %v22 = vld [vmem:[%s0 + $0x10] sm:$0xff]
  %v23 = vld [vmem:[%s0 + $0x18] sm:$0xf]
  %v24 = vld [vmem:[%s0 + $0x1c] sm:$0xff]
  %v25 = vld [vmem:[%s0 + $0x24] sm:$0xff]
  %v26 = vld [vmem:[%s0 + $0x2c] sm:$0xff]
  %v27 = vld [vmem:[%s0 + $0x34] sm:$0xf]
  %v28 = vld [vmem:[%s0 + $0x38] sm:$0xff]
  %v29 = vld [vmem:[%s0 + $0x40] sm:$0xff]
  %v30 = vld [vmem:[%s0 + $0x48] sm:$0xff]
  %v31 = vld [vmem:[%s0 + $0x50] sm:$0xf]
  %v32 = vld [vmem:[%s0 + $0x54] sm:$0xff]
  %v33 = vld [vmem:[%s0 + $0x5c] sm:$0xff]
  %v34 = vld [vmem:[%s0 + $0x64] sm:$0xff]
  %v35 = vld [vmem:[%s0 + $0x6c] sm:$0xf]
  %v36 = vld [vmem:[%s0 + $0x70] sm:$0xff]
  %v37 = vld [vmem:[%s0 + $0x78] sm:$0xff]
  %v38 = vld [vmem:[%s0 + $0x80] sm:$0xff]
  %v39 = vld [vmem:[%s0 + $0x88] sm:$0xf]
  %v40 = vld [vmem:[%s0 + $0x8c] sm:$0xff]
  %v41 = vld [vmem:[%s0 + $0x94] sm:$0xff]
  %v42 = vld [vmem:[%s0 + $0x9c] sm:$0xff]
  %v43 = vld [vmem:[%s0 + $0xa4] sm:$0xf]
  %v44 = vld [vmem:[%s0 + $0xa8] sm:$0xff]
  %v45 = vld [vmem:[%s0 + $0xb0] sm:$0xff]
  %v46 = vld [vmem:[%s0 + $0xb8] sm:$0xff]
  %v47 = vld [vmem:[%s0 + $0xc0] sm:$0xf]
  %v48 = vld [vmem:[%s0 + $0xc4] sm:$0xff]
  %v49 = vld [vmem:[%s0 + $0xcc] sm:$0xff]
  %v50 = vld [vmem:[%s0 + $0xd4] sm:$0xff]
  %v51 = vld [vmem:[%s0 + $0xdc] sm:$0xf]
  %v52 = vld [vmem:[%s0 + $0xe0] sm:$0xff]
  %v53 = vld [vmem:[%s0 + $0xe8] sm:$0xff]
  %v54 = vld [vmem:[%s0 + $0xf0] sm:$0xff]
  %v55 = vld [vmem:[%s0 + $0xf8] sm:$0xf]
  %v56 = vld [vmem:[%s0 + $0xfc] sm:$0xff]
  %v57 = vld [vmem:[%s0 + $0x104] sm:$0xff]
  %v58 = vld [vmem:[%s0 + $0x10c] sm:$0xff]
  %v59 = vld [vmem:[%s0 + $0x114] sm:$0xf]
  %v60 = vld [vmem:[%s0 + $0x118] sm:$0xff]
  %v61 = vld [vmem:[%s0 + $0x120] sm:$0xff]
  %v62 = vld [vmem:[%s0 + $0x128] sm:$0xff]
  %v63 = vld [vmem:[%s0 + $0x130] sm:$0xf]
  %v64 = vld [vmem:[%s0 + $0x134] sm:$0xff]
  %v65 = vld [vmem:[%s0 + $0x13c] sm:$0xff]
  %v66 = vld [vmem:[%s0 + $0x144] sm:$0xff]
  %v67 = vld [vmem:[%s0 + $0x14c] sm:$0xf]
  %v68 = vld [vmem:[%s0 + $0x150] sm:$0xff]
  %v69 = vld [vmem:[%s0 + $0x158] sm:$0xff]
  %v70 = vld [vmem:[%s0 + $0x160] sm:$0xff]
  %v71 = vld [vmem:[%s0 + $0x168] sm:$0xf]
  %v72 = vld [vmem:[%s0 + $0x16c] sm:$0xff]
  %v73 = vld [vmem:[%s0 + $0x174] sm:$0xff]
  %v74 = vld [vmem:[%s0 + $0x17c] sm:$0xff]
  %v75 = vld [vmem:[%s0 + $0x184] sm:$0xf]
  %v76 = vld [vmem:[%s0 + $0x188] sm:$0xff]
  %v77 = vld [vmem:[%s0 + $0x190] sm:$0xff]
  %v78 = vld [vmem:[%s0 + $0x198] sm:$0xff]
  %v79 = vld [vmem:[%s0 + $0x1a0] sm:$0xf]
  %v80 = vld [vmem:[%s0 + $0x1a4] sm:$0xff]
  %v81 = vld [vmem:[%s0 + $0x1ac] sm:$0xff]
  %v82 = vld [vmem:[%s0 + $0x1b4] sm:$0xff]
  %v83 = vld [vmem:[%s0 + $0x1bc] sm:$0xf]
  %v84 = vld [vmem:[%s0 + $0x1c0] sm:$0xff]
  %v85 = vld [vmem:[%s0 + $0x1c8] sm:$0xff]
  %v86 = vld [vmem:[%s0 + $0x1d0] sm:$0xff]
  %v87 = vld [vmem:[%s0 + $0x1d8] sm:$0xf]
  %v88 = vld [vmem:[%s0 + $0x1dc] sm:$0xff]
  %v89 = vld [vmem:[%s0 + $0x1e4] sm:$0xff]
  %v90 = vld [vmem:[%s0 + $0x1ec] sm:$0xff]
  %v91 = vld [vmem:[%s0 + $0x1f4] sm:$0xf]
  %v92 = vld [vmem:[%s0 + $0x1f8] sm:$0xff]
  %v93 = vld [vmem:[%s0 + $0x200] sm:$0xff]
  %v94 = vld [vmem:[%s0 + $0x208] sm:$0xff]
  %v95 = vld [vmem:[%s0 + $0x210] sm:$0xf]
  %v96 = vld [vmem:[%s0 + $0x214] sm:$0xff]
  %v97 = vld [vmem:[%s0 + $0x21c] sm:$0xff]
  %v98 = vld [vmem:[%s0 + $0x224] sm:$0xff]
  %v99 = vld [vmem:[%s0 + $0x22c] sm:$0xf]
  %v100 = vld [vmem:[%s0 + $0x230] sm:$0xff]
  %v101 = vld [vmem:[%s0 + $0x238] sm:$0xff]
  %v102 = vld [vmem:[%s0 + $0x240] sm:$0xff]
  %v103 = vld [vmem:[%s0 + $0x248] sm:$0xf]
  %v104 = vld [vmem:[%s0 + $0x24c] sm:$0xff]
  %v105 = vld [vmem:[%s0 + $0x254] sm:$0xff]
  %v106 = vld [vmem:[%s0 + $0x25c] sm:$0xff]
  %v107 = vld [vmem:[%s0 + $0x264] sm:$0xf]
  %v108 = vld [vmem:[%s0 + $0x268] sm:$0xff]
  %v109 = vld [vmem:[%s0 + $0x270] sm:$0xff]
  %v110 = vld [vmem:[%s0 + $0x278] sm:$0xff]
  %v111 = vld [vmem:[%s0 + $0x280] sm:$0xf]
  %v112 = vld [vmem:[%s0 + $0x284] sm:$0xff]
  %v113 = vld [vmem:[%s0 + $0x28c] sm:$0xff]
  %v114 = vld [vmem:[%s0 + $0x294] sm:$0xff]
  %v115 = vld [vmem:[%s0 + $0x29c] sm:$0xf]
  %v116 = vld [vmem:[%s0 + $0x2a0] sm:$0xff]
  %v117 = vld [vmem:[%s0 + $0x2a8] sm:$0xff]
  %v118 = vld [vmem:[%s0 + $0x2b0] sm:$0xff]
  %v119 = vld [vmem:[%s0 + $0x2b8] sm:$0xf]
  %v120 = vld [vmem:[%s0 + $0x2bc] sm:$0xff]
  %v121 = vld [vmem:[%s0 + $0x2c4] sm:$0xff]
  %v122 = vld [vmem:[%s0 + $0x2cc] sm:$0xff]
  %v123 = vld [vmem:[%s0 + $0x2d4] sm:$0xf]
  %v124 = vld [vmem:[%s0 + $0x2d8] sm:$0xff]
  %v125 = vld [vmem:[%s0 + $0x2e0] sm:$0xff]
  %v126 = vld [vmem:[%s0 + $0x2e8] sm:$0xff]
  %v127 = vld [vmem:[%s0 + $0x2f0] sm:$0xf]
  %v128 = vld [vmem:[%s0 + $0x2f4] sm:$0xff]
  %v129 = vld [vmem:[%s0 + $0x2fc] sm:$0xff]
  %v130 = vld [vmem:[%s0 + $0x304] sm:$0xff]
  %v131 = vld [vmem:[%s0 + $0x30c] sm:$0xf]
  %v132 = vld [vmem:[%s0 + $0x310] sm:$0xff]
  %v133 = vld [vmem:[%s0 + $0x318] sm:$0xff]
  %v134 = vld [vmem:[%s0 + $0x320] sm:$0xff]
  %v135 = vld [vmem:[%s0 + $0x328] sm:$0xf]
  %v136 = vld [vmem:[%s0 + $0x32c] sm:$0xff]
  %v137 = vld [vmem:[%s0 + $0x334] sm:$0xff]
  %v138 = vld [vmem:[%s0 + $0x33c] sm:$0xff]
  %v139 = vld [vmem:[%s0 + $0x344] sm:$0xf]
  %v140 = vld [vmem:[%s0 + $0x348] sm:$0xff]
  %v141 = vld [vmem:[%s0 + $0x350] sm:$0xff]
  %v142 = vld [vmem:[%s0 + $0x358] sm:$0xff]
  %v143 = vld [vmem:[%s0 + $0x360] sm:$0xf]
  %v144 = vld [vmem:[%s0 + $0x364] sm:$0xff]
  %v145 = vld [vmem:[%s0 + $0x36c] sm:$0xff]
  %v146 = vld [vmem:[%s0 + $0x374] sm:$0xff]
  %v147 = vld [vmem:[%s0 + $0x37c] sm:$0xf]
  %v148 = vld [vmem:[%s2] sm:$0xf]
  %v149 = vld [vmem:[%s2 + $0x4] sm:$0xf]
  %v150 = vld [vmem:[%s2 + $0x8] sm:$0xf]
  %v151 = vld [vmem:[%s2 + $0xc] sm:$0xf]
  %v152 = vld [vmem:[%s2 + $0x10] sm:$0xf]
  %v153 = vld [vmem:[%s2 + $0x14] sm:$0xf]
  %v154 = vld [vmem:[%s2 + $0x18] sm:$0xf]
  %v155 = vld [vmem:[%s2 + $0x1c] sm:$0xf]
  %v156 = vld [vmem:[%s2 + $0x20] sm:$0xf]
  %v157 = vld [vmem:[%s2 + $0x24] sm:$0xf]
  %v158 = vld [vmem:[%s2 + $0x28] sm:$0xf]
  %v159 = vld [vmem:[%s2 + $0x2c] sm:$0xf]
  %v160 = vld [vmem:[%s2 + $0x30] sm:$0xf]
  %v161 = vld [vmem:[%s2 + $0x34] sm:$0xf]
  %v162 = vld [vmem:[%s2 + $0x38] sm:$0xf]
  %v163 = vld [vmem:[%s2 + $0x3c] sm:$0xf]
  %v164 = vld [vmem:[%s2 + $0x40] sm:$0xf]
  %v165 = vld [vmem:[%s2 + $0x44] sm:$0xf]
  %v166 = vld [vmem:[%s2 + $0x48] sm:$0xf]
  %v167 = vld [vmem:[%s2 + $0x4c] sm:$0xf]
  %v168 = vld [vmem:[%s2 + $0x50] sm:$0xf]
  %v169 = vld [vmem:[%s2 + $0x54] sm:$0xf]
  %v170 = vld [vmem:[%s2 + $0x58] sm:$0xf]
  %v171 = vld [vmem:[%s2 + $0x5c] sm:$0xf]
  %v172 = vld [vmem:[%s2 + $0x60] sm:$0xf]
  %v173 = vld [vmem:[%s2 + $0x64] sm:$0xf]
  %v174 = vld [vmem:[%s2 + $0x68] sm:$0xf]
  %v175 = vld [vmem:[%s2 + $0x6c] sm:$0xf]
  %v176 = vld [vmem:[%s2 + $0x70] sm:$0xf]
  %v177 = vld [vmem:[%s2 + $0x74] sm:$0xf]
  %v178 = vld [vmem:[%s2 + $0x78] sm:$0xf]
  %v179 = vld [vmem:[%s2 + $0x7c] sm:$0xf]
  %v180 = vld [vmem:[%s2 + $0x80] sm:$0xf]
  %v181 = vld [vmem:[%s2 + $0x84] sm:$0xf]
  %v182 = vld [vmem:[%s2 + $0x88] sm:$0xf]
  %v183 = vld [vmem:[%s2 + $0x8c] sm:$0xf]
  %v184 = vld [vmem:[%s2 + $0x90] sm:$0xf]
  %v185 = vld [vmem:[%s2 + $0x94] sm:$0xf]
  %v186 = vld [vmem:[%s2 + $0x98] sm:$0xf]
  %v187 = vld [vmem:[%s2 + $0x9c] sm:$0xf]
  %v188 = vld [vmem:[%s2 + $0xa0] sm:$0xf]
  %v189 = vld [vmem:[%s2 + $0xa4] sm:$0xf]
  %v190 = vld [vmem:[%s2 + $0xa8] sm:$0xf]
  %v191 = vld [vmem:[%s2 + $0xac] sm:$0xf]
  %v192 = vld [vmem:[%s2 + $0xb0] sm:$0xf]
  %v193 = vld [vmem:[%s2 + $0xb4] sm:$0xf]
  %v194 = vld [vmem:[%s2 + $0xb8] sm:$0xf]
  %v195 = vld [vmem:[%s2 + $0xbc] sm:$0xf]
  %v196 = vld [vmem:[%s2 + $0xc0] sm:$0xf]
  %v197 = vld [vmem:[%s2 + $0xc4] sm:$0xf]
  %v198 = vld [vmem:[%s2 + $0xc8] sm:$0xf]
  %v199 = vld [vmem:[%s2 + $0xcc] sm:$0xf]
  %v200 = vld [vmem:[%s2 + $0xd0] sm:$0xf]
  %v201 = vld [vmem:[%s2 + $0xd4] sm:$0xf]
  %v202 = vld [vmem:[%s2 + $0xd8] sm:$0xf]
  %v203 = vld [vmem:[%s2 + $0xdc] sm:$0xf]
  %v204 = vld [vmem:[%s2 + $0xe0] sm:$0xf]
  %v205 = vld [vmem:[%s2 + $0xe4] sm:$0xf]
  %v206 = vld [vmem:[%s2 + $0xe8] sm:$0xf]
  %v207 = vld [vmem:[%s2 + $0xec] sm:$0xf]
  %v208 = vld [vmem:[%s2 + $0xf0] sm:$0xf]
  %v209 = vld [vmem:[%s2 + $0xf4] sm:$0xf]
  %v210 = vld [vmem:[%s2 + $0xf8] sm:$0xf]
  %v211 = vld [vmem:[%s2 + $0xfc] sm:$0xf]
  %v212 = vld [vmem:[%s2 + $0x100] sm:$0xf]
  %v213 = vld [vmem:[%s2 + $0x104] sm:$0xf]
  %v214 = vld [vmem:[%s2 + $0x108] sm:$0xf]
  %v215 = vld [vmem:[%s2 + $0x10c] sm:$0xf]
  %v216 = vld [vmem:[%s2 + $0x110] sm:$0xf]
  %v217 = vld [vmem:[%s2 + $0x114] sm:$0xf]
  %v218 = vld [vmem:[%s2 + $0x118] sm:$0xf]
  %v219 = vld [vmem:[%s2 + $0x11c] sm:$0xf]
  %v220 = vld [vmem:[%s2 + $0x120] sm:$0xf]
  %v221 = vld [vmem:[%s2 + $0x124] sm:$0xf]
  %v222 = vld [vmem:[%s2 + $0x128] sm:$0xf]
  %v223 = vld [vmem:[%s2 + $0x12c] sm:$0xf]
  %v224 = vld [vmem:[%s2 + $0x130] sm:$0xf]
  %v225 = vld [vmem:[%s2 + $0x134] sm:$0xf]
  %v226 = vld [vmem:[%s2 + $0x138] sm:$0xf]
  %v227 = vld [vmem:[%s2 + $0x13c] sm:$0xf]
  %v228 = vld [vmem:[%s2 + $0x140] sm:$0xf]
  %v229 = vld [vmem:[%s2 + $0x144] sm:$0xf]
  %v230 = vld [vmem:[%s2 + $0x148] sm:$0xf]
  %v231 = vld [vmem:[%s2 + $0x14c] sm:$0xf]
  %v232 = vld [vmem:[%s2 + $0x150] sm:$0xf]
  %v233 = vld [vmem:[%s2 + $0x154] sm:$0xf]
  %v234 = vld [vmem:[%s2 + $0x158] sm:$0xf]
  %v235 = vld [vmem:[%s2 + $0x15c] sm:$0xf]
  %v236 = vld [vmem:[%s2 + $0x160] sm:$0xf]
  %v237 = vld [vmem:[%s2 + $0x164] sm:$0xf]
  %v238 = vld [vmem:[%s2 + $0x168] sm:$0xf]
  %v239 = vld [vmem:[%s2 + $0x16c] sm:$0xf]
  %v240 = vld [vmem:[%s2 + $0x170] sm:$0xf]
  %v241 = vld [vmem:[%s2 + $0x174] sm:$0xf]
  %v242 = vld [vmem:[%s2 + $0x178] sm:$0xf]
  %v243 = vld [vmem:[%s2 + $0x17c] sm:$0xf]
  %v244 = vld [vmem:[%s2 + $0x180] sm:$0xf]
  %v245 = vld [vmem:[%s2 + $0x184] sm:$0xf]
  %v246 = vld [vmem:[%s2 + $0x188] sm:$0xf]
  %v247 = vld [vmem:[%s2 + $0x18c] sm:$0xf]
  %v248 = vld [vmem:[%s2 + $0x190] sm:$0xf]
  %v249 = vld [vmem:[%s2 + $0x194] sm:$0xf]
  %v250 = vld [vmem:[%s2 + $0x198] sm:$0xf]
  %v251 = vld [vmem:[%s2 + $0x19c] sm:$0xf]
  %v252 = vld [vmem:[%s2 + $0x1a0] sm:$0xf]
  %v253 = vld [vmem:[%s2 + $0x1a4] sm:$0xf]
  %v254 = vld [vmem:[%s2 + $0x1a8] sm:$0xf]
  %v255 = vld [vmem:[%s2 + $0x1ac] sm:$0xf]
  %v384 = vunpack.c.l.b16 %v20
  %v385 = vunpack.c.h.b16 %v20
  %v386 = vunpack.c.l.b16 %v21
  %v387 = vunpack.c.h.b16 %v21
  %v388 = vunpack.c.l.b16 %v22
  %v389 = vunpack.c.h.b16 %v22
  %v390 = vunpack.c.l.b16 %v23
  %v391 = vunpack.c.l.b16 %v24
  %v392 = vunpack.c.h.b16 %v24
  %v393 = vunpack.c.l.b16 %v25
  %v394 = vunpack.c.h.b16 %v25
  %v395 = vunpack.c.l.b16 %v26
  %v396 = vunpack.c.h.b16 %v26
  %v397 = vunpack.c.l.b16 %v27
  %v398 = vunpack.c.l.b16 %v28
  %v399 = vunpack.c.h.b16 %v28
  %v400 = vunpack.c.l.b16 %v29
  %v401 = vunpack.c.h.b16 %v29
  %v402 = vunpack.c.l.b16 %v30
  %v403 = vunpack.c.h.b16 %v30
  %v404 = vunpack.c.l.b16 %v31
  %v405 = vunpack.c.l.b16 %v32
  %v406 = vunpack.c.h.b16 %v32
  %v407 = vunpack.c.l.b16 %v33
  %v408 = vunpack.c.h.b16 %v33
  %v409 = vunpack.c.l.b16 %v34
  %v410 = vunpack.c.h.b16 %v34
  %v411 = vunpack.c.l.b16 %v35
  %v412 = vunpack.c.l.b16 %v36
  %v413 = vunpack.c.h.b16 %v36
  %v414 = vunpack.c.l.b16 %v37
  %v415 = vunpack.c.h.b16 %v37
  %v416 = vunpack.c.l.b16 %v38
  %v417 = vunpack.c.h.b16 %v38
  %v418 = vunpack.c.l.b16 %v39
  %v419 = vunpack.c.l.b16 %v40
  %v420 = vunpack.c.h.b16 %v40
  %v421 = vunpack.c.l.b16 %v41
  %v422 = vunpack.c.h.b16 %v41
  %v423 = vunpack.c.l.b16 %v42
  %v424 = vunpack.c.h.b16 %v42
  %v425 = vunpack.c.l.b16 %v43
  %v426 = vunpack.c.l.b16 %v44
  %v427 = vunpack.c.h.b16 %v44
  %v428 = vunpack.c.l.b16 %v45
  %v429 = vunpack.c.h.b16 %v45
  %v430 = vunpack.c.l.b16 %v46
  %v431 = vunpack.c.h.b16 %v46
  %v432 = vunpack.c.l.b16 %v47
  %v433 = vunpack.c.l.b16 %v48
  %v434 = vunpack.c.h.b16 %v48
  %v435 = vunpack.c.l.b16 %v49
  %v436 = vunpack.c.h.b16 %v49
  %v437 = vunpack.c.l.b16 %v50
  %v438 = vunpack.c.h.b16 %v50
  %v439 = vunpack.c.l.b16 %v51
  %v440 = vunpack.c.l.b16 %v52
  %v441 = vunpack.c.h.b16 %v52
  %v442 = vunpack.c.l.b16 %v53
  %v443 = vunpack.c.h.b16 %v53
  %v444 = vunpack.c.l.b16 %v54
  %v445 = vunpack.c.h.b16 %v54
  %v446 = vunpack.c.l.b16 %v55
  %v447 = vunpack.c.l.b16 %v56
  %v448 = vunpack.c.h.b16 %v56
  %v449 = vunpack.c.l.b16 %v57
  %v450 = vunpack.c.h.b16 %v57
  %v451 = vunpack.c.l.b16 %v58
  %v452 = vunpack.c.h.b16 %v58
  %v453 = vunpack.c.l.b16 %v59
  %v454 = vunpack.c.l.b16 %v60
  %v455 = vunpack.c.h.b16 %v60
  %v456 = vunpack.c.l.b16 %v61
  %v457 = vunpack.c.h.b16 %v61
  %v458 = vunpack.c.l.b16 %v62
  %v459 = vunpack.c.h.b16 %v62
  %v460 = vunpack.c.l.b16 %v63
  %v461 = vunpack.c.l.b16 %v64
  %v462 = vunpack.c.h.b16 %v64
  %v463 = vunpack.c.l.b16 %v65
  %v464 = vunpack.c.h.b16 %v65
  %v465 = vunpack.c.l.b16 %v66
  %v466 = vunpack.c.h.b16 %v66
  %v467 = vunpack.c.l.b16 %v67
  %v468 = vunpack.c.l.b16 %v68
  %v469 = vunpack.c.h.b16 %v68
  %v470 = vunpack.c.l.b16 %v69
  %v471 = vunpack.c.h.b16 %v69
  %v472 = vunpack.c.l.b16 %v70
  %v473 = vunpack.c.h.b16 %v70
  %v474 = vunpack.c.l.b16 %v71
  %v475 = vunpack.c.l.b16 %v72
  %v476 = vunpack.c.h.b16 %v72
  %v477 = vunpack.c.l.b16 %v73
  %v478 = vunpack.c.h.b16 %v73
  %v479 = vunpack.c.l.b16 %v74
  %v480 = vunpack.c.h.b16 %v74
  %v481 = vunpack.c.l.b16 %v75
  %v482 = vunpack.c.l.b16 %v76
  %v483 = vunpack.c.h.b16 %v76
  %v484 = vunpack.c.l.b16 %v77
  %v485 = vunpack.c.h.b16 %v77
  %v486 = vunpack.c.l.b16 %v78
  %v487 = vunpack.c.h.b16 %v78
  %v488 = vunpack.c.l.b16 %v79
  %v489 = vunpack.c.l.b16 %v80
  %v490 = vunpack.c.h.b16 %v80
  %v491 = vunpack.c.l.b16 %v81
  %v492 = vunpack.c.h.b16 %v81
  %v493 = vunpack.c.l.b16 %v82
  %v494 = vunpack.c.h.b16 %v82
  %v495 = vunpack.c.l.b16 %v83
  %v496 = vunpack.c.l.b16 %v84
  %v497 = vunpack.c.h.b16 %v84
  %v498 = vunpack.c.l.b16 %v85
  %v499 = vunpack.c.h.b16 %v85
  %v500 = vunpack.c.l.b16 %v86
  %v501 = vunpack.c.h.b16 %v86
  %v502 = vunpack.c.l.b16 %v87
  %v503 = vunpack.c.l.b16 %v88
  %v504 = vunpack.c.h.b16 %v88
  %v505 = vunpack.c.l.b16 %v89
  %v506 = vunpack.c.h.b16 %v89
  %v507 = vunpack.c.l.b16 %v90
  %v508 = vunpack.c.h.b16 %v90
  %v509 = vunpack.c.l.b16 %v91
  %v510 = vunpack.c.l.b16 %v92
  %v511 = vunpack.c.h.b16 %v92
  %v512 = vunpack.c.l.b16 %v93
  %v513 = vunpack.c.h.b16 %v93
  %v514 = vunpack.c.l.b16 %v94
  %v515 = vunpack.c.h.b16 %v94
  %v516 = vunpack.c.l.b16 %v95
  %v517 = vunpack.c.l.b16 %v96
  %v518 = vunpack.c.h.b16 %v96
  %v519 = vunpack.c.l.b16 %v97
  %v520 = vunpack.c.h.b16 %v97
  %v521 = vunpack.c.l.b16 %v98
  %v522 = vunpack.c.h.b16 %v98
  %v523 = vunpack.c.l.b16 %v99
  %v524 = vunpack.c.l.b16 %v100
  %v525 = vunpack.c.h.b16 %v100
  %v526 = vunpack.c.l.b16 %v101
  %v527 = vunpack.c.h.b16 %v101
  %v528 = vunpack.c.l.b16 %v102
  %v529 = vunpack.c.h.b16 %v102
  %v530 = vunpack.c.l.b16 %v103
  %v531 = vunpack.c.l.b16 %v104
  %v532 = vunpack.c.h.b16 %v104
  %v533 = vunpack.c.l.b16 %v105
  %v534 = vunpack.c.h.b16 %v105
  %v535 = vunpack.c.l.b16 %v106
  %v536 = vunpack.c.h.b16 %v106
  %v537 = vunpack.c.l.b16 %v107
  %v538 = vunpack.c.l.b16 %v108
  %v539 = vunpack.c.h.b16 %v108
  %v540 = vunpack.c.l.b16 %v109
  %v541 = vunpack.c.h.b16 %v109
  %v542 = vunpack.c.l.b16 %v110
  %v543 = vunpack.c.h.b16 %v110
  %v544 = vunpack.c.l.b16 %v111
  %v545 = vunpack.c.l.b16 %v112
  %v546 = vunpack.c.h.b16 %v112
  %v547 = vunpack.c.l.b16 %v113
  %v548 = vunpack.c.h.b16 %v113
  %v549 = vunpack.c.l.b16 %v114
  %v550 = vunpack.c.h.b16 %v114
  %v551 = vunpack.c.l.b16 %v115
  %v552 = vunpack.c.l.b16 %v116
  %v553 = vunpack.c.h.b16 %v116
  %v554 = vunpack.c.l.b16 %v117
  %v555 = vunpack.c.h.b16 %v117
  %v556 = vunpack.c.l.b16 %v118
  %v557 = vunpack.c.h.b16 %v118
  %v558 = vunpack.c.l.b16 %v119
  %v559 = vunpack.c.l.b16 %v120
  %v560 = vunpack.c.h.b16 %v120
  %v561 = vunpack.c.l.b16 %v121
  %v562 = vunpack.c.h.b16 %v121
  %v563 = vunpack.c.l.b16 %v122
  %v564 = vunpack.c.h.b16 %v122
  %v565 = vunpack.c.l.b16 %v123
  %v566 = vunpack.c.l.b16 %v124
  %v567 = vunpack.c.h.b16 %v124
  %v568 = vunpack.c.l.b16 %v125
  %v569 = vunpack.c.h.b16 %v125
  %v570 = vunpack.c.l.b16 %v126
  %v571 = vunpack.c.h.b16 %v126
  %v572 = vunpack.c.l.b16 %v127
  %v573 = vunpack.c.l.b16 %v128
  %v574 = vunpack.c.h.b16 %v128
  %v575 = vunpack.c.l.b16 %v129
  %v576 = vunpack.c.h.b16 %v129
  %v577 = vunpack.c.l.b16 %v130
  %v578 = vunpack.c.h.b16 %v130
  %v579 = vunpack.c.l.b16 %v131
  %v580 = vunpack.c.l.b16 %v132
  %v581 = vunpack.c.h.b16 %v132
  %v582 = vunpack.c.l.b16 %v133
  %v583 = vunpack.c.h.b16 %v133
  %v584 = vunpack.c.l.b16 %v134
  %v585 = vunpack.c.h.b16 %v134
  %v586 = vunpack.c.l.b16 %v135
  %v587 = vunpack.c.l.b16 %v136
  %v588 = vunpack.c.h.b16 %v136
  %v589 = vunpack.c.l.b16 %v137
  %v590 = vunpack.c.h.b16 %v137
  %v591 = vunpack.c.l.b16 %v138
  %v592 = vunpack.c.h.b16 %v138
  %v593 = vunpack.c.l.b16 %v139
  %v594 = vunpack.c.l.b16 %v140
  %v595 = vunpack.c.h.b16 %v140
  %v596 = vunpack.c.l.b16 %v141
  %v597 = vunpack.c.h.b16 %v141
  %v598 = vunpack.c.l.b16 %v142
  %v599 = vunpack.c.h.b16 %v142
  %v600 = vunpack.c.l.b16 %v143
  %v601 = vunpack.c.l.b16 %v144
  %v602 = vunpack.c.h.b16 %v144
  %v603 = vunpack.c.l.b16 %v145
  %v604 = vunpack.c.h.b16 %v145
  %v605 = vunpack.c.l.b16 %v146
  %v606 = vunpack.c.h.b16 %v146
  %v607 = vunpack.c.l.b16 %v147
  %v608 = vpack.c.b16 %v391, %v384
  %v609 = vpack.c.b16 %v392, %v385
  %v610 = vpack.c.b16 %v393, %v386
  %v611 = vpack.c.b16 %v394, %v387
  %v612 = vpack.c.b16 %v395, %v388
  %v613 = vpack.c.b16 %v396, %v389
  %v614 = vpack.c.b16 %v397, %v390
  %v615 = vpack.c.b16 %v405, %v398
  %v616 = vpack.c.b16 %v406, %v399
  %v617 = vpack.c.b16 %v407, %v400
  %v618 = vpack.c.b16 %v408, %v401
  %v619 = vpack.c.b16 %v409, %v402
  %v620 = vpack.c.b16 %v410, %v403
  %v621 = vpack.c.b16 %v411, %v404
  %v622 = vpack.c.b16 %v419, %v412
  %v623 = vpack.c.b16 %v420, %v413
  %v624 = vpack.c.b16 %v421, %v414
  %v625 = vpack.c.b16 %v422, %v415
  %v626 = vpack.c.b16 %v423, %v416
  %v627 = vpack.c.b16 %v424, %v417
  %v628 = vpack.c.b16 %v425, %v418
  %v629 = vpack.c.b16 %v433, %v426
  %v630 = vpack.c.b16 %v434, %v427
  %v631 = vpack.c.b16 %v435, %v428
  %v632 = vpack.c.b16 %v436, %v429
  %v633 = vpack.c.b16 %v437, %v430
  %v634 = vpack.c.b16 %v438, %v431
  %v635 = vpack.c.b16 %v439, %v432
  %v636 = vpack.c.b16 %v447, %v440
  %v637 = vpack.c.b16 %v448, %v441
  %v638 = vpack.c.b16 %v449, %v442
  %v639 = vpack.c.b16 %v450, %v443
  %v640 = vpack.c.b16 %v451, %v444
  %v641 = vpack.c.b16 %v452, %v445
  %v642 = vpack.c.b16 %v453, %v446
  %v643 = vpack.c.b16 %v461, %v454
  %v644 = vpack.c.b16 %v462, %v455
  %v645 = vpack.c.b16 %v463, %v456
  %v646 = vpack.c.b16 %v464, %v457
  %v647 = vpack.c.b16 %v465, %v458
  %v648 = vpack.c.b16 %v466, %v459
  %v649 = vpack.c.b16 %v467, %v460
  %v650 = vpack.c.b16 %v475, %v468
  %v651 = vpack.c.b16 %v476, %v469
  %v652 = vpack.c.b16 %v477, %v470
  %v653 = vpack.c.b16 %v478, %v471
  %v654 = vpack.c.b16 %v479, %v472
  %v655 = vpack.c.b16 %v480, %v473
  %v656 = vpack.c.b16 %v481, %v474
  %v657 = vpack.c.b16 %v489, %v482
  %v658 = vpack.c.b16 %v490, %v483
  %v659 = vpack.c.b16 %v491, %v484
  %v660 = vpack.c.b16 %v492, %v485
  %v661 = vpack.c.b16 %v493, %v486
  %v662 = vpack.c.b16 %v494, %v487
  %v663 = vpack.c.b16 %v495, %v488
  %v664 = vpack.c.b16 %v503, %v496
  %v665 = vpack.c.b16 %v504, %v497
  %v666 = vpack.c.b16 %v505, %v498
  %v667 = vpack.c.b16 %v506, %v499
  %v668 = vpack.c.b16 %v507, %v500
  %v669 = vpack.c.b16 %v508, %v501
  %v670 = vpack.c.b16 %v509, %v502
  %v671 = vpack.c.b16 %v517, %v510
  %v672 = vpack.c.b16 %v518, %v511
  %v673 = vpack.c.b16 %v519, %v512
  %v674 = vpack.c.b16 %v520, %v513
  %v675 = vpack.c.b16 %v521, %v514
  %v676 = vpack.c.b16 %v522, %v515
  %v677 = vpack.c.b16 %v523, %v516
  %v678 = vpack.c.b16 %v531, %v524
  %v679 = vpack.c.b16 %v532, %v525
  %v680 = vpack.c.b16 %v533, %v526
  %v681 = vpack.c.b16 %v534, %v527
  %v682 = vpack.c.b16 %v535, %v528
  %v683 = vpack.c.b16 %v536, %v529
  %v684 = vpack.c.b16 %v537, %v530
  %v685 = vpack.c.b16 %v545, %v538
  %v686 = vpack.c.b16 %v546, %v539
  %v687 = vpack.c.b16 %v547, %v540
  %v688 = vpack.c.b16 %v548, %v541
  %v689 = vpack.c.b16 %v549, %v542
  %v690 = vpack.c.b16 %v550, %v543
  %v691 = vpack.c.b16 %v551, %v544
  %v692 = vpack.c.b16 %v559, %v552
  %v693 = vpack.c.b16 %v560, %v553
  %v694 = vpack.c.b16 %v561, %v554
  %v695 = vpack.c.b16 %v562, %v555
  %v696 = vpack.c.b16 %v563, %v556
  %v697 = vpack.c.b16 %v564, %v557
  %v698 = vpack.c.b16 %v565, %v558
  %v699 = vpack.c.b16 %v573, %v566
  %v700 = vpack.c.b16 %v574, %v567
  %v701 = vpack.c.b16 %v575, %v568
  %v702 = vpack.c.b16 %v576, %v569
  %v703 = vpack.c.b16 %v577, %v570
  %v704 = vpack.c.b16 %v578, %v571
  %v705 = vpack.c.b16 %v579, %v572
  %v706 = vpack.c.b16 %v587, %v580
  %v707 = vpack.c.b16 %v588, %v581
  %v708 = vpack.c.b16 %v589, %v582
  %v709 = vpack.c.b16 %v590, %v583
  %v710 = vpack.c.b16 %v591, %v584
  %v711 = vpack.c.b16 %v592, %v585
  %v712 = vpack.c.b16 %v593, %v586
  %v713 = vpack.c.b16 %v601, %v594
  %v714 = vpack.c.b16 %v602, %v595
  %v715 = vpack.c.b16 %v603, %v596
  %v716 = vpack.c.b16 %v604, %v597
  %v717 = vpack.c.b16 %v605, %v598
  %v718 = vpack.c.b16 %v606, %v599
  %v719 = vpack.c.b16 %v607, %v600
  %v924 = vunpack.c.l.b16 %v148
  %v925 = vunpack.c.l.b16 %v149
  %v926 = vunpack.c.l.b16 %v150
  %v927 = vunpack.c.l.b16 %v151
  %v928 = vunpack.c.l.b16 %v152
  %v929 = vunpack.c.l.b16 %v153
  %v930 = vunpack.c.l.b16 %v154
  %v931 = vunpack.c.l.b16 %v155
  %v932 = vunpack.c.l.b16 %v156
  %v933 = vunpack.c.l.b16 %v157
  %v934 = vunpack.c.l.b16 %v158
  %v935 = vunpack.c.l.b16 %v159
  %v936 = vunpack.c.l.b16 %v160
  %v937 = vunpack.c.l.b16 %v161
  %v938 = vunpack.c.l.b16 %v162
  %v939 = vunpack.c.l.b16 %v163
  %v940 = vunpack.c.l.b16 %v164
  %v941 = vunpack.c.l.b16 %v165
  %v942 = vunpack.c.l.b16 %v166
  %v943 = vunpack.c.l.b16 %v167
  %v944 = vunpack.c.l.b16 %v168
  %v945 = vunpack.c.l.b16 %v169
  %v946 = vunpack.c.l.b16 %v170
  %v947 = vunpack.c.l.b16 %v171
  %v948 = vunpack.c.l.b16 %v172
  %v949 = vunpack.c.l.b16 %v173
  %v950 = vunpack.c.l.b16 %v174
  %v951 = vunpack.c.l.b16 %v175
  %v952 = vunpack.c.l.b16 %v176
  %v953 = vunpack.c.l.b16 %v177
  %v954 = vunpack.c.l.b16 %v178
  %v955 = vunpack.c.l.b16 %v179
  %v956 = vunpack.c.l.b16 %v180
  %v957 = vunpack.c.l.b16 %v181
  %v958 = vunpack.c.l.b16 %v182
  %v959 = vunpack.c.l.b16 %v183
  %v960 = vunpack.c.l.b16 %v184
  %v961 = vunpack.c.l.b16 %v185
  %v962 = vunpack.c.l.b16 %v186
  %v963 = vunpack.c.l.b16 %v187
  %v964 = vunpack.c.l.b16 %v188
  %v965 = vunpack.c.l.b16 %v189
  %v966 = vunpack.c.l.b16 %v190
  %v967 = vunpack.c.l.b16 %v191
  %v968 = vunpack.c.l.b16 %v192
  %v969 = vunpack.c.l.b16 %v193
  %v970 = vunpack.c.l.b16 %v194
  %v971 = vunpack.c.l.b16 %v195
  %v972 = vunpack.c.l.b16 %v196
  %v973 = vunpack.c.l.b16 %v197
  %v974 = vunpack.c.l.b16 %v198
  %v975 = vunpack.c.l.b16 %v199
  %v976 = vunpack.c.l.b16 %v200
  %v977 = vunpack.c.l.b16 %v201
  %v978 = vunpack.c.l.b16 %v202
  %v979 = vunpack.c.l.b16 %v203
  %v980 = vunpack.c.l.b16 %v204
  %v981 = vunpack.c.l.b16 %v205
  %v982 = vunpack.c.l.b16 %v206
  %v983 = vunpack.c.l.b16 %v207
  %v984 = vunpack.c.l.b16 %v208
  %v985 = vunpack.c.l.b16 %v209
  %v986 = vunpack.c.l.b16 %v210
  %v987 = vunpack.c.l.b16 %v211
  %v988 = vunpack.c.l.b16 %v212
  %v989 = vunpack.c.l.b16 %v213
  %v990 = vunpack.c.l.b16 %v214
  %v991 = vunpack.c.l.b16 %v215
  %v992 = vunpack.c.l.b16 %v216
  %v993 = vunpack.c.l.b16 %v217
  %v994 = vunpack.c.l.b16 %v218
  %v995 = vunpack.c.l.b16 %v219
  %v996 = vunpack.c.l.b16 %v220
  %v997 = vunpack.c.l.b16 %v221
  %v998 = vunpack.c.l.b16 %v222
  %v999 = vunpack.c.l.b16 %v223
  %v1000 = vunpack.c.l.b16 %v224
  %v1001 = vunpack.c.l.b16 %v225
  %v1002 = vunpack.c.l.b16 %v226
  %v1003 = vunpack.c.l.b16 %v227
  %v1004 = vunpack.c.l.b16 %v228
  %v1005 = vunpack.c.l.b16 %v229
  %v1006 = vunpack.c.l.b16 %v230
  %v1007 = vunpack.c.l.b16 %v231
  %v1008 = vunpack.c.l.b16 %v232
  %v1009 = vunpack.c.l.b16 %v233
  %v1010 = vunpack.c.l.b16 %v234
  %v1011 = vunpack.c.l.b16 %v235
  %v1012 = vunpack.c.l.b16 %v236
  %v1013 = vunpack.c.l.b16 %v237
  %v1014 = vunpack.c.l.b16 %v238
  %v1015 = vunpack.c.l.b16 %v239
  %v1016 = vunpack.c.l.b16 %v240
  %v1017 = vunpack.c.l.b16 %v241
  %v1018 = vunpack.c.l.b16 %v242
  %v1019 = vunpack.c.l.b16 %v243
  %v1020 = vunpack.c.l.b16 %v244
  %v1021 = vunpack.c.l.b16 %v245
  %v1022 = vunpack.c.l.b16 %v246
  %v1023 = vunpack.c.l.b16 %v247
  %v1024 = vunpack.c.l.b16 %v248
  %v1025 = vunpack.c.l.b16 %v249
  %v1026 = vunpack.c.l.b16 %v250
  %v1027 = vunpack.c.l.b16 %v251
  %v1028 = vunpack.c.l.b16 %v252
  %v1029 = vunpack.c.l.b16 %v253
  %v1030 = vunpack.c.l.b16 %v254
  %v1031 = vunpack.c.l.b16 %v255
  %v1032 = vpack.c.b16 %v925, %v924
  %v1033 = vpack.c.b16 %v927, %v926
  %v1034 = vpack.c.b16 %v929, %v928
  %v1035 = vpack.c.b16 %v931, %v930
  %v1036 = vpack.c.b16 %v933, %v932
  %v1037 = vpack.c.b16 %v935, %v934
  %v1038 = vpack.c.b16 %v937, %v936
  %v1039 = vpack.c.b16 %v939, %v938
  %v1040 = vpack.c.b16 %v941, %v940
  %v1041 = vpack.c.b16 %v943, %v942
  %v1042 = vpack.c.b16 %v945, %v944
  %v1043 = vpack.c.b16 %v947, %v946
  %v1044 = vpack.c.b16 %v949, %v948
  %v1045 = vpack.c.b16 %v951, %v950
  %v1046 = vpack.c.b16 %v953, %v952
  %v1047 = vpack.c.b16 %v955, %v954
  %v1048 = vpack.c.b16 %v957, %v956
  %v1049 = vpack.c.b16 %v959, %v958
  %v1050 = vpack.c.b16 %v961, %v960
  %v1051 = vpack.c.b16 %v963, %v962
  %v1052 = vpack.c.b16 %v965, %v964
  %v1053 = vpack.c.b16 %v967, %v966
  %v1054 = vpack.c.b16 %v969, %v968
  %v1055 = vpack.c.b16 %v971, %v970
  %v1056 = vpack.c.b16 %v973, %v972
  %v1057 = vpack.c.b16 %v975, %v974
  %v1058 = vpack.c.b16 %v977, %v976
  %v1059 = vpack.c.b16 %v979, %v978
  %v1060 = vpack.c.b16 %v981, %v980
  %v1061 = vpack.c.b16 %v983, %v982
  %v1062 = vpack.c.b16 %v985, %v984
  %v1063 = vpack.c.b16 %v987, %v986
  %v1064 = vpack.c.b16 %v989, %v988
  %v1065 = vpack.c.b16 %v991, %v990
  %v1066 = vpack.c.b16 %v993, %v992
  %v1067 = vpack.c.b16 %v995, %v994
  %v1068 = vpack.c.b16 %v997, %v996
  %v1069 = vpack.c.b16 %v999, %v998
  %v1070 = vpack.c.b16 %v1001, %v1000
  %v1071 = vpack.c.b16 %v1003, %v1002
  %v1072 = vpack.c.b16 %v1005, %v1004
  %v1073 = vpack.c.b16 %v1007, %v1006
  %v1074 = vpack.c.b16 %v1009, %v1008
  %v1075 = vpack.c.b16 %v1011, %v1010
  %v1076 = vpack.c.b16 %v1013, %v1012
  %v1077 = vpack.c.b16 %v1015, %v1014
  %v1078 = vpack.c.b16 %v1017, %v1016
  %v1079 = vpack.c.b16 %v1019, %v1018
  %v1080 = vpack.c.b16 %v1021, %v1020
  %v1081 = vpack.c.b16 %v1023, %v1022
  %v1082 = vpack.c.b16 %v1025, %v1024
  %v1083 = vpack.c.b16 %v1027, %v1026
  %v1084 = vpack.c.b16 %v1029, %v1028
  %v1085 = vpack.c.b16 %v1031, %v1030
  %vm1140 = vcmask 785408
  %v1142 = vsel %vm1140, %v614, 0
  %v1145 = vsel %vm1140, %v621, 0
  %v1148 = vsel %vm1140, %v628, 0
  %v1151 = vsel %vm1140, %v635, 0
  %v1154 = vsel %vm1140, %v642, 0
  %v1157 = vsel %vm1140, %v649, 0
  %v1160 = vsel %vm1140, %v656, 0
  %v1163 = vsel %vm1140, %v663, 0
  %v1166 = vsel %vm1140, %v670, 0
  %v1169 = vsel %vm1140, %v677, 0
  %v1172 = vsel %vm1140, %v684, 0
  %v1175 = vsel %vm1140, %v691, 0
  %v1178 = vsel %vm1140, %v698, 0
  %v1181 = vsel %vm1140, %v705, 0
  %v1184 = vsel %vm1140, %v712, 0
  %v1187 = vsel %vm1140, %v719, 0
  %1189 = vmatprep.subr.bf16.mxu0 0
  %1190 = vmatpush1.bf16.msra.mxu0 %v1032
  %1191 = vmatprep.subr.bf16.mxu0 0
  %1192 = vmatpush1.bf16.msra.mxu0 %v1033
  %1193 = vmatprep.subr.bf16.mxu0 0
  %1194 = vmatpush1.bf16.msra.mxu0 %v1034
  %1195 = vmatprep.subr.bf16.mxu0 0
  %1196 = vmatpush1.bf16.msra.mxu0 %v1035
  %1197 = vmatprep.subr.bf16.mxu0 0
  %1198 = vmatpush1.bf16.msra.mxu0 %v1036
  %1199 = vmatprep.subr.bf16.mxu0 0
  %1200 = vmatpush1.bf16.msra.mxu0 %v1037
  %1201 = vmatprep.subr.bf16.mxu0 0
  %1202 = vmatpush1.bf16.msra.mxu0 %v1038
  %1203 = vmatprep.subr.bf16.mxu0 0
  %1204 = vmatpush1.bf16.msra.mxu0 %v1039
  %1205 = vmatprep.subr.bf16.mxu0 0
  %1206 = vmatpush1.bf16.msra.mxu0 %v1040
  %1207 = vmatprep.subr.bf16.mxu0 0
  %1208 = vmatpush1.bf16.msra.mxu0 %v1041
  %1209 = vmatprep.subr.bf16.mxu0 0
  %1210 = vmatpush1.bf16.msra.mxu0 %v1042
  %1211 = vmatprep.subr.bf16.mxu0 0
  %1212 = vmatpush1.bf16.msra.mxu0 %v1043
  %1213 = vmatprep.subr.bf16.mxu0 0
  %1214 = vmatpush1.bf16.msra.mxu0 %v1044
  %1215 = vmatprep.subr.bf16.mxu0 0
  %1216 = vmatpush1.bf16.msra.mxu0 %v1045
  %1217 = vmatprep.subr.bf16.mxu0 0
  %1218 = vmatpush1.bf16.msra.mxu0 %v1046
  %1219 = vmatprep.subr.bf16.mxu0 0
  %1220 = vmatpush1.bf16.msra.mxu0 %v1047
  %1221 = vmatprep.mubr.bf16.mxu0 %v609
  %1222 = vmatmul.mubr.bf16.gmra.mrb[0].mxu0 %v608
  %v1223 = vpop.f32.mrb[0].mxu0
  %v1224 = vadd.f32 0.0, %v1223
  %v1225 = vpop.f32.mrb[0].mxu0
  %v1226 = vpop.f32.mrb[0].mxu0
  %v1227 = vadd.f32 0.0, %v1226
  %v1228 = vpop.f32.mrb[0].mxu0
  %1229 = vmatprep.mubr.bf16.mxu0 %v616
  %1230 = vmatmul.mubr.bf16.gmra.mrb[0].mxu0 %v615
  %v1231 = vpop.f32.mrb[0].mxu0
  %v1232 = vadd.f32 0.0, %v1231
  %v1233 = vpop.f32.mrb[0].mxu0
  %v1234 = vpop.f32.mrb[0].mxu0
  %v1235 = vadd.f32 0.0, %v1234
  %v1236 = vpop.f32.mrb[0].mxu0
  %1237 = vmatprep.mubr.bf16.mxu0 %v623
  %1238 = vmatmul.mubr.bf16.gmra.mrb[0].mxu0 %v622
  %v1239 = vpop.f32.mrb[0].mxu0
  %v1240 = vadd.f32 0.0, %v1239
  %v1241 = vpop.f32.mrb[0].mxu0
  %v1242 = vpop.f32.mrb[0].mxu0
  %v1243 = vadd.f32 0.0, %v1242
  %v1244 = vpop.f32.mrb[0].mxu0
  %1245 = vmatprep.mubr.bf16.mxu0 %v630
  %1246 = vmatmul.mubr.bf16.gmra.mrb[0].mxu0 %v629
  %v1247 = vpop.f32.mrb[0].mxu0
  %v1248 = vadd.f32 0.0, %v1247
  %v1249 = vpop.f32.mrb[0].mxu0
  %v1250 = vpop.f32.mrb[0].mxu0
  %v1251 = vadd.f32 0.0, %v1250
  %v1252 = vpop.f32.mrb[0].mxu0
  %1253 = vmatprep.mubr.bf16.mxu0 %v637
  %1254 = vmatmul.mubr.bf16.gmra.mrb[0].mxu0 %v636
  %v1255 = vpop.f32.mrb[0].mxu0
  %v1256 = vadd.f32 0.0, %v1255
  %v1257 = vpop.f32.mrb[0].mxu0
  %v1258 = vpop.f32.mrb[0].mxu0
  %v1259 = vadd.f32 0.0, %v1258
  %v1260 = vpop.f32.mrb[0].mxu0
  %1261 = vmatprep.mubr.bf16.mxu0 %v644
  %1262 = vmatmul.mubr.bf16.gmra.mrb[0].mxu0 %v643
  %v1263 = vpop.f32.mrb[0].mxu0
  %v1264 = vadd.f32 0.0, %v1263
  %v1265 = vpop.f32.mrb[0].mxu0
  %v1266 = vpop.f32.mrb[0].mxu0
  %v1267 = vadd.f32 0.0, %v1266
  %v1268 = vpop.f32.mrb[0].mxu0
  %1269 = vmatprep.mubr.bf16.mxu0 %v651
  %1270 = vmatmul.mubr.bf16.gmra.mrb[0].mxu0 %v650
  %v1271 = vpop.f32.mrb[0].mxu0
  %v1272 = vadd.f32 0.0, %v1271
  %v1273 = vpop.f32.mrb[0].mxu0
  %v1274 = vpop.f32.mrb[0].mxu0
  %v1275 = vadd.f32 0.0, %v1274
  %v1276 = vpop.f32.mrb[0].mxu0
  %1277 = vmatprep.mubr.bf16.mxu0 %v658
  %1278 = vmatmul.mubr.bf16.gmra.mrb[0].mxu0 %v657
  %v1279 = vpop.f32.mrb[0].mxu0
  %v1280 = vadd.f32 0.0, %v1279
  %v1281 = vpop.f32.mrb[0].mxu0
  %v1282 = vpop.f32.mrb[0].mxu0
  %v1283 = vadd.f32 0.0, %v1282
  %v1284 = vpop.f32.mrb[0].mxu0
  %1285 = vmatprep.mubr.bf16.mxu0 %v665
  %1286 = vmatmul.mubr.bf16.gmra.mrb[0].mxu0 %v664
  %v1287 = vpop.f32.mrb[0].mxu0
  %v1288 = vadd.f32 0.0, %v1287
  %v1289 = vpop.f32.mrb[0].mxu0
  %v1290 = vpop.f32.mrb[0].mxu0
  %v1291 = vadd.f32 0.0, %v1290
  %v1292 = vpop.f32.mrb[0].mxu0
  %1293 = vmatprep.mubr.bf16.mxu0 %v672
  %1294 = vmatmul.mubr.bf16.gmra.mrb[0].mxu0 %v671
  %v1295 = vpop.f32.mrb[0].mxu0
  %v1296 = vadd.f32 0.0, %v1295
  %v1297 = vpop.f32.mrb[0].mxu0
  %v1298 = vpop.f32.mrb[0].mxu0
  %v1299 = vadd.f32 0.0, %v1298
  %v1300 = vpop.f32.mrb[0].mxu0
  %1301 = vmatprep.mubr.bf16.mxu0 %v679
  %1302 = vmatmul.mubr.bf16.gmra.mrb[0].mxu0 %v678
  %v1303 = vpop.f32.mrb[0].mxu0
  %v1304 = vadd.f32 0.0, %v1303
  %v1305 = vpop.f32.mrb[0].mxu0
  %v1306 = vpop.f32.mrb[0].mxu0
  %v1307 = vadd.f32 0.0, %v1306
  %v1308 = vpop.f32.mrb[0].mxu0
  %1309 = vmatprep.mubr.bf16.mxu0 %v686
  %1310 = vmatmul.mubr.bf16.gmra.mrb[0].mxu0 %v685
  %v1311 = vpop.f32.mrb[0].mxu0
  %v1312 = vadd.f32 0.0, %v1311
  %v1313 = vpop.f32.mrb[0].mxu0
  %v1314 = vpop.f32.mrb[0].mxu0
  %v1315 = vadd.f32 0.0, %v1314
  %v1316 = vpop.f32.mrb[0].mxu0
  %1317 = vmatprep.mubr.bf16.mxu0 %v693
  %1318 = vmatmul.mubr.bf16.gmra.mrb[0].mxu0 %v692
  %v1319 = vpop.f32.mrb[0].mxu0
  %v1320 = vadd.f32 0.0, %v1319
  %v1321 = vpop.f32.mrb[0].mxu0
  %v1322 = vpop.f32.mrb[0].mxu0
  %v1323 = vadd.f32 0.0, %v1322
  %v1324 = vpop.f32.mrb[0].mxu0
  %1325 = vmatprep.mubr.bf16.mxu0 %v700
  %1326 = vmatmul.mubr.bf16.gmra.mrb[0].mxu0 %v699
  %v1327 = vpop.f32.mrb[0].mxu0
  %v1328 = vadd.f32 0.0, %v1327
  %v1329 = vpop.f32.mrb[0].mxu0
  %v1330 = vpop.f32.mrb[0].mxu0
  %v1331 = vadd.f32 0.0, %v1330
  %v1332 = vpop.f32.mrb[0].mxu0
  %1333 = vmatprep.mubr.bf16.mxu0 %v707
  %1334 = vmatmul.mubr.bf16.gmra.mrb[0].mxu0 %v706
  %v1335 = vpop.f32.mrb[0].mxu0
  %v1336 = vadd.f32 0.0, %v1335
  %v1337 = vpop.f32.mrb[0].mxu0
  %v1338 = vpop.f32.mrb[0].mxu0
  %v1339 = vadd.f32 0.0, %v1338
  %v1340 = vpop.f32.mrb[0].mxu0
  %1341 = vmatprep.mubr.bf16.mxu0 %v714
  %1342 = vmatmul.mubr.bf16.gmra.mrb[0].mxu0 %v713
  %v1343 = vpop.f32.mrb[0].mxu0
  %v1344 = vadd.f32 0.0, %v1343
  %v1345 = vpop.f32.mrb[0].mxu0
  %v1346 = vpop.f32.mrb[0].mxu0
  %v1347 = vadd.f32 0.0, %v1346
  %v1348 = vpop.f32.mrb[0].mxu0
  %1349 = vdwg.mxu0
  %1350 = vmatprep.subr.bf16.mxu0 0
  %1351 = vmatpush1.bf16.msra.mxu0 %v1048
  %1352 = vmatprep.subr.bf16.mxu0 0
  %1353 = vmatpush1.bf16.msra.mxu0 %v1049
  %1354 = vmatprep.subr.bf16.mxu0 0
  %1355 = vmatpush1.bf16.msra.mxu0 %v1050
  %1356 = vmatprep.subr.bf16.mxu0 0
  %1357 = vmatpush1.bf16.msra.mxu0 %v1051
  %1358 = vmatprep.subr.bf16.mxu0 0
  %1359 = vmatpush1.bf16.msra.mxu0 %v1052
  %1360 = vmatprep.subr.bf16.mxu0 0
  %1361 = vmatpush1.bf16.msra.mxu0 %v1053
  %1362 = vmatprep.subr.bf16.mxu0 0
  %1363 = vmatpush1.bf16.msra.mxu0 %v1054
  %1364 = vmatprep.subr.bf16.mxu0 0
  %1365 = vmatpush1.bf16.msra.mxu0 %v1055
  %1366 = vmatprep.subr.bf16.mxu0 0
  %1367 = vmatpush1.bf16.msra.mxu0 %v1056
  %1368 = vmatprep.subr.bf16.mxu0 0
  %1369 = vmatpush1.bf16.msra.mxu0 %v1057
  %1370 = vmatprep.subr.bf16.mxu0 0
  %1371 = vmatpush1.bf16.msra.mxu0 %v1058
  %1372 = vmatprep.subr.bf16.mxu0 0
  %1373 = vmatpush1.bf16.msra.mxu0 %v1059
  %1374 = vmatprep.subr.bf16.mxu0 0
  %1375 = vmatpush1.bf16.msra.mxu0 %v1060
  %1376 = vmatprep.subr.bf16.mxu0 0
  %1377 = vmatpush1.bf16.msra.mxu0 %v1061
  %1378 = vmatprep.subr.bf16.mxu0 0
  %1379 = vmatpush1.bf16.msra.mxu0 %v1062
  %1380 = vmatprep.subr.bf16.mxu0 0
  %1381 = vmatpush1.bf16.msra.mxu0 %v1063
  %1382 = vmatprep.mubr.bf16.mxu0 %v611
  %1383 = vmatmul.mubr.bf16.gmra.mrb[0].mxu0 %v610
  %v1384 = vpop.f32.mrb[0].mxu0
  %v1385 = vadd.f32 %v1224, %v1384
  %v1386 = vpop.f32.mrb[0].mxu0
  %v1387 = vpop.f32.mrb[0].mxu0
  %v1388 = vadd.f32 %v1227, %v1387
  %v1389 = vpop.f32.mrb[0].mxu0
  %1390 = vmatprep.mubr.bf16.mxu0 %v618
  %1391 = vmatmul.mubr.bf16.gmra.mrb[0].mxu0 %v617
  %v1392 = vpop.f32.mrb[0].mxu0
  %v1393 = vadd.f32 %v1232, %v1392
  %v1394 = vpop.f32.mrb[0].mxu0
  %v1395 = vpop.f32.mrb[0].mxu0
  %v1396 = vadd.f32 %v1235, %v1395
  %v1397 = vpop.f32.mrb[0].mxu0
  %1398 = vmatprep.mubr.bf16.mxu0 %v625
  %1399 = vmatmul.mubr.bf16.gmra.mrb[0].mxu0 %v624
  %v1400 = vpop.f32.mrb[0].mxu0
  %v1401 = vadd.f32 %v1240, %v1400
  %v1402 = vpop.f32.mrb[0].mxu0
  %v1403 = vpop.f32.mrb[0].mxu0
  %v1404 = vadd.f32 %v1243, %v1403
  %v1405 = vpop.f32.mrb[0].mxu0
  %1406 = vmatprep.mubr.bf16.mxu0 %v632
  %1407 = vmatmul.mubr.bf16.gmra.mrb[0].mxu0 %v631
  %v1408 = vpop.f32.mrb[0].mxu0
  %v1409 = vadd.f32 %v1248, %v1408
  %v1410 = vpop.f32.mrb[0].mxu0
  %v1411 = vpop.f32.mrb[0].mxu0
  %v1412 = vadd.f32 %v1251, %v1411
  %v1413 = vpop.f32.mrb[0].mxu0
  %1414 = vmatprep.mubr.bf16.mxu0 %v639
  %1415 = vmatmul.mubr.bf16.gmra.mrb[0].mxu0 %v638
  %v1416 = vpop.f32.mrb[0].mxu0
  %v1417 = vadd.f32 %v1256, %v1416
  %v1418 = vpop.f32.mrb[0].mxu0
  %v1419 = vpop.f32.mrb[0].mxu0
  %v1420 = vadd.f32 %v1259, %v1419
  %v1421 = vpop.f32.mrb[0].mxu0
  %1422 = vmatprep.mubr.bf16.mxu0 %v646
  %1423 = vmatmul.mubr.bf16.gmra.mrb[0].mxu0 %v645
  %v1424 = vpop.f32.mrb[0].mxu0
  %v1425 = vadd.f32 %v1264, %v1424
  %v1426 = vpop.f32.mrb[0].mxu0
  %v1427 = vpop.f32.mrb[0].mxu0
  %v1428 = vadd.f32 %v1267, %v1427
  %v1429 = vpop.f32.mrb[0].mxu0
  %1430 = vmatprep.mubr.bf16.mxu0 %v653
  %1431 = vmatmul.mubr.bf16.gmra.mrb[0].mxu0 %v652
  %v1432 = vpop.f32.mrb[0].mxu0
  %v1433 = vadd.f32 %v1272, %v1432
  %v1434 = vpop.f32.mrb[0].mxu0
  %v1435 = vpop.f32.mrb[0].mxu0
  %v1436 = vadd.f32 %v1275, %v1435
  %v1437 = vpop.f32.mrb[0].mxu0
  %1438 = vmatprep.mubr.bf16.mxu0 %v660
  %1439 = vmatmul.mubr.bf16.gmra.mrb[0].mxu0 %v659
  %v1440 = vpop.f32.mrb[0].mxu0
  %v1441 = vadd.f32 %v1280, %v1440
  %v1442 = vpop.f32.mrb[0].mxu0
  %v1443 = vpop.f32.mrb[0].mxu0
  %v1444 = vadd.f32 %v1283, %v1443
  %v1445 = vpop.f32.mrb[0].mxu0
  %1446 = vmatprep.mubr.bf16.mxu0 %v667
  %1447 = vmatmul.mubr.bf16.gmra.mrb[0].mxu0 %v666
  %v1448 = vpop.f32.mrb[0].mxu0
  %v1449 = vadd.f32 %v1288, %v1448
  %v1450 = vpop.f32.mrb[0].mxu0
  %v1451 = vpop.f32.mrb[0].mxu0
  %v1452 = vadd.f32 %v1291, %v1451
  %v1453 = vpop.f32.mrb[0].mxu0
  %1454 = vmatprep.mubr.bf16.mxu0 %v674
  %1455 = vmatmul.mubr.bf16.gmra.mrb[0].mxu0 %v673
  %v1456 = vpop.f32.mrb[0].mxu0
  %v1457 = vadd.f32 %v1296, %v1456
  %v1458 = vpop.f32.mrb[0].mxu0
  %v1459 = vpop.f32.mrb[0].mxu0
  %v1460 = vadd.f32 %v1299, %v1459
  %v1461 = vpop.f32.mrb[0].mxu0
  %1462 = vmatprep.mubr.bf16.mxu0 %v681
  %1463 = vmatmul.mubr.bf16.gmra.mrb[0].mxu0 %v680
  %v1464 = vpop.f32.mrb[0].mxu0
  %v1465 = vadd.f32 %v1304, %v1464
  %v1466 = vpop.f32.mrb[0].mxu0
  %v1467 = vpop.f32.mrb[0].mxu0
  %v1468 = vadd.f32 %v1307, %v1467
  %v1469 = vpop.f32.mrb[0].mxu0
  %1470 = vmatprep.mubr.bf16.mxu0 %v688
  %1471 = vmatmul.mubr.bf16.gmra.mrb[0].mxu0 %v687
  %v1472 = vpop.f32.mrb[0].mxu0
  %v1473 = vadd.f32 %v1312, %v1472
  %v1474 = vpop.f32.mrb[0].mxu0
  %v1475 = vpop.f32.mrb[0].mxu0
  %v1476 = vadd.f32 %v1315, %v1475
  %v1477 = vpop.f32.mrb[0].mxu0
  %1478 = vmatprep.mubr.bf16.mxu0 %v695
  %1479 = vmatmul.mubr.bf16.gmra.mrb[0].mxu0 %v694
  %v1480 = vpop.f32.mrb[0].mxu0
  %v1481 = vadd.f32 %v1320, %v1480
  %v1482 = vpop.f32.mrb[0].mxu0
  %v1483 = vpop.f32.mrb[0].mxu0
  %v1484 = vadd.f32 %v1323, %v1483
  %v1485 = vpop.f32.mrb[0].mxu0
  %1486 = vmatprep.mubr.bf16.mxu0 %v702
  %1487 = vmatmul.mubr.bf16.gmra.mrb[0].mxu0 %v701
  %v1488 = vpop.f32.mrb[0].mxu0
  %v1489 = vadd.f32 %v1328, %v1488
  %v1490 = vpop.f32.mrb[0].mxu0
  %v1491 = vpop.f32.mrb[0].mxu0
  %v1492 = vadd.f32 %v1331, %v1491
  %v1493 = vpop.f32.mrb[0].mxu0
  %1494 = vmatprep.mubr.bf16.mxu0 %v709
  %1495 = vmatmul.mubr.bf16.gmra.mrb[0].mxu0 %v708
  %v1496 = vpop.f32.mrb[0].mxu0
  %v1497 = vadd.f32 %v1336, %v1496
  %v1498 = vpop.f32.mrb[0].mxu0
  %v1499 = vpop.f32.mrb[0].mxu0
  %v1500 = vadd.f32 %v1339, %v1499
  %v1501 = vpop.f32.mrb[0].mxu0
  %1502 = vmatprep.mubr.bf16.mxu0 %v716
  %1503 = vmatmul.mubr.bf16.gmra.mrb[0].mxu0 %v715
  %v1504 = vpop.f32.mrb[0].mxu0
  %v1505 = vadd.f32 %v1344, %v1504
  %v1506 = vpop.f32.mrb[0].mxu0
  %v1507 = vpop.f32.mrb[0].mxu0
  %v1508 = vadd.f32 %v1347, %v1507
  %v1509 = vpop.f32.mrb[0].mxu0
  %1510 = vdwg.mxu0
  %1511 = vmatprep.subr.bf16.mxu0 0
  %1512 = vmatpush1.bf16.msra.mxu0 %v1064
  %1513 = vmatprep.subr.bf16.mxu0 0
  %1514 = vmatpush1.bf16.msra.mxu0 %v1065
  %1515 = vmatprep.subr.bf16.mxu0 0
  %1516 = vmatpush1.bf16.msra.mxu0 %v1066
  %1517 = vmatprep.subr.bf16.mxu0 0
  %1518 = vmatpush1.bf16.msra.mxu0 %v1067
  %1519 = vmatprep.subr.bf16.mxu0 0
  %1520 = vmatpush1.bf16.msra.mxu0 %v1068
  %1521 = vmatprep.subr.bf16.mxu0 0
  %1522 = vmatpush1.bf16.msra.mxu0 %v1069
  %1523 = vmatprep.subr.bf16.mxu0 0
  %1524 = vmatpush1.bf16.msra.mxu0 %v1070
  %1525 = vmatprep.subr.bf16.mxu0 0
  %1526 = vmatpush1.bf16.msra.mxu0 %v1071
  %1527 = vmatprep.subr.bf16.mxu0 0
  %1528 = vmatpush1.bf16.msra.mxu0 %v1072
  %1529 = vmatprep.subr.bf16.mxu0 0
  %1530 = vmatpush1.bf16.msra.mxu0 %v1073
  %1531 = vmatprep.subr.bf16.mxu0 0
  %1532 = vmatpush1.bf16.msra.mxu0 %v1074
  %1533 = vmatprep.subr.bf16.mxu0 0
  %1534 = vmatpush1.bf16.msra.mxu0 %v1075
  %1535 = vmatprep.subr.bf16.mxu0 0
  %1536 = vmatpush1.bf16.msra.mxu0 %v1076
  %1537 = vmatprep.subr.bf16.mxu0 0
  %1538 = vmatpush1.bf16.msra.mxu0 %v1077
  %1539 = vmatprep.subr.bf16.mxu0 0
  %1540 = vmatpush1.bf16.msra.mxu0 %v1078
  %1541 = vmatprep.subr.bf16.mxu0 0
  %1542 = vmatpush1.bf16.msra.mxu0 %v1079
  %1543 = vmatprep.mubr.bf16.mxu0 %v613
  %1544 = vmatmul.mubr.bf16.gmra.mrb[0].mxu0 %v612
  %v1545 = vpop.f32.mrb[0].mxu0
  %v1546 = vadd.f32 %v1385, %v1545
  %v1547 = vpop.f32.mrb[0].mxu0
  %v1548 = vpop.f32.mrb[0].mxu0
  %v1549 = vadd.f32 %v1388, %v1548
  %v1550 = vpop.f32.mrb[0].mxu0
  %1551 = vmatprep.mubr.bf16.mxu0 %v620
  %1552 = vmatmul.mubr.bf16.gmra.mrb[0].mxu0 %v619
  %v1553 = vpop.f32.mrb[0].mxu0
  %v1554 = vadd.f32 %v1393, %v1553
  %v1555 = vpop.f32.mrb[0].mxu0
  %v1556 = vpop.f32.mrb[0].mxu0
  %v1557 = vadd.f32 %v1396, %v1556
  %v1558 = vpop.f32.mrb[0].mxu0
  %1559 = vmatprep.mubr.bf16.mxu0 %v627
  %1560 = vmatmul.mubr.bf16.gmra.mrb[0].mxu0 %v626
  %v1561 = vpop.f32.mrb[0].mxu0
  %v1562 = vadd.f32 %v1401, %v1561
  %v1563 = vpop.f32.mrb[0].mxu0
  %v1564 = vpop.f32.mrb[0].mxu0
  %v1565 = vadd.f32 %v1404, %v1564
  %v1566 = vpop.f32.mrb[0].mxu0
  %1567 = vmatprep.mubr.bf16.mxu0 %v634
  %1568 = vmatmul.mubr.bf16.gmra.mrb[0].mxu0 %v633
  %v1569 = vpop.f32.mrb[0].mxu0
  %v1570 = vadd.f32 %v1409, %v1569
  %v1571 = vpop.f32.mrb[0].mxu0
  %v1572 = vpop.f32.mrb[0].mxu0
  %v1573 = vadd.f32 %v1412, %v1572
  %v1574 = vpop.f32.mrb[0].mxu0
  %1575 = vmatprep.mubr.bf16.mxu0 %v641
  %1576 = vmatmul.mubr.bf16.gmra.mrb[0].mxu0 %v640
  %v1577 = vpop.f32.mrb[0].mxu0
  %v1578 = vadd.f32 %v1417, %v1577
  %v1579 = vpop.f32.mrb[0].mxu0
  %v1580 = vpop.f32.mrb[0].mxu0
  %v1581 = vadd.f32 %v1420, %v1580
  %v1582 = vpop.f32.mrb[0].mxu0
  %1583 = vmatprep.mubr.bf16.mxu0 %v648
  %1584 = vmatmul.mubr.bf16.gmra.mrb[0].mxu0 %v647
  %v1585 = vpop.f32.mrb[0].mxu0
  %v1586 = vadd.f32 %v1425, %v1585
  %v1587 = vpop.f32.mrb[0].mxu0
  %v1588 = vpop.f32.mrb[0].mxu0
  %v1589 = vadd.f32 %v1428, %v1588
  %v1590 = vpop.f32.mrb[0].mxu0
  %1591 = vmatprep.mubr.bf16.mxu0 %v655
  %1592 = vmatmul.mubr.bf16.gmra.mrb[0].mxu0 %v654
  %v1593 = vpop.f32.mrb[0].mxu0
  %v1594 = vadd.f32 %v1433, %v1593
  %v1595 = vpop.f32.mrb[0].mxu0
  %v1596 = vpop.f32.mrb[0].mxu0
  %v1597 = vadd.f32 %v1436, %v1596
  %v1598 = vpop.f32.mrb[0].mxu0
  %1599 = vmatprep.mubr.bf16.mxu0 %v662
  %1600 = vmatmul.mubr.bf16.gmra.mrb[0].mxu0 %v661
  %v1601 = vpop.f32.mrb[0].mxu0
  %v1602 = vadd.f32 %v1441, %v1601
  %v1603 = vpop.f32.mrb[0].mxu0
  %v1604 = vpop.f32.mrb[0].mxu0
  %v1605 = vadd.f32 %v1444, %v1604
  %v1606 = vpop.f32.mrb[0].mxu0
  %1607 = vmatprep.mubr.bf16.mxu0 %v669
  %1608 = vmatmul.mubr.bf16.gmra.mrb[0].mxu0 %v668
  %v1609 = vpop.f32.mrb[0].mxu0
  %v1610 = vadd.f32 %v1449, %v1609
  %v1611 = vpop.f32.mrb[0].mxu0
  %v1612 = vpop.f32.mrb[0].mxu0
  %v1613 = vadd.f32 %v1452, %v1612
  %v1614 = vpop.f32.mrb[0].mxu0
  %1615 = vmatprep.mubr.bf16.mxu0 %v676
  %1616 = vmatmul.mubr.bf16.gmra.mrb[0].mxu0 %v675
  %v1617 = vpop.f32.mrb[0].mxu0
  %v1618 = vadd.f32 %v1457, %v1617
  %v1619 = vpop.f32.mrb[0].mxu0
  %v1620 = vpop.f32.mrb[0].mxu0
  %v1621 = vadd.f32 %v1460, %v1620
  %v1622 = vpop.f32.mrb[0].mxu0
  %1623 = vmatprep.mubr.bf16.mxu0 %v683
  %1624 = vmatmul.mubr.bf16.gmra.mrb[0].mxu0 %v682
  %v1625 = vpop.f32.mrb[0].mxu0
  %v1626 = vadd.f32 %v1465, %v1625
  %v1627 = vpop.f32.mrb[0].mxu0
  %v1628 = vpop.f32.mrb[0].mxu0
  %v1629 = vadd.f32 %v1468, %v1628
  %v1630 = vpop.f32.mrb[0].mxu0
  %1631 = vmatprep.mubr.bf16.mxu0 %v690
  %1632 = vmatmul.mubr.bf16.gmra.mrb[0].mxu0 %v689
  %v1633 = vpop.f32.mrb[0].mxu0
  %v1634 = vadd.f32 %v1473, %v1633
  %v1635 = vpop.f32.mrb[0].mxu0
  %v1636 = vpop.f32.mrb[0].mxu0
  %v1637 = vadd.f32 %v1476, %v1636
  %v1638 = vpop.f32.mrb[0].mxu0
  %1639 = vmatprep.mubr.bf16.mxu0 %v697
  %1640 = vmatmul.mubr.bf16.gmra.mrb[0].mxu0 %v696
  %v1641 = vpop.f32.mrb[0].mxu0
  %v1642 = vadd.f32 %v1481, %v1641
  %v1643 = vpop.f32.mrb[0].mxu0
  %v1644 = vpop.f32.mrb[0].mxu0
  %v1645 = vadd.f32 %v1484, %v1644
  %v1646 = vpop.f32.mrb[0].mxu0
  %1647 = vmatprep.mubr.bf16.mxu0 %v704
  %1648 = vmatmul.mubr.bf16.gmra.mrb[0].mxu0 %v703
  %v1649 = vpop.f32.mrb[0].mxu0
  %v1650 = vadd.f32 %v1489, %v1649
  %v1651 = vpop.f32.mrb[0].mxu0
  %v1652 = vpop.f32.mrb[0].mxu0
  %v1653 = vadd.f32 %v1492, %v1652
  %v1654 = vpop.f32.mrb[0].mxu0
  %1655 = vmatprep.mubr.bf16.mxu0 %v711
  %1656 = vmatmul.mubr.bf16.gmra.mrb[0].mxu0 %v710
  %v1657 = vpop.f32.mrb[0].mxu0
  %v1658 = vadd.f32 %v1497, %v1657
  %v1659 = vpop.f32.mrb[0].mxu0
  %v1660 = vpop.f32.mrb[0].mxu0
  %v1661 = vadd.f32 %v1500, %v1660
  %v1662 = vpop.f32.mrb[0].mxu0
  %1663 = vmatprep.mubr.bf16.mxu0 %v718
  %1664 = vmatmul.mubr.bf16.gmra.mrb[0].mxu0 %v717
  %v1665 = vpop.f32.mrb[0].mxu0
  %v1666 = vadd.f32 %v1505, %v1665
  %v1667 = vpop.f32.mrb[0].mxu0
  %v1668 = vpop.f32.mrb[0].mxu0
  %v1669 = vadd.f32 %v1508, %v1668
  %v1670 = vpop.f32.mrb[0].mxu0
  %1671 = vdwg.mxu0
  %1672 = vmatprep.subr.bf16.mxu0 0
  %1673 = vmatpush1.bf16.msra.mxu0 %v1080
  %1674 = vmatprep.subr.bf16.mxu0 0
  %1675 = vmatpush1.bf16.msra.mxu0 %v1081
  %1676 = vmatprep.subr.bf16.mxu0 0
  %1677 = vmatpush1.bf16.msra.mxu0 %v1082
  %1678 = vmatprep.subr.bf16.mxu0 0
  %1679 = vmatpush1.bf16.msra.mxu0 %v1083
  %1680 = vmatprep.subr.bf16.mxu0 0
  %1681 = vmatpush1.bf16.msra.mxu0 %v1084
  %1682 = vmatprep.subr.bf16.mxu0 0
  %1683 = vmatpush1.bf16.msra.mxu0 %v1085
  %1684 = vmatprep.subr.bf16.mxu0 0
  %1685 = vmatpush1.bf16.msra.mxu0 0
  %1686 = vmatprep.subr.bf16.mxu0 0
  %1687 = vmatpush1.bf16.msra.mxu0 0
  %1688 = vmatprep.subr.bf16.mxu0 0
  %1689 = vmatpush1.bf16.msra.mxu0 0
  %1690 = vmatprep.subr.bf16.mxu0 0
  %1691 = vmatpush1.bf16.msra.mxu0 0
  %1692 = vmatprep.subr.bf16.mxu0 0
  %1693 = vmatpush1.bf16.msra.mxu0 0
  %1694 = vmatprep.subr.bf16.mxu0 0
  %1695 = vmatpush1.bf16.msra.mxu0 0
  %1696 = vmatprep.subr.bf16.mxu0 0
  %1697 = vmatpush1.bf16.msra.mxu0 0
  %1698 = vmatprep.subr.bf16.mxu0 0
  %1699 = vmatpush1.bf16.msra.mxu0 0
  %1700 = vmatprep.subr.bf16.mxu0 0
  %1701 = vmatpush1.bf16.msra.mxu0 0
  %1702 = vmatprep.subr.bf16.mxu0 0
  %1703 = vmatpush1.bf16.msra.mxu0 0
  %1704 = vmatprep.mubr.bf16.mxu0 0
  %1705 = vmatmul.mubr.bf16.gmra.mrb[0].mxu0 %v1142
  %v1706 = vpop.f32.mrb[0].mxu0
  %v1707 = vadd.f32 %v1546, %v1706
  %v1708 = vpop.f32.mrb[0].mxu0
  %v1709 = vpop.f32.mrb[0].mxu0
  %v1710 = vadd.f32 %v1549, %v1709
  %v1711 = vpop.f32.mrb[0].mxu0
  %1712 = vmatprep.mubr.bf16.mxu0 0
  %1713 = vmatmul.mubr.bf16.gmra.mrb[0].mxu0 %v1145
  %v1714 = vpop.f32.mrb[0].mxu0
  %v1715 = vadd.f32 %v1554, %v1714
  %v1716 = vpop.f32.mrb[0].mxu0
  %v1717 = vpop.f32.mrb[0].mxu0
  %v1718 = vadd.f32 %v1557, %v1717
  %v1719 = vpop.f32.mrb[0].mxu0
  %1720 = vmatprep.mubr.bf16.mxu0 0
  %1721 = vmatmul.mubr.bf16.gmra.mrb[0].mxu0 %v1148
  %v1722 = vpop.f32.mrb[0].mxu0
  %v1723 = vadd.f32 %v1562, %v1722
  %v1724 = vpop.f32.mrb[0].mxu0
  %v1725 = vpop.f32.mrb[0].mxu0
  %v1726 = vadd.f32 %v1565, %v1725
  %v1727 = vpop.f32.mrb[0].mxu0
  %1728 = vmatprep.mubr.bf16.mxu0 0
  %1729 = vmatmul.mubr.bf16.gmra.mrb[0].mxu0 %v1151
  %v1730 = vpop.f32.mrb[0].mxu0
  %v1731 = vadd.f32 %v1570, %v1730
  %v1732 = vpop.f32.mrb[0].mxu0
  %v1733 = vpop.f32.mrb[0].mxu0
  %v1734 = vadd.f32 %v1573, %v1733
  %v1735 = vpop.f32.mrb[0].mxu0
  %1736 = vmatprep.mubr.bf16.mxu0 0
  %1737 = vmatmul.mubr.bf16.gmra.mrb[0].mxu0 %v1154
  %v1738 = vpop.f32.mrb[0].mxu0
  %v1739 = vadd.f32 %v1578, %v1738
  %v1740 = vpop.f32.mrb[0].mxu0
  %v1741 = vpop.f32.mrb[0].mxu0
  %v1742 = vadd.f32 %v1581, %v1741
  %v1743 = vpop.f32.mrb[0].mxu0
  %1744 = vmatprep.mubr.bf16.mxu0 0
  %1745 = vmatmul.mubr.bf16.gmra.mrb[0].mxu0 %v1157
  %v1746 = vpop.f32.mrb[0].mxu0
  %v1747 = vadd.f32 %v1586, %v1746
  %v1748 = vpop.f32.mrb[0].mxu0
  %v1749 = vpop.f32.mrb[0].mxu0
  %v1750 = vadd.f32 %v1589, %v1749
  %v1751 = vpop.f32.mrb[0].mxu0
  %1752 = vmatprep.mubr.bf16.mxu0 0
  %1753 = vmatmul.mubr.bf16.gmra.mrb[0].mxu0 %v1160
  %v1754 = vpop.f32.mrb[0].mxu0
  %v1755 = vadd.f32 %v1594, %v1754
  %v1756 = vpop.f32.mrb[0].mxu0
  %v1757 = vpop.f32.mrb[0].mxu0
  %v1758 = vadd.f32 %v1597, %v1757
  %v1759 = vpop.f32.mrb[0].mxu0
  %1760 = vmatprep.mubr.bf16.mxu0 0
  %1761 = vmatmul.mubr.bf16.gmra.mrb[0].mxu0 %v1163
  %v1762 = vpop.f32.mrb[0].mxu0
  %v1763 = vadd.f32 %v1602, %v1762
  %v1764 = vpop.f32.mrb[0].mxu0
  %v1765 = vpop.f32.mrb[0].mxu0
  %v1766 = vadd.f32 %v1605, %v1765
  %v1767 = vpop.f32.mrb[0].mxu0
  %1768 = vmatprep.mubr.bf16.mxu0 0
  %1769 = vmatmul.mubr.bf16.gmra.mrb[0].mxu0 %v1166
  %v1770 = vpop.f32.mrb[0].mxu0
  %v1771 = vadd.f32 %v1610, %v1770
  %v1772 = vpop.f32.mrb[0].mxu0
  %v1773 = vpop.f32.mrb[0].mxu0
  %v1774 = vadd.f32 %v1613, %v1773
  %v1775 = vpop.f32.mrb[0].mxu0
  %1776 = vmatprep.mubr.bf16.mxu0 0
  %1777 = vmatmul.mubr.bf16.gmra.mrb[0].mxu0 %v1169
  %v1778 = vpop.f32.mrb[0].mxu0
  %v1779 = vadd.f32 %v1618, %v1778
  %v1780 = vpop.f32.mrb[0].mxu0
  %v1781 = vpop.f32.mrb[0].mxu0
  %v1782 = vadd.f32 %v1621, %v1781
  %v1783 = vpop.f32.mrb[0].mxu0
  %1784 = vmatprep.mubr.bf16.mxu0 0
  %1785 = vmatmul.mubr.bf16.gmra.mrb[0].mxu0 %v1172
  %v1786 = vpop.f32.mrb[0].mxu0
  %v1787 = vadd.f32 %v1626, %v1786
  %v1788 = vpop.f32.mrb[0].mxu0
  %v1789 = vpop.f32.mrb[0].mxu0
  %v1790 = vadd.f32 %v1629, %v1789
  %v1791 = vpop.f32.mrb[0].mxu0
  %1792 = vmatprep.mubr.bf16.mxu0 0
  %1793 = vmatmul.mubr.bf16.gmra.mrb[0].mxu0 %v1175
  %v1794 = vpop.f32.mrb[0].mxu0
  %v1795 = vadd.f32 %v1634, %v1794
  %v1796 = vpop.f32.mrb[0].mxu0
  %v1797 = vpop.f32.mrb[0].mxu0
  %v1798 = vadd.f32 %v1637, %v1797
  %v1799 = vpop.f32.mrb[0].mxu0
  %1800 = vmatprep.mubr.bf16.mxu0 0
  %1801 = vmatmul.mubr.bf16.gmra.mrb[0].mxu0 %v1178
  %v1802 = vpop.f32.mrb[0].mxu0
  %v1803 = vadd.f32 %v1642, %v1802
  %v1804 = vpop.f32.mrb[0].mxu0
  %v1805 = vpop.f32.mrb[0].mxu0
  %v1806 = vadd.f32 %v1645, %v1805
  %v1807 = vpop.f32.mrb[0].mxu0
  %1808 = vmatprep.mubr.bf16.mxu0 0
  %1809 = vmatmul.mubr.bf16.gmra.mrb[0].mxu0 %v1181
  %v1810 = vpop.f32.mrb[0].mxu0
  %v1811 = vadd.f32 %v1650, %v1810
  %v1812 = vpop.f32.mrb[0].mxu0
  %v1813 = vpop.f32.mrb[0].mxu0
  %v1814 = vadd.f32 %v1653, %v1813
  %v1815 = vpop.f32.mrb[0].mxu0
  %1816 = vmatprep.mubr.bf16.mxu0 0
  %1817 = vmatmul.mubr.bf16.gmra.mrb[0].mxu0 %v1184
  %v1818 = vpop.f32.mrb[0].mxu0
  %v1819 = vadd.f32 %v1658, %v1818
  %v1820 = vpop.f32.mrb[0].mxu0
  %v1821 = vpop.f32.mrb[0].mxu0
  %v1822 = vadd.f32 %v1661, %v1821
  %v1823 = vpop.f32.mrb[0].mxu0
  %1824 = vmatprep.mubr.bf16.mxu0 0
  %1825 = vmatmul.mubr.bf16.gmra.mrb[0].mxu0 %v1187
  %v1826 = vpop.f32.mrb[0].mxu0
  %v1827 = vadd.f32 %v1666, %v1826
  %v1828 = vpop.f32.mrb[0].mxu0
  %v1829 = vpop.f32.mrb[0].mxu0
  %v1830 = vadd.f32 %v1669, %v1829
  %v1831 = vpop.f32.mrb[0].mxu0
  %1832 = vdwg.mxu0
  %v1833 = vld [vmem:[%s1] sm:$0xf]
  %v1834 = vld [vmem:[%s1 + $0x4] sm:$0xf]
  %v1835 = vld [vmem:[%s1 + $0x8] sm:$0xf]
  %v1836 = vld [vmem:[%s1 + $0xc] sm:$0xf]
  %v1837 = vld [vmem:[%s1 + $0x10] sm:$0xf]
  %v1838 = vld [vmem:[%s1 + $0x14] sm:$0xf]
  %v1839 = vld [vmem:[%s1 + $0x18] sm:$0xf]
  %v1840 = vld [vmem:[%s1 + $0x1c] sm:$0xf]
  %v1841 = vld [vmem:[%s1 + $0x20] sm:$0xf]
  %v1842 = vld [vmem:[%s1 + $0x24] sm:$0xf]
  %v1843 = vld [vmem:[%s1 + $0x28] sm:$0xf]
  %v1844 = vld [vmem:[%s1 + $0x2c] sm:$0xf]
  %v1845 = vld [vmem:[%s1 + $0x30] sm:$0xf]
  %v1846 = vld [vmem:[%s1 + $0x34] sm:$0xf]
  %v1847 = vld [vmem:[%s1 + $0x38] sm:$0xf]
  %v1848 = vld [vmem:[%s1 + $0x3c] sm:$0xf]
  %v1849 = vld [vmem:[%s1 + $0x40] sm:$0xf]
  %v1850 = vld [vmem:[%s1 + $0x44] sm:$0xf]
  %v1851 = vld [vmem:[%s1 + $0x48] sm:$0xf]
  %v1852 = vld [vmem:[%s1 + $0x4c] sm:$0xf]
  %v1853 = vld [vmem:[%s1 + $0x50] sm:$0xf]
  %v1854 = vld [vmem:[%s1 + $0x54] sm:$0xf]
  %v1855 = vld [vmem:[%s1 + $0x58] sm:$0xf]
  %v1856 = vld [vmem:[%s1 + $0x5c] sm:$0xf]
  %v1857 = vld [vmem:[%s1 + $0x60] sm:$0xf]
  %v1858 = vld [vmem:[%s1 + $0x64] sm:$0xf]
  %v1859 = vld [vmem:[%s1 + $0x68] sm:$0xf]
  %v1860 = vld [vmem:[%s1 + $0x6c] sm:$0xf]
  %v1861 = vld [vmem:[%s1 + $0x70] sm:$0xf]
  %v1862 = vld [vmem:[%s1 + $0x74] sm:$0xf]
  %v1863 = vld [vmem:[%s1 + $0x78] sm:$0xf]
  %v1864 = vld [vmem:[%s1 + $0x7c] sm:$0xf]
  %v1865 = vld [vmem:[%s3] sm:$0xf]
  %v1866 = vld [vmem:[%s3 + $0x4] sm:$0xf]
  %v1867 = vld [vmem:[%s3 + $0x8] sm:$0xf]
  %v1868 = vld [vmem:[%s3 + $0xc] sm:$0xf]
  %v1901 = vunpack.c.l.b16 %v1833
  %v1902 = vunpack.c.l.b16 %v1834
  %v1903 = vunpack.c.l.b16 %v1835
  %v1904 = vunpack.c.l.b16 %v1836
  %v1905 = vunpack.c.l.b16 %v1837
  %v1906 = vunpack.c.l.b16 %v1838
  %v1907 = vunpack.c.l.b16 %v1839
  %v1908 = vunpack.c.l.b16 %v1840
  %v1909 = vunpack.c.l.b16 %v1841
  %v1910 = vunpack.c.l.b16 %v1842
  %v1911 = vunpack.c.l.b16 %v1843
  %v1912 = vunpack.c.l.b16 %v1844
  %v1913 = vunpack.c.l.b16 %v1845
  %v1914 = vunpack.c.l.b16 %v1846
  %v1915 = vunpack.c.l.b16 %v1847
  %v1916 = vunpack.c.l.b16 %v1848
  %v1917 = vunpack.c.l.b16 %v1849
  %v1918 = vunpack.c.l.b16 %v1850
  %v1919 = vunpack.c.l.b16 %v1851
  %v1920 = vunpack.c.l.b16 %v1852
  %v1921 = vunpack.c.l.b16 %v1853
  %v1922 = vunpack.c.l.b16 %v1854
  %v1923 = vunpack.c.l.b16 %v1855
  %v1924 = vunpack.c.l.b16 %v1856
  %v1925 = vunpack.c.l.b16 %v1857
  %v1926 = vunpack.c.l.b16 %v1858
  %v1927 = vunpack.c.l.b16 %v1859
  %v1928 = vunpack.c.l.b16 %v1860
  %v1929 = vunpack.c.l.b16 %v1861
  %v1930 = vunpack.c.l.b16 %v1862
  %v1931 = vunpack.c.l.b16 %v1863
  %v1932 = vunpack.c.l.b16 %v1864
  %v1933 = vpack.c.b16 %v1902, %v1901
  %v1934 = vpack.c.b16 %v1904, %v1903
  %v1935 = vpack.c.b16 %v1906, %v1905
  %v1936 = vpack.c.b16 %v1908, %v1907
  %v1937 = vpack.c.b16 %v1910, %v1909
  %v1938 = vpack.c.b16 %v1912, %v1911
  %v1939 = vpack.c.b16 %v1914, %v1913
  %v1940 = vpack.c.b16 %v1916, %v1915
  %v1941 = vpack.c.b16 %v1918, %v1917
  %v1942 = vpack.c.b16 %v1920, %v1919
  %v1943 = vpack.c.b16 %v1922, %v1921
  %v1944 = vpack.c.b16 %v1924, %v1923
  %v1945 = vpack.c.b16 %v1926, %v1925
  %v1946 = vpack.c.b16 %v1928, %v1927
  %v1947 = vpack.c.b16 %v1930, %v1929
  %v1948 = vpack.c.b16 %v1932, %v1931
  %v1953 = vunpack.c.l.b16 %v1865
  %v1954 = vunpack.c.l.b16 %v1866
  %v1955 = vunpack.c.l.b16 %v1867
  %v1956 = vunpack.c.l.b16 %v1868
  %v1957 = vpack.c.b16 %v1954, %v1953
  %v1958 = vpack.c.b16 %v1956, %v1955
  %vm1961 = vcmask 261120
  %v1963 = vsel %vm1961, %v1933, 0
  %v1966 = vsel %vm1961, %v1934, 0
  %v1969 = vsel %vm1961, %v1935, 0
  %v1972 = vsel %vm1961, %v1936, 0
  %v1975 = vsel %vm1961, %v1937, 0
  %v1978 = vsel %vm1961, %v1938, 0
  %v1981 = vsel %vm1961, %v1939, 0
  %v1984 = vsel %vm1961, %v1940, 0
  %v1987 = vsel %vm1961, %v1941, 0
  %v1990 = vsel %vm1961, %v1942, 0
  %v1993 = vsel %vm1961, %v1943, 0
  %v1996 = vsel %vm1961, %v1944, 0
  %v1999 = vsel %vm1961, %v1945, 0
  %v2002 = vsel %vm1961, %v1946, 0
  %v2005 = vsel %vm1961, %v1947, 0
  %v2008 = vsel %vm1961, %v1948, 0
  %2010 = vmatprep.subr.bf16.mxu0 0
  %2011 = vmatpush1.bf16.msra.mxu0 %v1957
  %2012 = vmatprep.subr.bf16.mxu0 0
  %2013 = vmatpush1.bf16.msra.mxu0 %v1958
  %2014 = vmatprep.subr.bf16.mxu0 0
  %2015 = vmatpush1.bf16.msra.mxu0 0
  %2016 = vmatprep.subr.bf16.mxu0 0
  %2017 = vmatpush1.bf16.msra.mxu0 0
  %2018 = vmatprep.subr.bf16.mxu0 0
  %2019 = vmatpush1.bf16.msra.mxu0 0
  %2020 = vmatprep.subr.bf16.mxu0 0
  %2021 = vmatpush1.bf16.msra.mxu0 0
  %2022 = vmatprep.subr.bf16.mxu0 0
  %2023 = vmatpush1.bf16.msra.mxu0 0
  %2024 = vmatprep.subr.bf16.mxu0 0
  %2025 = vmatpush1.bf16.msra.mxu0 0
  %2026 = vmatprep.subr.bf16.mxu0 0
  %2027 = vmatpush1.bf16.msra.mxu0 0
  %2028 = vmatprep.subr.bf16.mxu0 0
  %2029 = vmatpush1.bf16.msra.mxu0 0
  %2030 = vmatprep.subr.bf16.mxu0 0
  %2031 = vmatpush1.bf16.msra.mxu0 0
  %2032 = vmatprep.subr.bf16.mxu0 0
  %2033 = vmatpush1.bf16.msra.mxu0 0
  %2034 = vmatprep.subr.bf16.mxu0 0
  %2035 = vmatpush1.bf16.msra.mxu0 0
  %2036 = vmatprep.subr.bf16.mxu0 0
  %2037 = vmatpush1.bf16.msra.mxu0 0
  %2038 = vmatprep.subr.bf16.mxu0 0
  %2039 = vmatpush1.bf16.msra.mxu0 0
  %2040 = vmatprep.subr.bf16.mxu0 0
  %2041 = vmatpush1.bf16.msra.mxu0 0
  %2042 = vmatprep.mubr.bf16.mxu0 0
  %2043 = vmatmul.mubr.bf16.gmra.mrb[0].mxu0 %v1963
  %v2044 = vpop.f32.mrb[0].mxu0
  %v2045 = vadd.f32 0.0, %v2044
  %v2046 = vpop.f32.mrb[0].mxu0
  %v2047 = vpop.f32.mrb[0].mxu0
  %v2048 = vadd.f32 0.0, %v2047
  %v2049 = vpop.f32.mrb[0].mxu0
  %2050 = vmatprep.mubr.bf16.mxu0 0
  %2051 = vmatmul.mubr.bf16.gmra.mrb[0].mxu0 %v1966
  %v2052 = vpop.f32.mrb[0].mxu0
  %v2053 = vadd.f32 0.0, %v2052
  %v2054 = vpop.f32.mrb[0].mxu0
  %v2055 = vpop.f32.mrb[0].mxu0
  %v2056 = vadd.f32 0.0, %v2055
  %v2057 = vpop.f32.mrb[0].mxu0
  %2058 = vmatprep.mubr.bf16.mxu0 0
  %2059 = vmatmul.mubr.bf16.gmra.mrb[0].mxu0 %v1969
  %v2060 = vpop.f32.mrb[0].mxu0
  %v2061 = vadd.f32 0.0, %v2060
  %v2062 = vpop.f32.mrb[0].mxu0
  %v2063 = vpop.f32.mrb[0].mxu0
  %v2064 = vadd.f32 0.0, %v2063
  %v2065 = vpop.f32.mrb[0].mxu0
  %2066 = vmatprep.mubr.bf16.mxu0 0
  %2067 = vmatmul.mubr.bf16.gmra.mrb[0].mxu0 %v1972
  %v2068 = vpop.f32.mrb[0].mxu0
  %v2069 = vadd.f32 0.0, %v2068
  %v2070 = vpop.f32.mrb[0].mxu0
  %v2071 = vpop.f32.mrb[0].mxu0
  %v2072 = vadd.f32 0.0, %v2071
  %v2073 = vpop.f32.mrb[0].mxu0
  %2074 = vmatprep.mubr.bf16.mxu0 0
  %2075 = vmatmul.mubr.bf16.gmra.mrb[0].mxu0 %v1975
  %v2076 = vpop.f32.mrb[0].mxu0
  %v2077 = vadd.f32 0.0, %v2076
  %v2078 = vpop.f32.mrb[0].mxu0
  %v2079 = vpop.f32.mrb[0].mxu0
  %v2080 = vadd.f32 0.0, %v2079
  %v2081 = vpop.f32.mrb[0].mxu0
  %2082 = vmatprep.mubr.bf16.mxu0 0
  %2083 = vmatmul.mubr.bf16.gmra.mrb[0].mxu0 %v1978
  %v2084 = vpop.f32.mrb[0].mxu0
  %v2085 = vadd.f32 0.0, %v2084
  %v2086 = vpop.f32.mrb[0].mxu0
  %v2087 = vpop.f32.mrb[0].mxu0
  %v2088 = vadd.f32 0.0, %v2087
  %v2089 = vpop.f32.mrb[0].mxu0
  %2090 = vmatprep.mubr.bf16.mxu0 0
  %2091 = vmatmul.mubr.bf16.gmra.mrb[0].mxu0 %v1981
  %v2092 = vpop.f32.mrb[0].mxu0
  %v2093 = vadd.f32 0.0, %v2092
  %v2094 = vpop.f32.mrb[0].mxu0
  %v2095 = vpop.f32.mrb[0].mxu0
  %v2096 = vadd.f32 0.0, %v2095
  %v2097 = vpop.f32.mrb[0].mxu0
  %2098 = vmatprep.mubr.bf16.mxu0 0
  %2099 = vmatmul.mubr.bf16.gmra.mrb[0].mxu0 %v1984
  %v2100 = vpop.f32.mrb[0].mxu0
  %v2101 = vadd.f32 0.0, %v2100
  %v2102 = vpop.f32.mrb[0].mxu0
  %v2103 = vpop.f32.mrb[0].mxu0
  %v2104 = vadd.f32 0.0, %v2103
  %v2105 = vpop.f32.mrb[0].mxu0
  %2106 = vmatprep.mubr.bf16.mxu0 0
  %2107 = vmatmul.mubr.bf16.gmra.mrb[0].mxu0 %v1987
  %v2108 = vpop.f32.mrb[0].mxu0
  %v2109 = vadd.f32 0.0, %v2108
  %v2110 = vpop.f32.mrb[0].mxu0
  %v2111 = vpop.f32.mrb[0].mxu0
  %v2112 = vadd.f32 0.0, %v2111
  %v2113 = vpop.f32.mrb[0].mxu0
  %2114 = vmatprep.mubr.bf16.mxu0 0
  %2115 = vmatmul.mubr.bf16.gmra.mrb[0].mxu0 %v1990
  %v2116 = vpop.f32.mrb[0].mxu0
  %v2117 = vadd.f32 0.0, %v2116
  %v2118 = vpop.f32.mrb[0].mxu0
  %v2119 = vpop.f32.mrb[0].mxu0
  %v2120 = vadd.f32 0.0, %v2119
  %v2121 = vpop.f32.mrb[0].mxu0
  %2122 = vmatprep.mubr.bf16.mxu0 0
  %2123 = vmatmul.mubr.bf16.gmra.mrb[0].mxu0 %v1993
  %v2124 = vpop.f32.mrb[0].mxu0
  %v2125 = vadd.f32 0.0, %v2124
  %v2126 = vpop.f32.mrb[0].mxu0
  %v2127 = vpop.f32.mrb[0].mxu0
  %v2128 = vadd.f32 0.0, %v2127
  %v2129 = vpop.f32.mrb[0].mxu0
  %2130 = vmatprep.mubr.bf16.mxu0 0
  %2131 = vmatmul.mubr.bf16.gmra.mrb[0].mxu0 %v1996
  %v2132 = vpop.f32.mrb[0].mxu0
  %v2133 = vadd.f32 0.0, %v2132
  %v2134 = vpop.f32.mrb[0].mxu0
  %v2135 = vpop.f32.mrb[0].mxu0
  %v2136 = vadd.f32 0.0, %v2135
  %v2137 = vpop.f32.mrb[0].mxu0
  %2138 = vmatprep.mubr.bf16.mxu0 0
  %2139 = vmatmul.mubr.bf16.gmra.mrb[0].mxu0 %v1999
  %v2140 = vpop.f32.mrb[0].mxu0
  %v2141 = vadd.f32 0.0, %v2140
  %v2142 = vpop.f32.mrb[0].mxu0
  %v2143 = vpop.f32.mrb[0].mxu0
  %v2144 = vadd.f32 0.0, %v2143
  %v2145 = vpop.f32.mrb[0].mxu0
  %2146 = vmatprep.mubr.bf16.mxu0 0
  %2147 = vmatmul.mubr.bf16.gmra.mrb[0].mxu0 %v2002
  %v2148 = vpop.f32.mrb[0].mxu0
  %v2149 = vadd.f32 0.0, %v2148
  %v2150 = vpop.f32.mrb[0].mxu0
  %v2151 = vpop.f32.mrb[0].mxu0
  %v2152 = vadd.f32 0.0, %v2151
  %v2153 = vpop.f32.mrb[0].mxu0
  %2154 = vmatprep.mubr.bf16.mxu0 0
  %2155 = vmatmul.mubr.bf16.gmra.mrb[0].mxu0 %v2005
  %v2156 = vpop.f32.mrb[0].mxu0
  %v2157 = vadd.f32 0.0, %v2156
  %v2158 = vpop.f32.mrb[0].mxu0
  %v2159 = vpop.f32.mrb[0].mxu0
  %v2160 = vadd.f32 0.0, %v2159
  %v2161 = vpop.f32.mrb[0].mxu0
  %2162 = vmatprep.mubr.bf16.mxu0 0
  %2163 = vmatmul.mubr.bf16.gmra.mrb[0].mxu0 %v2008
  %v2164 = vpop.f32.mrb[0].mxu0
  %v2165 = vadd.f32 0.0, %v2164
  %v2166 = vpop.f32.mrb[0].mxu0
  %v2167 = vpop.f32.mrb[0].mxu0
  %v2168 = vadd.f32 0.0, %v2167
  %v2169 = vpop.f32.mrb[0].mxu0
  %2170 = vdwg.mxu0
  %v2171 = vpack.c.bf16 %v1710, %v1707
  %v2172 = vpack.c.bf16 %v1718, %v1715
  %v2173 = vpack.c.bf16 %v1726, %v1723
  %v2174 = vpack.c.bf16 %v1734, %v1731
  %v2175 = vpack.c.bf16 %v1742, %v1739
  %v2176 = vpack.c.bf16 %v1750, %v1747
  %v2177 = vpack.c.bf16 %v1758, %v1755
  %v2178 = vpack.c.bf16 %v1766, %v1763
  %v2179 = vpack.c.bf16 %v1774, %v1771
  %v2180 = vpack.c.bf16 %v1782, %v1779
  %v2181 = vpack.c.bf16 %v1790, %v1787
  %v2182 = vpack.c.bf16 %v1798, %v1795
  %v2183 = vpack.c.bf16 %v1806, %v1803
  %v2184 = vpack.c.bf16 %v1814, %v1811
  %v2185 = vpack.c.bf16 %v1822, %v1819
  %v2186 = vpack.c.bf16 %v1830, %v1827
  %v2203 = vunpack.c.l.b16 %v2171
  %v2204 = vunpack.c.h.b16 %v2171
  %v2205 = vunpack.c.l.b16 %v2172
  %v2206 = vunpack.c.h.b16 %v2172
  %v2207 = vunpack.c.l.b16 %v2173
  %v2208 = vunpack.c.h.b16 %v2173
  %v2209 = vunpack.c.l.b16 %v2174
  %v2210 = vunpack.c.h.b16 %v2174
  %v2211 = vunpack.c.l.b16 %v2175
  %v2212 = vunpack.c.h.b16 %v2175
  %v2213 = vunpack.c.l.b16 %v2176
  %v2214 = vunpack.c.h.b16 %v2176
  %v2215 = vunpack.c.l.b16 %v2177
  %v2216 = vunpack.c.h.b16 %v2177
  %v2217 = vunpack.c.l.b16 %v2178
  %v2218 = vunpack.c.h.b16 %v2178
  %v2219 = vunpack.c.l.b16 %v2179
  %v2220 = vunpack.c.h.b16 %v2179
  %v2221 = vunpack.c.l.b16 %v2180
  %v2222 = vunpack.c.h.b16 %v2180
  %v2223 = vunpack.c.l.b16 %v2181
  %v2224 = vunpack.c.h.b16 %v2181
  %v2225 = vunpack.c.l.b16 %v2182
  %v2226 = vunpack.c.h.b16 %v2182
  %v2227 = vunpack.c.l.b16 %v2183
  %v2228 = vunpack.c.h.b16 %v2183
  %v2229 = vunpack.c.l.b16 %v2184
  %v2230 = vunpack.c.h.b16 %v2184
  %v2231 = vunpack.c.l.b16 %v2185
  %v2232 = vunpack.c.h.b16 %v2185
  %v2233 = vunpack.c.l.b16 %v2186
  %v2234 = vunpack.c.h.b16 %v2186
  %v2235 = vpack.c.b16 %v2203, %v2203
  %v2236 = vpack.c.b16 %v2204, %v2204
  %v2237 = vpack.c.b16 %v2205, %v2205
  %v2238 = vpack.c.b16 %v2206, %v2206
  %v2239 = vpack.c.b16 %v2207, %v2207
  %v2240 = vpack.c.b16 %v2208, %v2208
  %v2241 = vpack.c.b16 %v2209, %v2209
  %v2242 = vpack.c.b16 %v2210, %v2210
  %v2243 = vpack.c.b16 %v2211, %v2211
  %v2244 = vpack.c.b16 %v2212, %v2212
  %v2245 = vpack.c.b16 %v2213, %v2213
  %v2246 = vpack.c.b16 %v2214, %v2214
  %v2247 = vpack.c.b16 %v2215, %v2215
  %v2248 = vpack.c.b16 %v2216, %v2216
  %v2249 = vpack.c.b16 %v2217, %v2217
  %v2250 = vpack.c.b16 %v2218, %v2218
  %v2251 = vpack.c.b16 %v2219, %v2219
  %v2252 = vpack.c.b16 %v2220, %v2220
  %v2253 = vpack.c.b16 %v2221, %v2221
  %v2254 = vpack.c.b16 %v2222, %v2222
  %v2255 = vpack.c.b16 %v2223, %v2223
  %v2256 = vpack.c.b16 %v2224, %v2224
  %v2257 = vpack.c.b16 %v2225, %v2225
  %v2258 = vpack.c.b16 %v2226, %v2226
  %v2259 = vpack.c.b16 %v2227, %v2227
  %v2260 = vpack.c.b16 %v2228, %v2228
  %v2261 = vpack.c.b16 %v2229, %v2229
  %v2262 = vpack.c.b16 %v2230, %v2230
  %v2263 = vpack.c.b16 %v2231, %v2231
  %v2264 = vpack.c.b16 %v2232, %v2232
  %v2265 = vpack.c.b16 %v2233, %v2233
  %v2266 = vpack.c.b16 %v2234, %v2234
  %vm2299 = vcmask 257024
  %2300 = vst.msk [vmem:[%s4] sm:$0xf] %vm2299, %v2235
  %2301 = vst.msk [vmem:[%s4 + $0x4] sm:$0xf] %vm2299, %v2236
  %2302 = vst.msk [vmem:[%s4 + $0x8] sm:$0xf] %vm2299, %v2237
  %2303 = vst.msk [vmem:[%s4 + $0xc] sm:$0xf] %vm2299, %v2238
  %2304 = vst.msk [vmem:[%s4 + $0x10] sm:$0xf] %vm2299, %v2239
  %2305 = vst.msk [vmem:[%s4 + $0x14] sm:$0xf] %vm2299, %v2240
  %2306 = vst.msk [vmem:[%s4 + $0x18] sm:$0xf] %vm2299, %v2241
  %2307 = vst.msk [vmem:[%s4 + $0x1c] sm:$0xf] %vm2299, %v2242
  %2308 = vst.msk [vmem:[%s4 + $0x20] sm:$0xf] %vm2299, %v2243
  %2309 = vst.msk [vmem:[%s4 + $0x24] sm:$0xf] %vm2299, %v2244
  %2310 = vst.msk [vmem:[%s4 + $0x28] sm:$0xf] %vm2299, %v2245
  %2311 = vst.msk [vmem:[%s4 + $0x2c] sm:$0xf] %vm2299, %v2246
  %2312 = vst.msk [vmem:[%s4 + $0x30] sm:$0xf] %vm2299, %v2247
  %2313 = vst.msk [vmem:[%s4 + $0x34] sm:$0xf] %vm2299, %v2248
  %2314 = vst.msk [vmem:[%s4 + $0x38] sm:$0xf] %vm2299, %v2249
  %2315 = vst.msk [vmem:[%s4 + $0x3c] sm:$0xf] %vm2299, %v2250
  %2316 = vst.msk [vmem:[%s4 + $0x40] sm:$0xf] %vm2299, %v2251
  %2317 = vst.msk [vmem:[%s4 + $0x44] sm:$0xf] %vm2299, %v2252
  %2318 = vst.msk [vmem:[%s4 + $0x48] sm:$0xf] %vm2299, %v2253
  %2319 = vst.msk [vmem:[%s4 + $0x4c] sm:$0xf] %vm2299, %v2254
  %2320 = vst.msk [vmem:[%s4 + $0x50] sm:$0xf] %vm2299, %v2255
  %2321 = vst.msk [vmem:[%s4 + $0x54] sm:$0xf] %vm2299, %v2256
  %2322 = vst.msk [vmem:[%s4 + $0x58] sm:$0xf] %vm2299, %v2257
  %2323 = vst.msk [vmem:[%s4 + $0x5c] sm:$0xf] %vm2299, %v2258
  %2324 = vst.msk [vmem:[%s4 + $0x60] sm:$0xf] %vm2299, %v2259
  %2325 = vst.msk [vmem:[%s4 + $0x64] sm:$0xf] %vm2299, %v2260
  %2326 = vst.msk [vmem:[%s4 + $0x68] sm:$0xf] %vm2299, %v2261
  %2327 = vst.msk [vmem:[%s4 + $0x6c] sm:$0xf] %vm2299, %v2262
  %2328 = vst.msk [vmem:[%s4 + $0x70] sm:$0xf] %vm2299, %v2263
  %2329 = vst.msk [vmem:[%s4 + $0x74] sm:$0xf] %vm2299, %v2264
  %2330 = vst.msk [vmem:[%s4 + $0x78] sm:$0xf] %vm2299, %v2265
  %2331 = vst.msk [vmem:[%s4 + $0x7c] sm:$0xf] %vm2299, %v2266
  %v2332 = vpack.c.bf16 %v2048, %v2045
  %v2333 = vpack.c.bf16 %v2056, %v2053
  %v2334 = vpack.c.bf16 %v2064, %v2061
  %v2335 = vpack.c.bf16 %v2072, %v2069
  %v2336 = vpack.c.bf16 %v2080, %v2077
  %v2337 = vpack.c.bf16 %v2088, %v2085
  %v2338 = vpack.c.bf16 %v2096, %v2093
  %v2339 = vpack.c.bf16 %v2104, %v2101
  %v2340 = vpack.c.bf16 %v2112, %v2109
  %v2341 = vpack.c.bf16 %v2120, %v2117
  %v2342 = vpack.c.bf16 %v2128, %v2125
  %v2343 = vpack.c.bf16 %v2136, %v2133
  %v2344 = vpack.c.bf16 %v2144, %v2141
  %v2345 = vpack.c.bf16 %v2152, %v2149
  %v2346 = vpack.c.bf16 %v2160, %v2157
  %v2347 = vpack.c.bf16 %v2168, %v2165
  %v2364 = vunpack.c.l.b16 %v2332
  %v2365 = vunpack.c.h.b16 %v2332
  %v2366 = vunpack.c.l.b16 %v2333
  %v2367 = vunpack.c.h.b16 %v2333
  %v2368 = vunpack.c.l.b16 %v2334
  %v2369 = vunpack.c.h.b16 %v2334
  %v2370 = vunpack.c.l.b16 %v2335
  %v2371 = vunpack.c.h.b16 %v2335
  %v2372 = vunpack.c.l.b16 %v2336
  %v2373 = vunpack.c.h.b16 %v2336
  %v2374 = vunpack.c.l.b16 %v2337
  %v2375 = vunpack.c.h.b16 %v2337
  %v2376 = vunpack.c.l.b16 %v2338
  %v2377 = vunpack.c.h.b16 %v2338
  %v2378 = vunpack.c.l.b16 %v2339
  %v2379 = vunpack.c.h.b16 %v2339
  %v2380 = vunpack.c.l.b16 %v2340
  %v2381 = vunpack.c.h.b16 %v2340
  %v2382 = vunpack.c.l.b16 %v2341
  %v2383 = vunpack.c.h.b16 %v2341
  %v2384 = vunpack.c.l.b16 %v2342
  %v2385 = vunpack.c.h.b16 %v2342
  %v2386 = vunpack.c.l.b16 %v2343
  %v2387 = vunpack.c.h.b16 %v2343
  %v2388 = vunpack.c.l.b16 %v2344
  %v2389 = vunpack.c.h.b16 %v2344
  %v2390 = vunpack.c.l.b16 %v2345
  %v2391 = vunpack.c.h.b16 %v2345
  %v2392 = vunpack.c.l.b16 %v2346
  %v2393 = vunpack.c.h.b16 %v2346
  %v2394 = vunpack.c.l.b16 %v2347
  %v2395 = vunpack.c.h.b16 %v2347
  %v2396 = vpack.c.b16 %v2364, %v2364
  %v2397 = vpack.c.b16 %v2365, %v2365
  %v2398 = vpack.c.b16 %v2366, %v2366
  %v2399 = vpack.c.b16 %v2367, %v2367
  %v2400 = vpack.c.b16 %v2368, %v2368
  %v2401 = vpack.c.b16 %v2369, %v2369
  %v2402 = vpack.c.b16 %v2370, %v2370
  %v2403 = vpack.c.b16 %v2371, %v2371
  %v2404 = vpack.c.b16 %v2372, %v2372
  %v2405 = vpack.c.b16 %v2373, %v2373
  %v2406 = vpack.c.b16 %v2374, %v2374
  %v2407 = vpack.c.b16 %v2375, %v2375
  %v2408 = vpack.c.b16 %v2376, %v2376
  %v2409 = vpack.c.b16 %v2377, %v2377
  %v2410 = vpack.c.b16 %v2378, %v2378
  %v2411 = vpack.c.b16 %v2379, %v2379
  %v2412 = vpack.c.b16 %v2380, %v2380
  %v2413 = vpack.c.b16 %v2381, %v2381
  %v2414 = vpack.c.b16 %v2382, %v2382
  %v2415 = vpack.c.b16 %v2383, %v2383
  %v2416 = vpack.c.b16 %v2384, %v2384
  %v2417 = vpack.c.b16 %v2385, %v2385
  %v2418 = vpack.c.b16 %v2386, %v2386
  %v2419 = vpack.c.b16 %v2387, %v2387
  %v2420 = vpack.c.b16 %v2388, %v2388
  %v2421 = vpack.c.b16 %v2389, %v2389
  %v2422 = vpack.c.b16 %v2390, %v2390
  %v2423 = vpack.c.b16 %v2391, %v2391
  %v2424 = vpack.c.b16 %v2392, %v2392
  %v2425 = vpack.c.b16 %v2393, %v2393
  %v2426 = vpack.c.b16 %v2394, %v2394
  %v2427 = vpack.c.b16 %v2395, %v2395
  %2460 = vst.msk [vmem:[%s5] sm:$0xf] %vm2299, %v2396
  %2461 = vst.msk [vmem:[%s5 + $0x4] sm:$0xf] %vm2299, %v2397
  %2462 = vst.msk [vmem:[%s5 + $0x8] sm:$0xf] %vm2299, %v2398
  %2463 = vst.msk [vmem:[%s5 + $0xc] sm:$0xf] %vm2299, %v2399
  %2464 = vst.msk [vmem:[%s5 + $0x10] sm:$0xf] %vm2299, %v2400
  %2465 = vst.msk [vmem:[%s5 + $0x14] sm:$0xf] %vm2299, %v2401
  %2466 = vst.msk [vmem:[%s5 + $0x18] sm:$0xf] %vm2299, %v2402
  %2467 = vst.msk [vmem:[%s5 + $0x1c] sm:$0xf] %vm2299, %v2403
  %2468 = vst.msk [vmem:[%s5 + $0x20] sm:$0xf] %vm2299, %v2404
  %2469 = vst.msk [vmem:[%s5 + $0x24] sm:$0xf] %vm2299, %v2405
  %2470 = vst.msk [vmem:[%s5 + $0x28] sm:$0xf] %vm2299, %v2406
  %2471 = vst.msk [vmem:[%s5 + $0x2c] sm:$0xf] %vm2299, %v2407
  %2472 = vst.msk [vmem:[%s5 + $0x30] sm:$0xf] %vm2299, %v2408
  %2473 = vst.msk [vmem:[%s5 + $0x34] sm:$0xf] %vm2299, %v2409
  %2474 = vst.msk [vmem:[%s5 + $0x38] sm:$0xf] %vm2299, %v2410
  %2475 = vst.msk [vmem:[%s5 + $0x3c] sm:$0xf] %vm2299, %v2411
  %2476 = vst.msk [vmem:[%s5 + $0x40] sm:$0xf] %vm2299, %v2412
  %2477 = vst.msk [vmem:[%s5 + $0x44] sm:$0xf] %vm2299, %v2413
  %2478 = vst.msk [vmem:[%s5 + $0x48] sm:$0xf] %vm2299, %v2414
  %2479 = vst.msk [vmem:[%s5 + $0x4c] sm:$0xf] %vm2299, %v2415
  %2480 = vst.msk [vmem:[%s5 + $0x50] sm:$0xf] %vm2299, %v2416
  %2481 = vst.msk [vmem:[%s5 + $0x54] sm:$0xf] %vm2299, %v2417
  %2482 = vst.msk [vmem:[%s5 + $0x58] sm:$0xf] %vm2299, %v2418
  %2483 = vst.msk [vmem:[%s5 + $0x5c] sm:$0xf] %vm2299, %v2419
  %2484 = vst.msk [vmem:[%s5 + $0x60] sm:$0xf] %vm2299, %v2420
  %2485 = vst.msk [vmem:[%s5 + $0x64] sm:$0xf] %vm2299, %v2421
  %2486 = vst.msk [vmem:[%s5 + $0x68] sm:$0xf] %vm2299, %v2422
  %2487 = vst.msk [vmem:[%s5 + $0x6c] sm:$0xf] %vm2299, %v2423
  %2488 = vst.msk [vmem:[%s5 + $0x70] sm:$0xf] %vm2299, %v2424
  %2489 = vst.msk [vmem:[%s5 + $0x74] sm:$0xf] %vm2299, %v2425
  %2490 = vst.msk [vmem:[%s5 + $0x78] sm:$0xf] %vm2299, %v2426
  %2491 = vst.msk [vmem:[%s5 + $0x7c] sm:$0xf] %vm2299, %v2427
  // Predicated region
  $region18: #{_sgb_forward_impl.11} parent=0 // pred_check
    _
  $region19: #{_sgb_forward_impl.11} parent=0 // pred_check_branch
    %2493 = sbr.rel (0) target = $region21
  $region20: #{_sgb_forward_impl.11} parent=0 // pred_region
    _
  $region21: #{_sgb_forward_impl.11} parent=0 // pred_fallthru
    _
  // Predicated region
  $region22: #{_sgb_forward_impl.11} parent=0 // pred_check
    _
  $region23: #{_sgb_forward_impl.11} parent=0 // pred_check_branch
    %2495 = sbr.rel (0) target = $region25
  $region24: #{_sgb_forward_impl.11} parent=0 // pred_region
    _
  $region25: #{_sgb_forward_impl.11} parent=0 // pred_fallthru
    _
  // Predicated region
  $region26: #{_sgb_forward_impl.11} parent=0 // pred_check
    _
  $region27: #{_sgb_forward_impl.11} parent=0 // pred_check_branch
    %2497 = sbr.rel (0) target = $region29
  $region28: #{_sgb_forward_impl.11} parent=0 // pred_region
    _
  $region29: #{_sgb_forward_impl.11} parent=0 // pred_fallthru
    _
  // Predicated region
  $region30: #{_sgb_forward_impl.11} parent=0 // pred_check
    _
  $region31: #{_sgb_forward_impl.11} parent=0 // pred_check_branch
    %2499 = sbr.rel (0) target = $region33
  $region32: #{_sgb_forward_impl.11} parent=0 // pred_region
    _
  $region33: #{_sgb_forward_impl.11} parent=0 // pred_fallthru
    _

// kernel: _sgb_forward_impl.12
$region0: #{_sgb_forward_impl.12}
  #allocation0 [shape = 'u32[]', space=smem, size = 0x4, offset = 0x4, fixed_abs, tag = 'smem constant byte address 0x4 - core index']
  #allocation1 [shape = 'u32[144,128]{1,0:T(1,128)}', space=vmem, size = 0x12000, scoped, tag = 'internal scratch']
  %s0 = inlined_call_operand.vmem [shape: bf16[256,864], index: 0, kind: input, shape index: {}]
  %s1 = inlined_call_operand.vmem [shape: bf16[864,32], index: 1, kind: input, shape index: {}]
  %s2 = inlined_call_operand.vmem [shape: bf16[256,32], index: 2, kind: output, shape index: {}]
  %s3 = sld [smem:[#allocation0]]
  $region18: #{_sgb_forward_impl.12} parent=0
    _
  %s5 = ssub.s32 1, %s3
  %s6 = scalar_select 0, %s5, %s3
  // Predicated region
  $region2: #{_sgb_forward_impl.12} parent=0 // pred_check
    _
  $region3: #{_sgb_forward_impl.12} parent=0 // pred_check_branch
    %8 = sbr.rel (0) target = $region5
  $region4: #{_sgb_forward_impl.12} parent=0 // pred_region
    _
  $region5: #{_sgb_forward_impl.12} parent=0 // pred_fallthru
    _
  // Predicated region
  $region6: #{_sgb_forward_impl.12} parent=0 // pred_check
    _
  $region7: #{_sgb_forward_impl.12} parent=0 // pred_check_branch
    %10 = sbr.rel (0) target = $region9
  $region8: #{_sgb_forward_impl.12} parent=0 // pred_region
    _
  $region9: #{_sgb_forward_impl.12} parent=0 // pred_fallthru
    _
  %v12 = vld [vmem:[%s0] sm:$0xff]
  %v13 = vld [vmem:[%s0 + $0x8] sm:$0xff]
  %v14 = vld [vmem:[%s0 + $0x10] sm:$0xff]
  %v15 = vld [vmem:[%s0 + $0x18] sm:$0xf]
  %v16 = vld [vmem:[%s0 + $0x1c] sm:$0xff]
  %v17 = vld [vmem:[%s0 + $0x24] sm:$0xff]
  %v18 = vld [vmem:[%s0 + $0x2c] sm:$0xff]
  %v19 = vld [vmem:[%s0 + $0x34] sm:$0xf]
  %v20 = vld [vmem:[%s0 + $0x38] sm:$0xff]
  %v21 = vld [vmem:[%s0 + $0x40] sm:$0xff]
  %v22 = vld [vmem:[%s0 + $0x48] sm:$0xff]
  %v23 = vld [vmem:[%s0 + $0x50] sm:$0xf]
  %v24 = vld [vmem:[%s0 + $0x54] sm:$0xff]
  %v25 = vld [vmem:[%s0 + $0x5c] sm:$0xff]
  %v26 = vld [vmem:[%s0 + $0x64] sm:$0xff]
  %v27 = vld [vmem:[%s0 + $0x6c] sm:$0xf]
  %v28 = vld [vmem:[%s0 + $0x70] sm:$0xff]
  %v29 = vld [vmem:[%s0 + $0x78] sm:$0xff]
  %v30 = vld [vmem:[%s0 + $0x80] sm:$0xff]
  %v31 = vld [vmem:[%s0 + $0x88] sm:$0xf]
  %v32 = vld [vmem:[%s0 + $0x8c] sm:$0xff]
  %v33 = vld [vmem:[%s0 + $0x94] sm:$0xff]
  %v34 = vld [vmem:[%s0 + $0x9c] sm:$0xff]
  %v35 = vld [vmem:[%s0 + $0xa4] sm:$0xf]
  %v36 = vld [vmem:[%s0 + $0xa8] sm:$0xff]
  %v37 = vld [vmem:[%s0 + $0xb0] sm:$0xff]
  %v38 = vld [vmem:[%s0 + $0xb8] sm:$0xff]
  %v39 = vld [vmem:[%s0 + $0xc0] sm:$0xf]
  %v40 = vld [vmem:[%s0 + $0xc4] sm:$0xff]
  %v41 = vld [vmem:[%s0 + $0xcc] sm:$0xff]
  %v42 = vld [vmem:[%s0 + $0xd4] sm:$0xff]
  %v43 = vld [vmem:[%s0 + $0xdc] sm:$0xf]
  %v44 = vld [vmem:[%s0 + $0xe0] sm:$0xff]
  %v45 = vld [vmem:[%s0 + $0xe8] sm:$0xff]
  %v46 = vld [vmem:[%s0 + $0xf0] sm:$0xff]
  %v47 = vld [vmem:[%s0 + $0xf8] sm:$0xf]
  %v48 = vld [vmem:[%s0 + $0xfc] sm:$0xff]
  %v49 = vld [vmem:[%s0 + $0x104] sm:$0xff]
  %v50 = vld [vmem:[%s0 + $0x10c] sm:$0xff]
  %v51 = vld [vmem:[%s0 + $0x114] sm:$0xf]
  %v52 = vld [vmem:[%s0 + $0x118] sm:$0xff]
  %v53 = vld [vmem:[%s0 + $0x120] sm:$0xff]
  %v54 = vld [vmem:[%s0 + $0x128] sm:$0xff]
  %v55 = vld [vmem:[%s0 + $0x130] sm:$0xf]
  %v56 = vld [vmem:[%s0 + $0x134] sm:$0xff]
  %v57 = vld [vmem:[%s0 + $0x13c] sm:$0xff]
  %v58 = vld [vmem:[%s0 + $0x144] sm:$0xff]
  %v59 = vld [vmem:[%s0 + $0x14c] sm:$0xf]
  %v60 = vld [vmem:[%s0 + $0x150] sm:$0xff]
  %v61 = vld [vmem:[%s0 + $0x158] sm:$0xff]
  %v62 = vld [vmem:[%s0 + $0x160] sm:$0xff]
  %v63 = vld [vmem:[%s0 + $0x168] sm:$0xf]
  %v64 = vld [vmem:[%s0 + $0x16c] sm:$0xff]
  %v65 = vld [vmem:[%s0 + $0x174] sm:$0xff]
  %v66 = vld [vmem:[%s0 + $0x17c] sm:$0xff]
  %v67 = vld [vmem:[%s0 + $0x184] sm:$0xf]
  %v68 = vld [vmem:[%s0 + $0x188] sm:$0xff]
  %v69 = vld [vmem:[%s0 + $0x190] sm:$0xff]
  %v70 = vld [vmem:[%s0 + $0x198] sm:$0xff]
  %v71 = vld [vmem:[%s0 + $0x1a0] sm:$0xf]
  %v72 = vld [vmem:[%s0 + $0x1a4] sm:$0xff]
  %v73 = vld [vmem:[%s0 + $0x1ac] sm:$0xff]
  %v74 = vld [vmem:[%s0 + $0x1b4] sm:$0xff]
  %v75 = vld [vmem:[%s0 + $0x1bc] sm:$0xf]
  %v76 = vld [vmem:[%s0 + $0x1c0] sm:$0xff]
  %v77 = vld [vmem:[%s0 + $0x1c8] sm:$0xff]
  %v78 = vld [vmem:[%s0 + $0x1d0] sm:$0xff]
  %v79 = vld [vmem:[%s0 + $0x1d8] sm:$0xf]
  %v80 = vld [vmem:[%s0 + $0x1dc] sm:$0xff]
  %v81 = vld [vmem:[%s0 + $0x1e4] sm:$0xff]
  %v82 = vld [vmem:[%s0 + $0x1ec] sm:$0xff]
  %v83 = vld [vmem:[%s0 + $0x1f4] sm:$0xf]
  %v84 = vld [vmem:[%s0 + $0x1f8] sm:$0xff]
  %v85 = vld [vmem:[%s0 + $0x200] sm:$0xff]
  %v86 = vld [vmem:[%s0 + $0x208] sm:$0xff]
  %v87 = vld [vmem:[%s0 + $0x210] sm:$0xf]
  %v88 = vld [vmem:[%s0 + $0x214] sm:$0xff]
  %v89 = vld [vmem:[%s0 + $0x21c] sm:$0xff]
  %v90 = vld [vmem:[%s0 + $0x224] sm:$0xff]
  %v91 = vld [vmem:[%s0 + $0x22c] sm:$0xf]
  %v92 = vld [vmem:[%s0 + $0x230] sm:$0xff]
  %v93 = vld [vmem:[%s0 + $0x238] sm:$0xff]
  %v94 = vld [vmem:[%s0 + $0x240] sm:$0xff]
  %v95 = vld [vmem:[%s0 + $0x248] sm:$0xf]
  %v96 = vld [vmem:[%s0 + $0x24c] sm:$0xff]
  %v97 = vld [vmem:[%s0 + $0x254] sm:$0xff]
  %v98 = vld [vmem:[%s0 + $0x25c] sm:$0xff]
  %v99 = vld [vmem:[%s0 + $0x264] sm:$0xf]
  %v100 = vld [vmem:[%s0 + $0x268] sm:$0xff]
  %v101 = vld [vmem:[%s0 + $0x270] sm:$0xff]
  %v102 = vld [vmem:[%s0 + $0x278] sm:$0xff]
  %v103 = vld [vmem:[%s0 + $0x280] sm:$0xf]
  %v104 = vld [vmem:[%s0 + $0x284] sm:$0xff]
  %v105 = vld [vmem:[%s0 + $0x28c] sm:$0xff]
  %v106 = vld [vmem:[%s0 + $0x294] sm:$0xff]
  %v107 = vld [vmem:[%s0 + $0x29c] sm:$0xf]
  %v108 = vld [vmem:[%s0 + $0x2a0] sm:$0xff]
  %v109 = vld [vmem:[%s0 + $0x2a8] sm:$0xff]
  %v110 = vld [vmem:[%s0 + $0x2b0] sm:$0xff]
  %v111 = vld [vmem:[%s0 + $0x2b8] sm:$0xf]
  %v112 = vld [vmem:[%s0 + $0x2bc] sm:$0xff]
  %v113 = vld [vmem:[%s0 + $0x2c4] sm:$0xff]
  %v114 = vld [vmem:[%s0 + $0x2cc] sm:$0xff]
  %v115 = vld [vmem:[%s0 + $0x2d4] sm:$0xf]
  %v116 = vld [vmem:[%s0 + $0x2d8] sm:$0xff]
  %v117 = vld [vmem:[%s0 + $0x2e0] sm:$0xff]
  %v118 = vld [vmem:[%s0 + $0x2e8] sm:$0xff]
  %v119 = vld [vmem:[%s0 + $0x2f0] sm:$0xf]
  %v120 = vld [vmem:[%s0 + $0x2f4] sm:$0xff]
  %v121 = vld [vmem:[%s0 + $0x2fc] sm:$0xff]
  %v122 = vld [vmem:[%s0 + $0x304] sm:$0xff]
  %v123 = vld [vmem:[%s0 + $0x30c] sm:$0xf]
  %v124 = vld [vmem:[%s0 + $0x310] sm:$0xff]
  %v125 = vld [vmem:[%s0 + $0x318] sm:$0xff]
  %v126 = vld [vmem:[%s0 + $0x320] sm:$0xff]
  %v127 = vld [vmem:[%s0 + $0x328] sm:$0xf]
  %v128 = vld [vmem:[%s0 + $0x32c] sm:$0xff]
  %v129 = vld [vmem:[%s0 + $0x334] sm:$0xff]
  %v130 = vld [vmem:[%s0 + $0x33c] sm:$0xff]
  %v131 = vld [vmem:[%s0 + $0x344] sm:$0xf]
  %v132 = vld [vmem:[%s0 + $0x348] sm:$0xff]
  %v133 = vld [vmem:[%s0 + $0x350] sm:$0xff]
  %v134 = vld [vmem:[%s0 + $0x358] sm:$0xff]
  %v135 = vld [vmem:[%s0 + $0x360] sm:$0xf]
  %v136 = vld [vmem:[%s0 + $0x364] sm:$0xff]
  %v137 = vld [vmem:[%s0 + $0x36c] sm:$0xff]
  %v138 = vld [vmem:[%s0 + $0x374] sm:$0xff]
  %v139 = vld [vmem:[%s0 + $0x37c] sm:$0xf]
  %v140 = vld [vmem:[%s1] sm:$0xf]
  %v141 = vld [vmem:[%s1 + $0x4] sm:$0xf]
  %v142 = vld [vmem:[%s1 + $0x8] sm:$0xf]
  %v143 = vld [vmem:[%s1 + $0xc] sm:$0xf]
  %v144 = vld [vmem:[%s1 + $0x10] sm:$0xf]
  %v145 = vld [vmem:[%s1 + $0x14] sm:$0xf]
  %v146 = vld [vmem:[%s1 + $0x18] sm:$0xf]
  %v147 = vld [vmem:[%s1 + $0x1c] sm:$0xf]
  %v148 = vld [vmem:[%s1 + $0x20] sm:$0xf]
  %v149 = vld [vmem:[%s1 + $0x24] sm:$0xf]
  %v150 = vld [vmem:[%s1 + $0x28] sm:$0xf]
  %v151 = vld [vmem:[%s1 + $0x2c] sm:$0xf]
  %v152 = vld [vmem:[%s1 + $0x30] sm:$0xf]
  %v153 = vld [vmem:[%s1 + $0x34] sm:$0xf]
  %v154 = vld [vmem:[%s1 + $0x38] sm:$0xf]
  %v155 = vld [vmem:[%s1 + $0x3c] sm:$0xf]
  %v156 = vld [vmem:[%s1 + $0x40] sm:$0xf]
  %v157 = vld [vmem:[%s1 + $0x44] sm:$0xf]
  %v158 = vld [vmem:[%s1 + $0x48] sm:$0xf]
  %v159 = vld [vmem:[%s1 + $0x4c] sm:$0xf]
  %v160 = vld [vmem:[%s1 + $0x50] sm:$0xf]
  %v161 = vld [vmem:[%s1 + $0x54] sm:$0xf]
  %v162 = vld [vmem:[%s1 + $0x58] sm:$0xf]
  %v163 = vld [vmem:[%s1 + $0x5c] sm:$0xf]
  %v164 = vld [vmem:[%s1 + $0x60] sm:$0xf]
  %v165 = vld [vmem:[%s1 + $0x64] sm:$0xf]
  %v166 = vld [vmem:[%s1 + $0x68] sm:$0xf]
  %v167 = vld [vmem:[%s1 + $0x6c] sm:$0xf]
  %v168 = vld [vmem:[%s1 + $0x70] sm:$0xf]
  %v169 = vld [vmem:[%s1 + $0x74] sm:$0xf]
  %v170 = vld [vmem:[%s1 + $0x78] sm:$0xf]
  %v171 = vld [vmem:[%s1 + $0x7c] sm:$0xf]
  %v172 = vld [vmem:[%s1 + $0x80] sm:$0xf]
  %v173 = vld [vmem:[%s1 + $0x84] sm:$0xf]
  %v174 = vld [vmem:[%s1 + $0x88] sm:$0xf]
  %v175 = vld [vmem:[%s1 + $0x8c] sm:$0xf]
  %v176 = vld [vmem:[%s1 + $0x90] sm:$0xf]
  %v177 = vld [vmem:[%s1 + $0x94] sm:$0xf]
  %v178 = vld [vmem:[%s1 + $0x98] sm:$0xf]
  %v179 = vld [vmem:[%s1 + $0x9c] sm:$0xf]
  %v180 = vld [vmem:[%s1 + $0xa0] sm:$0xf]
  %v181 = vld [vmem:[%s1 + $0xa4] sm:$0xf]
  %v182 = vld [vmem:[%s1 + $0xa8] sm:$0xf]
  %v183 = vld [vmem:[%s1 + $0xac] sm:$0xf]
  %v184 = vld [vmem:[%s1 + $0xb0] sm:$0xf]
  %v185 = vld [vmem:[%s1 + $0xb4] sm:$0xf]
  %v186 = vld [vmem:[%s1 + $0xb8] sm:$0xf]
  %v187 = vld [vmem:[%s1 + $0xbc] sm:$0xf]
  %v188 = vld [vmem:[%s1 + $0xc0] sm:$0xf]
  %v189 = vld [vmem:[%s1 + $0xc4] sm:$0xf]
  %v190 = vld [vmem:[%s1 + $0xc8] sm:$0xf]
  %v191 = vld [vmem:[%s1 + $0xcc] sm:$0xf]
  %v192 = vld [vmem:[%s1 + $0xd0] sm:$0xf]
  %v193 = vld [vmem:[%s1 + $0xd4] sm:$0xf]
  %v194 = vld [vmem:[%s1 + $0xd8] sm:$0xf]
  %v195 = vld [vmem:[%s1 + $0xdc] sm:$0xf]
  %v196 = vld [vmem:[%s1 + $0xe0] sm:$0xf]
  %v197 = vld [vmem:[%s1 + $0xe4] sm:$0xf]
  %v198 = vld [vmem:[%s1 + $0xe8] sm:$0xf]
  %v199 = vld [vmem:[%s1 + $0xec] sm:$0xf]
  %v200 = vld [vmem:[%s1 + $0xf0] sm:$0xf]
  %v201 = vld [vmem:[%s1 + $0xf4] sm:$0xf]
  %v202 = vld [vmem:[%s1 + $0xf8] sm:$0xf]
  %v203 = vld [vmem:[%s1 + $0xfc] sm:$0xf]
  %v204 = vld [vmem:[%s1 + $0x100] sm:$0xf]
  %v205 = vld [vmem:[%s1 + $0x104] sm:$0xf]
  %v206 = vld [vmem:[%s1 + $0x108] sm:$0xf]
  %v207 = vld [vmem:[%s1 + $0x10c] sm:$0xf]
  %v208 = vld [vmem:[%s1 + $0x110] sm:$0xf]
  %v209 = vld [vmem:[%s1 + $0x114] sm:$0xf]
  %v210 = vld [vmem:[%s1 + $0x118] sm:$0xf]
  %v211 = vld [vmem:[%s1 + $0x11c] sm:$0xf]
  %v212 = vld [vmem:[%s1 + $0x120] sm:$0xf]
  %v213 = vld [vmem:[%s1 + $0x124] sm:$0xf]
  %v214 = vld [vmem:[%s1 + $0x128] sm:$0xf]
  %v215 = vld [vmem:[%s1 + $0x12c] sm:$0xf]
  %v216 = vld [vmem:[%s1 + $0x130] sm:$0xf]
  %v217 = vld [vmem:[%s1 + $0x134] sm:$0xf]
  %v218 = vld [vmem:[%s1 + $0x138] sm:$0xf]
  %v219 = vld [vmem:[%s1 + $0x13c] sm:$0xf]
  %v220 = vld [vmem:[%s1 + $0x140] sm:$0xf]
  %v221 = vld [vmem:[%s1 + $0x144] sm:$0xf]
  %v222 = vld [vmem:[%s1 + $0x148] sm:$0xf]
  %v223 = vld [vmem:[%s1 + $0x14c] sm:$0xf]
  %v224 = vld [vmem:[%s1 + $0x150] sm:$0xf]
  %v225 = vld [vmem:[%s1 + $0x154] sm:$0xf]
  %v226 = vld [vmem:[%s1 + $0x158] sm:$0xf]
  %v227 = vld [vmem:[%s1 + $0x15c] sm:$0xf]
  %v228 = vld [vmem:[%s1 + $0x160] sm:$0xf]
  %v229 = vld [vmem:[%s1 + $0x164] sm:$0xf]
  %v230 = vld [vmem:[%s1 + $0x168] sm:$0xf]
  %v231 = vld [vmem:[%s1 + $0x16c] sm:$0xf]
  %v232 = vld [vmem:[%s1 + $0x170] sm:$0xf]
  %v233 = vld [vmem:[%s1 + $0x174] sm:$0xf]
  %v234 = vld [vmem:[%s1 + $0x178] sm:$0xf]
  %v235 = vld [vmem:[%s1 + $0x17c] sm:$0xf]
  %v236 = vld [vmem:[%s1 + $0x180] sm:$0xf]
  %v237 = vld [vmem:[%s1 + $0x184] sm:$0xf]
  %v238 = vld [vmem:[%s1 + $0x188] sm:$0xf]
  %v239 = vld [vmem:[%s1 + $0x18c] sm:$0xf]
  %v240 = vld [vmem:[%s1 + $0x190] sm:$0xf]
  %v241 = vld [vmem:[%s1 + $0x194] sm:$0xf]
  %v242 = vld [vmem:[%s1 + $0x198] sm:$0xf]
  %v243 = vld [vmem:[%s1 + $0x19c] sm:$0xf]
  %v244 = vld [vmem:[%s1 + $0x1a0] sm:$0xf]
  %v245 = vld [vmem:[%s1 + $0x1a4] sm:$0xf]
  %v246 = vld [vmem:[%s1 + $0x1a8] sm:$0xf]
  %v247 = vld [vmem:[%s1 + $0x1ac] sm:$0xf]
  %v376 = vunpack.c.l.b16 %v12
  %v377 = vunpack.c.h.b16 %v12
  %v378 = vunpack.c.l.b16 %v13
  %v379 = vunpack.c.h.b16 %v13
  %v380 = vunpack.c.l.b16 %v14
  %v381 = vunpack.c.h.b16 %v14
  %v382 = vunpack.c.l.b16 %v15
  %v383 = vunpack.c.l.b16 %v16
  %v384 = vunpack.c.h.b16 %v16
  %v385 = vunpack.c.l.b16 %v17
  %v386 = vunpack.c.h.b16 %v17
  %v387 = vunpack.c.l.b16 %v18
  %v388 = vunpack.c.h.b16 %v18
  %v389 = vunpack.c.l.b16 %v19
  %v390 = vunpack.c.l.b16 %v20
  %v391 = vunpack.c.h.b16 %v20
  %v392 = vunpack.c.l.b16 %v21
  %v393 = vunpack.c.h.b16 %v21
  %v394 = vunpack.c.l.b16 %v22
  %v395 = vunpack.c.h.b16 %v22
  %v396 = vunpack.c.l.b16 %v23
  %v397 = vunpack.c.l.b16 %v24
  %v398 = vunpack.c.h.b16 %v24
  %v399 = vunpack.c.l.b16 %v25
  %v400 = vunpack.c.h.b16 %v25
  %v401 = vunpack.c.l.b16 %v26
  %v402 = vunpack.c.h.b16 %v26
  %v403 = vunpack.c.l.b16 %v27
  %v404 = vunpack.c.l.b16 %v28
  %v405 = vunpack.c.h.b16 %v28
  %v406 = vunpack.c.l.b16 %v29
  %v407 = vunpack.c.h.b16 %v29
  %v408 = vunpack.c.l.b16 %v30
  %v409 = vunpack.c.h.b16 %v30
  %v410 = vunpack.c.l.b16 %v31
  %v411 = vunpack.c.l.b16 %v32
  %v412 = vunpack.c.h.b16 %v32
  %v413 = vunpack.c.l.b16 %v33
  %v414 = vunpack.c.h.b16 %v33
  %v415 = vunpack.c.l.b16 %v34
  %v416 = vunpack.c.h.b16 %v34
  %v417 = vunpack.c.l.b16 %v35
  %v418 = vunpack.c.l.b16 %v36
  %v419 = vunpack.c.h.b16 %v36
  %v420 = vunpack.c.l.b16 %v37
  %v421 = vunpack.c.h.b16 %v37
  %v422 = vunpack.c.l.b16 %v38
  %v423 = vunpack.c.h.b16 %v38
  %v424 = vunpack.c.l.b16 %v39
  %v425 = vunpack.c.l.b16 %v40
  %v426 = vunpack.c.h.b16 %v40
  %v427 = vunpack.c.l.b16 %v41
  %v428 = vunpack.c.h.b16 %v41
  %v429 = vunpack.c.l.b16 %v42
  %v430 = vunpack.c.h.b16 %v42
  %v431 = vunpack.c.l.b16 %v43
  %v432 = vunpack.c.l.b16 %v44
  %v433 = vunpack.c.h.b16 %v44
  %v434 = vunpack.c.l.b16 %v45
  %v435 = vunpack.c.h.b16 %v45
  %v436 = vunpack.c.l.b16 %v46
  %v437 = vunpack.c.h.b16 %v46
  %v438 = vunpack.c.l.b16 %v47
  %v439 = vunpack.c.l.b16 %v48
  %v440 = vunpack.c.h.b16 %v48
  %v441 = vunpack.c.l.b16 %v49
  %v442 = vunpack.c.h.b16 %v49
  %v443 = vunpack.c.l.b16 %v50
  %v444 = vunpack.c.h.b16 %v50
  %v445 = vunpack.c.l.b16 %v51
  %v446 = vunpack.c.l.b16 %v52
  %v447 = vunpack.c.h.b16 %v52
  %v448 = vunpack.c.l.b16 %v53
  %v449 = vunpack.c.h.b16 %v53
  %v450 = vunpack.c.l.b16 %v54
  %v451 = vunpack.c.h.b16 %v54
  %v452 = vunpack.c.l.b16 %v55
  %v453 = vunpack.c.l.b16 %v56
  %v454 = vunpack.c.h.b16 %v56
  %v455 = vunpack.c.l.b16 %v57
  %v456 = vunpack.c.h.b16 %v57
  %v457 = vunpack.c.l.b16 %v58
  %v458 = vunpack.c.h.b16 %v58
  %v459 = vunpack.c.l.b16 %v59
  %v460 = vunpack.c.l.b16 %v60
  %v461 = vunpack.c.h.b16 %v60
  %v462 = vunpack.c.l.b16 %v61
  %v463 = vunpack.c.h.b16 %v61
  %v464 = vunpack.c.l.b16 %v62
  %v465 = vunpack.c.h.b16 %v62
  %v466 = vunpack.c.l.b16 %v63
  %v467 = vunpack.c.l.b16 %v64
  %v468 = vunpack.c.h.b16 %v64
  %v469 = vunpack.c.l.b16 %v65
  %v470 = vunpack.c.h.b16 %v65
  %v471 = vunpack.c.l.b16 %v66
  %v472 = vunpack.c.h.b16 %v66
  %v473 = vunpack.c.l.b16 %v67
  %v474 = vunpack.c.l.b16 %v68
  %v475 = vunpack.c.h.b16 %v68
  %v476 = vunpack.c.l.b16 %v69
  %v477 = vunpack.c.h.b16 %v69
  %v478 = vunpack.c.l.b16 %v70
  %v479 = vunpack.c.h.b16 %v70
  %v480 = vunpack.c.l.b16 %v71
  %v481 = vunpack.c.l.b16 %v72
  %v482 = vunpack.c.h.b16 %v72
  %v483 = vunpack.c.l.b16 %v73
  %v484 = vunpack.c.h.b16 %v73
  %v485 = vunpack.c.l.b16 %v74
  %v486 = vunpack.c.h.b16 %v74
  %v487 = vunpack.c.l.b16 %v75
  %v488 = vunpack.c.l.b16 %v76
  %v489 = vunpack.c.h.b16 %v76
  %v490 = vunpack.c.l.b16 %v77
  %v491 = vunpack.c.h.b16 %v77
  %v492 = vunpack.c.l.b16 %v78
  %v493 = vunpack.c.h.b16 %v78
  %v494 = vunpack.c.l.b16 %v79
  %v495 = vunpack.c.l.b16 %v80
  %v496 = vunpack.c.h.b16 %v80
  %v497 = vunpack.c.l.b16 %v81
  %v498 = vunpack.c.h.b16 %v81
  %v499 = vunpack.c.l.b16 %v82
  %v500 = vunpack.c.h.b16 %v82
  %v501 = vunpack.c.l.b16 %v83
  %v502 = vunpack.c.l.b16 %v84
  %v503 = vunpack.c.h.b16 %v84
  %v504 = vunpack.c.l.b16 %v85
  %v505 = vunpack.c.h.b16 %v85
  %v506 = vunpack.c.l.b16 %v86
  %v507 = vunpack.c.h.b16 %v86
  %v508 = vunpack.c.l.b16 %v87
  %v509 = vunpack.c.l.b16 %v88
  %v510 = vunpack.c.h.b16 %v88
  %v511 = vunpack.c.l.b16 %v89
  %v512 = vunpack.c.h.b16 %v89
  %v513 = vunpack.c.l.b16 %v90
  %v514 = vunpack.c.h.b16 %v90
  %v515 = vunpack.c.l.b16 %v91
  %v516 = vunpack.c.l.b16 %v92
  %v517 = vunpack.c.h.b16 %v92
  %v518 = vunpack.c.l.b16 %v93
  %v519 = vunpack.c.h.b16 %v93
  %v520 = vunpack.c.l.b16 %v94
  %v521 = vunpack.c.h.b16 %v94
  %v522 = vunpack.c.l.b16 %v95
  %v523 = vunpack.c.l.b16 %v96
  %v524 = vunpack.c.h.b16 %v96
  %v525 = vunpack.c.l.b16 %v97
  %v526 = vunpack.c.h.b16 %v97
  %v527 = vunpack.c.l.b16 %v98
  %v528 = vunpack.c.h.b16 %v98
  %v529 = vunpack.c.l.b16 %v99
  %v530 = vunpack.c.l.b16 %v100
  %v531 = vunpack.c.h.b16 %v100
  %v532 = vunpack.c.l.b16 %v101
  %v533 = vunpack.c.h.b16 %v101
  %v534 = vunpack.c.l.b16 %v102
  %v535 = vunpack.c.h.b16 %v102
  %v536 = vunpack.c.l.b16 %v103
  %v537 = vunpack.c.l.b16 %v104
  %v538 = vunpack.c.h.b16 %v104
  %v539 = vunpack.c.l.b16 %v105
  %v540 = vunpack.c.h.b16 %v105
  %v541 = vunpack.c.l.b16 %v106
  %v542 = vunpack.c.h.b16 %v106
  %v543 = vunpack.c.l.b16 %v107
  %v544 = vunpack.c.l.b16 %v108
  %v545 = vunpack.c.h.b16 %v108
  %v546 = vunpack.c.l.b16 %v109
  %v547 = vunpack.c.h.b16 %v109
  %v548 = vunpack.c.l.b16 %v110
  %v549 = vunpack.c.h.b16 %v110
  %v550 = vunpack.c.l.b16 %v111
  %v551 = vunpack.c.l.b16 %v112
  %v552 = vunpack.c.h.b16 %v112
  %v553 = vunpack.c.l.b16 %v113
  %v554 = vunpack.c.h.b16 %v113
  %v555 = vunpack.c.l.b16 %v114
  %v556 = vunpack.c.h.b16 %v114
  %v557 = vunpack.c.l.b16 %v115
  %v558 = vunpack.c.l.b16 %v116
  %v559 = vunpack.c.h.b16 %v116
  %v560 = vunpack.c.l.b16 %v117
  %v561 = vunpack.c.h.b16 %v117
  %v562 = vunpack.c.l.b16 %v118
  %v563 = vunpack.c.h.b16 %v118
  %v564 = vunpack.c.l.b16 %v119
  %v565 = vunpack.c.l.b16 %v120
  %v566 = vunpack.c.h.b16 %v120
  %v567 = vunpack.c.l.b16 %v121
  %v568 = vunpack.c.h.b16 %v121
  %v569 = vunpack.c.l.b16 %v122
  %v570 = vunpack.c.h.b16 %v122
  %v571 = vunpack.c.l.b16 %v123
  %v572 = vunpack.c.l.b16 %v124
  %v573 = vunpack.c.h.b16 %v124
  %v574 = vunpack.c.l.b16 %v125
  %v575 = vunpack.c.h.b16 %v125
  %v576 = vunpack.c.l.b16 %v126
  %v577 = vunpack.c.h.b16 %v126
  %v578 = vunpack.c.l.b16 %v127
  %v579 = vunpack.c.l.b16 %v128
  %v580 = vunpack.c.h.b16 %v128
  %v581 = vunpack.c.l.b16 %v129
  %v582 = vunpack.c.h.b16 %v129
  %v583 = vunpack.c.l.b16 %v130
  %v584 = vunpack.c.h.b16 %v130
  %v585 = vunpack.c.l.b16 %v131
  %v586 = vunpack.c.l.b16 %v132
  %v587 = vunpack.c.h.b16 %v132
  %v588 = vunpack.c.l.b16 %v133
  %v589 = vunpack.c.h.b16 %v133
  %v590 = vunpack.c.l.b16 %v134
  %v591 = vunpack.c.h.b16 %v134
  %v592 = vunpack.c.l.b16 %v135
  %v593 = vunpack.c.l.b16 %v136
  %v594 = vunpack.c.h.b16 %v136
  %v595 = vunpack.c.l.b16 %v137
  %v596 = vunpack.c.h.b16 %v137
  %v597 = vunpack.c.l.b16 %v138
  %v598 = vunpack.c.h.b16 %v138
  %v599 = vunpack.c.l.b16 %v139
  %v600 = vpack.c.b16 %v383, %v376
  %v601 = vpack.c.b16 %v384, %v377
  %v602 = vpack.c.b16 %v385, %v378
  %v603 = vpack.c.b16 %v386, %v379
  %v604 = vpack.c.b16 %v387, %v380
  %v605 = vpack.c.b16 %v388, %v381
  %v606 = vpack.c.b16 %v389, %v382
  %v607 = vpack.c.b16 %v397, %v390
  %v608 = vpack.c.b16 %v398, %v391
  %v609 = vpack.c.b16 %v399, %v392
  %v610 = vpack.c.b16 %v400, %v393
  %v611 = vpack.c.b16 %v401, %v394
  %v612 = vpack.c.b16 %v402, %v395
  %v613 = vpack.c.b16 %v403, %v396
  %v614 = vpack.c.b16 %v411, %v404
  %v615 = vpack.c.b16 %v412, %v405
  %v616 = vpack.c.b16 %v413, %v406
  %v617 = vpack.c.b16 %v414, %v407
  %v618 = vpack.c.b16 %v415, %v408
  %v619 = vpack.c.b16 %v416, %v409
  %v620 = vpack.c.b16 %v417, %v410
  %v621 = vpack.c.b16 %v425, %v418
  %v622 = vpack.c.b16 %v426, %v419
  %v623 = vpack.c.b16 %v427, %v420
  %v624 = vpack.c.b16 %v428, %v421
  %v625 = vpack.c.b16 %v429, %v422
  %v626 = vpack.c.b16 %v430, %v423
  %v627 = vpack.c.b16 %v431, %v424
  %v628 = vpack.c.b16 %v439, %v432
  %v629 = vpack.c.b16 %v440, %v433
  %v630 = vpack.c.b16 %v441, %v434
  %v631 = vpack.c.b16 %v442, %v435
  %v632 = vpack.c.b16 %v443, %v436
  %v633 = vpack.c.b16 %v444, %v437
  %v634 = vpack.c.b16 %v445, %v438
  %v635 = vpack.c.b16 %v453, %v446
  %v636 = vpack.c.b16 %v454, %v447
  %v637 = vpack.c.b16 %v455, %v448
  %v638 = vpack.c.b16 %v456, %v449
  %v639 = vpack.c.b16 %v457, %v450
  %v640 = vpack.c.b16 %v458, %v451
  %v641 = vpack.c.b16 %v459, %v452
  %v642 = vpack.c.b16 %v467, %v460
  %v643 = vpack.c.b16 %v468, %v461
  %v644 = vpack.c.b16 %v469, %v462
  %v645 = vpack.c.b16 %v470, %v463
  %v646 = vpack.c.b16 %v471, %v464
  %v647 = vpack.c.b16 %v472, %v465
  %v648 = vpack.c.b16 %v473, %v466
  %v649 = vpack.c.b16 %v481, %v474
  %v650 = vpack.c.b16 %v482, %v475
  %v651 = vpack.c.b16 %v483, %v476
  %v652 = vpack.c.b16 %v484, %v477
  %v653 = vpack.c.b16 %v485, %v478
  %v654 = vpack.c.b16 %v486, %v479
  %v655 = vpack.c.b16 %v487, %v480
  %v656 = vpack.c.b16 %v495, %v488
  %v657 = vpack.c.b16 %v496, %v489
  %v658 = vpack.c.b16 %v497, %v490
  %v659 = vpack.c.b16 %v498, %v491
  %v660 = vpack.c.b16 %v499, %v492
  %v661 = vpack.c.b16 %v500, %v493
  %v662 = vpack.c.b16 %v501, %v494
  %v663 = vpack.c.b16 %v509, %v502
  %v664 = vpack.c.b16 %v510, %v503
  %v665 = vpack.c.b16 %v511, %v504
  %v666 = vpack.c.b16 %v512, %v505
  %v667 = vpack.c.b16 %v513, %v506
  %v668 = vpack.c.b16 %v514, %v507
  %v669 = vpack.c.b16 %v515, %v508
  %v670 = vpack.c.b16 %v523, %v516
  %v671 = vpack.c.b16 %v524, %v517
  %v672 = vpack.c.b16 %v525, %v518
  %v673 = vpack.c.b16 %v526, %v519
  %v674 = vpack.c.b16 %v527, %v520
  %v675 = vpack.c.b16 %v528, %v521
  %v676 = vpack.c.b16 %v529, %v522
  %v677 = vpack.c.b16 %v537, %v530
  %v678 = vpack.c.b16 %v538, %v531
  %v679 = vpack.c.b16 %v539, %v532
  %v680 = vpack.c.b16 %v540, %v533
  %v681 = vpack.c.b16 %v541, %v534
  %v682 = vpack.c.b16 %v542, %v535
  %v683 = vpack.c.b16 %v543, %v536
  %v684 = vpack.c.b16 %v551, %v544
  %v685 = vpack.c.b16 %v552, %v545
  %v686 = vpack.c.b16 %v553, %v546
  %v687 = vpack.c.b16 %v554, %v547
  %v688 = vpack.c.b16 %v555, %v548
  %v689 = vpack.c.b16 %v556, %v549
  %v690 = vpack.c.b16 %v557, %v550
  %v691 = vpack.c.b16 %v565, %v558
  %v692 = vpack.c.b16 %v566, %v559
  %v693 = vpack.c.b16 %v567, %v560
  %v694 = vpack.c.b16 %v568, %v561
  %v695 = vpack.c.b16 %v569, %v562
  %v696 = vpack.c.b16 %v570, %v563
  %v697 = vpack.c.b16 %v571, %v564
  %v698 = vpack.c.b16 %v579, %v572
  %v699 = vpack.c.b16 %v580, %v573
  %v700 = vpack.c.b16 %v581, %v574
  %v701 = vpack.c.b16 %v582, %v575
  %v702 = vpack.c.b16 %v583, %v576
  %v703 = vpack.c.b16 %v584, %v577
  %v704 = vpack.c.b16 %v585, %v578
  %v705 = vpack.c.b16 %v593, %v586
  %v706 = vpack.c.b16 %v594, %v587
  %v707 = vpack.c.b16 %v595, %v588
  %v708 = vpack.c.b16 %v596, %v589
  %v709 = vpack.c.b16 %v597, %v590
  %v710 = vpack.c.b16 %v598, %v591
  %v711 = vpack.c.b16 %v599, %v592
  %v916 = vunpack.c.l.b16 %v140
  %v917 = vunpack.c.l.b16 %v141
  %v918 = vunpack.c.l.b16 %v142
  %v919 = vunpack.c.l.b16 %v143
  %v920 = vunpack.c.l.b16 %v144
  %v921 = vunpack.c.l.b16 %v145
  %v922 = vunpack.c.l.b16 %v146
  %v923 = vunpack.c.l.b16 %v147
  %v924 = vunpack.c.l.b16 %v148
  %v925 = vunpack.c.l.b16 %v149
  %v926 = vunpack.c.l.b16 %v150
  %v927 = vunpack.c.l.b16 %v151
  %v928 = vunpack.c.l.b16 %v152
  %v929 = vunpack.c.l.b16 %v153
  %v930 = vunpack.c.l.b16 %v154
  %v931 = vunpack.c.l.b16 %v155
  %v932 = vunpack.c.l.b16 %v156
  %v933 = vunpack.c.l.b16 %v157
  %v934 = vunpack.c.l.b16 %v158
  %v935 = vunpack.c.l.b16 %v159
  %v936 = vunpack.c.l.b16 %v160
  %v937 = vunpack.c.l.b16 %v161
  %v938 = vunpack.c.l.b16 %v162
  %v939 = vunpack.c.l.b16 %v163
  %v940 = vunpack.c.l.b16 %v164
  %v941 = vunpack.c.l.b16 %v165
  %v942 = vunpack.c.l.b16 %v166
  %v943 = vunpack.c.l.b16 %v167
  %v944 = vunpack.c.l.b16 %v168
  %v945 = vunpack.c.l.b16 %v169
  %v946 = vunpack.c.l.b16 %v170
  %v947 = vunpack.c.l.b16 %v171
  %v948 = vunpack.c.l.b16 %v172
  %v949 = vunpack.c.l.b16 %v173
  %v950 = vunpack.c.l.b16 %v174
  %v951 = vunpack.c.l.b16 %v175
  %v952 = vunpack.c.l.b16 %v176
  %v953 = vunpack.c.l.b16 %v177
  %v954 = vunpack.c.l.b16 %v178
  %v955 = vunpack.c.l.b16 %v179
  %v956 = vunpack.c.l.b16 %v180
  %v957 = vunpack.c.l.b16 %v181
  %v958 = vunpack.c.l.b16 %v182
  %v959 = vunpack.c.l.b16 %v183
  %v960 = vunpack.c.l.b16 %v184
  %v961 = vunpack.c.l.b16 %v185
  %v962 = vunpack.c.l.b16 %v186
  %v963 = vunpack.c.l.b16 %v187
  %v964 = vunpack.c.l.b16 %v188
  %v965 = vunpack.c.l.b16 %v189
  %v966 = vunpack.c.l.b16 %v190
  %v967 = vunpack.c.l.b16 %v191
  %v968 = vunpack.c.l.b16 %v192
  %v969 = vunpack.c.l.b16 %v193
  %v970 = vunpack.c.l.b16 %v194
  %v971 = vunpack.c.l.b16 %v195
  %v972 = vunpack.c.l.b16 %v196
  %v973 = vunpack.c.l.b16 %v197
  %v974 = vunpack.c.l.b16 %v198
  %v975 = vunpack.c.l.b16 %v199
  %v976 = vunpack.c.l.b16 %v200
  %v977 = vunpack.c.l.b16 %v201
  %v978 = vunpack.c.l.b16 %v202
  %v979 = vunpack.c.l.b16 %v203
  %v980 = vunpack.c.l.b16 %v204
  %v981 = vunpack.c.l.b16 %v205
  %v982 = vunpack.c.l.b16 %v206
  %v983 = vunpack.c.l.b16 %v207
  %v984 = vunpack.c.l.b16 %v208
  %v985 = vunpack.c.l.b16 %v209
  %v986 = vunpack.c.l.b16 %v210
  %v987 = vunpack.c.l.b16 %v211
  %v988 = vunpack.c.l.b16 %v212
  %v989 = vunpack.c.l.b16 %v213
  %v990 = vunpack.c.l.b16 %v214
  %v991 = vunpack.c.l.b16 %v215
  %v992 = vunpack.c.l.b16 %v216
  %v993 = vunpack.c.l.b16 %v217
  %v994 = vunpack.c.l.b16 %v218
  %v995 = vunpack.c.l.b16 %v219
  %v996 = vunpack.c.l.b16 %v220
  %v997 = vunpack.c.l.b16 %v221
  %v998 = vunpack.c.l.b16 %v222
  %v999 = vunpack.c.l.b16 %v223
  %v1000 = vunpack.c.l.b16 %v224
  %v1001 = vunpack.c.l.b16 %v225
  %v1002 = vunpack.c.l.b16 %v226
  %v1003 = vunpack.c.l.b16 %v227
  %v1004 = vunpack.c.l.b16 %v228
  %v1005 = vunpack.c.l.b16 %v229
  %v1006 = vunpack.c.l.b16 %v230
  %v1007 = vunpack.c.l.b16 %v231
  %v1008 = vunpack.c.l.b16 %v232
  %v1009 = vunpack.c.l.b16 %v233
  %v1010 = vunpack.c.l.b16 %v234
  %v1011 = vunpack.c.l.b16 %v235
  %v1012 = vunpack.c.l.b16 %v236
  %v1013 = vunpack.c.l.b16 %v237
  %v1014 = vunpack.c.l.b16 %v238
  %v1015 = vunpack.c.l.b16 %v239
  %v1016 = vunpack.c.l.b16 %v240
  %v1017 = vunpack.c.l.b16 %v241
  %v1018 = vunpack.c.l.b16 %v242
  %v1019 = vunpack.c.l.b16 %v243
  %v1020 = vunpack.c.l.b16 %v244
  %v1021 = vunpack.c.l.b16 %v245
  %v1022 = vunpack.c.l.b16 %v246
  %v1023 = vunpack.c.l.b16 %v247
  %v1024 = vpack.c.b16 %v917, %v916
  %v1025 = vpack.c.b16 %v919, %v918
  %v1026 = vpack.c.b16 %v921, %v920
  %v1027 = vpack.c.b16 %v923, %v922
  %v1028 = vpack.c.b16 %v925, %v924
  %v1029 = vpack.c.b16 %v927, %v926
  %v1030 = vpack.c.b16 %v929, %v928
  %v1031 = vpack.c.b16 %v931, %v930
  %v1032 = vpack.c.b16 %v933, %v932
  %v1033 = vpack.c.b16 %v935, %v934
  %v1034 = vpack.c.b16 %v937, %v936
  %v1035 = vpack.c.b16 %v939, %v938
  %v1036 = vpack.c.b16 %v941, %v940
  %v1037 = vpack.c.b16 %v943, %v942
  %v1038 = vpack.c.b16 %v945, %v944
  %v1039 = vpack.c.b16 %v947, %v946
  %v1040 = vpack.c.b16 %v949, %v948
  %v1041 = vpack.c.b16 %v951, %v950
  %v1042 = vpack.c.b16 %v953, %v952
  %v1043 = vpack.c.b16 %v955, %v954
  %v1044 = vpack.c.b16 %v957, %v956
  %v1045 = vpack.c.b16 %v959, %v958
  %v1046 = vpack.c.b16 %v961, %v960
  %v1047 = vpack.c.b16 %v963, %v962
  %v1048 = vpack.c.b16 %v965, %v964
  %v1049 = vpack.c.b16 %v967, %v966
  %v1050 = vpack.c.b16 %v969, %v968
  %v1051 = vpack.c.b16 %v971, %v970
  %v1052 = vpack.c.b16 %v973, %v972
  %v1053 = vpack.c.b16 %v975, %v974
  %v1054 = vpack.c.b16 %v977, %v976
  %v1055 = vpack.c.b16 %v979, %v978
  %v1056 = vpack.c.b16 %v981, %v980
  %v1057 = vpack.c.b16 %v983, %v982
  %v1058 = vpack.c.b16 %v985, %v984
  %v1059 = vpack.c.b16 %v987, %v986
  %v1060 = vpack.c.b16 %v989, %v988
  %v1061 = vpack.c.b16 %v991, %v990
  %v1062 = vpack.c.b16 %v993, %v992
  %v1063 = vpack.c.b16 %v995, %v994
  %v1064 = vpack.c.b16 %v997, %v996
  %v1065 = vpack.c.b16 %v999, %v998
  %v1066 = vpack.c.b16 %v1001, %v1000
  %v1067 = vpack.c.b16 %v1003, %v1002
  %v1068 = vpack.c.b16 %v1005, %v1004
  %v1069 = vpack.c.b16 %v1007, %v1006
  %v1070 = vpack.c.b16 %v1009, %v1008
  %v1071 = vpack.c.b16 %v1011, %v1010
  %v1072 = vpack.c.b16 %v1013, %v1012
  %v1073 = vpack.c.b16 %v1015, %v1014
  %v1074 = vpack.c.b16 %v1017, %v1016
  %v1075 = vpack.c.b16 %v1019, %v1018
  %v1076 = vpack.c.b16 %v1021, %v1020
  %v1077 = vpack.c.b16 %v1023, %v1022
  %vm1132 = vcmask 785408
  %v1134 = vsel %vm1132, %v606, 0
  %v1137 = vsel %vm1132, %v613, 0
  %v1140 = vsel %vm1132, %v620, 0
  %v1143 = vsel %vm1132, %v627, 0
  %v1146 = vsel %vm1132, %v634, 0
  %v1149 = vsel %vm1132, %v641, 0
  %v1152 = vsel %vm1132, %v648, 0
  %v1155 = vsel %vm1132, %v655, 0
  %v1158 = vsel %vm1132, %v662, 0
  %v1161 = vsel %vm1132, %v669, 0
  %v1164 = vsel %vm1132, %v676, 0
  %v1167 = vsel %vm1132, %v683, 0
  %v1170 = vsel %vm1132, %v690, 0
  %v1173 = vsel %vm1132, %v697, 0
  %v1176 = vsel %vm1132, %v704, 0
  %v1179 = vsel %vm1132, %v711, 0
  %1181 = vmatprep.subr.bf16.mxu0 0
  %1182 = vmatpush1.bf16.msra.mxu0 %v1024
  %1183 = vmatprep.subr.bf16.mxu0 0
  %1184 = vmatpush1.bf16.msra.mxu0 %v1025
  %1185 = vmatprep.subr.bf16.mxu0 0
  %1186 = vmatpush1.bf16.msra.mxu0 %v1026
  %1187 = vmatprep.subr.bf16.mxu0 0
  %1188 = vmatpush1.bf16.msra.mxu0 %v1027
  %1189 = vmatprep.subr.bf16.mxu0 0
  %1190 = vmatpush1.bf16.msra.mxu0 %v1028
  %1191 = vmatprep.subr.bf16.mxu0 0
  %1192 = vmatpush1.bf16.msra.mxu0 %v1029
  %1193 = vmatprep.subr.bf16.mxu0 0
  %1194 = vmatpush1.bf16.msra.mxu0 %v1030
  %1195 = vmatprep.subr.bf16.mxu0 0
  %1196 = vmatpush1.bf16.msra.mxu0 %v1031
  %1197 = vmatprep.subr.bf16.mxu0 0
  %1198 = vmatpush1.bf16.msra.mxu0 %v1032
  %1199 = vmatprep.subr.bf16.mxu0 0
  %1200 = vmatpush1.bf16.msra.mxu0 %v1033
  %1201 = vmatprep.subr.bf16.mxu0 0
  %1202 = vmatpush1.bf16.msra.mxu0 %v1034
  %1203 = vmatprep.subr.bf16.mxu0 0
  %1204 = vmatpush1.bf16.msra.mxu0 %v1035
  %1205 = vmatprep.subr.bf16.mxu0 0
  %1206 = vmatpush1.bf16.msra.mxu0 %v1036
  %1207 = vmatprep.subr.bf16.mxu0 0
  %1208 = vmatpush1.bf16.msra.mxu0 %v1037
  %1209 = vmatprep.subr.bf16.mxu0 0
  %1210 = vmatpush1.bf16.msra.mxu0 %v1038
  %1211 = vmatprep.subr.bf16.mxu0 0
  %1212 = vmatpush1.bf16.msra.mxu0 %v1039
  %1213 = vmatprep.mubr.bf16.mxu0 %v601
  %1214 = vmatmul.mubr.bf16.gmra.mrb[0].mxu0 %v600
  %v1215 = vpop.f32.mrb[0].mxu0
  %v1216 = vadd.f32 0.0, %v1215
  %v1217 = vpop.f32.mrb[0].mxu0
  %v1218 = vpop.f32.mrb[0].mxu0
  %v1219 = vadd.f32 0.0, %v1218
  %v1220 = vpop.f32.mrb[0].mxu0
  %1221 = vmatprep.mubr.bf16.mxu0 %v608
  %1222 = vmatmul.mubr.bf16.gmra.mrb[0].mxu0 %v607
  %v1223 = vpop.f32.mrb[0].mxu0
  %v1224 = vadd.f32 0.0, %v1223
  %v1225 = vpop.f32.mrb[0].mxu0
  %v1226 = vpop.f32.mrb[0].mxu0
  %v1227 = vadd.f32 0.0, %v1226
  %v1228 = vpop.f32.mrb[0].mxu0
  %1229 = vmatprep.mubr.bf16.mxu0 %v615
  %1230 = vmatmul.mubr.bf16.gmra.mrb[0].mxu0 %v614
  %v1231 = vpop.f32.mrb[0].mxu0
  %v1232 = vadd.f32 0.0, %v1231
  %v1233 = vpop.f32.mrb[0].mxu0
  %v1234 = vpop.f32.mrb[0].mxu0
  %v1235 = vadd.f32 0.0, %v1234
  %v1236 = vpop.f32.mrb[0].mxu0
  %1237 = vmatprep.mubr.bf16.mxu0 %v622
  %1238 = vmatmul.mubr.bf16.gmra.mrb[0].mxu0 %v621
  %v1239 = vpop.f32.mrb[0].mxu0
  %v1240 = vadd.f32 0.0, %v1239
  %v1241 = vpop.f32.mrb[0].mxu0
  %v1242 = vpop.f32.mrb[0].mxu0
  %v1243 = vadd.f32 0.0, %v1242
  %v1244 = vpop.f32.mrb[0].mxu0
  %1245 = vmatprep.mubr.bf16.mxu0 %v629
  %1246 = vmatmul.mubr.bf16.gmra.mrb[0].mxu0 %v628
  %v1247 = vpop.f32.mrb[0].mxu0
  %v1248 = vadd.f32 0.0, %v1247
  %v1249 = vpop.f32.mrb[0].mxu0
  %v1250 = vpop.f32.mrb[0].mxu0
  %v1251 = vadd.f32 0.0, %v1250
  %v1252 = vpop.f32.mrb[0].mxu0
  %1253 = vmatprep.mubr.bf16.mxu0 %v636
  %1254 = vmatmul.mubr.bf16.gmra.mrb[0].mxu0 %v635
  %v1255 = vpop.f32.mrb[0].mxu0
  %v1256 = vadd.f32 0.0, %v1255
  %v1257 = vpop.f32.mrb[0].mxu0
  %v1258 = vpop.f32.mrb[0].mxu0
  %v1259 = vadd.f32 0.0, %v1258
  %v1260 = vpop.f32.mrb[0].mxu0
  %1261 = vmatprep.mubr.bf16.mxu0 %v643
  %1262 = vmatmul.mubr.bf16.gmra.mrb[0].mxu0 %v642
  %v1263 = vpop.f32.mrb[0].mxu0
  %v1264 = vadd.f32 0.0, %v1263
  %v1265 = vpop.f32.mrb[0].mxu0
  %v1266 = vpop.f32.mrb[0].mxu0
  %v1267 = vadd.f32 0.0, %v1266
  %v1268 = vpop.f32.mrb[0].mxu0
  %1269 = vmatprep.mubr.bf16.mxu0 %v650
  %1270 = vmatmul.mubr.bf16.gmra.mrb[0].mxu0 %v649
  %v1271 = vpop.f32.mrb[0].mxu0
  %v1272 = vadd.f32 0.0, %v1271
  %v1273 = vpop.f32.mrb[0].mxu0
  %v1274 = vpop.f32.mrb[0].mxu0
  %v1275 = vadd.f32 0.0, %v1274
  %v1276 = vpop.f32.mrb[0].mxu0
  %1277 = vmatprep.mubr.bf16.mxu0 %v657
  %1278 = vmatmul.mubr.bf16.gmra.mrb[0].mxu0 %v656
  %v1279 = vpop.f32.mrb[0].mxu0
  %v1280 = vadd.f32 0.0, %v1279
  %v1281 = vpop.f32.mrb[0].mxu0
  %v1282 = vpop.f32.mrb[0].mxu0
  %v1283 = vadd.f32 0.0, %v1282
  %v1284 = vpop.f32.mrb[0].mxu0
  %1285 = vmatprep.mubr.bf16.mxu0 %v664
  %1286 = vmatmul.mubr.bf16.gmra.mrb[0].mxu0 %v663
  %v1287 = vpop.f32.mrb[0].mxu0
  %v1288 = vadd.f32 0.0, %v1287
  %v1289 = vpop.f32.mrb[0].mxu0
  %v1290 = vpop.f32.mrb[0].mxu0
  %v1291 = vadd.f32 0.0, %v1290
  %v1292 = vpop.f32.mrb[0].mxu0
  %1293 = vmatprep.mubr.bf16.mxu0 %v671
  %1294 = vmatmul.mubr.bf16.gmra.mrb[0].mxu0 %v670
  %v1295 = vpop.f32.mrb[0].mxu0
  %v1296 = vadd.f32 0.0, %v1295
  %v1297 = vpop.f32.mrb[0].mxu0
  %v1298 = vpop.f32.mrb[0].mxu0
  %v1299 = vadd.f32 0.0, %v1298
  %v1300 = vpop.f32.mrb[0].mxu0
  %1301 = vmatprep.mubr.bf16.mxu0 %v678
  %1302 = vmatmul.mubr.bf16.gmra.mrb[0].mxu0 %v677
  %v1303 = vpop.f32.mrb[0].mxu0
  %v1304 = vadd.f32 0.0, %v1303
  %v1305 = vpop.f32.mrb[0].mxu0
  %v1306 = vpop.f32.mrb[0].mxu0
  %v1307 = vadd.f32 0.0, %v1306
  %v1308 = vpop.f32.mrb[0].mxu0
  %1309 = vmatprep.mubr.bf16.mxu0 %v685
  %1310 = vmatmul.mubr.bf16.gmra.mrb[0].mxu0 %v684
  %v1311 = vpop.f32.mrb[0].mxu0
  %v1312 = vadd.f32 0.0, %v1311
  %v1313 = vpop.f32.mrb[0].mxu0
  %v1314 = vpop.f32.mrb[0].mxu0
  %v1315 = vadd.f32 0.0, %v1314
  %v1316 = vpop.f32.mrb[0].mxu0
  %1317 = vmatprep.mubr.bf16.mxu0 %v692
  %1318 = vmatmul.mubr.bf16.gmra.mrb[0].mxu0 %v691
  %v1319 = vpop.f32.mrb[0].mxu0
  %v1320 = vadd.f32 0.0, %v1319
  %v1321 = vpop.f32.mrb[0].mxu0
  %v1322 = vpop.f32.mrb[0].mxu0
  %v1323 = vadd.f32 0.0, %v1322
  %v1324 = vpop.f32.mrb[0].mxu0
  %1325 = vmatprep.mubr.bf16.mxu0 %v699
  %1326 = vmatmul.mubr.bf16.gmra.mrb[0].mxu0 %v698
  %v1327 = vpop.f32.mrb[0].mxu0
  %v1328 = vadd.f32 0.0, %v1327
  %v1329 = vpop.f32.mrb[0].mxu0
  %v1330 = vpop.f32.mrb[0].mxu0
  %v1331 = vadd.f32 0.0, %v1330
  %v1332 = vpop.f32.mrb[0].mxu0
  %1333 = vmatprep.mubr.bf16.mxu0 %v706
  %1334 = vmatmul.mubr.bf16.gmra.mrb[0].mxu0 %v705
  %v1335 = vpop.f32.mrb[0].mxu0
  %v1336 = vadd.f32 0.0, %v1335
  %v1337 = vpop.f32.mrb[0].mxu0
  %v1338 = vpop.f32.mrb[0].mxu0
  %v1339 = vadd.f32 0.0, %v1338
  %v1340 = vpop.f32.mrb[0].mxu0
  %1341 = vdwg.mxu0
  %1342 = vmatprep.subr.bf16.mxu0 0
  %1343 = vmatpush1.bf16.msra.mxu0 %v1040
  %1344 = vmatprep.subr.bf16.mxu0 0
  %1345 = vmatpush1.bf16.msra.mxu0 %v1041
  %1346 = vmatprep.subr.bf16.mxu0 0
  %1347 = vmatpush1.bf16.msra.mxu0 %v1042
  %1348 = vmatprep.subr.bf16.mxu0 0
  %1349 = vmatpush1.bf16.msra.mxu0 %v1043
  %1350 = vmatprep.subr.bf16.mxu0 0
  %1351 = vmatpush1.bf16.msra.mxu0 %v1044
  %1352 = vmatprep.subr.bf16.mxu0 0
  %1353 = vmatpush1.bf16.msra.mxu0 %v1045
  %1354 = vmatprep.subr.bf16.mxu0 0
  %1355 = vmatpush1.bf16.msra.mxu0 %v1046
  %1356 = vmatprep.subr.bf16.mxu0 0
  %1357 = vmatpush1.bf16.msra.mxu0 %v1047
  %1358 = vmatprep.subr.bf16.mxu0 0
  %1359 = vmatpush1.bf16.msra.mxu0 %v1048
  %1360 = vmatprep.subr.bf16.mxu0 0
  %1361 = vmatpush1.bf16.msra.mxu0 %v1049
  %1362 = vmatprep.subr.bf16.mxu0 0
  %1363 = vmatpush1.bf16.msra.mxu0 %v1050
  %1364 = vmatprep.subr.bf16.mxu0 0
  %1365 = vmatpush1.bf16.msra.mxu0 %v1051
  %1366 = vmatprep.subr.bf16.mxu0 0
  %1367 = vmatpush1.bf16.msra.mxu0 %v1052
  %1368 = vmatprep.subr.bf16.mxu0 0
  %1369 = vmatpush1.bf16.msra.mxu0 %v1053
  %1370 = vmatprep.subr.bf16.mxu0 0
  %1371 = vmatpush1.bf16.msra.mxu0 %v1054
  %1372 = vmatprep.subr.bf16.mxu0 0
  %1373 = vmatpush1.bf16.msra.mxu0 %v1055
  %1374 = vmatprep.mubr.bf16.mxu0 %v603
  %1375 = vmatmul.mubr.bf16.gmra.mrb[0].mxu0 %v602
  %v1376 = vpop.f32.mrb[0].mxu0
  %v1377 = vadd.f32 %v1216, %v1376
  %v1378 = vpop.f32.mrb[0].mxu0
  %v1379 = vpop.f32.mrb[0].mxu0
  %v1380 = vadd.f32 %v1219, %v1379
  %v1381 = vpop.f32.mrb[0].mxu0
  %1382 = vmatprep.mubr.bf16.mxu0 %v610
  %1383 = vmatmul.mubr.bf16.gmra.mrb[0].mxu0 %v609
  %v1384 = vpop.f32.mrb[0].mxu0
  %v1385 = vadd.f32 %v1224, %v1384
  %v1386 = vpop.f32.mrb[0].mxu0
  %v1387 = vpop.f32.mrb[0].mxu0
  %v1388 = vadd.f32 %v1227, %v1387
  %v1389 = vpop.f32.mrb[0].mxu0
  %1390 = vmatprep.mubr.bf16.mxu0 %v617
  %1391 = vmatmul.mubr.bf16.gmra.mrb[0].mxu0 %v616
  %v1392 = vpop.f32.mrb[0].mxu0
  %v1393 = vadd.f32 %v1232, %v1392
  %v1394 = vpop.f32.mrb[0].mxu0
  %v1395 = vpop.f32.mrb[0].mxu0
  %v1396 = vadd.f32 %v1235, %v1395
  %v1397 = vpop.f32.mrb[0].mxu0
  %1398 = vmatprep.mubr.bf16.mxu0 %v624
  %1399 = vmatmul.mubr.bf16.gmra.mrb[0].mxu0 %v623
  %v1400 = vpop.f32.mrb[0].mxu0
  %v1401 = vadd.f32 %v1240, %v1400
  %v1402 = vpop.f32.mrb[0].mxu0
  %v1403 = vpop.f32.mrb[0].mxu0
  %v1404 = vadd.f32 %v1243, %v1403
  %v1405 = vpop.f32.mrb[0].mxu0
  %1406 = vmatprep.mubr.bf16.mxu0 %v631
  %1407 = vmatmul.mubr.bf16.gmra.mrb[0].mxu0 %v630
  %v1408 = vpop.f32.mrb[0].mxu0
  %v1409 = vadd.f32 %v1248, %v1408
  %v1410 = vpop.f32.mrb[0].mxu0
  %v1411 = vpop.f32.mrb[0].mxu0
  %v1412 = vadd.f32 %v1251, %v1411
  %v1413 = vpop.f32.mrb[0].mxu0
  %1414 = vmatprep.mubr.bf16.mxu0 %v638
  %1415 = vmatmul.mubr.bf16.gmra.mrb[0].mxu0 %v637
  %v1416 = vpop.f32.mrb[0].mxu0
  %v1417 = vadd.f32 %v1256, %v1416
  %v1418 = vpop.f32.mrb[0].mxu0
  %v1419 = vpop.f32.mrb[0].mxu0
  %v1420 = vadd.f32 %v1259, %v1419
  %v1421 = vpop.f32.mrb[0].mxu0
  %1422 = vmatprep.mubr.bf16.mxu0 %v645
  %1423 = vmatmul.mubr.bf16.gmra.mrb[0].mxu0 %v644
  %v1424 = vpop.f32.mrb[0].mxu0
  %v1425 = vadd.f32 %v1264, %v1424
  %v1426 = vpop.f32.mrb[0].mxu0
  %v1427 = vpop.f32.mrb[0].mxu0
  %v1428 = vadd.f32 %v1267, %v1427
  %v1429 = vpop.f32.mrb[0].mxu0
  %1430 = vmatprep.mubr.bf16.mxu0 %v652
  %1431 = vmatmul.mubr.bf16.gmra.mrb[0].mxu0 %v651
  %v1432 = vpop.f32.mrb[0].mxu0
  %v1433 = vadd.f32 %v1272, %v1432
  %v1434 = vpop.f32.mrb[0].mxu0
  %v1435 = vpop.f32.mrb[0].mxu0
  %v1436 = vadd.f32 %v1275, %v1435
  %v1437 = vpop.f32.mrb[0].mxu0
  %1438 = vmatprep.mubr.bf16.mxu0 %v659
  %1439 = vmatmul.mubr.bf16.gmra.mrb[0].mxu0 %v658
  %v1440 = vpop.f32.mrb[0].mxu0
  %v1441 = vadd.f32 %v1280, %v1440
  %v1442 = vpop.f32.mrb[0].mxu0
  %v1443 = vpop.f32.mrb[0].mxu0
  %v1444 = vadd.f32 %v1283, %v1443
  %v1445 = vpop.f32.mrb[0].mxu0
  %1446 = vmatprep.mubr.bf16.mxu0 %v666
  %1447 = vmatmul.mubr.bf16.gmra.mrb[0].mxu0 %v665
  %v1448 = vpop.f32.mrb[0].mxu0
  %v1449 = vadd.f32 %v1288, %v1448
  %v1450 = vpop.f32.mrb[0].mxu0
  %v1451 = vpop.f32.mrb[0].mxu0
  %v1452 = vadd.f32 %v1291, %v1451
  %v1453 = vpop.f32.mrb[0].mxu0
  %1454 = vmatprep.mubr.bf16.mxu0 %v673
  %1455 = vmatmul.mubr.bf16.gmra.mrb[0].mxu0 %v672
  %v1456 = vpop.f32.mrb[0].mxu0
  %v1457 = vadd.f32 %v1296, %v1456
  %v1458 = vpop.f32.mrb[0].mxu0
  %v1459 = vpop.f32.mrb[0].mxu0
  %v1460 = vadd.f32 %v1299, %v1459
  %v1461 = vpop.f32.mrb[0].mxu0
  %1462 = vmatprep.mubr.bf16.mxu0 %v680
  %1463 = vmatmul.mubr.bf16.gmra.mrb[0].mxu0 %v679
  %v1464 = vpop.f32.mrb[0].mxu0
  %v1465 = vadd.f32 %v1304, %v1464
  %v1466 = vpop.f32.mrb[0].mxu0
  %v1467 = vpop.f32.mrb[0].mxu0
  %v1468 = vadd.f32 %v1307, %v1467
  %v1469 = vpop.f32.mrb[0].mxu0
  %1470 = vmatprep.mubr.bf16.mxu0 %v687
  %1471 = vmatmul.mubr.bf16.gmra.mrb[0].mxu0 %v686
  %v1472 = vpop.f32.mrb[0].mxu0
  %v1473 = vadd.f32 %v1312, %v1472
  %v1474 = vpop.f32.mrb[0].mxu0
  %v1475 = vpop.f32.mrb[0].mxu0
  %v1476 = vadd.f32 %v1315, %v1475
  %v1477 = vpop.f32.mrb[0].mxu0
  %1478 = vmatprep.mubr.bf16.mxu0 %v694
  %1479 = vmatmul.mubr.bf16.gmra.mrb[0].mxu0 %v693
  %v1480 = vpop.f32.mrb[0].mxu0
  %v1481 = vadd.f32 %v1320, %v1480
  %v1482 = vpop.f32.mrb[0].mxu0
  %v1483 = vpop.f32.mrb[0].mxu0
  %v1484 = vadd.f32 %v1323, %v1483
  %v1485 = vpop.f32.mrb[0].mxu0
  %1486 = vmatprep.mubr.bf16.mxu0 %v701
  %1487 = vmatmul.mubr.bf16.gmra.mrb[0].mxu0 %v700
  %v1488 = vpop.f32.mrb[0].mxu0
  %v1489 = vadd.f32 %v1328, %v1488
  %v1490 = vpop.f32.mrb[0].mxu0
  %v1491 = vpop.f32.mrb[0].mxu0
  %v1492 = vadd.f32 %v1331, %v1491
  %v1493 = vpop.f32.mrb[0].mxu0
  %1494 = vmatprep.mubr.bf16.mxu0 %v708
  %1495 = vmatmul.mubr.bf16.gmra.mrb[0].mxu0 %v707
  %v1496 = vpop.f32.mrb[0].mxu0
  %v1497 = vadd.f32 %v1336, %v1496
  %v1498 = vpop.f32.mrb[0].mxu0
  %v1499 = vpop.f32.mrb[0].mxu0
  %v1500 = vadd.f32 %v1339, %v1499
  %v1501 = vpop.f32.mrb[0].mxu0
  %1502 = vdwg.mxu0
  %1503 = vmatprep.subr.bf16.mxu0 0
  %1504 = vmatpush1.bf16.msra.mxu0 %v1056
  %1505 = vmatprep.subr.bf16.mxu0 0
  %1506 = vmatpush1.bf16.msra.mxu0 %v1057
  %1507 = vmatprep.subr.bf16.mxu0 0
  %1508 = vmatpush1.bf16.msra.mxu0 %v1058
  %1509 = vmatprep.subr.bf16.mxu0 0
  %1510 = vmatpush1.bf16.msra.mxu0 %v1059
  %1511 = vmatprep.subr.bf16.mxu0 0
  %1512 = vmatpush1.bf16.msra.mxu0 %v1060
  %1513 = vmatprep.subr.bf16.mxu0 0
  %1514 = vmatpush1.bf16.msra.mxu0 %v1061
  %1515 = vmatprep.subr.bf16.mxu0 0
  %1516 = vmatpush1.bf16.msra.mxu0 %v1062
  %1517 = vmatprep.subr.bf16.mxu0 0
  %1518 = vmatpush1.bf16.msra.mxu0 %v1063
  %1519 = vmatprep.subr.bf16.mxu0 0
  %1520 = vmatpush1.bf16.msra.mxu0 %v1064
  %1521 = vmatprep.subr.bf16.mxu0 0
  %1522 = vmatpush1.bf16.msra.mxu0 %v1065
  %1523 = vmatprep.subr.bf16.mxu0 0
  %1524 = vmatpush1.bf16.msra.mxu0 %v1066
  %1525 = vmatprep.subr.bf16.mxu0 0
  %1526 = vmatpush1.bf16.msra.mxu0 %v1067
  %1527 = vmatprep.subr.bf16.mxu0 0
  %1528 = vmatpush1.bf16.msra.mxu0 %v1068
  %1529 = vmatprep.subr.bf16.mxu0 0
  %1530 = vmatpush1.bf16.msra.mxu0 %v1069
  %1531 = vmatprep.subr.bf16.mxu0 0
  %1532 = vmatpush1.bf16.msra.mxu0 %v1070
  %1533 = vmatprep.subr.bf16.mxu0 0
  %1534 = vmatpush1.bf16.msra.mxu0 %v1071
  %1535 = vmatprep.mubr.bf16.mxu0 %v605
  %1536 = vmatmul.mubr.bf16.gmra.mrb[0].mxu0 %v604
  %v1537 = vpop.f32.mrb[0].mxu0
  %v1538 = vadd.f32 %v1377, %v1537
  %v1539 = vpop.f32.mrb[0].mxu0
  %v1540 = vpop.f32.mrb[0].mxu0
  %v1541 = vadd.f32 %v1380, %v1540
  %v1542 = vpop.f32.mrb[0].mxu0
  %1543 = vmatprep.mubr.bf16.mxu0 %v612
  %1544 = vmatmul.mubr.bf16.gmra.mrb[0].mxu0 %v611
  %v1545 = vpop.f32.mrb[0].mxu0
  %v1546 = vadd.f32 %v1385, %v1545
  %v1547 = vpop.f32.mrb[0].mxu0
  %v1548 = vpop.f32.mrb[0].mxu0
  %v1549 = vadd.f32 %v1388, %v1548
  %v1550 = vpop.f32.mrb[0].mxu0
  %1551 = vmatprep.mubr.bf16.mxu0 %v619
  %1552 = vmatmul.mubr.bf16.gmra.mrb[0].mxu0 %v618
  %v1553 = vpop.f32.mrb[0].mxu0
  %v1554 = vadd.f32 %v1393, %v1553
  %v1555 = vpop.f32.mrb[0].mxu0
  %v1556 = vpop.f32.mrb[0].mxu0
  %v1557 = vadd.f32 %v1396, %v1556
  %v1558 = vpop.f32.mrb[0].mxu0
  %1559 = vmatprep.mubr.bf16.mxu0 %v626
  %1560 = vmatmul.mubr.bf16.gmra.mrb[0].mxu0 %v625
  %v1561 = vpop.f32.mrb[0].mxu0
  %v1562 = vadd.f32 %v1401, %v1561
  %v1563 = vpop.f32.mrb[0].mxu0
  %v1564 = vpop.f32.mrb[0].mxu0
  %v1565 = vadd.f32 %v1404, %v1564
  %v1566 = vpop.f32.mrb[0].mxu0
  %1567 = vmatprep.mubr.bf16.mxu0 %v633
  %1568 = vmatmul.mubr.bf16.gmra.mrb[0].mxu0 %v632
  %v1569 = vpop.f32.mrb[0].mxu0
  %v1570 = vadd.f32 %v1409, %v1569
  %v1571 = vpop.f32.mrb[0].mxu0
  %v1572 = vpop.f32.mrb[0].mxu0
  %v1573 = vadd.f32 %v1412, %v1572
  %v1574 = vpop.f32.mrb[0].mxu0
  %1575 = vmatprep.mubr.bf16.mxu0 %v640
  %1576 = vmatmul.mubr.bf16.gmra.mrb[0].mxu0 %v639
  %v1577 = vpop.f32.mrb[0].mxu0
  %v1578 = vadd.f32 %v1417, %v1577
  %v1579 = vpop.f32.mrb[0].mxu0
  %v1580 = vpop.f32.mrb[0].mxu0
  %v1581 = vadd.f32 %v1420, %v1580
  %v1582 = vpop.f32.mrb[0].mxu0
  %1583 = vmatprep.mubr.bf16.mxu0 %v647
  %1584 = vmatmul.mubr.bf16.gmra.mrb[0].mxu0 %v646
  %v1585 = vpop.f32.mrb[0].mxu0
  %v1586 = vadd.f32 %v1425, %v1585
  %v1587 = vpop.f32.mrb[0].mxu0
  %v1588 = vpop.f32.mrb[0].mxu0
  %v1589 = vadd.f32 %v1428, %v1588
  %v1590 = vpop.f32.mrb[0].mxu0
  %1591 = vmatprep.mubr.bf16.mxu0 %v654
  %1592 = vmatmul.mubr.bf16.gmra.mrb[0].mxu0 %v653
  %v1593 = vpop.f32.mrb[0].mxu0
  %v1594 = vadd.f32 %v1433, %v1593
  %v1595 = vpop.f32.mrb[0].mxu0
  %v1596 = vpop.f32.mrb[0].mxu0
  %v1597 = vadd.f32 %v1436, %v1596
  %v1598 = vpop.f32.mrb[0].mxu0
  %1599 = vmatprep.mubr.bf16.mxu0 %v661
  %1600 = vmatmul.mubr.bf16.gmra.mrb[0].mxu0 %v660
  %v1601 = vpop.f32.mrb[0].mxu0
  %v1602 = vadd.f32 %v1441, %v1601
  %v1603 = vpop.f32.mrb[0].mxu0
  %v1604 = vpop.f32.mrb[0].mxu0
  %v1605 = vadd.f32 %v1444, %v1604
  %v1606 = vpop.f32.mrb[0].mxu0
  %1607 = vmatprep.mubr.bf16.mxu0 %v668
  %1608 = vmatmul.mubr.bf16.gmra.mrb[0].mxu0 %v667
  %v1609 = vpop.f32.mrb[0].mxu0
  %v1610 = vadd.f32 %v1449, %v1609
  %v1611 = vpop.f32.mrb[0].mxu0
  %v1612 = vpop.f32.mrb[0].mxu0
  %v1613 = vadd.f32 %v1452, %v1612
  %v1614 = vpop.f32.mrb[0].mxu0
  %1615 = vmatprep.mubr.bf16.mxu0 %v675
  %1616 = vmatmul.mubr.bf16.gmra.mrb[0].mxu0 %v674
  %v1617 = vpop.f32.mrb[0].mxu0
  %v1618 = vadd.f32 %v1457, %v1617
  %v1619 = vpop.f32.mrb[0].mxu0
  %v1620 = vpop.f32.mrb[0].mxu0
  %v1621 = vadd.f32 %v1460, %v1620
  %v1622 = vpop.f32.mrb[0].mxu0
  %1623 = vmatprep.mubr.bf16.mxu0 %v682
  %1624 = vmatmul.mubr.bf16.gmra.mrb[0].mxu0 %v681
  %v1625 = vpop.f32.mrb[0].mxu0
  %v1626 = vadd.f32 %v1465, %v1625
  %v1627 = vpop.f32.mrb[0].mxu0
  %v1628 = vpop.f32.mrb[0].mxu0
  %v1629 = vadd.f32 %v1468, %v1628
  %v1630 = vpop.f32.mrb[0].mxu0
  %1631 = vmatprep.mubr.bf16.mxu0 %v689
  %1632 = vmatmul.mubr.bf16.gmra.mrb[0].mxu0 %v688
  %v1633 = vpop.f32.mrb[0].mxu0
  %v1634 = vadd.f32 %v1473, %v1633
  %v1635 = vpop.f32.mrb[0].mxu0
  %v1636 = vpop.f32.mrb[0].mxu0
  %v1637 = vadd.f32 %v1476, %v1636
  %v1638 = vpop.f32.mrb[0].mxu0
  %1639 = vmatprep.mubr.bf16.mxu0 %v696
  %1640 = vmatmul.mubr.bf16.gmra.mrb[0].mxu0 %v695
  %v1641 = vpop.f32.mrb[0].mxu0
  %v1642 = vadd.f32 %v1481, %v1641
  %v1643 = vpop.f32.mrb[0].mxu0
  %v1644 = vpop.f32.mrb[0].mxu0
  %v1645 = vadd.f32 %v1484, %v1644
  %v1646 = vpop.f32.mrb[0].mxu0
  %1647 = vmatprep.mubr.bf16.mxu0 %v703
  %1648 = vmatmul.mubr.bf16.gmra.mrb[0].mxu0 %v702
  %v1649 = vpop.f32.mrb[0].mxu0
  %v1650 = vadd.f32 %v1489, %v1649
  %v1651 = vpop.f32.mrb[0].mxu0
  %v1652 = vpop.f32.mrb[0].mxu0
  %v1653 = vadd.f32 %v1492, %v1652
  %v1654 = vpop.f32.mrb[0].mxu0
  %1655 = vmatprep.mubr.bf16.mxu0 %v710
  %1656 = vmatmul.mubr.bf16.gmra.mrb[0].mxu0 %v709
  %v1657 = vpop.f32.mrb[0].mxu0
  %v1658 = vadd.f32 %v1497, %v1657
  %v1659 = vpop.f32.mrb[0].mxu0
  %v1660 = vpop.f32.mrb[0].mxu0
  %v1661 = vadd.f32 %v1500, %v1660
  %v1662 = vpop.f32.mrb[0].mxu0
  %1663 = vdwg.mxu0
  %1664 = vmatprep.subr.bf16.mxu0 0
  %1665 = vmatpush1.bf16.msra.mxu0 %v1072
  %1666 = vmatprep.subr.bf16.mxu0 0
  %1667 = vmatpush1.bf16.msra.mxu0 %v1073
  %1668 = vmatprep.subr.bf16.mxu0 0
  %1669 = vmatpush1.bf16.msra.mxu0 %v1074
  %1670 = vmatprep.subr.bf16.mxu0 0
  %1671 = vmatpush1.bf16.msra.mxu0 %v1075
  %1672 = vmatprep.subr.bf16.mxu0 0
  %1673 = vmatpush1.bf16.msra.mxu0 %v1076
  %1674 = vmatprep.subr.bf16.mxu0 0
  %1675 = vmatpush1.bf16.msra.mxu0 %v1077
  %1676 = vmatprep.subr.bf16.mxu0 0
  %1677 = vmatpush1.bf16.msra.mxu0 0
  %1678 = vmatprep.subr.bf16.mxu0 0
  %1679 = vmatpush1.bf16.msra.mxu0 0
  %1680 = vmatprep.subr.bf16.mxu0 0
  %1681 = vmatpush1.bf16.msra.mxu0 0
  %1682 = vmatprep.subr.bf16.mxu0 0
  %1683 = vmatpush1.bf16.msra.mxu0 0
  %1684 = vmatprep.subr.bf16.mxu0 0
  %1685 = vmatpush1.bf16.msra.mxu0 0
  %1686 = vmatprep.subr.bf16.mxu0 0
  %1687 = vmatpush1.bf16.msra.mxu0 0
  %1688 = vmatprep.subr.bf16.mxu0 0
  %1689 = vmatpush1.bf16.msra.mxu0 0
  %1690 = vmatprep.subr.bf16.mxu0 0
  %1691 = vmatpush1.bf16.msra.mxu0 0
  %1692 = vmatprep.subr.bf16.mxu0 0
  %1693 = vmatpush1.bf16.msra.mxu0 0
  %1694 = vmatprep.subr.bf16.mxu0 0
  %1695 = vmatpush1.bf16.msra.mxu0 0
  %1696 = vmatprep.mubr.bf16.mxu0 0
  %1697 = vmatmul.mubr.bf16.gmra.mrb[0].mxu0 %v1134
  %v1698 = vpop.f32.mrb[0].mxu0
  %v1699 = vadd.f32 %v1538, %v1698
  %v1700 = vpop.f32.mrb[0].mxu0
  %v1701 = vpop.f32.mrb[0].mxu0
  %v1702 = vadd.f32 %v1541, %v1701
  %v1703 = vpop.f32.mrb[0].mxu0
  %1704 = vmatprep.mubr.bf16.mxu0 0
  %1705 = vmatmul.mubr.bf16.gmra.mrb[0].mxu0 %v1137
  %v1706 = vpop.f32.mrb[0].mxu0
  %v1707 = vadd.f32 %v1546, %v1706
  %v1708 = vpop.f32.mrb[0].mxu0
  %v1709 = vpop.f32.mrb[0].mxu0
  %v1710 = vadd.f32 %v1549, %v1709
  %v1711 = vpop.f32.mrb[0].mxu0
  %1712 = vmatprep.mubr.bf16.mxu0 0
  %1713 = vmatmul.mubr.bf16.gmra.mrb[0].mxu0 %v1140
  %v1714 = vpop.f32.mrb[0].mxu0
  %v1715 = vadd.f32 %v1554, %v1714
  %v1716 = vpop.f32.mrb[0].mxu0
  %v1717 = vpop.f32.mrb[0].mxu0
  %v1718 = vadd.f32 %v1557, %v1717
  %v1719 = vpop.f32.mrb[0].mxu0
  %1720 = vmatprep.mubr.bf16.mxu0 0
  %1721 = vmatmul.mubr.bf16.gmra.mrb[0].mxu0 %v1143
  %v1722 = vpop.f32.mrb[0].mxu0
  %v1723 = vadd.f32 %v1562, %v1722
  %v1724 = vpop.f32.mrb[0].mxu0
  %v1725 = vpop.f32.mrb[0].mxu0
  %v1726 = vadd.f32 %v1565, %v1725
  %v1727 = vpop.f32.mrb[0].mxu0
  %1728 = vmatprep.mubr.bf16.mxu0 0
  %1729 = vmatmul.mubr.bf16.gmra.mrb[0].mxu0 %v1146
  %v1730 = vpop.f32.mrb[0].mxu0
  %v1731 = vadd.f32 %v1570, %v1730
  %v1732 = vpop.f32.mrb[0].mxu0
  %v1733 = vpop.f32.mrb[0].mxu0
  %v1734 = vadd.f32 %v1573, %v1733
  %v1735 = vpop.f32.mrb[0].mxu0
  %1736 = vmatprep.mubr.bf16.mxu0 0
  %1737 = vmatmul.mubr.bf16.gmra.mrb[0].mxu0 %v1149
  %v1738 = vpop.f32.mrb[0].mxu0
  %v1739 = vadd.f32 %v1578, %v1738
  %v1740 = vpop.f32.mrb[0].mxu0
  %v1741 = vpop.f32.mrb[0].mxu0
  %v1742 = vadd.f32 %v1581, %v1741
  %v1743 = vpop.f32.mrb[0].mxu0
  %1744 = vmatprep.mubr.bf16.mxu0 0
  %1745 = vmatmul.mubr.bf16.gmra.mrb[0].mxu0 %v1152
  %v1746 = vpop.f32.mrb[0].mxu0
  %v1747 = vadd.f32 %v1586, %v1746
  %v1748 = vpop.f32.mrb[0].mxu0
  %v1749 = vpop.f32.mrb[0].mxu0
  %v1750 = vadd.f32 %v1589, %v1749
  %v1751 = vpop.f32.mrb[0].mxu0
  %1752 = vmatprep.mubr.bf16.mxu0 0
  %1753 = vmatmul.mubr.bf16.gmra.mrb[0].mxu0 %v1155
  %v1754 = vpop.f32.mrb[0].mxu0
  %v1755 = vadd.f32 %v1594, %v1754
  %v1756 = vpop.f32.mrb[0].mxu0
  %v1757 = vpop.f32.mrb[0].mxu0
  %v1758 = vadd.f32 %v1597, %v1757
  %v1759 = vpop.f32.mrb[0].mxu0
  %1760 = vmatprep.mubr.bf16.mxu0 0
  %1761 = vmatmul.mubr.bf16.gmra.mrb[0].mxu0 %v1158
  %v1762 = vpop.f32.mrb[0].mxu0
  %v1763 = vadd.f32 %v1602, %v1762
  %v1764 = vpop.f32.mrb[0].mxu0
  %v1765 = vpop.f32.mrb[0].mxu0
  %v1766 = vadd.f32 %v1605, %v1765
  %v1767 = vpop.f32.mrb[0].mxu0
  %1768 = vmatprep.mubr.bf16.mxu0 0
  %1769 = vmatmul.mubr.bf16.gmra.mrb[0].mxu0 %v1161
  %v1770 = vpop.f32.mrb[0].mxu0
  %v1771 = vadd.f32 %v1610, %v1770
  %v1772 = vpop.f32.mrb[0].mxu0
  %v1773 = vpop.f32.mrb[0].mxu0
  %v1774 = vadd.f32 %v1613, %v1773
  %v1775 = vpop.f32.mrb[0].mxu0
  %1776 = vmatprep.mubr.bf16.mxu0 0
  %1777 = vmatmul.mubr.bf16.gmra.mrb[0].mxu0 %v1164
  %v1778 = vpop.f32.mrb[0].mxu0
  %v1779 = vadd.f32 %v1618, %v1778
  %v1780 = vpop.f32.mrb[0].mxu0
  %v1781 = vpop.f32.mrb[0].mxu0
  %v1782 = vadd.f32 %v1621, %v1781
  %v1783 = vpop.f32.mrb[0].mxu0
  %1784 = vmatprep.mubr.bf16.mxu0 0
  %1785 = vmatmul.mubr.bf16.gmra.mrb[0].mxu0 %v1167
  %v1786 = vpop.f32.mrb[0].mxu0
  %v1787 = vadd.f32 %v1626, %v1786
  %v1788 = vpop.f32.mrb[0].mxu0
  %v1789 = vpop.f32.mrb[0].mxu0
  %v1790 = vadd.f32 %v1629, %v1789
  %v1791 = vpop.f32.mrb[0].mxu0
  %1792 = vmatprep.mubr.bf16.mxu0 0
  %1793 = vmatmul.mubr.bf16.gmra.mrb[0].mxu0 %v1170
  %v1794 = vpop.f32.mrb[0].mxu0
  %v1795 = vadd.f32 %v1634, %v1794
  %v1796 = vpop.f32.mrb[0].mxu0
  %v1797 = vpop.f32.mrb[0].mxu0
  %v1798 = vadd.f32 %v1637, %v1797
  %v1799 = vpop.f32.mrb[0].mxu0
  %1800 = vmatprep.mubr.bf16.mxu0 0
  %1801 = vmatmul.mubr.bf16.gmra.mrb[0].mxu0 %v1173
  %v1802 = vpop.f32.mrb[0].mxu0
  %v1803 = vadd.f32 %v1642, %v1802
  %v1804 = vpop.f32.mrb[0].mxu0
  %v1805 = vpop.f32.mrb[0].mxu0
  %v1806 = vadd.f32 %v1645, %v1805
  %v1807 = vpop.f32.mrb[0].mxu0
  %1808 = vmatprep.mubr.bf16.mxu0 0
  %1809 = vmatmul.mubr.bf16.gmra.mrb[0].mxu0 %v1176
  %v1810 = vpop.f32.mrb[0].mxu0
  %v1811 = vadd.f32 %v1650, %v1810
  %v1812 = vpop.f32.mrb[0].mxu0
  %v1813 = vpop.f32.mrb[0].mxu0
  %v1814 = vadd.f32 %v1653, %v1813
  %v1815 = vpop.f32.mrb[0].mxu0
  %1816 = vmatprep.mubr.bf16.mxu0 0
  %1817 = vmatmul.mubr.bf16.gmra.mrb[0].mxu0 %v1179
  %v1818 = vpop.f32.mrb[0].mxu0
  %v1819 = vadd.f32 %v1658, %v1818
  %v1820 = vpop.f32.mrb[0].mxu0
  %v1821 = vpop.f32.mrb[0].mxu0
  %v1822 = vadd.f32 %v1661, %v1821
  %v1823 = vpop.f32.mrb[0].mxu0
  %1824 = vdwg.mxu0
  %v1825 = vpack.c.bf16 %v1702, %v1699
  %v1826 = vpack.c.bf16 %v1710, %v1707
  %v1827 = vpack.c.bf16 %v1718, %v1715
  %v1828 = vpack.c.bf16 %v1726, %v1723
  %v1829 = vpack.c.bf16 %v1734, %v1731
  %v1830 = vpack.c.bf16 %v1742, %v1739
  %v1831 = vpack.c.bf16 %v1750, %v1747
  %v1832 = vpack.c.bf16 %v1758, %v1755
  %v1833 = vpack.c.bf16 %v1766, %v1763
  %v1834 = vpack.c.bf16 %v1774, %v1771
  %v1835 = vpack.c.bf16 %v1782, %v1779
  %v1836 = vpack.c.bf16 %v1790, %v1787
  %v1837 = vpack.c.bf16 %v1798, %v1795
  %v1838 = vpack.c.bf16 %v1806, %v1803
  %v1839 = vpack.c.bf16 %v1814, %v1811
  %v1840 = vpack.c.bf16 %v1822, %v1819
  %v1857 = vunpack.c.l.b16 %v1825
  %v1858 = vunpack.c.h.b16 %v1825
  %v1859 = vunpack.c.l.b16 %v1826
  %v1860 = vunpack.c.h.b16 %v1826
  %v1861 = vunpack.c.l.b16 %v1827
  %v1862 = vunpack.c.h.b16 %v1827
  %v1863 = vunpack.c.l.b16 %v1828
  %v1864 = vunpack.c.h.b16 %v1828
  %v1865 = vunpack.c.l.b16 %v1829
  %v1866 = vunpack.c.h.b16 %v1829
  %v1867 = vunpack.c.l.b16 %v1830
  %v1868 = vunpack.c.h.b16 %v1830
  %v1869 = vunpack.c.l.b16 %v1831
  %v1870 = vunpack.c.h.b16 %v1831
  %v1871 = vunpack.c.l.b16 %v1832
  %v1872 = vunpack.c.h.b16 %v1832
  %v1873 = vunpack.c.l.b16 %v1833
  %v1874 = vunpack.c.h.b16 %v1833
  %v1875 = vunpack.c.l.b16 %v1834
  %v1876 = vunpack.c.h.b16 %v1834
  %v1877 = vunpack.c.l.b16 %v1835
  %v1878 = vunpack.c.h.b16 %v1835
  %v1879 = vunpack.c.l.b16 %v1836
  %v1880 = vunpack.c.h.b16 %v1836
  %v1881 = vunpack.c.l.b16 %v1837
  %v1882 = vunpack.c.h.b16 %v1837
  %v1883 = vunpack.c.l.b16 %v1838
  %v1884 = vunpack.c.h.b16 %v1838
  %v1885 = vunpack.c.l.b16 %v1839
  %v1886 = vunpack.c.h.b16 %v1839
  %v1887 = vunpack.c.l.b16 %v1840
  %v1888 = vunpack.c.h.b16 %v1840
  %v1889 = vpack.c.b16 %v1857, %v1857
  %v1890 = vpack.c.b16 %v1858, %v1858
  %v1891 = vpack.c.b16 %v1859, %v1859
  %v1892 = vpack.c.b16 %v1860, %v1860
  %v1893 = vpack.c.b16 %v1861, %v1861
  %v1894 = vpack.c.b16 %v1862, %v1862
  %v1895 = vpack.c.b16 %v1863, %v1863
  %v1896 = vpack.c.b16 %v1864, %v1864
  %v1897 = vpack.c.b16 %v1865, %v1865
  %v1898 = vpack.c.b16 %v1866, %v1866
  %v1899 = vpack.c.b16 %v1867, %v1867
  %v1900 = vpack.c.b16 %v1868, %v1868
  %v1901 = vpack.c.b16 %v1869, %v1869
  %v1902 = vpack.c.b16 %v1870, %v1870
  %v1903 = vpack.c.b16 %v1871, %v1871
  %v1904 = vpack.c.b16 %v1872, %v1872
  %v1905 = vpack.c.b16 %v1873, %v1873
  %v1906 = vpack.c.b16 %v1874, %v1874
  %v1907 = vpack.c.b16 %v1875, %v1875
  %v1908 = vpack.c.b16 %v1876, %v1876
  %v1909 = vpack.c.b16 %v1877, %v1877
  %v1910 = vpack.c.b16 %v1878, %v1878
  %v1911 = vpack.c.b16 %v1879, %v1879
  %v1912 = vpack.c.b16 %v1880, %v1880
  %v1913 = vpack.c.b16 %v1881, %v1881
  %v1914 = vpack.c.b16 %v1882, %v1882
  %v1915 = vpack.c.b16 %v1883, %v1883
  %v1916 = vpack.c.b16 %v1884, %v1884
  %v1917 = vpack.c.b16 %v1885, %v1885
  %v1918 = vpack.c.b16 %v1886, %v1886
  %v1919 = vpack.c.b16 %v1887, %v1887
  %v1920 = vpack.c.b16 %v1888, %v1888
  %vm1953 = vcmask 257024
  %1954 = vst.msk [vmem:[%s2] sm:$0xf] %vm1953, %v1889
  %1955 = vst.msk [vmem:[%s2 + $0x4] sm:$0xf] %vm1953, %v1890
  %1956 = vst.msk [vmem:[%s2 + $0x8] sm:$0xf] %vm1953, %v1891
  %1957 = vst.msk [vmem:[%s2 + $0xc] sm:$0xf] %vm1953, %v1892
  %1958 = vst.msk [vmem:[%s2 + $0x10] sm:$0xf] %vm1953, %v1893
  %1959 = vst.msk [vmem:[%s2 + $0x14] sm:$0xf] %vm1953, %v1894
  %1960 = vst.msk [vmem:[%s2 + $0x18] sm:$0xf] %vm1953, %v1895
  %1961 = vst.msk [vmem:[%s2 + $0x1c] sm:$0xf] %vm1953, %v1896
  %1962 = vst.msk [vmem:[%s2 + $0x20] sm:$0xf] %vm1953, %v1897
  %1963 = vst.msk [vmem:[%s2 + $0x24] sm:$0xf] %vm1953, %v1898
  %1964 = vst.msk [vmem:[%s2 + $0x28] sm:$0xf] %vm1953, %v1899
  %1965 = vst.msk [vmem:[%s2 + $0x2c] sm:$0xf] %vm1953, %v1900
  %1966 = vst.msk [vmem:[%s2 + $0x30] sm:$0xf] %vm1953, %v1901
  %1967 = vst.msk [vmem:[%s2 + $0x34] sm:$0xf] %vm1953, %v1902
  %1968 = vst.msk [vmem:[%s2 + $0x38] sm:$0xf] %vm1953, %v1903
  %1969 = vst.msk [vmem:[%s2 + $0x3c] sm:$0xf] %vm1953, %v1904
  %1970 = vst.msk [vmem:[%s2 + $0x40] sm:$0xf] %vm1953, %v1905
  %1971 = vst.msk [vmem:[%s2 + $0x44] sm:$0xf] %vm1953, %v1906
  %1972 = vst.msk [vmem:[%s2 + $0x48] sm:$0xf] %vm1953, %v1907
  %1973 = vst.msk [vmem:[%s2 + $0x4c] sm:$0xf] %vm1953, %v1908
  %1974 = vst.msk [vmem:[%s2 + $0x50] sm:$0xf] %vm1953, %v1909
  %1975 = vst.msk [vmem:[%s2 + $0x54] sm:$0xf] %vm1953, %v1910
  %1976 = vst.msk [vmem:[%s2 + $0x58] sm:$0xf] %vm1953, %v1911
  %1977 = vst.msk [vmem:[%s2 + $0x5c] sm:$0xf] %vm1953, %v1912
  %1978 = vst.msk [vmem:[%s2 + $0x60] sm:$0xf] %vm1953, %v1913
  %1979 = vst.msk [vmem:[%s2 + $0x64] sm:$0xf] %vm1953, %v1914
  %1980 = vst.msk [vmem:[%s2 + $0x68] sm:$0xf] %vm1953, %v1915
  %1981 = vst.msk [vmem:[%s2 + $0x6c] sm:$0xf] %vm1953, %v1916
  %1982 = vst.msk [vmem:[%s2 + $0x70] sm:$0xf] %vm1953, %v1917
  %1983 = vst.msk [vmem:[%s2 + $0x74] sm:$0xf] %vm1953, %v1918
  %1984 = vst.msk [vmem:[%s2 + $0x78] sm:$0xf] %vm1953, %v1919
  %1985 = vst.msk [vmem:[%s2 + $0x7c] sm:$0xf] %vm1953, %v1920
  // Predicated region
  $region10: #{_sgb_forward_impl.12} parent=0 // pred_check
    _
  $region11: #{_sgb_forward_impl.12} parent=0 // pred_check_branch
    %1987 = sbr.rel (0) target = $region13
  $region12: #{_sgb_forward_impl.12} parent=0 // pred_region
    _
  $region13: #{_sgb_forward_impl.12} parent=0 // pred_fallthru
    _
  // Predicated region
  $region14: #{_sgb_forward_impl.12} parent=0 // pred_check
    _
  $region15: #{_sgb_forward_impl.12} parent=0 // pred_check_branch
    %1989 = sbr.rel (0) target = $region17
  $region16: #{_sgb_forward_impl.12} parent=0 // pred_region
    _
  $region17: #{_sgb_forward_impl.12} parent=0 // pred_fallthru
    _

// kernel: _sgb_forward_impl.13
$region0: #{_sgb_forward_impl.13}
  #allocation0 [shape = 'u32[]', space=smem, size = 0x4, offset = 0x4, fixed_abs, tag = 'smem constant byte address 0x4 - core index']
  #allocation1 [shape = 'u32[144,128]{1,0:T(1,128)}', space=vmem, size = 0x12000, scoped, tag = 'internal scratch']
  %s0 = inlined_call_operand.vmem [shape: bf16[256,32], index: 0, kind: input, shape index: {}]
  %s1 = inlined_call_operand.vmem [shape: bf16[256,32], index: 1, kind: input, shape index: {}]
  %s2 = inlined_call_operand.vmem [shape: f32[1,32], index: 2, kind: input, shape index: {}]
  %s3 = inlined_call_operand.vmem [shape: f32[1,32], index: 3, kind: input, shape index: {}]
  %s4 = inlined_call_operand.vmem [shape: f32[1,32], index: 4, kind: input, shape index: {}]
  %s5 = inlined_call_operand.vmem [shape: bf16[32,32], index: 5, kind: input, shape index: {}]
  %s6 = inlined_call_operand.vmem [shape: f32[1,32], index: 6, kind: input, shape index: {}]
  %s7 = inlined_call_operand.vmem [shape: f32[256,32], index: 7, kind: output, shape index: {}]
  %s8 = sld [smem:[#allocation0]]
  $region38: #{_sgb_forward_impl.13} parent=0
    _
  %s10 = ssub.s32 1, %s8
  %s11 = scalar_select 0, %s10, %s8
  // Predicated region
  $region2: #{_sgb_forward_impl.13} parent=0 // pred_check
    _
  $region3: #{_sgb_forward_impl.13} parent=0 // pred_check_branch
    %13 = sbr.rel (0) target = $region5
  $region4: #{_sgb_forward_impl.13} parent=0 // pred_region
    _
  $region5: #{_sgb_forward_impl.13} parent=0 // pred_fallthru
    _
  // Predicated region
  $region6: #{_sgb_forward_impl.13} parent=0 // pred_check
    _
  $region7: #{_sgb_forward_impl.13} parent=0 // pred_check_branch
    %15 = sbr.rel (0) target = $region9
  $region8: #{_sgb_forward_impl.13} parent=0 // pred_region
    _
  $region9: #{_sgb_forward_impl.13} parent=0 // pred_fallthru
    _
  // Predicated region
  $region10: #{_sgb_forward_impl.13} parent=0 // pred_check
    _
  $region11: #{_sgb_forward_impl.13} parent=0 // pred_check_branch
    %17 = sbr.rel (0) target = $region13
  $region12: #{_sgb_forward_impl.13} parent=0 // pred_region
    _
  $region13: #{_sgb_forward_impl.13} parent=0 // pred_fallthru
    _
  // Predicated region
  $region14: #{_sgb_forward_impl.13} parent=0 // pred_check
    _
  $region15: #{_sgb_forward_impl.13} parent=0 // pred_check_branch
    %19 = sbr.rel (0) target = $region17
  $region16: #{_sgb_forward_impl.13} parent=0 // pred_region
    _
  $region17: #{_sgb_forward_impl.13} parent=0 // pred_fallthru
    _
  // Predicated region
  $region18: #{_sgb_forward_impl.13} parent=0 // pred_check
    _
  $region19: #{_sgb_forward_impl.13} parent=0 // pred_check_branch
    %21 = sbr.rel (0) target = $region21
  $region20: #{_sgb_forward_impl.13} parent=0 // pred_region
    _
  $region21: #{_sgb_forward_impl.13} parent=0 // pred_fallthru
    _
  // Predicated region
  $region22: #{_sgb_forward_impl.13} parent=0 // pred_check
    _
  $region23: #{_sgb_forward_impl.13} parent=0 // pred_check_branch
    %23 = sbr.rel (0) target = $region25
  $region24: #{_sgb_forward_impl.13} parent=0 // pred_region
    _
  $region25: #{_sgb_forward_impl.13} parent=0 // pred_fallthru
    _
  // Predicated region
  $region26: #{_sgb_forward_impl.13} parent=0 // pred_check
    _
  $region27: #{_sgb_forward_impl.13} parent=0 // pred_check_branch
    %25 = sbr.rel (0) target = $region29
  $region28: #{_sgb_forward_impl.13} parent=0 // pred_region
    _
  $region29: #{_sgb_forward_impl.13} parent=0 // pred_fallthru
    _
  %v27 = vld [vmem:[%s0] sm:$0xf]
  %v28 = vld [vmem:[%s0 + $0x4] sm:$0xf]
  %v29 = vld [vmem:[%s0 + $0x8] sm:$0xf]
  %v30 = vld [vmem:[%s0 + $0xc] sm:$0xf]
  %v31 = vld [vmem:[%s0 + $0x10] sm:$0xf]
  %v32 = vld [vmem:[%s0 + $0x14] sm:$0xf]
  %v33 = vld [vmem:[%s0 + $0x18] sm:$0xf]
  %v34 = vld [vmem:[%s0 + $0x1c] sm:$0xf]
  %v35 = vld [vmem:[%s0 + $0x20] sm:$0xf]
  %v36 = vld [vmem:[%s0 + $0x24] sm:$0xf]
  %v37 = vld [vmem:[%s0 + $0x28] sm:$0xf]
  %v38 = vld [vmem:[%s0 + $0x2c] sm:$0xf]
  %v39 = vld [vmem:[%s0 + $0x30] sm:$0xf]
  %v40 = vld [vmem:[%s0 + $0x34] sm:$0xf]
  %v41 = vld [vmem:[%s0 + $0x38] sm:$0xf]
  %v42 = vld [vmem:[%s0 + $0x3c] sm:$0xf]
  %v43 = vld [vmem:[%s0 + $0x40] sm:$0xf]
  %v44 = vld [vmem:[%s0 + $0x44] sm:$0xf]
  %v45 = vld [vmem:[%s0 + $0x48] sm:$0xf]
  %v46 = vld [vmem:[%s0 + $0x4c] sm:$0xf]
  %v47 = vld [vmem:[%s0 + $0x50] sm:$0xf]
  %v48 = vld [vmem:[%s0 + $0x54] sm:$0xf]
  %v49 = vld [vmem:[%s0 + $0x58] sm:$0xf]
  %v50 = vld [vmem:[%s0 + $0x5c] sm:$0xf]
  %v51 = vld [vmem:[%s0 + $0x60] sm:$0xf]
  %v52 = vld [vmem:[%s0 + $0x64] sm:$0xf]
  %v53 = vld [vmem:[%s0 + $0x68] sm:$0xf]
  %v54 = vld [vmem:[%s0 + $0x6c] sm:$0xf]
  %v55 = vld [vmem:[%s0 + $0x70] sm:$0xf]
  %v56 = vld [vmem:[%s0 + $0x74] sm:$0xf]
  %v57 = vld [vmem:[%s0 + $0x78] sm:$0xf]
  %v58 = vld [vmem:[%s0 + $0x7c] sm:$0xf]
  %v59 = vunpack.c.l.bf16 %v27
  %v60 = vunpack.c.l.bf16 %v28
  %v61 = vunpack.c.l.bf16 %v29
  %v62 = vunpack.c.l.bf16 %v30
  %v63 = vunpack.c.l.bf16 %v31
  %v64 = vunpack.c.l.bf16 %v32
  %v65 = vunpack.c.l.bf16 %v33
  %v66 = vunpack.c.l.bf16 %v34
  %v67 = vunpack.c.l.bf16 %v35
  %v68 = vunpack.c.l.bf16 %v36
  %v69 = vunpack.c.l.bf16 %v37
  %v70 = vunpack.c.l.bf16 %v38
  %v71 = vunpack.c.l.bf16 %v39
  %v72 = vunpack.c.l.bf16 %v40
  %v73 = vunpack.c.l.bf16 %v41
  %v74 = vunpack.c.l.bf16 %v42
  %v75 = vunpack.c.l.bf16 %v43
  %v76 = vunpack.c.l.bf16 %v44
  %v77 = vunpack.c.l.bf16 %v45
  %v78 = vunpack.c.l.bf16 %v46
  %v79 = vunpack.c.l.bf16 %v47
  %v80 = vunpack.c.l.bf16 %v48
  %v81 = vunpack.c.l.bf16 %v49
  %v82 = vunpack.c.l.bf16 %v50
  %v83 = vunpack.c.l.bf16 %v51
  %v84 = vunpack.c.l.bf16 %v52
  %v85 = vunpack.c.l.bf16 %v53
  %v86 = vunpack.c.l.bf16 %v54
  %v87 = vunpack.c.l.bf16 %v55
  %v88 = vunpack.c.l.bf16 %v56
  %v89 = vunpack.c.l.bf16 %v57
  %v90 = vunpack.c.l.bf16 %v58
  %v91 = vld [vmem:[%s2] sm:$0x1]
  %v93 = vlaneseq
  %v94 = vshrl.u32 %v93, 7
  %v95 = vsub.s32 0, %v94
  %v96 = vrot.slane %v91, %v95
  %v98 = vmul.f32 %v59, %v96
  %v99 = vmul.f32 %v60, %v96
  %v100 = vmul.f32 %v61, %v96
  %v101 = vmul.f32 %v62, %v96
  %v102 = vmul.f32 %v63, %v96
  %v103 = vmul.f32 %v64, %v96
  %v104 = vmul.f32 %v65, %v96
  %v105 = vmul.f32 %v66, %v96
  %v106 = vmul.f32 %v67, %v96
  %v107 = vmul.f32 %v68, %v96
  %v108 = vmul.f32 %v69, %v96
  %v109 = vmul.f32 %v70, %v96
  %v110 = vmul.f32 %v71, %v96
  %v111 = vmul.f32 %v72, %v96
  %v112 = vmul.f32 %v73, %v96
  %v113 = vmul.f32 %v74, %v96
  %v114 = vmul.f32 %v75, %v96
  %v115 = vmul.f32 %v76, %v96
  %v116 = vmul.f32 %v77, %v96
  %v117 = vmul.f32 %v78, %v96
  %v118 = vmul.f32 %v79, %v96
  %v119 = vmul.f32 %v80, %v96
  %v120 = vmul.f32 %v81, %v96
  %v121 = vmul.f32 %v82, %v96
  %v122 = vmul.f32 %v83, %v96
  %v123 = vmul.f32 %v84, %v96
  %v124 = vmul.f32 %v85, %v96
  %v125 = vmul.f32 %v86, %v96
  %v126 = vmul.f32 %v87, %v96
  %v127 = vmul.f32 %v88, %v96
  %v128 = vmul.f32 %v89, %v96
  %v129 = vmul.f32 %v90, %v96
  %v130 = vld [vmem:[%s1] sm:$0xf]
  %v131 = vld [vmem:[%s1 + $0x4] sm:$0xf]
  %v132 = vld [vmem:[%s1 + $0x8] sm:$0xf]
  %v133 = vld [vmem:[%s1 + $0xc] sm:$0xf]
  %v134 = vld [vmem:[%s1 + $0x10] sm:$0xf]
  %v135 = vld [vmem:[%s1 + $0x14] sm:$0xf]
  %v136 = vld [vmem:[%s1 + $0x18] sm:$0xf]
  %v137 = vld [vmem:[%s1 + $0x1c] sm:$0xf]
  %v138 = vld [vmem:[%s1 + $0x20] sm:$0xf]
  %v139 = vld [vmem:[%s1 + $0x24] sm:$0xf]
  %v140 = vld [vmem:[%s1 + $0x28] sm:$0xf]
  %v141 = vld [vmem:[%s1 + $0x2c] sm:$0xf]
  %v142 = vld [vmem:[%s1 + $0x30] sm:$0xf]
  %v143 = vld [vmem:[%s1 + $0x34] sm:$0xf]
  %v144 = vld [vmem:[%s1 + $0x38] sm:$0xf]
  %v145 = vld [vmem:[%s1 + $0x3c] sm:$0xf]
  %v146 = vld [vmem:[%s1 + $0x40] sm:$0xf]
  %v147 = vld [vmem:[%s1 + $0x44] sm:$0xf]
  %v148 = vld [vmem:[%s1 + $0x48] sm:$0xf]
  %v149 = vld [vmem:[%s1 + $0x4c] sm:$0xf]
  %v150 = vld [vmem:[%s1 + $0x50] sm:$0xf]
  %v151 = vld [vmem:[%s1 + $0x54] sm:$0xf]
  %v152 = vld [vmem:[%s1 + $0x58] sm:$0xf]
  %v153 = vld [vmem:[%s1 + $0x5c] sm:$0xf]
  %v154 = vld [vmem:[%s1 + $0x60] sm:$0xf]
  %v155 = vld [vmem:[%s1 + $0x64] sm:$0xf]
  %v156 = vld [vmem:[%s1 + $0x68] sm:$0xf]
  %v157 = vld [vmem:[%s1 + $0x6c] sm:$0xf]
  %v158 = vld [vmem:[%s1 + $0x70] sm:$0xf]
  %v159 = vld [vmem:[%s1 + $0x74] sm:$0xf]
  %v160 = vld [vmem:[%s1 + $0x78] sm:$0xf]
  %v161 = vld [vmem:[%s1 + $0x7c] sm:$0xf]
  %v162 = vunpack.c.l.bf16 %v130
  %v163 = vunpack.c.l.bf16 %v131
  %v164 = vunpack.c.l.bf16 %v132
  %v165 = vunpack.c.l.bf16 %v133
  %v166 = vunpack.c.l.bf16 %v134
  %v167 = vunpack.c.l.bf16 %v135
  %v168 = vunpack.c.l.bf16 %v136
  %v169 = vunpack.c.l.bf16 %v137
  %v170 = vunpack.c.l.bf16 %v138
  %v171 = vunpack.c.l.bf16 %v139
  %v172 = vunpack.c.l.bf16 %v140
  %v173 = vunpack.c.l.bf16 %v141
  %v174 = vunpack.c.l.bf16 %v142
  %v175 = vunpack.c.l.bf16 %v143
  %v176 = vunpack.c.l.bf16 %v144
  %v177 = vunpack.c.l.bf16 %v145
  %v178 = vunpack.c.l.bf16 %v146
  %v179 = vunpack.c.l.bf16 %v147
  %v180 = vunpack.c.l.bf16 %v148
  %v181 = vunpack.c.l.bf16 %v149
  %v182 = vunpack.c.l.bf16 %v150
  %v183 = vunpack.c.l.bf16 %v151
  %v184 = vunpack.c.l.bf16 %v152
  %v185 = vunpack.c.l.bf16 %v153
  %v186 = vunpack.c.l.bf16 %v154
  %v187 = vunpack.c.l.bf16 %v155
  %v188 = vunpack.c.l.bf16 %v156
  %v189 = vunpack.c.l.bf16 %v157
  %v190 = vunpack.c.l.bf16 %v158
  %v191 = vunpack.c.l.bf16 %v159
  %v192 = vunpack.c.l.bf16 %v160
  %v193 = vunpack.c.l.bf16 %v161
  %v194 = vld [vmem:[%s3] sm:$0x1]
  %v196 = vlaneseq
  %v197 = vshrl.u32 %v196, 7
  %v198 = vsub.s32 0, %v197
  %v199 = vrot.slane %v194, %v198
  %v201 = vmul.f32 %v162, %v199
  %v202 = vmul.f32 %v163, %v199
  %v203 = vmul.f32 %v164, %v199
  %v204 = vmul.f32 %v165, %v199
  %v205 = vmul.f32 %v166, %v199
  %v206 = vmul.f32 %v167, %v199
  %v207 = vmul.f32 %v168, %v199
  %v208 = vmul.f32 %v169, %v199
  %v209 = vmul.f32 %v170, %v199
  %v210 = vmul.f32 %v171, %v199
  %v211 = vmul.f32 %v172, %v199
  %v212 = vmul.f32 %v173, %v199
  %v213 = vmul.f32 %v174, %v199
  %v214 = vmul.f32 %v175, %v199
  %v215 = vmul.f32 %v176, %v199
  %v216 = vmul.f32 %v177, %v199
  %v217 = vmul.f32 %v178, %v199
  %v218 = vmul.f32 %v179, %v199
  %v219 = vmul.f32 %v180, %v199
  %v220 = vmul.f32 %v181, %v199
  %v221 = vmul.f32 %v182, %v199
  %v222 = vmul.f32 %v183, %v199
  %v223 = vmul.f32 %v184, %v199
  %v224 = vmul.f32 %v185, %v199
  %v225 = vmul.f32 %v186, %v199
  %v226 = vmul.f32 %v187, %v199
  %v227 = vmul.f32 %v188, %v199
  %v228 = vmul.f32 %v189, %v199
  %v229 = vmul.f32 %v190, %v199
  %v230 = vmul.f32 %v191, %v199
  %v231 = vmul.f32 %v192, %v199
  %v232 = vmul.f32 %v193, %v199
  %v233 = vadd.f32 %v98, %v201
  %v234 = vadd.f32 %v99, %v202
  %v235 = vadd.f32 %v100, %v203
  %v236 = vadd.f32 %v101, %v204
  %v237 = vadd.f32 %v102, %v205
  %v238 = vadd.f32 %v103, %v206
  %v239 = vadd.f32 %v104, %v207
  %v240 = vadd.f32 %v105, %v208
  %v241 = vadd.f32 %v106, %v209
  %v242 = vadd.f32 %v107, %v210
  %v243 = vadd.f32 %v108, %v211
  %v244 = vadd.f32 %v109, %v212
  %v245 = vadd.f32 %v110, %v213
  %v246 = vadd.f32 %v111, %v214
  %v247 = vadd.f32 %v112, %v215
  %v248 = vadd.f32 %v113, %v216
  %v249 = vadd.f32 %v114, %v217
  %v250 = vadd.f32 %v115, %v218
  %v251 = vadd.f32 %v116, %v219
  %v252 = vadd.f32 %v117, %v220
  %v253 = vadd.f32 %v118, %v221
  %v254 = vadd.f32 %v119, %v222
  %v255 = vadd.f32 %v120, %v223
  %v256 = vadd.f32 %v121, %v224
  %v257 = vadd.f32 %v122, %v225
  %v258 = vadd.f32 %v123, %v226
  %v259 = vadd.f32 %v124, %v227
  %v260 = vadd.f32 %v125, %v228
  %v261 = vadd.f32 %v126, %v229
  %v262 = vadd.f32 %v127, %v230
  %v263 = vadd.f32 %v128, %v231
  %v264 = vadd.f32 %v129, %v232
  %v265 = vld [vmem:[%s4] sm:$0x1]
  %v267 = vlaneseq
  %v268 = vshrl.u32 %v267, 7
  %v269 = vsub.s32 0, %v268
  %v270 = vrot.slane %v265, %v269
  %v272 = vadd.f32 %v233, %v270
  %v273 = vadd.f32 %v234, %v270
  %v274 = vadd.f32 %v235, %v270
  %v275 = vadd.f32 %v236, %v270
  %v276 = vadd.f32 %v237, %v270
  %v277 = vadd.f32 %v238, %v270
  %v278 = vadd.f32 %v239, %v270
  %v279 = vadd.f32 %v240, %v270
  %v280 = vadd.f32 %v241, %v270
  %v281 = vadd.f32 %v242, %v270
  %v282 = vadd.f32 %v243, %v270
  %v283 = vadd.f32 %v244, %v270
  %v284 = vadd.f32 %v245, %v270
  %v285 = vadd.f32 %v246, %v270
  %v286 = vadd.f32 %v247, %v270
  %v287 = vadd.f32 %v248, %v270
  %v288 = vadd.f32 %v249, %v270
  %v289 = vadd.f32 %v250, %v270
  %v290 = vadd.f32 %v251, %v270
  %v291 = vadd.f32 %v252, %v270
  %v292 = vadd.f32 %v253, %v270
  %v293 = vadd.f32 %v254, %v270
  %v294 = vadd.f32 %v255, %v270
  %v295 = vadd.f32 %v256, %v270
  %v296 = vadd.f32 %v257, %v270
  %v297 = vadd.f32 %v258, %v270
  %v298 = vadd.f32 %v259, %v270
  %v299 = vadd.f32 %v260, %v270
  %v300 = vadd.f32 %v261, %v270
  %v301 = vadd.f32 %v262, %v270
  %v302 = vadd.f32 %v263, %v270
  %v303 = vadd.f32 %v264, %v270
  %vm304 = vcmp.gt.f32.partialorder %v272, 0.0
  %vm305 = vcmp.gt.f32.partialorder %v273, 0.0
  %vm306 = vcmp.gt.f32.partialorder %v274, 0.0
  %vm307 = vcmp.gt.f32.partialorder %v275, 0.0
  %vm308 = vcmp.gt.f32.partialorder %v276, 0.0
  %vm309 = vcmp.gt.f32.partialorder %v277, 0.0
  %vm310 = vcmp.gt.f32.partialorder %v278, 0.0
  %vm311 = vcmp.gt.f32.partialorder %v279, 0.0
  %vm312 = vcmp.gt.f32.partialorder %v280, 0.0
  %vm313 = vcmp.gt.f32.partialorder %v281, 0.0
  %vm314 = vcmp.gt.f32.partialorder %v282, 0.0
  %vm315 = vcmp.gt.f32.partialorder %v283, 0.0
  %vm316 = vcmp.gt.f32.partialorder %v284, 0.0
  %vm317 = vcmp.gt.f32.partialorder %v285, 0.0
  %vm318 = vcmp.gt.f32.partialorder %v286, 0.0
  %vm319 = vcmp.gt.f32.partialorder %v287, 0.0
  %vm320 = vcmp.gt.f32.partialorder %v288, 0.0
  %vm321 = vcmp.gt.f32.partialorder %v289, 0.0
  %vm322 = vcmp.gt.f32.partialorder %v290, 0.0
  %vm323 = vcmp.gt.f32.partialorder %v291, 0.0
  %vm324 = vcmp.gt.f32.partialorder %v292, 0.0
  %vm325 = vcmp.gt.f32.partialorder %v293, 0.0
  %vm326 = vcmp.gt.f32.partialorder %v294, 0.0
  %vm327 = vcmp.gt.f32.partialorder %v295, 0.0
  %vm328 = vcmp.gt.f32.partialorder %v296, 0.0
  %vm329 = vcmp.gt.f32.partialorder %v297, 0.0
  %vm330 = vcmp.gt.f32.partialorder %v298, 0.0
  %vm331 = vcmp.gt.f32.partialorder %v299, 0.0
  %vm332 = vcmp.gt.f32.partialorder %v300, 0.0
  %vm333 = vcmp.gt.f32.partialorder %v301, 0.0
  %vm334 = vcmp.gt.f32.partialorder %v302, 0.0
  %vm335 = vcmp.gt.f32.partialorder %v303, 0.0
  %v336 = vmul.f32 %v272, 0.1
  %v337 = vmul.f32 %v273, 0.1
  %v338 = vmul.f32 %v274, 0.1
  %v339 = vmul.f32 %v275, 0.1
  %v340 = vmul.f32 %v276, 0.1
  %v341 = vmul.f32 %v277, 0.1
  %v342 = vmul.f32 %v278, 0.1
  %v343 = vmul.f32 %v279, 0.1
  %v344 = vmul.f32 %v280, 0.1
  %v345 = vmul.f32 %v281, 0.1
  %v346 = vmul.f32 %v282, 0.1
  %v347 = vmul.f32 %v283, 0.1
  %v348 = vmul.f32 %v284, 0.1
  %v349 = vmul.f32 %v285, 0.1
  %v350 = vmul.f32 %v286, 0.1
  %v351 = vmul.f32 %v287, 0.1
  %v352 = vmul.f32 %v288, 0.1
  %v353 = vmul.f32 %v289, 0.1
  %v354 = vmul.f32 %v290, 0.1
  %v355 = vmul.f32 %v291, 0.1
  %v356 = vmul.f32 %v292, 0.1
  %v357 = vmul.f32 %v293, 0.1
  %v358 = vmul.f32 %v294, 0.1
  %v359 = vmul.f32 %v295, 0.1
  %v360 = vmul.f32 %v296, 0.1
  %v361 = vmul.f32 %v297, 0.1
  %v362 = vmul.f32 %v298, 0.1
  %v363 = vmul.f32 %v299, 0.1
  %v364 = vmul.f32 %v300, 0.1
  %v365 = vmul.f32 %v301, 0.1
  %v366 = vmul.f32 %v302, 0.1
  %v367 = vmul.f32 %v303, 0.1
  %v368 = vsel %vm304, %v272, %v336
  %v369 = vsel %vm305, %v273, %v337
  %v370 = vsel %vm306, %v274, %v338
  %v371 = vsel %vm307, %v275, %v339
  %v372 = vsel %vm308, %v276, %v340
  %v373 = vsel %vm309, %v277, %v341
  %v374 = vsel %vm310, %v278, %v342
  %v375 = vsel %vm311, %v279, %v343
  %v376 = vsel %vm312, %v280, %v344
  %v377 = vsel %vm313, %v281, %v345
  %v378 = vsel %vm314, %v282, %v346
  %v379 = vsel %vm315, %v283, %v347
  %v380 = vsel %vm316, %v284, %v348
  %v381 = vsel %vm317, %v285, %v349
  %v382 = vsel %vm318, %v286, %v350
  %v383 = vsel %vm319, %v287, %v351
  %v384 = vsel %vm320, %v288, %v352
  %v385 = vsel %vm321, %v289, %v353
  %v386 = vsel %vm322, %v290, %v354
  %v387 = vsel %vm323, %v291, %v355
  %v388 = vsel %vm324, %v292, %v356
  %v389 = vsel %vm325, %v293, %v357
  %v390 = vsel %vm326, %v294, %v358
  %v391 = vsel %vm327, %v295, %v359
  %v392 = vsel %vm328, %v296, %v360
  %v393 = vsel %vm329, %v297, %v361
  %v394 = vsel %vm330, %v298, %v362
  %v395 = vsel %vm331, %v299, %v363
  %v396 = vsel %vm332, %v300, %v364
  %v397 = vsel %vm333, %v301, %v365
  %v398 = vsel %vm334, %v302, %v366
  %v399 = vsel %vm335, %v303, %v367
  %v400 = vpack.c.bf16 %v369, %v368
  %v401 = vpack.c.bf16 %v371, %v370
  %v402 = vpack.c.bf16 %v373, %v372
  %v403 = vpack.c.bf16 %v375, %v374
  %v404 = vpack.c.bf16 %v377, %v376
  %v405 = vpack.c.bf16 %v379, %v378
  %v406 = vpack.c.bf16 %v381, %v380
  %v407 = vpack.c.bf16 %v383, %v382
  %v408 = vpack.c.bf16 %v385, %v384
  %v409 = vpack.c.bf16 %v387, %v386
  %v410 = vpack.c.bf16 %v389, %v388
  %v411 = vpack.c.bf16 %v391, %v390
  %v412 = vpack.c.bf16 %v393, %v392
  %v413 = vpack.c.bf16 %v395, %v394
  %v414 = vpack.c.bf16 %v397, %v396
  %v415 = vpack.c.bf16 %v399, %v398
  %v416 = vld [vmem:[%s5] sm:$0xf]
  %v417 = vld [vmem:[%s5 + $0x4] sm:$0xf]
  %v418 = vld [vmem:[%s5 + $0x8] sm:$0xf]
  %v419 = vld [vmem:[%s5 + $0xc] sm:$0xf]
  %v420 = vld [vmem:[%s6] sm:$0x1]
  %v422 = vlaneseq
  %v423 = vshrl.u32 %v422, 7
  %v424 = vsub.s32 0, %v423
  %v425 = vrot.slane %v420, %v424
  %v431 = vunpack.c.l.b16 %v416
  %v432 = vunpack.c.l.b16 %v417
  %v433 = vunpack.c.l.b16 %v418
  %v434 = vunpack.c.l.b16 %v419
  %v435 = vpack.c.b16 %v432, %v431
  %v436 = vpack.c.b16 %v434, %v433
  %vm439 = vcmask 261120
  %v441 = vsel %vm439, %v400, 0
  %v444 = vsel %vm439, %v401, 0
  %v447 = vsel %vm439, %v402, 0
  %v450 = vsel %vm439, %v403, 0
  %v453 = vsel %vm439, %v404, 0
  %v456 = vsel %vm439, %v405, 0
  %v459 = vsel %vm439, %v406, 0
  %v462 = vsel %vm439, %v407, 0
  %v465 = vsel %vm439, %v408, 0
  %v468 = vsel %vm439, %v409, 0
  %v471 = vsel %vm439, %v410, 0
  %v474 = vsel %vm439, %v411, 0
  %v477 = vsel %vm439, %v412, 0
  %v480 = vsel %vm439, %v413, 0
  %v483 = vsel %vm439, %v414, 0
  %v486 = vsel %vm439, %v415, 0
  %488 = vmatprep.subr.bf16.mxu0 0
  %489 = vmatpush1.bf16.msra.mxu0 %v435
  %490 = vmatprep.subr.bf16.mxu0 0
  %491 = vmatpush1.bf16.msra.mxu0 %v436
  %492 = vmatprep.subr.bf16.mxu0 0
  %493 = vmatpush1.bf16.msra.mxu0 0
  %494 = vmatprep.subr.bf16.mxu0 0
  %495 = vmatpush1.bf16.msra.mxu0 0
  %496 = vmatprep.subr.bf16.mxu0 0
  %497 = vmatpush1.bf16.msra.mxu0 0
  %498 = vmatprep.subr.bf16.mxu0 0
  %499 = vmatpush1.bf16.msra.mxu0 0
  %500 = vmatprep.subr.bf16.mxu0 0
  %501 = vmatpush1.bf16.msra.mxu0 0
  %502 = vmatprep.subr.bf16.mxu0 0
  %503 = vmatpush1.bf16.msra.mxu0 0
  %504 = vmatprep.subr.bf16.mxu0 0
  %505 = vmatpush1.bf16.msra.mxu0 0
  %506 = vmatprep.subr.bf16.mxu0 0
  %507 = vmatpush1.bf16.msra.mxu0 0
  %508 = vmatprep.subr.bf16.mxu0 0
  %509 = vmatpush1.bf16.msra.mxu0 0
  %510 = vmatprep.subr.bf16.mxu0 0
  %511 = vmatpush1.bf16.msra.mxu0 0
  %512 = vmatprep.subr.bf16.mxu0 0
  %513 = vmatpush1.bf16.msra.mxu0 0
  %514 = vmatprep.subr.bf16.mxu0 0
  %515 = vmatpush1.bf16.msra.mxu0 0
  %516 = vmatprep.subr.bf16.mxu0 0
  %517 = vmatpush1.bf16.msra.mxu0 0
  %518 = vmatprep.subr.bf16.mxu0 0
  %519 = vmatpush1.bf16.msra.mxu0 0
  %520 = vmatprep.mubr.bf16.mxu0 0
  %521 = vmatmul.mubr.bf16.gmra.mrb[0].mxu0 %v441
  %v522 = vpop.f32.mrb[0].mxu0
  %v523 = vadd.f32 %v425, %v522
  %v524 = vpop.f32.mrb[0].mxu0
  %v525 = vpop.f32.mrb[0].mxu0
  %v526 = vadd.f32 %v425, %v525
  %v527 = vpop.f32.mrb[0].mxu0
  %528 = vmatprep.mubr.bf16.mxu0 0
  %529 = vmatmul.mubr.bf16.gmra.mrb[0].mxu0 %v444
  %v530 = vpop.f32.mrb[0].mxu0
  %v531 = vadd.f32 %v425, %v530
  %v532 = vpop.f32.mrb[0].mxu0
  %v533 = vpop.f32.mrb[0].mxu0
  %v534 = vadd.f32 %v425, %v533
  %v535 = vpop.f32.mrb[0].mxu0
  %536 = vmatprep.mubr.bf16.mxu0 0
  %537 = vmatmul.mubr.bf16.gmra.mrb[0].mxu0 %v447
  %v538 = vpop.f32.mrb[0].mxu0
  %v539 = vadd.f32 %v425, %v538
  %v540 = vpop.f32.mrb[0].mxu0
  %v541 = vpop.f32.mrb[0].mxu0
  %v542 = vadd.f32 %v425, %v541
  %v543 = vpop.f32.mrb[0].mxu0
  %544 = vmatprep.mubr.bf16.mxu0 0
  %545 = vmatmul.mubr.bf16.gmra.mrb[0].mxu0 %v450
  %v546 = vpop.f32.mrb[0].mxu0
  %v547 = vadd.f32 %v425, %v546
  %v548 = vpop.f32.mrb[0].mxu0
  %v549 = vpop.f32.mrb[0].mxu0
  %v550 = vadd.f32 %v425, %v549
  %v551 = vpop.f32.mrb[0].mxu0
  %552 = vmatprep.mubr.bf16.mxu0 0
  %553 = vmatmul.mubr.bf16.gmra.mrb[0].mxu0 %v453
  %v554 = vpop.f32.mrb[0].mxu0
  %v555 = vadd.f32 %v425, %v554
  %v556 = vpop.f32.mrb[0].mxu0
  %v557 = vpop.f32.mrb[0].mxu0
  %v558 = vadd.f32 %v425, %v557
  %v559 = vpop.f32.mrb[0].mxu0
  %560 = vmatprep.mubr.bf16.mxu0 0
  %561 = vmatmul.mubr.bf16.gmra.mrb[0].mxu0 %v456
  %v562 = vpop.f32.mrb[0].mxu0
  %v563 = vadd.f32 %v425, %v562
  %v564 = vpop.f32.mrb[0].mxu0
  %v565 = vpop.f32.mrb[0].mxu0
  %v566 = vadd.f32 %v425, %v565
  %v567 = vpop.f32.mrb[0].mxu0
  %568 = vmatprep.mubr.bf16.mxu0 0
  %569 = vmatmul.mubr.bf16.gmra.mrb[0].mxu0 %v459
  %v570 = vpop.f32.mrb[0].mxu0
  %v571 = vadd.f32 %v425, %v570
  %v572 = vpop.f32.mrb[0].mxu0
  %v573 = vpop.f32.mrb[0].mxu0
  %v574 = vadd.f32 %v425, %v573
  %v575 = vpop.f32.mrb[0].mxu0
  %576 = vmatprep.mubr.bf16.mxu0 0
  %577 = vmatmul.mubr.bf16.gmra.mrb[0].mxu0 %v462
  %v578 = vpop.f32.mrb[0].mxu0
  %v579 = vadd.f32 %v425, %v578
  %v580 = vpop.f32.mrb[0].mxu0
  %v581 = vpop.f32.mrb[0].mxu0
  %v582 = vadd.f32 %v425, %v581
  %v583 = vpop.f32.mrb[0].mxu0
  %584 = vmatprep.mubr.bf16.mxu0 0
  %585 = vmatmul.mubr.bf16.gmra.mrb[0].mxu0 %v465
  %v586 = vpop.f32.mrb[0].mxu0
  %v587 = vadd.f32 %v425, %v586
  %v588 = vpop.f32.mrb[0].mxu0
  %v589 = vpop.f32.mrb[0].mxu0
  %v590 = vadd.f32 %v425, %v589
  %v591 = vpop.f32.mrb[0].mxu0
  %592 = vmatprep.mubr.bf16.mxu0 0
  %593 = vmatmul.mubr.bf16.gmra.mrb[0].mxu0 %v468
  %v594 = vpop.f32.mrb[0].mxu0
  %v595 = vadd.f32 %v425, %v594
  %v596 = vpop.f32.mrb[0].mxu0
  %v597 = vpop.f32.mrb[0].mxu0
  %v598 = vadd.f32 %v425, %v597
  %v599 = vpop.f32.mrb[0].mxu0
  %600 = vmatprep.mubr.bf16.mxu0 0
  %601 = vmatmul.mubr.bf16.gmra.mrb[0].mxu0 %v471
  %v602 = vpop.f32.mrb[0].mxu0
  %v603 = vadd.f32 %v425, %v602
  %v604 = vpop.f32.mrb[0].mxu0
  %v605 = vpop.f32.mrb[0].mxu0
  %v606 = vadd.f32 %v425, %v605
  %v607 = vpop.f32.mrb[0].mxu0
  %608 = vmatprep.mubr.bf16.mxu0 0
  %609 = vmatmul.mubr.bf16.gmra.mrb[0].mxu0 %v474
  %v610 = vpop.f32.mrb[0].mxu0
  %v611 = vadd.f32 %v425, %v610
  %v612 = vpop.f32.mrb[0].mxu0
  %v613 = vpop.f32.mrb[0].mxu0
  %v614 = vadd.f32 %v425, %v613
  %v615 = vpop.f32.mrb[0].mxu0
  %616 = vmatprep.mubr.bf16.mxu0 0
  %617 = vmatmul.mubr.bf16.gmra.mrb[0].mxu0 %v477
  %v618 = vpop.f32.mrb[0].mxu0
  %v619 = vadd.f32 %v425, %v618
  %v620 = vpop.f32.mrb[0].mxu0
  %v621 = vpop.f32.mrb[0].mxu0
  %v622 = vadd.f32 %v425, %v621
  %v623 = vpop.f32.mrb[0].mxu0
  %624 = vmatprep.mubr.bf16.mxu0 0
  %625 = vmatmul.mubr.bf16.gmra.mrb[0].mxu0 %v480
  %v626 = vpop.f32.mrb[0].mxu0
  %v627 = vadd.f32 %v425, %v626
  %v628 = vpop.f32.mrb[0].mxu0
  %v629 = vpop.f32.mrb[0].mxu0
  %v630 = vadd.f32 %v425, %v629
  %v631 = vpop.f32.mrb[0].mxu0
  %632 = vmatprep.mubr.bf16.mxu0 0
  %633 = vmatmul.mubr.bf16.gmra.mrb[0].mxu0 %v483
  %v634 = vpop.f32.mrb[0].mxu0
  %v635 = vadd.f32 %v425, %v634
  %v636 = vpop.f32.mrb[0].mxu0
  %v637 = vpop.f32.mrb[0].mxu0
  %v638 = vadd.f32 %v425, %v637
  %v639 = vpop.f32.mrb[0].mxu0
  %640 = vmatprep.mubr.bf16.mxu0 0
  %641 = vmatmul.mubr.bf16.gmra.mrb[0].mxu0 %v486
  %v642 = vpop.f32.mrb[0].mxu0
  %v643 = vadd.f32 %v425, %v642
  %v644 = vpop.f32.mrb[0].mxu0
  %v645 = vpop.f32.mrb[0].mxu0
  %v646 = vadd.f32 %v425, %v645
  %v647 = vpop.f32.mrb[0].mxu0
  %648 = vdwg.mxu0
  %v649 = vmax.f32 %v523, 0.0
  %v650 = vmax.f32 %v526, 0.0
  %v651 = vmax.f32 %v531, 0.0
  %v652 = vmax.f32 %v534, 0.0
  %v653 = vmax.f32 %v539, 0.0
  %v654 = vmax.f32 %v542, 0.0
  %v655 = vmax.f32 %v547, 0.0
  %v656 = vmax.f32 %v550, 0.0
  %v657 = vmax.f32 %v555, 0.0
  %v658 = vmax.f32 %v558, 0.0
  %v659 = vmax.f32 %v563, 0.0
  %v660 = vmax.f32 %v566, 0.0
  %v661 = vmax.f32 %v571, 0.0
  %v662 = vmax.f32 %v574, 0.0
  %v663 = vmax.f32 %v579, 0.0
  %v664 = vmax.f32 %v582, 0.0
  %v665 = vmax.f32 %v587, 0.0
  %v666 = vmax.f32 %v590, 0.0
  %v667 = vmax.f32 %v595, 0.0
  %v668 = vmax.f32 %v598, 0.0
  %v669 = vmax.f32 %v603, 0.0
  %v670 = vmax.f32 %v606, 0.0
  %v671 = vmax.f32 %v611, 0.0
  %v672 = vmax.f32 %v614, 0.0
  %v673 = vmax.f32 %v619, 0.0
  %v674 = vmax.f32 %v622, 0.0
  %v675 = vmax.f32 %v627, 0.0
  %v676 = vmax.f32 %v630, 0.0
  %v677 = vmax.f32 %v635, 0.0
  %v678 = vmax.f32 %v638, 0.0
  %v679 = vmax.f32 %v643, 0.0
  %v680 = vmax.f32 %v646, 0.0
  %681 = vst.msk [vmem:[%s7] sm:$0xff] %vm439, %v649
  %682 = vst.msk [vmem:[%s7 + $0x8] sm:$0xff] %vm439, %v650
  %683 = vst.msk [vmem:[%s7 + $0x10] sm:$0xff] %vm439, %v651
  %684 = vst.msk [vmem:[%s7 + $0x18] sm:$0xff] %vm439, %v652
  %685 = vst.msk [vmem:[%s7 + $0x20] sm:$0xff] %vm439, %v653
  %686 = vst.msk [vmem:[%s7 + $0x28] sm:$0xff] %vm439, %v654
  %687 = vst.msk [vmem:[%s7 + $0x30] sm:$0xff] %vm439, %v655
  %688 = vst.msk [vmem:[%s7 + $0x38] sm:$0xff] %vm439, %v656
  %689 = vst.msk [vmem:[%s7 + $0x40] sm:$0xff] %vm439, %v657
  %690 = vst.msk [vmem:[%s7 + $0x48] sm:$0xff] %vm439, %v658
  %691 = vst.msk [vmem:[%s7 + $0x50] sm:$0xff] %vm439, %v659
  %692 = vst.msk [vmem:[%s7 + $0x58] sm:$0xff] %vm439, %v660
  %693 = vst.msk [vmem:[%s7 + $0x60] sm:$0xff] %vm439, %v661
  %694 = vst.msk [vmem:[%s7 + $0x68] sm:$0xff] %vm439, %v662
  %695 = vst.msk [vmem:[%s7 + $0x70] sm:$0xff] %vm439, %v663
  %696 = vst.msk [vmem:[%s7 + $0x78] sm:$0xff] %vm439, %v664
  %697 = vst.msk [vmem:[%s7 + $0x80] sm:$0xff] %vm439, %v665
  %698 = vst.msk [vmem:[%s7 + $0x88] sm:$0xff] %vm439, %v666
  %699 = vst.msk [vmem:[%s7 + $0x90] sm:$0xff] %vm439, %v667
  %700 = vst.msk [vmem:[%s7 + $0x98] sm:$0xff] %vm439, %v668
  %701 = vst.msk [vmem:[%s7 + $0xa0] sm:$0xff] %vm439, %v669
  %702 = vst.msk [vmem:[%s7 + $0xa8] sm:$0xff] %vm439, %v670
  %703 = vst.msk [vmem:[%s7 + $0xb0] sm:$0xff] %vm439, %v671
  %704 = vst.msk [vmem:[%s7 + $0xb8] sm:$0xff] %vm439, %v672
  %705 = vst.msk [vmem:[%s7 + $0xc0] sm:$0xff] %vm439, %v673
  %706 = vst.msk [vmem:[%s7 + $0xc8] sm:$0xff] %vm439, %v674
  %707 = vst.msk [vmem:[%s7 + $0xd0] sm:$0xff] %vm439, %v675
  %708 = vst.msk [vmem:[%s7 + $0xd8] sm:$0xff] %vm439, %v676
  %709 = vst.msk [vmem:[%s7 + $0xe0] sm:$0xff] %vm439, %v677
  %710 = vst.msk [vmem:[%s7 + $0xe8] sm:$0xff] %vm439, %v678
  %711 = vst.msk [vmem:[%s7 + $0xf0] sm:$0xff] %vm439, %v679
  %712 = vst.msk [vmem:[%s7 + $0xf8] sm:$0xff] %vm439, %v680
  // Predicated region
  $region30: #{_sgb_forward_impl.13} parent=0 // pred_check
    _
  $region31: #{_sgb_forward_impl.13} parent=0 // pred_check_branch
    %714 = sbr.rel (0) target = $region33
  $region32: #{_sgb_forward_impl.13} parent=0 // pred_region
    _
  $region33: #{_sgb_forward_impl.13} parent=0 // pred_fallthru
    _
  // Predicated region
  $region34: #{_sgb_forward_impl.13} parent=0 // pred_check
    _
  $region35: #{_sgb_forward_impl.13} parent=0 // pred_check_branch
    %716 = sbr.rel (0) target = $region37
  $region36: #{_sgb_forward_impl.13} parent=0 // pred_region
    _
  $region37: #{_sgb_forward_impl.13} parent=0 // pred_fallthru
    _

// kernel: _sgb_forward_impl.14
$region0: #{_sgb_forward_impl.14}
  #allocation0 [shape = 'u32[]', space=smem, size = 0x4, offset = 0x4, fixed_abs, tag = 'smem constant byte address 0x4 - core index']
  #allocation1 [shape = 'u32[144,128]{1,0:T(1,128)}', space=vmem, size = 0x12000, scoped, tag = 'internal scratch']
  %s0 = inlined_call_operand.vmem [shape: f32[4,256,32], index: 0, kind: input, shape index: {}]
  %s1 = inlined_call_operand.vmem [shape: bf16[4,32,16], index: 1, kind: input, shape index: {}]
  %s2 = inlined_call_operand.vmem [shape: f32[4,1,16], index: 2, kind: input, shape index: {}]
  %s3 = inlined_call_operand.vmem [shape: bf16[4,256,16], index: 3, kind: output, shape index: {}]
  %s4 = sld [smem:[#allocation0]]
  $region45: #{_sgb_forward_impl.14} parent=0
    _
  %s6 = ssub.s32 1, %s4
  %s7 = scalar_select 0, %s6, %s4
  loop: start=0, step=1, limit=6
  $region2: #{_sgb_forward_impl.14} parent=0 // loop_pre_header
    _
  $region3: #{_sgb_forward_impl.14} parent=0 // loop_header
    %s9 = sphi 0, %s13
    %p10 = scmp.ge.s32.totalorder %s9, 6
    %s16 = sphi 0, %s28
    %s17 = sphi 0, %s24
    %s18 = sphi 0, %s16
    %s19 = sphi 0, %s17
    %s20 = sphi 0, %s18
    %s21 = sphi 0, %s19
    %s33 = sphi 0, %s35
    %s36 = sphi 0, %s33
    %s37 = sphi 0, %s36
    %s53 = sphi 0, %s37
    %s59 = sphi 0, %s61
    %s62 = sphi 0, %s59
    %s63 = sphi 0, %s62
    %s79 = sphi 0, %s63
    %s85 = sphi 0, %s87
    %s88 = sphi 0, %s85
    %s89 = sphi 0, %s88
    %s105 = sphi 0, %s89
    %s113 = sphi 0, %s115
    %s116 = sphi 0, %s113
    %s117 = sphi 0, %s116
    %s133 = sphi 0, %s117
  $region4: #{_sgb_forward_impl.14} parent=0 // loop_header_branch
    %12 = sbr.rel (%p10) target = $region8
  $region5: #{_sgb_forward_impl.14} parent=0 // loop_body
    %s14 = ssub.s32 %s9, 1
    %s15 = ssub.s32 %s9, 2
    %s22 = sadd.s32 1, %s17
    %p23 = scmp.ge.s32.totalorder %s22, 1
    %s24 = scalar_select %p23, 0, %s22
    %s25 = sadd.s32 1, %s16
    %s26 = scalar_select %p23, %s25, %s16
    %p27 = scmp.ge.s32.totalorder %s26, 4
    %s28 = scalar_select %p27, 0, %s26
    %s29 = ssub.s32 %s16, %s28
    %s30 = ssub.s32 %s17, %s24
    %s31 = sor.u32 %s29, %s30
    %p32 = scmp.eq.s32.totalorder %s31, 0
    %s34 = sadd.s32 %s33, 1
    %s35 = scalar_select %p32, %s33, %s34
    %p38 = pneg %p32
    %p39 = scmp.eq.s32.totalorder %s9, 3
    %p40 = por %p38, %p39
    %p41 = scmp.ne.s32.totalorder %s33, %s36
    %p42 = scmp.eq.s32.totalorder %s9, 0
    %p43 = por %p41, %p42
    %p44 = scmp.ne.s32.totalorder %s33, %s36
    %p45 = scmp.eq.s32.totalorder %s14, 3
    %p46 = por %p44, %p45
    %p47 = scmp.ne.s32.totalorder %s36, %s37
    %p48 = scmp.eq.s32.totalorder %s14, 0
    %p49 = por %p47, %p48
    %p50 = scmp.ne.s32.totalorder %s36, %s37
    %p51 = scmp.eq.s32.totalorder %s15, 3
    %p52 = por %p50, %p51
    %p54 = scmp.ne.s32.totalorder %s37, %s53
    %p55 = scmp.eq.s32.totalorder %s15, 0
    %p56 = por %p54, %p55
    %s57 = ssub.s32 %s16, %s28
    %p58 = scmp.eq.s32.totalorder %s57, 0
    %s60 = sadd.s32 %s59, 1
    %s61 = scalar_select %p58, %s59, %s60
    %p64 = pneg %p58
    %p65 = scmp.eq.s32.totalorder %s9, 3
    %p66 = por %p64, %p65
    %p67 = scmp.ne.s32.totalorder %s59, %s62
    %p68 = scmp.eq.s32.totalorder %s9, 0
    %p69 = por %p67, %p68
    %p70 = scmp.ne.s32.totalorder %s59, %s62
    %p71 = scmp.eq.s32.totalorder %s14, 3
    %p72 = por %p70, %p71
    %p73 = scmp.ne.s32.totalorder %s62, %s63
    %p74 = scmp.eq.s32.totalorder %s14, 0
    %p75 = por %p73, %p74
    %p76 = scmp.ne.s32.totalorder %s62, %s63
    %p77 = scmp.eq.s32.totalorder %s15, 3
    %p78 = por %p76, %p77
    %p80 = scmp.ne.s32.totalorder %s63, %s79
    %p81 = scmp.eq.s32.totalorder %s15, 0
    %p82 = por %p80, %p81
    %s83 = ssub.s32 %s16, %s28
    %p84 = scmp.eq.s32.totalorder %s83, 0
    %s86 = sadd.s32 %s85, 1
    %s87 = scalar_select %p84, %s85, %s86
    %p90 = pneg %p84
    %p91 = scmp.eq.s32.totalorder %s9, 3
    %p92 = por %p90, %p91
    %p93 = scmp.ne.s32.totalorder %s85, %s88
    %p94 = scmp.eq.s32.totalorder %s9, 0
    %p95 = por %p93, %p94
    %p96 = scmp.ne.s32.totalorder %s85, %s88
    %p97 = scmp.eq.s32.totalorder %s14, 3
    %p98 = por %p96, %p97
    %p99 = scmp.ne.s32.totalorder %s88, %s89
    %p100 = scmp.eq.s32.totalorder %s14, 0
    %p101 = por %p99, %p100
    %p102 = scmp.ne.s32.totalorder %s88, %s89
    %p103 = scmp.eq.s32.totalorder %s15, 3
    %p104 = por %p102, %p103
    %p106 = scmp.ne.s32.totalorder %s89, %s105
    %p107 = scmp.eq.s32.totalorder %s15, 0
    %p108 = por %p106, %p107
    %s109 = ssub.s32 %s16, %s28
    %s110 = ssub.s32 %s17, %s24
    %s111 = sor.u32 %s109, %s110
    %p112 = scmp.eq.s32.totalorder %s111, 0
    %s114 = sadd.s32 %s113, 1
    %s115 = scalar_select %p112, %s113, %s114
    %p118 = pneg %p112
    %p119 = scmp.eq.s32.totalorder %s9, 3
    %p120 = por %p118, %p119
    %p121 = scmp.ne.s32.totalorder %s113, %s116
    %p122 = scmp.eq.s32.totalorder %s9, 0
    %p123 = por %p121, %p122
    %p124 = scmp.ne.s32.totalorder %s113, %s116
    %p125 = scmp.eq.s32.totalorder %s14, 3
    %p126 = por %p124, %p125
    %p127 = scmp.ne.s32.totalorder %s116, %s117
    %p128 = scmp.eq.s32.totalorder %s14, 0
    %p129 = por %p127, %p128
    %p130 = scmp.ne.s32.totalorder %s116, %s117
    %p131 = scmp.eq.s32.totalorder %s15, 3
    %p132 = por %p130, %p131
    %p134 = scmp.ne.s32.totalorder %s117, %s133
    %p135 = scmp.eq.s32.totalorder %s15, 0
    %p136 = por %p134, %p135
    %p137 = scmp.le.s32.totalorder 1, %s9
    %p138 = scmp.lt.s32.totalorder %s9, 5
    %p139 = pnand %p137, %p138
    %p140 = pneg %p139
    // Predicated region
    $region9: #{_sgb_forward_impl.14} parent=5 // pred_check
      _
    $region10: #{_sgb_forward_impl.14} parent=5 // pred_check_branch
      %142 = sbr.rel (%p139) target = $region12
    $region11: #{_sgb_forward_impl.14} parent=5 // pred_region
      %s143 = ssub.s32 %s9, 1
    $region12: #{_sgb_forward_impl.14} parent=5 // pred_fallthru
      _
    %p144 = scmp.lt.s32.totalorder %s9, 4
    // Predicated region
    $region13: #{_sgb_forward_impl.14} parent=5 // pred_check
      %p145 = pneg %p144
    $region14: #{_sgb_forward_impl.14} parent=5 // pred_check_branch
      %147 = sbr.rel (%p145) target = $region16
    $region15: #{_sgb_forward_impl.14} parent=5 // pred_region
      // Predicated region
      $region17: #{_sgb_forward_impl.14} parent=15 // pred_check
        %p148 = pneg %p43
      $region18: #{_sgb_forward_impl.14} parent=15 // pred_check_branch
        %150 = sbr.rel (%p148) target = $region20
      $region19: #{_sgb_forward_impl.14} parent=15 // pred_region
        %s151 = smul.u32 32, %s17
        %p152 = scmp.lt.s32.totalorder %s16, 3
        %s153 = scalar_select %p152, %s16, 3
        %p154 = scmp.lt.s32.totalorder %s151, 31
        %s155 = scalar_select %p154, %s151, 31
        %s156 = smul.addr %s153, 32
        %s157 = sadd.s32 %s155, %s156
        %s158 = smul.addr %s157, 8
        %s159 = scalar_lea.vmem %s0, %s158
        %s160 = smul.u32 32, %s17
      $region20: #{_sgb_forward_impl.14} parent=15 // pred_fallthru
        _
      // Predicated region
      $region21: #{_sgb_forward_impl.14} parent=15 // pred_check
        %p161 = pneg %p69
      $region22: #{_sgb_forward_impl.14} parent=15 // pred_check_branch
        %163 = sbr.rel (%p161) target = $region24
      $region23: #{_sgb_forward_impl.14} parent=15 // pred_region
        %p164 = scmp.lt.s32.totalorder %s16, 3
        %s165 = scalar_select %p164, %s16, 3
        %s166 = smul.addr %s165, 4
        %s167 = smul.addr %s166, 4
        %s168 = scalar_lea.vmem %s1, %s167
      $region24: #{_sgb_forward_impl.14} parent=15 // pred_fallthru
        _
      // Predicated region
      $region25: #{_sgb_forward_impl.14} parent=15 // pred_check
        %p169 = pneg %p95
      $region26: #{_sgb_forward_impl.14} parent=15 // pred_check_branch
        %171 = sbr.rel (%p169) target = $region28
      $region27: #{_sgb_forward_impl.14} parent=15 // pred_region
        %p172 = scmp.lt.s32.totalorder %s16, 3
        %s173 = scalar_select %p172, %s16, 3
        %s174 = scalar_lea.vmem %s2, %s173
      $region28: #{_sgb_forward_impl.14} parent=15 // pred_fallthru
        _
    $region16: #{_sgb_forward_impl.14} parent=5 // pred_fallthru
      _
    %p175 = scmp.le.s32.totalorder 1, %s9
    %p176 = scmp.lt.s32.totalorder %s9, 5
    %p177 = pnand %p175, %p176
    %p178 = pneg %p177
    // Predicated region
    $region29: #{_sgb_forward_impl.14} parent=5 // pred_check
      _
    $region30: #{_sgb_forward_impl.14} parent=5 // pred_check_branch
      %180 = sbr.rel (%p177) target = $region32
    $region31: #{_sgb_forward_impl.14} parent=5 // pred_region
      %s181 = ssub.s32 %s9, 1
      %s182 = smul.u32 32, %s19
      %p183 = scmp.lt.s32.totalorder %s18, 3
      %s184 = scalar_select %p183, %s18, 3
      %p185 = scmp.lt.s32.totalorder %s182, 31
      %s186 = scalar_select %p185, %s182, 31
      %s187 = smul.addr %s184, 32
      %s188 = sadd.s32 %s186, %s187
      %s189 = smul.addr %s188, 8
      %s190 = scalar_lea.vmem %s0, %s189
      %p191 = pneg %p49
      %p192 = pneg %p46
      %p193 = scmp.lt.s32.totalorder %s18, 3
      %s194 = scalar_select %p193, %s18, 3
      %s195 = smul.addr %s194, 4
      %s196 = smul.addr %s195, 4
      %s197 = scalar_lea.vmem %s1, %s196
      %p198 = pneg %p75
      %p199 = pneg %p72
      %p200 = scmp.lt.s32.totalorder %s18, 3
      %s201 = scalar_select %p200, %s18, 3
      %s202 = scalar_lea.vmem %s2, %s201
      %p203 = pneg %p101
      %p204 = pneg %p98
      %p205 = pneg %p129
      %p206 = pneg %p126
      %s207 = smul.u32 32, %s19
      %p208 = scmp.lt.s32.totalorder %s18, 3
      %s209 = scalar_select %p208, %s18, 3
      %p210 = scmp.lt.s32.totalorder %s207, 31
      %s211 = scalar_select %p210, %s207, 31
      %s212 = smul.addr %s209, 32
      %s213 = sadd.s32 %s211, %s212
      %s214 = smul.addr %s213, 4
      %s215 = scalar_lea.vmem %s3, %s214
      %s216 = smul.u32 32, %s19
      %p217 = scmp.lt.s32.totalorder %s18, 3
      %s218 = scalar_select %p217, %s18, 3
      %p219 = scmp.lt.s32.totalorder %s216, 31
      %s220 = scalar_select %p219, %s216, 31
      %s221 = smul.addr %s218, 32
      %s222 = sadd.s32 %s220, %s221
      %s223 = smul.addr %s222, 8
      %s224 = scalar_lea.vmem %s0, %s223
      %s225 = smul.u32 32, %s19
      %p226 = scmp.lt.s32.totalorder %s18, 3
      %s227 = scalar_select %p226, %s18, 3
      %s228 = smul.addr %s227, 4
      %s229 = smul.addr %s228, 4
      %s230 = scalar_lea.vmem %s1, %s229
      %p231 = scmp.lt.s32.totalorder %s18, 3
      %s232 = scalar_select %p231, %s18, 3
      %s233 = scalar_lea.vmem %s2, %s232
      %s234 = smul.u32 32, %s19
      %p235 = scmp.lt.s32.totalorder %s18, 3
      %s236 = scalar_select %p235, %s18, 3
      %p237 = scmp.lt.s32.totalorder %s234, 31
      %s238 = scalar_select %p237, %s234, 31
      %s239 = smul.addr %s236, 32
      %s240 = sadd.s32 %s238, %s239
      %s241 = smul.addr %s240, 4
      %s242 = scalar_lea.vmem %s3, %s241
      %s243 = smul.u32 32, %s19
      %v245 = vld [vmem:[%s224] sm:$0xff]
      %v246 = vld [vmem:[%s224 + $0x8] sm:$0xff]
      %v247 = vld [vmem:[%s224 + $0x10] sm:$0xff]
      %v248 = vld [vmem:[%s224 + $0x18] sm:$0xff]
      %v249 = vld [vmem:[%s224 + $0x20] sm:$0xff]
      %v250 = vld [vmem:[%s224 + $0x28] sm:$0xff]
      %v251 = vld [vmem:[%s224 + $0x30] sm:$0xff]
      %v252 = vld [vmem:[%s224 + $0x38] sm:$0xff]
      %v253 = vld [vmem:[%s224 + $0x40] sm:$0xff]
      %v254 = vld [vmem:[%s224 + $0x48] sm:$0xff]
      %v255 = vld [vmem:[%s224 + $0x50] sm:$0xff]
      %v256 = vld [vmem:[%s224 + $0x58] sm:$0xff]
      %v257 = vld [vmem:[%s224 + $0x60] sm:$0xff]
      %v258 = vld [vmem:[%s224 + $0x68] sm:$0xff]
      %v259 = vld [vmem:[%s224 + $0x70] sm:$0xff]
      %v260 = vld [vmem:[%s224 + $0x78] sm:$0xff]
      %v261 = vld [vmem:[%s224 + $0x80] sm:$0xff]
      %v262 = vld [vmem:[%s224 + $0x88] sm:$0xff]
      %v263 = vld [vmem:[%s224 + $0x90] sm:$0xff]
      %v264 = vld [vmem:[%s224 + $0x98] sm:$0xff]
      %v265 = vld [vmem:[%s224 + $0xa0] sm:$0xff]
      %v266 = vld [vmem:[%s224 + $0xa8] sm:$0xff]
      %v267 = vld [vmem:[%s224 + $0xb0] sm:$0xff]
      %v268 = vld [vmem:[%s224 + $0xb8] sm:$0xff]
      %v269 = vld [vmem:[%s224 + $0xc0] sm:$0xff]
      %v270 = vld [vmem:[%s224 + $0xc8] sm:$0xff]
      %v271 = vld [vmem:[%s224 + $0xd0] sm:$0xff]
      %v272 = vld [vmem:[%s224 + $0xd8] sm:$0xff]
      %v273 = vld [vmem:[%s224 + $0xe0] sm:$0xff]
      %v274 = vld [vmem:[%s224 + $0xe8] sm:$0xff]
      %v275 = vld [vmem:[%s224 + $0xf0] sm:$0xff]
      %v276 = vld [vmem:[%s224 + $0xf8] sm:$0xff]
      %v277 = vpack.c.bf16 %v246, %v245
      %v278 = vpack.c.bf16 %v248, %v247
      %v279 = vpack.c.bf16 %v250, %v249
      %v280 = vpack.c.bf16 %v252, %v251
      %v281 = vpack.c.bf16 %v254, %v253
      %v282 = vpack.c.bf16 %v256, %v255
      %v283 = vpack.c.bf16 %v258, %v257
      %v284 = vpack.c.bf16 %v260, %v259
      %v285 = vpack.c.bf16 %v262, %v261
      %v286 = vpack.c.bf16 %v264, %v263
      %v287 = vpack.c.bf16 %v266, %v265
      %v288 = vpack.c.bf16 %v268, %v267
      %v289 = vpack.c.bf16 %v270, %v269
      %v290 = vpack.c.bf16 %v272, %v271
      %v291 = vpack.c.bf16 %v274, %v273
      %v292 = vpack.c.bf16 %v276, %v275
      %v293 = vld [vmem:[%s230] sm:$0xf]
      %v294 = vld [vmem:[%s230 + $0x4] sm:$0xf]
      %v295 = vld [vmem:[%s230 + $0x8] sm:$0xf]
      %v296 = vld [vmem:[%s230 + $0xc] sm:$0xf]
      %v297 = vld [vmem:[%s233] sm:$0x1]
      %v299 = vlaneseq
      %v300 = vshrl.u32 %v299, 7
      %v301 = vsub.s32 0, %v300
      %v302 = vrot.slane %v297, %v301
      %v308 = vunpack.c.l.b16 %v293
      %v309 = vunpack.c.l.b16 %v294
      %v310 = vunpack.c.l.b16 %v295
      %v311 = vunpack.c.l.b16 %v296
      %v312 = vpack.c.b16 %v309, %v308
      %v313 = vpack.c.b16 %v311, %v310
      %vm316 = vcmask 261120
      %v318 = vsel %vm316, %v277, 0
      %v321 = vsel %vm316, %v278, 0
      %v324 = vsel %vm316, %v279, 0
      %v327 = vsel %vm316, %v280, 0
      %v330 = vsel %vm316, %v281, 0
      %v333 = vsel %vm316, %v282, 0
      %v336 = vsel %vm316, %v283, 0
      %v339 = vsel %vm316, %v284, 0
      %v342 = vsel %vm316, %v285, 0
      %v345 = vsel %vm316, %v286, 0
      %v348 = vsel %vm316, %v287, 0
      %v351 = vsel %vm316, %v288, 0
      %v354 = vsel %vm316, %v289, 0
      %v357 = vsel %vm316, %v290, 0
      %v360 = vsel %vm316, %v291, 0
      %v363 = vsel %vm316, %v292, 0
      %365 = vmatprep.subr.bf16.mxu0 0
      %366 = vmatpush1.bf16.msra.mxu0 %v312
      %367 = vmatprep.subr.bf16.mxu0 0
      %368 = vmatpush1.bf16.msra.mxu0 %v313
      %369 = vmatprep.subr.bf16.mxu0 0
      %370 = vmatpush1.bf16.msra.mxu0 0
      %371 = vmatprep.subr.bf16.mxu0 0
      %372 = vmatpush1.bf16.msra.mxu0 0
      %373 = vmatprep.subr.bf16.mxu0 0
      %374 = vmatpush1.bf16.msra.mxu0 0
      %375 = vmatprep.subr.bf16.mxu0 0
      %376 = vmatpush1.bf16.msra.mxu0 0
      %377 = vmatprep.subr.bf16.mxu0 0
      %378 = vmatpush1.bf16.msra.mxu0 0
      %379 = vmatprep.subr.bf16.mxu0 0
      %380 = vmatpush1.bf16.msra.mxu0 0
      %381 = vmatprep.subr.bf16.mxu0 0
      %382 = vmatpush1.bf16.msra.mxu0 0
      %383 = vmatprep.subr.bf16.mxu0 0
      %384 = vmatpush1.bf16.msra.mxu0 0
      %385 = vmatprep.subr.bf16.mxu0 0
      %386 = vmatpush1.bf16.msra.mxu0 0
      %387 = vmatprep.subr.bf16.mxu0 0
      %388 = vmatpush1.bf16.msra.mxu0 0
      %389 = vmatprep.subr.bf16.mxu0 0
      %390 = vmatpush1.bf16.msra.mxu0 0
      %391 = vmatprep.subr.bf16.mxu0 0
      %392 = vmatpush1.bf16.msra.mxu0 0
      %393 = vmatprep.subr.bf16.mxu0 0
      %394 = vmatpush1.bf16.msra.mxu0 0
      %395 = vmatprep.subr.bf16.mxu0 0
      %396 = vmatpush1.bf16.msra.mxu0 0
      %397 = vmatprep.mubr.bf16.mxu0 0
      %398 = vmatmul.mubr.bf16.gmra.mrb[0].mxu0 %v318
      %v399 = vpop.f32.mrb[0].mxu0
      %v400 = vadd.f32 %v302, %v399
      %v401 = vpop.f32.mrb[0].mxu0
      %v402 = vpop.f32.mrb[0].mxu0
      %v403 = vadd.f32 %v302, %v402
      %v404 = vpop.f32.mrb[0].mxu0
      %405 = vmatprep.mubr.bf16.mxu0 0
      %406 = vmatmul.mubr.bf16.gmra.mrb[0].mxu0 %v321
      %v407 = vpop.f32.mrb[0].mxu0
      %v408 = vadd.f32 %v302, %v407
      %v409 = vpop.f32.mrb[0].mxu0
      %v410 = vpop.f32.mrb[0].mxu0
      %v411 = vadd.f32 %v302, %v410
      %v412 = vpop.f32.mrb[0].mxu0
      %413 = vmatprep.mubr.bf16.mxu0 0
      %414 = vmatmul.mubr.bf16.gmra.mrb[0].mxu0 %v324
      %v415 = vpop.f32.mrb[0].mxu0
      %v416 = vadd.f32 %v302, %v415
      %v417 = vpop.f32.mrb[0].mxu0
      %v418 = vpop.f32.mrb[0].mxu0
      %v419 = vadd.f32 %v302, %v418
      %v420 = vpop.f32.mrb[0].mxu0
      %421 = vmatprep.mubr.bf16.mxu0 0
      %422 = vmatmul.mubr.bf16.gmra.mrb[0].mxu0 %v327
      %v423 = vpop.f32.mrb[0].mxu0
      %v424 = vadd.f32 %v302, %v423
      %v425 = vpop.f32.mrb[0].mxu0
      %v426 = vpop.f32.mrb[0].mxu0
      %v427 = vadd.f32 %v302, %v426
      %v428 = vpop.f32.mrb[0].mxu0
      %429 = vmatprep.mubr.bf16.mxu0 0
      %430 = vmatmul.mubr.bf16.gmra.mrb[0].mxu0 %v330
      %v431 = vpop.f32.mrb[0].mxu0
      %v432 = vadd.f32 %v302, %v431
      %v433 = vpop.f32.mrb[0].mxu0
      %v434 = vpop.f32.mrb[0].mxu0
      %v435 = vadd.f32 %v302, %v434
      %v436 = vpop.f32.mrb[0].mxu0
      %437 = vmatprep.mubr.bf16.mxu0 0
      %438 = vmatmul.mubr.bf16.gmra.mrb[0].mxu0 %v333
      %v439 = vpop.f32.mrb[0].mxu0
      %v440 = vadd.f32 %v302, %v439
      %v441 = vpop.f32.mrb[0].mxu0
      %v442 = vpop.f32.mrb[0].mxu0
      %v443 = vadd.f32 %v302, %v442
      %v444 = vpop.f32.mrb[0].mxu0
      %445 = vmatprep.mubr.bf16.mxu0 0
      %446 = vmatmul.mubr.bf16.gmra.mrb[0].mxu0 %v336
      %v447 = vpop.f32.mrb[0].mxu0
      %v448 = vadd.f32 %v302, %v447
      %v449 = vpop.f32.mrb[0].mxu0
      %v450 = vpop.f32.mrb[0].mxu0
      %v451 = vadd.f32 %v302, %v450
      %v452 = vpop.f32.mrb[0].mxu0
      %453 = vmatprep.mubr.bf16.mxu0 0
      %454 = vmatmul.mubr.bf16.gmra.mrb[0].mxu0 %v339
      %v455 = vpop.f32.mrb[0].mxu0
      %v456 = vadd.f32 %v302, %v455
      %v457 = vpop.f32.mrb[0].mxu0
      %v458 = vpop.f32.mrb[0].mxu0
      %v459 = vadd.f32 %v302, %v458
      %v460 = vpop.f32.mrb[0].mxu0
      %461 = vmatprep.mubr.bf16.mxu0 0
      %462 = vmatmul.mubr.bf16.gmra.mrb[0].mxu0 %v342
      %v463 = vpop.f32.mrb[0].mxu0
      %v464 = vadd.f32 %v302, %v463
      %v465 = vpop.f32.mrb[0].mxu0
      %v466 = vpop.f32.mrb[0].mxu0
      %v467 = vadd.f32 %v302, %v466
      %v468 = vpop.f32.mrb[0].mxu0
      %469 = vmatprep.mubr.bf16.mxu0 0
      %470 = vmatmul.mubr.bf16.gmra.mrb[0].mxu0 %v345
      %v471 = vpop.f32.mrb[0].mxu0
      %v472 = vadd.f32 %v302, %v471
      %v473 = vpop.f32.mrb[0].mxu0
      %v474 = vpop.f32.mrb[0].mxu0
      %v475 = vadd.f32 %v302, %v474
      %v476 = vpop.f32.mrb[0].mxu0
      %477 = vmatprep.mubr.bf16.mxu0 0
      %478 = vmatmul.mubr.bf16.gmra.mrb[0].mxu0 %v348
      %v479 = vpop.f32.mrb[0].mxu0
      %v480 = vadd.f32 %v302, %v479
      %v481 = vpop.f32.mrb[0].mxu0
      %v482 = vpop.f32.mrb[0].mxu0
      %v483 = vadd.f32 %v302, %v482
      %v484 = vpop.f32.mrb[0].mxu0
      %485 = vmatprep.mubr.bf16.mxu0 0
      %486 = vmatmul.mubr.bf16.gmra.mrb[0].mxu0 %v351
      %v487 = vpop.f32.mrb[0].mxu0
      %v488 = vadd.f32 %v302, %v487
      %v489 = vpop.f32.mrb[0].mxu0
      %v490 = vpop.f32.mrb[0].mxu0
      %v491 = vadd.f32 %v302, %v490
      %v492 = vpop.f32.mrb[0].mxu0
      %493 = vmatprep.mubr.bf16.mxu0 0
      %494 = vmatmul.mubr.bf16.gmra.mrb[0].mxu0 %v354
      %v495 = vpop.f32.mrb[0].mxu0
      %v496 = vadd.f32 %v302, %v495
      %v497 = vpop.f32.mrb[0].mxu0
      %v498 = vpop.f32.mrb[0].mxu0
      %v499 = vadd.f32 %v302, %v498
      %v500 = vpop.f32.mrb[0].mxu0
      %501 = vmatprep.mubr.bf16.mxu0 0
      %502 = vmatmul.mubr.bf16.gmra.mrb[0].mxu0 %v357
      %v503 = vpop.f32.mrb[0].mxu0
      %v504 = vadd.f32 %v302, %v503
      %v505 = vpop.f32.mrb[0].mxu0
      %v506 = vpop.f32.mrb[0].mxu0
      %v507 = vadd.f32 %v302, %v506
      %v508 = vpop.f32.mrb[0].mxu0
      %509 = vmatprep.mubr.bf16.mxu0 0
      %510 = vmatmul.mubr.bf16.gmra.mrb[0].mxu0 %v360
      %v511 = vpop.f32.mrb[0].mxu0
      %v512 = vadd.f32 %v302, %v511
      %v513 = vpop.f32.mrb[0].mxu0
      %v514 = vpop.f32.mrb[0].mxu0
      %v515 = vadd.f32 %v302, %v514
      %v516 = vpop.f32.mrb[0].mxu0
      %517 = vmatprep.mubr.bf16.mxu0 0
      %518 = vmatmul.mubr.bf16.gmra.mrb[0].mxu0 %v363
      %v519 = vpop.f32.mrb[0].mxu0
      %v520 = vadd.f32 %v302, %v519
      %v521 = vpop.f32.mrb[0].mxu0
      %v522 = vpop.f32.mrb[0].mxu0
      %v523 = vadd.f32 %v302, %v522
      %v524 = vpop.f32.mrb[0].mxu0
      %525 = vdwg.mxu0
      %v526 = vmax.f32 %v400, 0.0
      %v527 = vmax.f32 %v403, 0.0
      %v528 = vmax.f32 %v408, 0.0
      %v529 = vmax.f32 %v411, 0.0
      %v530 = vmax.f32 %v416, 0.0
      %v531 = vmax.f32 %v419, 0.0
      %v532 = vmax.f32 %v424, 0.0
      %v533 = vmax.f32 %v427, 0.0
      %v534 = vmax.f32 %v432, 0.0
      %v535 = vmax.f32 %v435, 0.0
      %v536 = vmax.f32 %v440, 0.0
      %v537 = vmax.f32 %v443, 0.0
      %v538 = vmax.f32 %v448, 0.0
      %v539 = vmax.f32 %v451, 0.0
      %v540 = vmax.f32 %v456, 0.0
      %v541 = vmax.f32 %v459, 0.0
      %v542 = vmax.f32 %v464, 0.0
      %v543 = vmax.f32 %v467, 0.0
      %v544 = vmax.f32 %v472, 0.0
      %v545 = vmax.f32 %v475, 0.0
      %v546 = vmax.f32 %v480, 0.0
      %v547 = vmax.f32 %v483, 0.0
      %v548 = vmax.f32 %v488, 0.0
      %v549 = vmax.f32 %v491, 0.0
      %v550 = vmax.f32 %v496, 0.0
      %v551 = vmax.f32 %v499, 0.0
      %v552 = vmax.f32 %v504, 0.0
      %v553 = vmax.f32 %v507, 0.0
      %v554 = vmax.f32 %v512, 0.0
      %v555 = vmax.f32 %v515, 0.0
      %v556 = vmax.f32 %v520, 0.0
      %v557 = vmax.f32 %v523, 0.0
      %v558 = vpack.c.bf16 %v527, %v526
      %v559 = vpack.c.bf16 %v529, %v528
      %v560 = vpack.c.bf16 %v531, %v530
      %v561 = vpack.c.bf16 %v533, %v532
      %v562 = vpack.c.bf16 %v535, %v534
      %v563 = vpack.c.bf16 %v537, %v536
      %v564 = vpack.c.bf16 %v539, %v538
      %v565 = vpack.c.bf16 %v541, %v540
      %v566 = vpack.c.bf16 %v543, %v542
      %v567 = vpack.c.bf16 %v545, %v544
      %v568 = vpack.c.bf16 %v547, %v546
      %v569 = vpack.c.bf16 %v549, %v548
      %v570 = vpack.c.bf16 %v551, %v550
      %v571 = vpack.c.bf16 %v553, %v552
      %v572 = vpack.c.bf16 %v555, %v554
      %v573 = vpack.c.bf16 %v557, %v556
      %v590 = vunpack.c.l.b16 %v558
      %v591 = vunpack.c.h.b16 %v558
      %v592 = vunpack.c.l.b16 %v559
      %v593 = vunpack.c.h.b16 %v559
      %v594 = vunpack.c.l.b16 %v560
      %v595 = vunpack.c.h.b16 %v560
      %v596 = vunpack.c.l.b16 %v561
      %v597 = vunpack.c.h.b16 %v561
      %v598 = vunpack.c.l.b16 %v562
      %v599 = vunpack.c.h.b16 %v562
      %v600 = vunpack.c.l.b16 %v563
      %v601 = vunpack.c.h.b16 %v563
      %v602 = vunpack.c.l.b16 %v564
      %v603 = vunpack.c.h.b16 %v564
      %v604 = vunpack.c.l.b16 %v565
      %v605 = vunpack.c.h.b16 %v565
      %v606 = vunpack.c.l.b16 %v566
      %v607 = vunpack.c.h.b16 %v566
      %v608 = vunpack.c.l.b16 %v567
      %v609 = vunpack.c.h.b16 %v567
      %v610 = vunpack.c.l.b16 %v568
      %v611 = vunpack.c.h.b16 %v568
      %v612 = vunpack.c.l.b16 %v569
      %v613 = vunpack.c.h.b16 %v569
      %v614 = vunpack.c.l.b16 %v570
      %v615 = vunpack.c.h.b16 %v570
      %v616 = vunpack.c.l.b16 %v571
      %v617 = vunpack.c.h.b16 %v571
      %v618 = vunpack.c.l.b16 %v572
      %v619 = vunpack.c.h.b16 %v572
      %v620 = vunpack.c.l.b16 %v573
      %v621 = vunpack.c.h.b16 %v573
      %v622 = vpack.c.b16 %v590, %v590
      %v623 = vpack.c.b16 %v591, %v591
      %v624 = vpack.c.b16 %v592, %v592
      %v625 = vpack.c.b16 %v593, %v593
      %v626 = vpack.c.b16 %v594, %v594
      %v627 = vpack.c.b16 %v595, %v595
      %v628 = vpack.c.b16 %v596, %v596
      %v629 = vpack.c.b16 %v597, %v597
      %v630 = vpack.c.b16 %v598, %v598
      %v631 = vpack.c.b16 %v599, %v599
      %v632 = vpack.c.b16 %v600, %v600
      %v633 = vpack.c.b16 %v601, %v601
      %v634 = vpack.c.b16 %v602, %v602
      %v635 = vpack.c.b16 %v603, %v603
      %v636 = vpack.c.b16 %v604, %v604
      %v637 = vpack.c.b16 %v605, %v605
      %v638 = vpack.c.b16 %v606, %v606
      %v639 = vpack.c.b16 %v607, %v607
      %v640 = vpack.c.b16 %v608, %v608
      %v641 = vpack.c.b16 %v609, %v609
      %v642 = vpack.c.b16 %v610, %v610
      %v643 = vpack.c.b16 %v611, %v611
      %v644 = vpack.c.b16 %v612, %v612
      %v645 = vpack.c.b16 %v613, %v613
      %v646 = vpack.c.b16 %v614, %v614
      %v647 = vpack.c.b16 %v615, %v615
      %v648 = vpack.c.b16 %v616, %v616
      %v649 = vpack.c.b16 %v617, %v617
      %v650 = vpack.c.b16 %v618, %v618
      %v651 = vpack.c.b16 %v619, %v619
      %v652 = vpack.c.b16 %v620, %v620
      %v653 = vpack.c.b16 %v621, %v621
      %vm686 = vcmask 125952
      %687 = vst.msk [vmem:[%s242] sm:$0xf] %vm686, %v622
      %688 = vst.msk [vmem:[%s242 + $0x4] sm:$0xf] %vm686, %v623
      %689 = vst.msk [vmem:[%s242 + $0x8] sm:$0xf] %vm686, %v624
      %690 = vst.msk [vmem:[%s242 + $0xc] sm:$0xf] %vm686, %v625
      %691 = vst.msk [vmem:[%s242 + $0x10] sm:$0xf] %vm686, %v626
      %692 = vst.msk [vmem:[%s242 + $0x14] sm:$0xf] %vm686, %v627
      %693 = vst.msk [vmem:[%s242 + $0x18] sm:$0xf] %vm686, %v628
      %694 = vst.msk [vmem:[%s242 + $0x1c] sm:$0xf] %vm686, %v629
      %695 = vst.msk [vmem:[%s242 + $0x20] sm:$0xf] %vm686, %v630
      %696 = vst.msk [vmem:[%s242 + $0x24] sm:$0xf] %vm686, %v631
      %697 = vst.msk [vmem:[%s242 + $0x28] sm:$0xf] %vm686, %v632
      %698 = vst.msk [vmem:[%s242 + $0x2c] sm:$0xf] %vm686, %v633
      %699 = vst.msk [vmem:[%s242 + $0x30] sm:$0xf] %vm686, %v634
      %700 = vst.msk [vmem:[%s242 + $0x34] sm:$0xf] %vm686, %v635
      %701 = vst.msk [vmem:[%s242 + $0x38] sm:$0xf] %vm686, %v636
      %702 = vst.msk [vmem:[%s242 + $0x3c] sm:$0xf] %vm686, %v637
      %703 = vst.msk [vmem:[%s242 + $0x40] sm:$0xf] %vm686, %v638
      %704 = vst.msk [vmem:[%s242 + $0x44] sm:$0xf] %vm686, %v639
      %705 = vst.msk [vmem:[%s242 + $0x48] sm:$0xf] %vm686, %v640
      %706 = vst.msk [vmem:[%s242 + $0x4c] sm:$0xf] %vm686, %v641
      %707 = vst.msk [vmem:[%s242 + $0x50] sm:$0xf] %vm686, %v642
      %708 = vst.msk [vmem:[%s242 + $0x54] sm:$0xf] %vm686, %v643
      %709 = vst.msk [vmem:[%s242 + $0x58] sm:$0xf] %vm686, %v644
      %710 = vst.msk [vmem:[%s242 + $0x5c] sm:$0xf] %vm686, %v645
      %711 = vst.msk [vmem:[%s242 + $0x60] sm:$0xf] %vm686, %v646
      %712 = vst.msk [vmem:[%s242 + $0x64] sm:$0xf] %vm686, %v647
      %713 = vst.msk [vmem:[%s242 + $0x68] sm:$0xf] %vm686, %v648
      %714 = vst.msk [vmem:[%s242 + $0x6c] sm:$0xf] %vm686, %v649
      %715 = vst.msk [vmem:[%s242 + $0x70] sm:$0xf] %vm686, %v650
      %716 = vst.msk [vmem:[%s242 + $0x74] sm:$0xf] %vm686, %v651
      %717 = vst.msk [vmem:[%s242 + $0x78] sm:$0xf] %vm686, %v652
      %718 = vst.msk [vmem:[%s242 + $0x7c] sm:$0xf] %vm686, %v653
      %s719 = smul.u32 32, %s19
      %p720 = scmp.lt.s32.totalorder %s18, 3
      %s721 = scalar_select %p720, %s18, 3
      %p722 = scmp.lt.s32.totalorder %s719, 31
      %s723 = scalar_select %p722, %s719, 31
      %s724 = smul.addr %s721, 32
      %s725 = sadd.s32 %s723, %s724
      %s726 = smul.addr %s725, 4
      %s727 = scalar_lea.vmem %s3, %s726
      // Predicated region
      $region33: #{_sgb_forward_impl.14} parent=31 // pred_check
        %p728 = pneg %p126
      $region34: #{_sgb_forward_impl.14} parent=31 // pred_check_branch
        %730 = sbr.rel (%p728) target = $region36
      $region35: #{_sgb_forward_impl.14} parent=31 // pred_region
        %s731 = smul.u32 32, %s19
      $region36: #{_sgb_forward_impl.14} parent=31 // pred_fallthru
        _
    $region32: #{_sgb_forward_impl.14} parent=5 // pred_fallthru
      _
    %p732 = scmp.le.s32.totalorder 2, %s9
    // Predicated region
    $region37: #{_sgb_forward_impl.14} parent=5 // pred_check
      %p733 = pneg %p732
    $region38: #{_sgb_forward_impl.14} parent=5 // pred_check_branch
      %735 = sbr.rel (%p733) target = $region40
    $region39: #{_sgb_forward_impl.14} parent=5 // pred_region
      %s736 = ssub.s32 %s9, 2
      // Predicated region
      $region41: #{_sgb_forward_impl.14} parent=39 // pred_check
        %p737 = pneg %p132
      $region42: #{_sgb_forward_impl.14} parent=39 // pred_check_branch
        %739 = sbr.rel (%p737) target = $region44
      $region43: #{_sgb_forward_impl.14} parent=39 // pred_region
        %s740 = smul.u32 32, %s21
        %p741 = scmp.lt.s32.totalorder %s20, 3
        %s742 = scalar_select %p741, %s20, 3
        %p743 = scmp.lt.s32.totalorder %s740, 31
        %s744 = scalar_select %p743, %s740, 31
        %s745 = smul.addr %s742, 32
        %s746 = sadd.s32 %s744, %s745
        %s747 = smul.addr %s746, 4
        %s748 = scalar_lea.vmem %s3, %s747
      $region44: #{_sgb_forward_impl.14} parent=39 // pred_fallthru
        _
    $region40: #{_sgb_forward_impl.14} parent=5 // pred_fallthru
      _
  $region6: #{_sgb_forward_impl.14} parent=0 // loop_footer
    %s13 = sadd.s32 1, %s9
  $region7: #{_sgb_forward_impl.14} parent=0 // loop_footer_branch
    %8 = sbr.rel target = $region3
  $region8: #{_sgb_forward_impl.14} parent=0 // loop_exit
    _

// kernel: _sgb_forward_impl.15
$region0: #{_sgb_forward_impl.15}
  #allocation0 [shape = 'u32[]', space=smem, size = 0x4, offset = 0x4, fixed_abs, tag = 'smem constant byte address 0x4 - core index']
  #allocation1 [shape = 'u32[144,128]{1,0:T(1,128)}', space=vmem, size = 0x12000, scoped, tag = 'internal scratch']
  %s0 = inlined_call_operand.vmem [shape: bf16[4,256,16], index: 0, kind: input, shape index: {}]
  %s1 = inlined_call_operand.vmem [shape: f32[256,32], index: 1, kind: input, shape index: {}]
  %s2 = inlined_call_operand.vmem [shape: bf16[16,16], index: 2, kind: input, shape index: {}]
  %s3 = inlined_call_operand.vmem [shape: bf16[4,16,16], index: 3, kind: input, shape index: {}]
  %s4 = inlined_call_operand.vmem [shape: f32[4,1,16], index: 4, kind: input, shape index: {}]
  %s5 = inlined_call_operand.vmem [shape: bf16[16,32], index: 5, kind: input, shape index: {}]
  %s6 = inlined_call_operand.vmem [shape: bf16[32,32], index: 6, kind: input, shape index: {}]
  %s7 = inlined_call_operand.vmem [shape: bf16[32,32], index: 7, kind: input, shape index: {}]
  %s8 = inlined_call_operand.vmem [shape: bf16[32,32], index: 8, kind: input, shape index: {}]
  %s9 = inlined_call_operand.vmem [shape: f32[1,32], index: 9, kind: input, shape index: {}]
  %s10 = inlined_call_operand.vmem [shape: f32[256,32], index: 10, kind: output, shape index: {}]
  %s11 = sld [smem:[#allocation0]]
  $region50: #{_sgb_forward_impl.15} parent=0
    _
  %s13 = ssub.s32 1, %s11
  %s14 = scalar_select 0, %s13, %s11
  // Predicated region
  $region2: #{_sgb_forward_impl.15} parent=0 // pred_check
    _
  $region3: #{_sgb_forward_impl.15} parent=0 // pred_check_branch
    %16 = sbr.rel (0) target = $region5
  $region4: #{_sgb_forward_impl.15} parent=0 // pred_region
    _
  $region5: #{_sgb_forward_impl.15} parent=0 // pred_fallthru
    _
  // Predicated region
  $region6: #{_sgb_forward_impl.15} parent=0 // pred_check
    _
  $region7: #{_sgb_forward_impl.15} parent=0 // pred_check_branch
    %18 = sbr.rel (0) target = $region9
  $region8: #{_sgb_forward_impl.15} parent=0 // pred_region
    _
  $region9: #{_sgb_forward_impl.15} parent=0 // pred_fallthru
    _
  // Predicated region
  $region10: #{_sgb_forward_impl.15} parent=0 // pred_check
    _
  $region11: #{_sgb_forward_impl.15} parent=0 // pred_check_branch
    %20 = sbr.rel (0) target = $region13
  $region12: #{_sgb_forward_impl.15} parent=0 // pred_region
    _
  $region13: #{_sgb_forward_impl.15} parent=0 // pred_fallthru
    _
  // Predicated region
  $region14: #{_sgb_forward_impl.15} parent=0 // pred_check
    _
  $region15: #{_sgb_forward_impl.15} parent=0 // pred_check_branch
    %22 = sbr.rel (0) target = $region17
  $region16: #{_sgb_forward_impl.15} parent=0 // pred_region
    _
  $region17: #{_sgb_forward_impl.15} parent=0 // pred_fallthru
    _
  // Predicated region
  $region18: #{_sgb_forward_impl.15} parent=0 // pred_check
    _
  $region19: #{_sgb_forward_impl.15} parent=0 // pred_check_branch
    %24 = sbr.rel (0) target = $region21
  $region20: #{_sgb_forward_impl.15} parent=0 // pred_region
    _
  $region21: #{_sgb_forward_impl.15} parent=0 // pred_fallthru
    _
  // Predicated region
  $region22: #{_sgb_forward_impl.15} parent=0 // pred_check
    _
  $region23: #{_sgb_forward_impl.15} parent=0 // pred_check_branch
    %26 = sbr.rel (0) target = $region25
  $region24: #{_sgb_forward_impl.15} parent=0 // pred_region
    _
  $region25: #{_sgb_forward_impl.15} parent=0 // pred_fallthru
    _
  // Predicated region
  $region26: #{_sgb_forward_impl.15} parent=0 // pred_check
    _
  $region27: #{_sgb_forward_impl.15} parent=0 // pred_check_branch
    %28 = sbr.rel (0) target = $region29
  $region28: #{_sgb_forward_impl.15} parent=0 // pred_region
    _
  $region29: #{_sgb_forward_impl.15} parent=0 // pred_fallthru
    _
  // Predicated region
  $region30: #{_sgb_forward_impl.15} parent=0 // pred_check
    _
  $region31: #{_sgb_forward_impl.15} parent=0 // pred_check_branch
    %30 = sbr.rel (0) target = $region33
  $region32: #{_sgb_forward_impl.15} parent=0 // pred_region
    _
  $region33: #{_sgb_forward_impl.15} parent=0 // pred_fallthru
    _
  // Predicated region
  $region34: #{_sgb_forward_impl.15} parent=0 // pred_check
    _
  $region35: #{_sgb_forward_impl.15} parent=0 // pred_check_branch
    %32 = sbr.rel (0) target = $region37
  $region36: #{_sgb_forward_impl.15} parent=0 // pred_region
    _
  $region37: #{_sgb_forward_impl.15} parent=0 // pred_fallthru
    _
  // Predicated region
  $region38: #{_sgb_forward_impl.15} parent=0 // pred_check
    _
  $region39: #{_sgb_forward_impl.15} parent=0 // pred_check_branch
    %34 = sbr.rel (0) target = $region41
  $region40: #{_sgb_forward_impl.15} parent=0 // pred_region
    _
  $region41: #{_sgb_forward_impl.15} parent=0 // pred_fallthru
    _
  %v36 = vld [vmem:[%s0] sm:$0xf]
  %v37 = vld [vmem:[%s0 + $0x4] sm:$0xf]
  %v38 = vld [vmem:[%s0 + $0x8] sm:$0xf]
  %v39 = vld [vmem:[%s0 + $0xc] sm:$0xf]
  %v40 = vld [vmem:[%s0 + $0x10] sm:$0xf]
  %v41 = vld [vmem:[%s0 + $0x14] sm:$0xf]
  %v42 = vld [vmem:[%s0 + $0x18] sm:$0xf]
  %v43 = vld [vmem:[%s0 + $0x1c] sm:$0xf]
  %v44 = vld [vmem:[%s0 + $0x20] sm:$0xf]
  %v45 = vld [vmem:[%s0 + $0x24] sm:$0xf]
  %v46 = vld [vmem:[%s0 + $0x28] sm:$0xf]
  %v47 = vld [vmem:[%s0 + $0x2c] sm:$0xf]
  %v48 = vld [vmem:[%s0 + $0x30] sm:$0xf]
  %v49 = vld [vmem:[%s0 + $0x34] sm:$0xf]
  %v50 = vld [vmem:[%s0 + $0x38] sm:$0xf]
  %v51 = vld [vmem:[%s0 + $0x3c] sm:$0xf]
  %v52 = vld [vmem:[%s0 + $0x40] sm:$0xf]
  %v53 = vld [vmem:[%s0 + $0x44] sm:$0xf]
  %v54 = vld [vmem:[%s0 + $0x48] sm:$0xf]
  %v55 = vld [vmem:[%s0 + $0x4c] sm:$0xf]
  %v56 = vld [vmem:[%s0 + $0x50] sm:$0xf]
  %v57 = vld [vmem:[%s0 + $0x54] sm:$0xf]
  %v58 = vld [vmem:[%s0 + $0x58] sm:$0xf]
  %v59 = vld [vmem:[%s0 + $0x5c] sm:$0xf]
  %v60 = vld [vmem:[%s0 + $0x60] sm:$0xf]
  %v61 = vld [vmem:[%s0 + $0x64] sm:$0xf]
  %v62 = vld [vmem:[%s0 + $0x68] sm:$0xf]
  %v63 = vld [vmem:[%s0 + $0x6c] sm:$0xf]
  %v64 = vld [vmem:[%s0 + $0x70] sm:$0xf]
  %v65 = vld [vmem:[%s0 + $0x74] sm:$0xf]
  %v66 = vld [vmem:[%s0 + $0x78] sm:$0xf]
  %v67 = vld [vmem:[%s0 + $0x7c] sm:$0xf]
  %v68 = vunpack.c.l.bf16 %v36
  %v69 = vunpack.c.l.bf16 %v37
  %v70 = vunpack.c.l.bf16 %v38
  %v71 = vunpack.c.l.bf16 %v39
  %v72 = vunpack.c.l.bf16 %v40
  %v73 = vunpack.c.l.bf16 %v41
  %v74 = vunpack.c.l.bf16 %v42
  %v75 = vunpack.c.l.bf16 %v43
  %v76 = vunpack.c.l.bf16 %v44
  %v77 = vunpack.c.l.bf16 %v45
  %v78 = vunpack.c.l.bf16 %v46
  %v79 = vunpack.c.l.bf16 %v47
  %v80 = vunpack.c.l.bf16 %v48
  %v81 = vunpack.c.l.bf16 %v49
  %v82 = vunpack.c.l.bf16 %v50
  %v83 = vunpack.c.l.bf16 %v51
  %v84 = vunpack.c.l.bf16 %v52
  %v85 = vunpack.c.l.bf16 %v53
  %v86 = vunpack.c.l.bf16 %v54
  %v87 = vunpack.c.l.bf16 %v55
  %v88 = vunpack.c.l.bf16 %v56
  %v89 = vunpack.c.l.bf16 %v57
  %v90 = vunpack.c.l.bf16 %v58
  %v91 = vunpack.c.l.bf16 %v59
  %v92 = vunpack.c.l.bf16 %v60
  %v93 = vunpack.c.l.bf16 %v61
  %v94 = vunpack.c.l.bf16 %v62
  %v95 = vunpack.c.l.bf16 %v63
  %v96 = vunpack.c.l.bf16 %v64
  %v97 = vunpack.c.l.bf16 %v65
  %v98 = vunpack.c.l.bf16 %v66
  %v99 = vunpack.c.l.bf16 %v67
  %s100 = scalar_lea.vmem %s0, 128
  %v101 = vld [vmem:[%s100] sm:$0xf]
  %v102 = vld [vmem:[%s100 + $0x4] sm:$0xf]
  %v103 = vld [vmem:[%s100 + $0x8] sm:$0xf]
  %v104 = vld [vmem:[%s100 + $0xc] sm:$0xf]
  %v105 = vld [vmem:[%s100 + $0x10] sm:$0xf]
  %v106 = vld [vmem:[%s100 + $0x14] sm:$0xf]
  %v107 = vld [vmem:[%s100 + $0x18] sm:$0xf]
  %v108 = vld [vmem:[%s100 + $0x1c] sm:$0xf]
  %v109 = vld [vmem:[%s100 + $0x20] sm:$0xf]
  %v110 = vld [vmem:[%s100 + $0x24] sm:$0xf]
  %v111 = vld [vmem:[%s100 + $0x28] sm:$0xf]
  %v112 = vld [vmem:[%s100 + $0x2c] sm:$0xf]
  %v113 = vld [vmem:[%s100 + $0x30] sm:$0xf]
  %v114 = vld [vmem:[%s100 + $0x34] sm:$0xf]
  %v115 = vld [vmem:[%s100 + $0x38] sm:$0xf]
  %v116 = vld [vmem:[%s100 + $0x3c] sm:$0xf]
  %v117 = vld [vmem:[%s100 + $0x40] sm:$0xf]
  %v118 = vld [vmem:[%s100 + $0x44] sm:$0xf]
  %v119 = vld [vmem:[%s100 + $0x48] sm:$0xf]
  %v120 = vld [vmem:[%s100 + $0x4c] sm:$0xf]
  %v121 = vld [vmem:[%s100 + $0x50] sm:$0xf]
  %v122 = vld [vmem:[%s100 + $0x54] sm:$0xf]
  %v123 = vld [vmem:[%s100 + $0x58] sm:$0xf]
  %v124 = vld [vmem:[%s100 + $0x5c] sm:$0xf]
  %v125 = vld [vmem:[%s100 + $0x60] sm:$0xf]
  %v126 = vld [vmem:[%s100 + $0x64] sm:$0xf]
  %v127 = vld [vmem:[%s100 + $0x68] sm:$0xf]
  %v128 = vld [vmem:[%s100 + $0x6c] sm:$0xf]
  %v129 = vld [vmem:[%s100 + $0x70] sm:$0xf]
  %v130 = vld [vmem:[%s100 + $0x74] sm:$0xf]
  %v131 = vld [vmem:[%s100 + $0x78] sm:$0xf]
  %v132 = vld [vmem:[%s100 + $0x7c] sm:$0xf]
  %v133 = vunpack.c.l.bf16 %v101
  %v134 = vunpack.c.l.bf16 %v102
  %v135 = vunpack.c.l.bf16 %v103
  %v136 = vunpack.c.l.bf16 %v104
  %v137 = vunpack.c.l.bf16 %v105
  %v138 = vunpack.c.l.bf16 %v106
  %v139 = vunpack.c.l.bf16 %v107
  %v140 = vunpack.c.l.bf16 %v108
  %v141 = vunpack.c.l.bf16 %v109
  %v142 = vunpack.c.l.bf16 %v110
  %v143 = vunpack.c.l.bf16 %v111
  %v144 = vunpack.c.l.bf16 %v112
  %v145 = vunpack.c.l.bf16 %v113
  %v146 = vunpack.c.l.bf16 %v114
  %v147 = vunpack.c.l.bf16 %v115
  %v148 = vunpack.c.l.bf16 %v116
  %v149 = vunpack.c.l.bf16 %v117
  %v150 = vunpack.c.l.bf16 %v118
  %v151 = vunpack.c.l.bf16 %v119
  %v152 = vunpack.c.l.bf16 %v120
  %v153 = vunpack.c.l.bf16 %v121
  %v154 = vunpack.c.l.bf16 %v122
  %v155 = vunpack.c.l.bf16 %v123
  %v156 = vunpack.c.l.bf16 %v124
  %v157 = vunpack.c.l.bf16 %v125
  %v158 = vunpack.c.l.bf16 %v126
  %v159 = vunpack.c.l.bf16 %v127
  %v160 = vunpack.c.l.bf16 %v128
  %v161 = vunpack.c.l.bf16 %v129
  %v162 = vunpack.c.l.bf16 %v130
  %v163 = vunpack.c.l.bf16 %v131
  %v164 = vunpack.c.l.bf16 %v132
  %s165 = scalar_lea.vmem %s0, 256
  %v166 = vld [vmem:[%s165] sm:$0xf]
  %v167 = vld [vmem:[%s165 + $0x4] sm:$0xf]
  %v168 = vld [vmem:[%s165 + $0x8] sm:$0xf]
  %v169 = vld [vmem:[%s165 + $0xc] sm:$0xf]
  %v170 = vld [vmem:[%s165 + $0x10] sm:$0xf]
  %v171 = vld [vmem:[%s165 + $0x14] sm:$0xf]
  %v172 = vld [vmem:[%s165 + $0x18] sm:$0xf]
  %v173 = vld [vmem:[%s165 + $0x1c] sm:$0xf]
  %v174 = vld [vmem:[%s165 + $0x20] sm:$0xf]
  %v175 = vld [vmem:[%s165 + $0x24] sm:$0xf]
  %v176 = vld [vmem:[%s165 + $0x28] sm:$0xf]
  %v177 = vld [vmem:[%s165 + $0x2c] sm:$0xf]
  %v178 = vld [vmem:[%s165 + $0x30] sm:$0xf]
  %v179 = vld [vmem:[%s165 + $0x34] sm:$0xf]
  %v180 = vld [vmem:[%s165 + $0x38] sm:$0xf]
  %v181 = vld [vmem:[%s165 + $0x3c] sm:$0xf]
  %v182 = vld [vmem:[%s165 + $0x40] sm:$0xf]
  %v183 = vld [vmem:[%s165 + $0x44] sm:$0xf]
  %v184 = vld [vmem:[%s165 + $0x48] sm:$0xf]
  %v185 = vld [vmem:[%s165 + $0x4c] sm:$0xf]
  %v186 = vld [vmem:[%s165 + $0x50] sm:$0xf]
  %v187 = vld [vmem:[%s165 + $0x54] sm:$0xf]
  %v188 = vld [vmem:[%s165 + $0x58] sm:$0xf]
  %v189 = vld [vmem:[%s165 + $0x5c] sm:$0xf]
  %v190 = vld [vmem:[%s165 + $0x60] sm:$0xf]
  %v191 = vld [vmem:[%s165 + $0x64] sm:$0xf]
  %v192 = vld [vmem:[%s165 + $0x68] sm:$0xf]
  %v193 = vld [vmem:[%s165 + $0x6c] sm:$0xf]
  %v194 = vld [vmem:[%s165 + $0x70] sm:$0xf]
  %v195 = vld [vmem:[%s165 + $0x74] sm:$0xf]
  %v196 = vld [vmem:[%s165 + $0x78] sm:$0xf]
  %v197 = vld [vmem:[%s165 + $0x7c] sm:$0xf]
  %v198 = vunpack.c.l.bf16 %v166
  %v199 = vunpack.c.l.bf16 %v167
  %v200 = vunpack.c.l.bf16 %v168
  %v201 = vunpack.c.l.bf16 %v169
  %v202 = vunpack.c.l.bf16 %v170
  %v203 = vunpack.c.l.bf16 %v171
  %v204 = vunpack.c.l.bf16 %v172
  %v205 = vunpack.c.l.bf16 %v173
  %v206 = vunpack.c.l.bf16 %v174
  %v207 = vunpack.c.l.bf16 %v175
  %v208 = vunpack.c.l.bf16 %v176
  %v209 = vunpack.c.l.bf16 %v177
  %v210 = vunpack.c.l.bf16 %v178
  %v211 = vunpack.c.l.bf16 %v179
  %v212 = vunpack.c.l.bf16 %v180
  %v213 = vunpack.c.l.bf16 %v181
  %v214 = vunpack.c.l.bf16 %v182
  %v215 = vunpack.c.l.bf16 %v183
  %v216 = vunpack.c.l.bf16 %v184
  %v217 = vunpack.c.l.bf16 %v185
  %v218 = vunpack.c.l.bf16 %v186
  %v219 = vunpack.c.l.bf16 %v187
  %v220 = vunpack.c.l.bf16 %v188
  %v221 = vunpack.c.l.bf16 %v189
  %v222 = vunpack.c.l.bf16 %v190
  %v223 = vunpack.c.l.bf16 %v191
  %v224 = vunpack.c.l.bf16 %v192
  %v225 = vunpack.c.l.bf16 %v193
  %v226 = vunpack.c.l.bf16 %v194
  %v227 = vunpack.c.l.bf16 %v195
  %v228 = vunpack.c.l.bf16 %v196
  %v229 = vunpack.c.l.bf16 %v197
  %s230 = scalar_lea.vmem %s0, 384
  %v231 = vld [vmem:[%s230] sm:$0xf]
  %v232 = vld [vmem:[%s230 + $0x4] sm:$0xf]
  %v233 = vld [vmem:[%s230 + $0x8] sm:$0xf]
  %v234 = vld [vmem:[%s230 + $0xc] sm:$0xf]
  %v235 = vld [vmem:[%s230 + $0x10] sm:$0xf]
  %v236 = vld [vmem:[%s230 + $0x14] sm:$0xf]
  %v237 = vld [vmem:[%s230 + $0x18] sm:$0xf]
  %v238 = vld [vmem:[%s230 + $0x1c] sm:$0xf]
  %v239 = vld [vmem:[%s230 + $0x20] sm:$0xf]
  %v240 = vld [vmem:[%s230 + $0x24] sm:$0xf]
  %v241 = vld [vmem:[%s230 + $0x28] sm:$0xf]
  %v242 = vld [vmem:[%s230 + $0x2c] sm:$0xf]
  %v243 = vld [vmem:[%s230 + $0x30] sm:$0xf]
  %v244 = vld [vmem:[%s230 + $0x34] sm:$0xf]
  %v245 = vld [vmem:[%s230 + $0x38] sm:$0xf]
  %v246 = vld [vmem:[%s230 + $0x3c] sm:$0xf]
  %v247 = vld [vmem:[%s230 + $0x40] sm:$0xf]
  %v248 = vld [vmem:[%s230 + $0x44] sm:$0xf]
  %v249 = vld [vmem:[%s230 + $0x48] sm:$0xf]
  %v250 = vld [vmem:[%s230 + $0x4c] sm:$0xf]
  %v251 = vld [vmem:[%s230 + $0x50] sm:$0xf]
  %v252 = vld [vmem:[%s230 + $0x54] sm:$0xf]
  %v253 = vld [vmem:[%s230 + $0x58] sm:$0xf]
  %v254 = vld [vmem:[%s230 + $0x5c] sm:$0xf]
  %v255 = vld [vmem:[%s230 + $0x60] sm:$0xf]
  %v256 = vld [vmem:[%s230 + $0x64] sm:$0xf]
  %v257 = vld [vmem:[%s230 + $0x68] sm:$0xf]
  %v258 = vld [vmem:[%s230 + $0x6c] sm:$0xf]
  %v259 = vld [vmem:[%s230 + $0x70] sm:$0xf]
  %v260 = vld [vmem:[%s230 + $0x74] sm:$0xf]
  %v261 = vld [vmem:[%s230 + $0x78] sm:$0xf]
  %v262 = vld [vmem:[%s230 + $0x7c] sm:$0xf]
  %v263 = vunpack.c.l.bf16 %v231
  %v264 = vunpack.c.l.bf16 %v232
  %v265 = vunpack.c.l.bf16 %v233
  %v266 = vunpack.c.l.bf16 %v234
  %v267 = vunpack.c.l.bf16 %v235
  %v268 = vunpack.c.l.bf16 %v236
  %v269 = vunpack.c.l.bf16 %v237
  %v270 = vunpack.c.l.bf16 %v238
  %v271 = vunpack.c.l.bf16 %v239
  %v272 = vunpack.c.l.bf16 %v240
  %v273 = vunpack.c.l.bf16 %v241
  %v274 = vunpack.c.l.bf16 %v242
  %v275 = vunpack.c.l.bf16 %v243
  %v276 = vunpack.c.l.bf16 %v244
  %v277 = vunpack.c.l.bf16 %v245
  %v278 = vunpack.c.l.bf16 %v246
  %v279 = vunpack.c.l.bf16 %v247
  %v280 = vunpack.c.l.bf16 %v248
  %v281 = vunpack.c.l.bf16 %v249
  %v282 = vunpack.c.l.bf16 %v250
  %v283 = vunpack.c.l.bf16 %v251
  %v284 = vunpack.c.l.bf16 %v252
  %v285 = vunpack.c.l.bf16 %v253
  %v286 = vunpack.c.l.bf16 %v254
  %v287 = vunpack.c.l.bf16 %v255
  %v288 = vunpack.c.l.bf16 %v256
  %v289 = vunpack.c.l.bf16 %v257
  %v290 = vunpack.c.l.bf16 %v258
  %v291 = vunpack.c.l.bf16 %v259
  %v292 = vunpack.c.l.bf16 %v260
  %v293 = vunpack.c.l.bf16 %v261
  %v294 = vunpack.c.l.bf16 %v262
  %v295 = vadd.f32 %v68, %v133
  %v296 = vadd.f32 %v69, %v134
  %v297 = vadd.f32 %v70, %v135
  %v298 = vadd.f32 %v71, %v136
  %v299 = vadd.f32 %v72, %v137
  %v300 = vadd.f32 %v73, %v138
  %v301 = vadd.f32 %v74, %v139
  %v302 = vadd.f32 %v75, %v140
  %v303 = vadd.f32 %v76, %v141
  %v304 = vadd.f32 %v77, %v142
  %v305 = vadd.f32 %v78, %v143
  %v306 = vadd.f32 %v79, %v144
  %v307 = vadd.f32 %v80, %v145
  %v308 = vadd.f32 %v81, %v146
  %v309 = vadd.f32 %v82, %v147
  %v310 = vadd.f32 %v83, %v148
  %v311 = vadd.f32 %v84, %v149
  %v312 = vadd.f32 %v85, %v150
  %v313 = vadd.f32 %v86, %v151
  %v314 = vadd.f32 %v87, %v152
  %v315 = vadd.f32 %v88, %v153
  %v316 = vadd.f32 %v89, %v154
  %v317 = vadd.f32 %v90, %v155
  %v318 = vadd.f32 %v91, %v156
  %v319 = vadd.f32 %v92, %v157
  %v320 = vadd.f32 %v93, %v158
  %v321 = vadd.f32 %v94, %v159
  %v322 = vadd.f32 %v95, %v160
  %v323 = vadd.f32 %v96, %v161
  %v324 = vadd.f32 %v97, %v162
  %v325 = vadd.f32 %v98, %v163
  %v326 = vadd.f32 %v99, %v164
  %v327 = vadd.f32 %v295, %v198
  %v328 = vadd.f32 %v296, %v199
  %v329 = vadd.f32 %v297, %v200
  %v330 = vadd.f32 %v298, %v201
  %v331 = vadd.f32 %v299, %v202
  %v332 = vadd.f32 %v300, %v203
  %v333 = vadd.f32 %v301, %v204
  %v334 = vadd.f32 %v302, %v205
  %v335 = vadd.f32 %v303, %v206
  %v336 = vadd.f32 %v304, %v207
  %v337 = vadd.f32 %v305, %v208
  %v338 = vadd.f32 %v306, %v209
  %v339 = vadd.f32 %v307, %v210
  %v340 = vadd.f32 %v308, %v211
  %v341 = vadd.f32 %v309, %v212
  %v342 = vadd.f32 %v310, %v213
  %v343 = vadd.f32 %v311, %v214
  %v344 = vadd.f32 %v312, %v215
  %v345 = vadd.f32 %v313, %v216
  %v346 = vadd.f32 %v314, %v217
  %v347 = vadd.f32 %v315, %v218
  %v348 = vadd.f32 %v316, %v219
  %v349 = vadd.f32 %v317, %v220
  %v350 = vadd.f32 %v318, %v221
  %v351 = vadd.f32 %v319, %v222
  %v352 = vadd.f32 %v320, %v223
  %v353 = vadd.f32 %v321, %v224
  %v354 = vadd.f32 %v322, %v225
  %v355 = vadd.f32 %v323, %v226
  %v356 = vadd.f32 %v324, %v227
  %v357 = vadd.f32 %v325, %v228
  %v358 = vadd.f32 %v326, %v229
  %v359 = vadd.f32 %v327, %v263
  %v360 = vadd.f32 %v328, %v264
  %v361 = vadd.f32 %v329, %v265
  %v362 = vadd.f32 %v330, %v266
  %v363 = vadd.f32 %v331, %v267
  %v364 = vadd.f32 %v332, %v268
  %v365 = vadd.f32 %v333, %v269
  %v366 = vadd.f32 %v334, %v270
  %v367 = vadd.f32 %v335, %v271
  %v368 = vadd.f32 %v336, %v272
  %v369 = vadd.f32 %v337, %v273
  %v370 = vadd.f32 %v338, %v274
  %v371 = vadd.f32 %v339, %v275
  %v372 = vadd.f32 %v340, %v276
  %v373 = vadd.f32 %v341, %v277
  %v374 = vadd.f32 %v342, %v278
  %v375 = vadd.f32 %v343, %v279
  %v376 = vadd.f32 %v344, %v280
  %v377 = vadd.f32 %v345, %v281
  %v378 = vadd.f32 %v346, %v282
  %v379 = vadd.f32 %v347, %v283
  %v380 = vadd.f32 %v348, %v284
  %v381 = vadd.f32 %v349, %v285
  %v382 = vadd.f32 %v350, %v286
  %v383 = vadd.f32 %v351, %v287
  %v384 = vadd.f32 %v352, %v288
  %v385 = vadd.f32 %v353, %v289
  %v386 = vadd.f32 %v354, %v290
  %v387 = vadd.f32 %v355, %v291
  %v388 = vadd.f32 %v356, %v292
  %v389 = vadd.f32 %v357, %v293
  %v390 = vadd.f32 %v358, %v294
  %v391 = vpack.c.bf16 %v360, %v359
  %v392 = vpack.c.bf16 %v362, %v361
  %v393 = vpack.c.bf16 %v364, %v363
  %v394 = vpack.c.bf16 %v366, %v365
  %v395 = vpack.c.bf16 %v368, %v367
  %v396 = vpack.c.bf16 %v370, %v369
  %v397 = vpack.c.bf16 %v372, %v371
  %v398 = vpack.c.bf16 %v374, %v373
  %v399 = vpack.c.bf16 %v376, %v375
  %v400 = vpack.c.bf16 %v378, %v377
  %v401 = vpack.c.bf16 %v380, %v379
  %v402 = vpack.c.bf16 %v382, %v381
  %v403 = vpack.c.bf16 %v384, %v383
  %v404 = vpack.c.bf16 %v386, %v385
  %v405 = vpack.c.bf16 %v388, %v387
  %v406 = vpack.c.bf16 %v390, %v389
  %v407 = vld [vmem:[%s2] sm:$0xf]
  %v408 = vld [vmem:[%s2 + $0x4] sm:$0xf]
  %v411 = vunpack.c.l.b16 %v407
  %v412 = vunpack.c.l.b16 %v408
  %v413 = vpack.c.b16 %v412, %v411
  %vm415 = vcmask 130048
  %v417 = vsel %vm415, %v391, 0
  %v420 = vsel %vm415, %v392, 0
  %v423 = vsel %vm415, %v393, 0
  %v426 = vsel %vm415, %v394, 0
  %v429 = vsel %vm415, %v395, 0
  %v432 = vsel %vm415, %v396, 0
  %v435 = vsel %vm415, %v397, 0
  %v438 = vsel %vm415, %v398, 0
  %v441 = vsel %vm415, %v399, 0
  %v444 = vsel %vm415, %v400, 0
  %v447 = vsel %vm415, %v401, 0
  %v450 = vsel %vm415, %v402, 0
  %v453 = vsel %vm415, %v403, 0
  %v456 = vsel %vm415, %v404, 0
  %v459 = vsel %vm415, %v405, 0
  %v462 = vsel %vm415, %v406, 0
  %464 = vmatprep.subr.bf16.mxu0 0
  %465 = vmatpush1.bf16.msra.mxu0 %v413
  %466 = vmatprep.subr.bf16.mxu0 0
  %467 = vmatpush1.bf16.msra.mxu0 0
  %468 = vmatprep.subr.bf16.mxu0 0
  %469 = vmatpush1.bf16.msra.mxu0 0
  %470 = vmatprep.subr.bf16.mxu0 0
  %471 = vmatpush1.bf16.msra.mxu0 0
  %472 = vmatprep.subr.bf16.mxu0 0
  %473 = vmatpush1.bf16.msra.mxu0 0
  %474 = vmatprep.subr.bf16.mxu0 0
  %475 = vmatpush1.bf16.msra.mxu0 0
  %476 = vmatprep.subr.bf16.mxu0 0
  %477 = vmatpush1.bf16.msra.mxu0 0
  %478 = vmatprep.subr.bf16.mxu0 0
  %479 = vmatpush1.bf16.msra.mxu0 0
  %480 = vmatprep.subr.bf16.mxu0 0
  %481 = vmatpush1.bf16.msra.mxu0 0
  %482 = vmatprep.subr.bf16.mxu0 0
  %483 = vmatpush1.bf16.msra.mxu0 0
  %484 = vmatprep.subr.bf16.mxu0 0
  %485 = vmatpush1.bf16.msra.mxu0 0
  %486 = vmatprep.subr.bf16.mxu0 0
  %487 = vmatpush1.bf16.msra.mxu0 0
  %488 = vmatprep.subr.bf16.mxu0 0
  %489 = vmatpush1.bf16.msra.mxu0 0
  %490 = vmatprep.subr.bf16.mxu0 0
  %491 = vmatpush1.bf16.msra.mxu0 0
  %492 = vmatprep.subr.bf16.mxu0 0
  %493 = vmatpush1.bf16.msra.mxu0 0
  %494 = vmatprep.subr.bf16.mxu0 0
  %495 = vmatpush1.bf16.msra.mxu0 0
  %496 = vmatprep.mubr.bf16.mxu0 0
  %497 = vmatmul.mubr.bf16.gmra.mrb[0].mxu0 %v417
  %v498 = vpop.f32.mrb[0].mxu0
  %v499 = vadd.f32 0.0, %v498
  %v500 = vpop.f32.mrb[0].mxu0
  %v501 = vpop.f32.mrb[0].mxu0
  %v502 = vadd.f32 0.0, %v501
  %v503 = vpop.f32.mrb[0].mxu0
  %504 = vmatprep.mubr.bf16.mxu0 0
  %505 = vmatmul.mubr.bf16.gmra.mrb[0].mxu0 %v420
  %v506 = vpop.f32.mrb[0].mxu0
  %v507 = vadd.f32 0.0, %v506
  %v508 = vpop.f32.mrb[0].mxu0
  %v509 = vpop.f32.mrb[0].mxu0
  %v510 = vadd.f32 0.0, %v509
  %v511 = vpop.f32.mrb[0].mxu0
  %512 = vmatprep.mubr.bf16.mxu0 0
  %513 = vmatmul.mubr.bf16.gmra.mrb[0].mxu0 %v423
  %v514 = vpop.f32.mrb[0].mxu0
  %v515 = vadd.f32 0.0, %v514
  %v516 = vpop.f32.mrb[0].mxu0
  %v517 = vpop.f32.mrb[0].mxu0
  %v518 = vadd.f32 0.0, %v517
  %v519 = vpop.f32.mrb[0].mxu0
  %520 = vmatprep.mubr.bf16.mxu0 0
  %521 = vmatmul.mubr.bf16.gmra.mrb[0].mxu0 %v426
  %v522 = vpop.f32.mrb[0].mxu0
  %v523 = vadd.f32 0.0, %v522
  %v524 = vpop.f32.mrb[0].mxu0
  %v525 = vpop.f32.mrb[0].mxu0
  %v526 = vadd.f32 0.0, %v525
  %v527 = vpop.f32.mrb[0].mxu0
  %528 = vmatprep.mubr.bf16.mxu0 0
  %529 = vmatmul.mubr.bf16.gmra.mrb[0].mxu0 %v429
  %v530 = vpop.f32.mrb[0].mxu0
  %v531 = vadd.f32 0.0, %v530
  %v532 = vpop.f32.mrb[0].mxu0
  %v533 = vpop.f32.mrb[0].mxu0
  %v534 = vadd.f32 0.0, %v533
  %v535 = vpop.f32.mrb[0].mxu0
  %536 = vmatprep.mubr.bf16.mxu0 0
  %537 = vmatmul.mubr.bf16.gmra.mrb[0].mxu0 %v432
  %v538 = vpop.f32.mrb[0].mxu0
  %v539 = vadd.f32 0.0, %v538
  %v540 = vpop.f32.mrb[0].mxu0
  %v541 = vpop.f32.mrb[0].mxu0
  %v542 = vadd.f32 0.0, %v541
  %v543 = vpop.f32.mrb[0].mxu0
  %544 = vmatprep.mubr.bf16.mxu0 0
  %545 = vmatmul.mubr.bf16.gmra.mrb[0].mxu0 %v435
  %v546 = vpop.f32.mrb[0].mxu0
  %v547 = vadd.f32 0.0, %v546
  %v548 = vpop.f32.mrb[0].mxu0
  %v549 = vpop.f32.mrb[0].mxu0
  %v550 = vadd.f32 0.0, %v549
  %v551 = vpop.f32.mrb[0].mxu0
  %552 = vmatprep.mubr.bf16.mxu0 0
  %553 = vmatmul.mubr.bf16.gmra.mrb[0].mxu0 %v438
  %v554 = vpop.f32.mrb[0].mxu0
  %v555 = vadd.f32 0.0, %v554
  %v556 = vpop.f32.mrb[0].mxu0
  %v557 = vpop.f32.mrb[0].mxu0
  %v558 = vadd.f32 0.0, %v557
  %v559 = vpop.f32.mrb[0].mxu0
  %560 = vmatprep.mubr.bf16.mxu0 0
  %561 = vmatmul.mubr.bf16.gmra.mrb[0].mxu0 %v441
  %v562 = vpop.f32.mrb[0].mxu0
  %v563 = vadd.f32 0.0, %v562
  %v564 = vpop.f32.mrb[0].mxu0
  %v565 = vpop.f32.mrb[0].mxu0
  %v566 = vadd.f32 0.0, %v565
  %v567 = vpop.f32.mrb[0].mxu0
  %568 = vmatprep.mubr.bf16.mxu0 0
  %569 = vmatmul.mubr.bf16.gmra.mrb[0].mxu0 %v444
  %v570 = vpop.f32.mrb[0].mxu0
  %v571 = vadd.f32 0.0, %v570
  %v572 = vpop.f32.mrb[0].mxu0
  %v573 = vpop.f32.mrb[0].mxu0
  %v574 = vadd.f32 0.0, %v573
  %v575 = vpop.f32.mrb[0].mxu0
  %576 = vmatprep.mubr.bf16.mxu0 0
  %577 = vmatmul.mubr.bf16.gmra.mrb[0].mxu0 %v447
  %v578 = vpop.f32.mrb[0].mxu0
  %v579 = vadd.f32 0.0, %v578
  %v580 = vpop.f32.mrb[0].mxu0
  %v581 = vpop.f32.mrb[0].mxu0
  %v582 = vadd.f32 0.0, %v581
  %v583 = vpop.f32.mrb[0].mxu0
  %584 = vmatprep.mubr.bf16.mxu0 0
  %585 = vmatmul.mubr.bf16.gmra.mrb[0].mxu0 %v450
  %v586 = vpop.f32.mrb[0].mxu0
  %v587 = vadd.f32 0.0, %v586
  %v588 = vpop.f32.mrb[0].mxu0
  %v589 = vpop.f32.mrb[0].mxu0
  %v590 = vadd.f32 0.0, %v589
  %v591 = vpop.f32.mrb[0].mxu0
  %592 = vmatprep.mubr.bf16.mxu0 0
  %593 = vmatmul.mubr.bf16.gmra.mrb[0].mxu0 %v453
  %v594 = vpop.f32.mrb[0].mxu0
  %v595 = vadd.f32 0.0, %v594
  %v596 = vpop.f32.mrb[0].mxu0
  %v597 = vpop.f32.mrb[0].mxu0
  %v598 = vadd.f32 0.0, %v597
  %v599 = vpop.f32.mrb[0].mxu0
  %600 = vmatprep.mubr.bf16.mxu0 0
  %601 = vmatmul.mubr.bf16.gmra.mrb[0].mxu0 %v456
  %v602 = vpop.f32.mrb[0].mxu0
  %v603 = vadd.f32 0.0, %v602
  %v604 = vpop.f32.mrb[0].mxu0
  %v605 = vpop.f32.mrb[0].mxu0
  %v606 = vadd.f32 0.0, %v605
  %v607 = vpop.f32.mrb[0].mxu0
  %608 = vmatprep.mubr.bf16.mxu0 0
  %609 = vmatmul.mubr.bf16.gmra.mrb[0].mxu0 %v459
  %v610 = vpop.f32.mrb[0].mxu0
  %v611 = vadd.f32 0.0, %v610
  %v612 = vpop.f32.mrb[0].mxu0
  %v613 = vpop.f32.mrb[0].mxu0
  %v614 = vadd.f32 0.0, %v613
  %v615 = vpop.f32.mrb[0].mxu0
  %616 = vmatprep.mubr.bf16.mxu0 0
  %617 = vmatmul.mubr.bf16.gmra.mrb[0].mxu0 %v462
  %v618 = vpop.f32.mrb[0].mxu0
  %v619 = vadd.f32 0.0, %v618
  %v620 = vpop.f32.mrb[0].mxu0
  %v621 = vpop.f32.mrb[0].mxu0
  %v622 = vadd.f32 0.0, %v621
  %v623 = vpop.f32.mrb[0].mxu0
  %624 = vdwg.mxu0
  %v625 = vmax.f32 %v499, 0.0
  %v626 = vmax.f32 %v502, 0.0
  %v627 = vmax.f32 %v507, 0.0
  %v628 = vmax.f32 %v510, 0.0
  %v629 = vmax.f32 %v515, 0.0
  %v630 = vmax.f32 %v518, 0.0
  %v631 = vmax.f32 %v523, 0.0
  %v632 = vmax.f32 %v526, 0.0
  %v633 = vmax.f32 %v531, 0.0
  %v634 = vmax.f32 %v534, 0.0
  %v635 = vmax.f32 %v539, 0.0
  %v636 = vmax.f32 %v542, 0.0
  %v637 = vmax.f32 %v547, 0.0
  %v638 = vmax.f32 %v550, 0.0
  %v639 = vmax.f32 %v555, 0.0
  %v640 = vmax.f32 %v558, 0.0
  %v641 = vmax.f32 %v563, 0.0
  %v642 = vmax.f32 %v566, 0.0
  %v643 = vmax.f32 %v571, 0.0
  %v644 = vmax.f32 %v574, 0.0
  %v645 = vmax.f32 %v579, 0.0
  %v646 = vmax.f32 %v582, 0.0
  %v647 = vmax.f32 %v587, 0.0
  %v648 = vmax.f32 %v590, 0.0
  %v649 = vmax.f32 %v595, 0.0
  %v650 = vmax.f32 %v598, 0.0
  %v651 = vmax.f32 %v603, 0.0
  %v652 = vmax.f32 %v606, 0.0
  %v653 = vmax.f32 %v611, 0.0
  %v654 = vmax.f32 %v614, 0.0
  %v655 = vmax.f32 %v619, 0.0
  %v656 = vmax.f32 %v622, 0.0
  %v657 = vpack.c.bf16 %v626, %v625
  %v658 = vpack.c.bf16 %v628, %v627
  %v659 = vpack.c.bf16 %v630, %v629
  %v660 = vpack.c.bf16 %v632, %v631
  %v661 = vpack.c.bf16 %v634, %v633
  %v662 = vpack.c.bf16 %v636, %v635
  %v663 = vpack.c.bf16 %v638, %v637
  %v664 = vpack.c.bf16 %v640, %v639
  %v665 = vpack.c.bf16 %v642, %v641
  %v666 = vpack.c.bf16 %v644, %v643
  %v667 = vpack.c.bf16 %v646, %v645
  %v668 = vpack.c.bf16 %v648, %v647
  %v669 = vpack.c.bf16 %v650, %v649
  %v670 = vpack.c.bf16 %v652, %v651
  %v671 = vpack.c.bf16 %v654, %v653
  %v672 = vpack.c.bf16 %v656, %v655
  %v673 = vld [vmem:[%s3] sm:$0xf]
  %v674 = vld [vmem:[%s3 + $0x4] sm:$0xf]
  %v675 = vld [vmem:[%s4] sm:$0x1]
  %v677 = vlaneseq
  %v678 = vshrl.u32 %v677, 7
  %v679 = vsub.s32 0, %v678
  %v680 = vrot.slane %v675, %v679
  %v684 = vunpack.c.l.b16 %v673
  %v685 = vunpack.c.l.b16 %v674
  %v686 = vpack.c.b16 %v685, %v684
  %v689 = vsel %vm415, %v657, 0
  %v692 = vsel %vm415, %v658, 0
  %v695 = vsel %vm415, %v659, 0
  %v698 = vsel %vm415, %v660, 0
  %v701 = vsel %vm415, %v661, 0
  %v704 = vsel %vm415, %v662, 0
  %v707 = vsel %vm415, %v663, 0
  %v710 = vsel %vm415, %v664, 0
  %v713 = vsel %vm415, %v665, 0
  %v716 = vsel %vm415, %v666, 0
  %v719 = vsel %vm415, %v667, 0
  %v722 = vsel %vm415, %v668, 0
  %v725 = vsel %vm415, %v669, 0
  %v728 = vsel %vm415, %v670, 0
  %v731 = vsel %vm415, %v671, 0
  %v734 = vsel %vm415, %v672, 0
  %736 = vmatprep.subr.bf16.mxu0 0
  %737 = vmatpush1.bf16.msra.mxu0 %v686
  %738 = vmatprep.subr.bf16.mxu0 0
  %739 = vmatpush1.bf16.msra.mxu0 0
  %740 = vmatprep.subr.bf16.mxu0 0
  %741 = vmatpush1.bf16.msra.mxu0 0
  %742 = vmatprep.subr.bf16.mxu0 0
  %743 = vmatpush1.bf16.msra.mxu0 0
  %744 = vmatprep.subr.bf16.mxu0 0
  %745 = vmatpush1.bf16.msra.mxu0 0
  %746 = vmatprep.subr.bf16.mxu0 0
  %747 = vmatpush1.bf16.msra.mxu0 0
  %748 = vmatprep.subr.bf16.mxu0 0
  %749 = vmatpush1.bf16.msra.mxu0 0
  %750 = vmatprep.subr.bf16.mxu0 0
  %751 = vmatpush1.bf16.msra.mxu0 0
  %752 = vmatprep.subr.bf16.mxu0 0
  %753 = vmatpush1.bf16.msra.mxu0 0
  %754 = vmatprep.subr.bf16.mxu0 0
  %755 = vmatpush1.bf16.msra.mxu0 0
  %756 = vmatprep.subr.bf16.mxu0 0
  %757 = vmatpush1.bf16.msra.mxu0 0
  %758 = vmatprep.subr.bf16.mxu0 0
  %759 = vmatpush1.bf16.msra.mxu0 0
  %760 = vmatprep.subr.bf16.mxu0 0
  %761 = vmatpush1.bf16.msra.mxu0 0
  %762 = vmatprep.subr.bf16.mxu0 0
  %763 = vmatpush1.bf16.msra.mxu0 0
  %764 = vmatprep.subr.bf16.mxu0 0
  %765 = vmatpush1.bf16.msra.mxu0 0
  %766 = vmatprep.subr.bf16.mxu0 0
  %767 = vmatpush1.bf16.msra.mxu0 0
  %768 = vmatprep.mubr.bf16.mxu0 0
  %769 = vmatmul.mubr.bf16.gmra.mrb[0].mxu0 %v689
  %v770 = vpop.f32.mrb[0].mxu0
  %v771 = vadd.f32 %v680, %v770
  %v772 = vpop.f32.mrb[0].mxu0
  %v773 = vpop.f32.mrb[0].mxu0
  %v774 = vadd.f32 %v680, %v773
  %v775 = vpop.f32.mrb[0].mxu0
  %776 = vmatprep.mubr.bf16.mxu0 0
  %777 = vmatmul.mubr.bf16.gmra.mrb[0].mxu0 %v692
  %v778 = vpop.f32.mrb[0].mxu0
  %v779 = vadd.f32 %v680, %v778
  %v780 = vpop.f32.mrb[0].mxu0
  %v781 = vpop.f32.mrb[0].mxu0
  %v782 = vadd.f32 %v680, %v781
  %v783 = vpop.f32.mrb[0].mxu0
  %784 = vmatprep.mubr.bf16.mxu0 0
  %785 = vmatmul.mubr.bf16.gmra.mrb[0].mxu0 %v695
  %v786 = vpop.f32.mrb[0].mxu0
  %v787 = vadd.f32 %v680, %v786
  %v788 = vpop.f32.mrb[0].mxu0
  %v789 = vpop.f32.mrb[0].mxu0
  %v790 = vadd.f32 %v680, %v789
  %v791 = vpop.f32.mrb[0].mxu0
  %792 = vmatprep.mubr.bf16.mxu0 0
  %793 = vmatmul.mubr.bf16.gmra.mrb[0].mxu0 %v698
  %v794 = vpop.f32.mrb[0].mxu0
  %v795 = vadd.f32 %v680, %v794
  %v796 = vpop.f32.mrb[0].mxu0
  %v797 = vpop.f32.mrb[0].mxu0
  %v798 = vadd.f32 %v680, %v797
  %v799 = vpop.f32.mrb[0].mxu0
  %800 = vmatprep.mubr.bf16.mxu0 0
  %801 = vmatmul.mubr.bf16.gmra.mrb[0].mxu0 %v701
  %v802 = vpop.f32.mrb[0].mxu0
  %v803 = vadd.f32 %v680, %v802
  %v804 = vpop.f32.mrb[0].mxu0
  %v805 = vpop.f32.mrb[0].mxu0
  %v806 = vadd.f32 %v680, %v805
  %v807 = vpop.f32.mrb[0].mxu0
  %808 = vmatprep.mubr.bf16.mxu0 0
  %809 = vmatmul.mubr.bf16.gmra.mrb[0].mxu0 %v704
  %v810 = vpop.f32.mrb[0].mxu0
  %v811 = vadd.f32 %v680, %v810
  %v812 = vpop.f32.mrb[0].mxu0
  %v813 = vpop.f32.mrb[0].mxu0
  %v814 = vadd.f32 %v680, %v813
  %v815 = vpop.f32.mrb[0].mxu0
  %816 = vmatprep.mubr.bf16.mxu0 0
  %817 = vmatmul.mubr.bf16.gmra.mrb[0].mxu0 %v707
  %v818 = vpop.f32.mrb[0].mxu0
  %v819 = vadd.f32 %v680, %v818
  %v820 = vpop.f32.mrb[0].mxu0
  %v821 = vpop.f32.mrb[0].mxu0
  %v822 = vadd.f32 %v680, %v821
  %v823 = vpop.f32.mrb[0].mxu0
  %824 = vmatprep.mubr.bf16.mxu0 0
  %825 = vmatmul.mubr.bf16.gmra.mrb[0].mxu0 %v710
  %v826 = vpop.f32.mrb[0].mxu0
  %v827 = vadd.f32 %v680, %v826
  %v828 = vpop.f32.mrb[0].mxu0
  %v829 = vpop.f32.mrb[0].mxu0
  %v830 = vadd.f32 %v680, %v829
  %v831 = vpop.f32.mrb[0].mxu0
  %832 = vmatprep.mubr.bf16.mxu0 0
  %833 = vmatmul.mubr.bf16.gmra.mrb[0].mxu0 %v713
  %v834 = vpop.f32.mrb[0].mxu0
  %v835 = vadd.f32 %v680, %v834
  %v836 = vpop.f32.mrb[0].mxu0
  %v837 = vpop.f32.mrb[0].mxu0
  %v838 = vadd.f32 %v680, %v837
  %v839 = vpop.f32.mrb[0].mxu0
  %840 = vmatprep.mubr.bf16.mxu0 0
  %841 = vmatmul.mubr.bf16.gmra.mrb[0].mxu0 %v716
  %v842 = vpop.f32.mrb[0].mxu0
  %v843 = vadd.f32 %v680, %v842
  %v844 = vpop.f32.mrb[0].mxu0
  %v845 = vpop.f32.mrb[0].mxu0
  %v846 = vadd.f32 %v680, %v845
  %v847 = vpop.f32.mrb[0].mxu0
  %848 = vmatprep.mubr.bf16.mxu0 0
  %849 = vmatmul.mubr.bf16.gmra.mrb[0].mxu0 %v719
  %v850 = vpop.f32.mrb[0].mxu0
  %v851 = vadd.f32 %v680, %v850
  %v852 = vpop.f32.mrb[0].mxu0
  %v853 = vpop.f32.mrb[0].mxu0
  %v854 = vadd.f32 %v680, %v853
  %v855 = vpop.f32.mrb[0].mxu0
  %856 = vmatprep.mubr.bf16.mxu0 0
  %857 = vmatmul.mubr.bf16.gmra.mrb[0].mxu0 %v722
  %v858 = vpop.f32.mrb[0].mxu0
  %v859 = vadd.f32 %v680, %v858
  %v860 = vpop.f32.mrb[0].mxu0
  %v861 = vpop.f32.mrb[0].mxu0
  %v862 = vadd.f32 %v680, %v861
  %v863 = vpop.f32.mrb[0].mxu0
  %864 = vmatprep.mubr.bf16.mxu0 0
  %865 = vmatmul.mubr.bf16.gmra.mrb[0].mxu0 %v725
  %v866 = vpop.f32.mrb[0].mxu0
  %v867 = vadd.f32 %v680, %v866
  %v868 = vpop.f32.mrb[0].mxu0
  %v869 = vpop.f32.mrb[0].mxu0
  %v870 = vadd.f32 %v680, %v869
  %v871 = vpop.f32.mrb[0].mxu0
  %872 = vmatprep.mubr.bf16.mxu0 0
  %873 = vmatmul.mubr.bf16.gmra.mrb[0].mxu0 %v728
  %v874 = vpop.f32.mrb[0].mxu0
  %v875 = vadd.f32 %v680, %v874
  %v876 = vpop.f32.mrb[0].mxu0
  %v877 = vpop.f32.mrb[0].mxu0
  %v878 = vadd.f32 %v680, %v877
  %v879 = vpop.f32.mrb[0].mxu0
  %880 = vmatprep.mubr.bf16.mxu0 0
  %881 = vmatmul.mubr.bf16.gmra.mrb[0].mxu0 %v731
  %v882 = vpop.f32.mrb[0].mxu0
  %v883 = vadd.f32 %v680, %v882
  %v884 = vpop.f32.mrb[0].mxu0
  %v885 = vpop.f32.mrb[0].mxu0
  %v886 = vadd.f32 %v680, %v885
  %v887 = vpop.f32.mrb[0].mxu0
  %888 = vmatprep.mubr.bf16.mxu0 0
  %889 = vmatmul.mubr.bf16.gmra.mrb[0].mxu0 %v734
  %v890 = vpop.f32.mrb[0].mxu0
  %v891 = vadd.f32 %v680, %v890
  %v892 = vpop.f32.mrb[0].mxu0
  %v893 = vpop.f32.mrb[0].mxu0
  %v894 = vadd.f32 %v680, %v893
  %v895 = vpop.f32.mrb[0].mxu0
  %896 = vdwg.mxu0
  %v897 = vxor.u32 %v771, 2147483648
  %v898 = vxor.u32 %v774, 2147483648
  %v899 = vxor.u32 %v779, 2147483648
  %v900 = vxor.u32 %v782, 2147483648
  %v901 = vxor.u32 %v787, 2147483648
  %v902 = vxor.u32 %v790, 2147483648
  %v903 = vxor.u32 %v795, 2147483648
  %v904 = vxor.u32 %v798, 2147483648
  %v905 = vxor.u32 %v803, 2147483648
  %v906 = vxor.u32 %v806, 2147483648
  %v907 = vxor.u32 %v811, 2147483648
  %v908 = vxor.u32 %v814, 2147483648
  %v909 = vxor.u32 %v819, 2147483648
  %v910 = vxor.u32 %v822, 2147483648
  %v911 = vxor.u32 %v827, 2147483648
  %v912 = vxor.u32 %v830, 2147483648
  %v913 = vxor.u32 %v835, 2147483648
  %v914 = vxor.u32 %v838, 2147483648
  %v915 = vxor.u32 %v843, 2147483648
  %v916 = vxor.u32 %v846, 2147483648
  %v917 = vxor.u32 %v851, 2147483648
  %v918 = vxor.u32 %v854, 2147483648
  %v919 = vxor.u32 %v859, 2147483648
  %v920 = vxor.u32 %v862, 2147483648
  %v921 = vxor.u32 %v867, 2147483648
  %v922 = vxor.u32 %v870, 2147483648
  %v923 = vxor.u32 %v875, 2147483648
  %v924 = vxor.u32 %v878, 2147483648
  %v925 = vxor.u32 %v883, 2147483648
  %v926 = vxor.u32 %v886, 2147483648
  %v927 = vxor.u32 %v891, 2147483648
  %v928 = vxor.u32 %v894, 2147483648
  %v929 = vmul.f32 %v897, 1.442695
  %v930 = vpow.pop %v929
  %v931 = vmul.f32 %v898, 1.442695
  %v932 = vpow.pop %v931
  %v933 = vmul.f32 %v899, 1.442695
  %v934 = vpow.pop %v933
  %v935 = vmul.f32 %v900, 1.442695
  %v936 = vpow.pop %v935
  %v937 = vmul.f32 %v901, 1.442695
  %v938 = vpow.pop %v937
  %v939 = vmul.f32 %v902, 1.442695
  %v940 = vpow.pop %v939
  %v941 = vmul.f32 %v903, 1.442695
  %v942 = vpow.pop %v941
  %v943 = vmul.f32 %v904, 1.442695
  %v944 = vpow.pop %v943
  %v945 = vmul.f32 %v905, 1.442695
  %v946 = vpow.pop %v945
  %v947 = vmul.f32 %v906, 1.442695
  %v948 = vpow.pop %v947
  %v949 = vmul.f32 %v907, 1.442695
  %v950 = vpow.pop %v949
  %v951 = vmul.f32 %v908, 1.442695
  %v952 = vpow.pop %v951
  %v953 = vmul.f32 %v909, 1.442695
  %v954 = vpow.pop %v953
  %v955 = vmul.f32 %v910, 1.442695
  %v956 = vpow.pop %v955
  %v957 = vmul.f32 %v911, 1.442695
  %v958 = vpow.pop %v957
  %v959 = vmul.f32 %v912, 1.442695
  %v960 = vpow.pop %v959
  %v961 = vmul.f32 %v913, 1.442695
  %v962 = vpow.pop %v961
  %v963 = vmul.f32 %v914, 1.442695
  %v964 = vpow.pop %v963
  %v965 = vmul.f32 %v915, 1.442695
  %v966 = vpow.pop %v965
  %v967 = vmul.f32 %v916, 1.442695
  %v968 = vpow.pop %v967
  %v969 = vmul.f32 %v917, 1.442695
  %v970 = vpow.pop %v969
  %v971 = vmul.f32 %v918, 1.442695
  %v972 = vpow.pop %v971
  %v973 = vmul.f32 %v919, 1.442695
  %v974 = vpow.pop %v973
  %v975 = vmul.f32 %v920, 1.442695
  %v976 = vpow.pop %v975
  %v977 = vmul.f32 %v921, 1.442695
  %v978 = vpow.pop %v977
  %v979 = vmul.f32 %v922, 1.442695
  %v980 = vpow.pop %v979
  %v981 = vmul.f32 %v923, 1.442695
  %v982 = vpow.pop %v981
  %v983 = vmul.f32 %v924, 1.442695
  %v984 = vpow.pop %v983
  %v985 = vmul.f32 %v925, 1.442695
  %v986 = vpow.pop %v985
  %v987 = vmul.f32 %v926, 1.442695
  %v988 = vpow.pop %v987
  %v989 = vmul.f32 %v927, 1.442695
  %v990 = vpow.pop %v989
  %v991 = vmul.f32 %v928, 1.442695
  %v992 = vpow.pop %v991
  %v993 = vadd.f32 %v930, 1.0
  %v994 = vadd.f32 %v932, 1.0
  %v995 = vadd.f32 %v934, 1.0
  %v996 = vadd.f32 %v936, 1.0
  %v997 = vadd.f32 %v938, 1.0
  %v998 = vadd.f32 %v940, 1.0
  %v999 = vadd.f32 %v942, 1.0
  %v1000 = vadd.f32 %v944, 1.0
  %v1001 = vadd.f32 %v946, 1.0
  %v1002 = vadd.f32 %v948, 1.0
  %v1003 = vadd.f32 %v950, 1.0
  %v1004 = vadd.f32 %v952, 1.0
  %v1005 = vadd.f32 %v954, 1.0
  %v1006 = vadd.f32 %v956, 1.0
  %v1007 = vadd.f32 %v958, 1.0
  %v1008 = vadd.f32 %v960, 1.0
  %v1009 = vadd.f32 %v962, 1.0
  %v1010 = vadd.f32 %v964, 1.0
  %v1011 = vadd.f32 %v966, 1.0
  %v1012 = vadd.f32 %v968, 1.0
  %v1013 = vadd.f32 %v970, 1.0
  %v1014 = vadd.f32 %v972, 1.0
  %v1015 = vadd.f32 %v974, 1.0
  %v1016 = vadd.f32 %v976, 1.0
  %v1017 = vadd.f32 %v978, 1.0
  %v1018 = vadd.f32 %v980, 1.0
  %v1019 = vadd.f32 %v982, 1.0
  %v1020 = vadd.f32 %v984, 1.0
  %v1021 = vadd.f32 %v986, 1.0
  %v1022 = vadd.f32 %v988, 1.0
  %v1023 = vadd.f32 %v990, 1.0
  %v1024 = vadd.f32 %v992, 1.0
  %v1025 = vrcp.pop %v993
  %v1026 = vmul.f32 1.0, %v1025
  %v1027 = vrcp.pop %v994
  %v1028 = vmul.f32 1.0, %v1027
  %v1029 = vrcp.pop %v995
  %v1030 = vmul.f32 1.0, %v1029
  %v1031 = vrcp.pop %v996
  %v1032 = vmul.f32 1.0, %v1031
  %v1033 = vrcp.pop %v997
  %v1034 = vmul.f32 1.0, %v1033
  %v1035 = vrcp.pop %v998
  %v1036 = vmul.f32 1.0, %v1035
  %v1037 = vrcp.pop %v999
  %v1038 = vmul.f32 1.0, %v1037
  %v1039 = vrcp.pop %v1000
  %v1040 = vmul.f32 1.0, %v1039
  %v1041 = vrcp.pop %v1001
  %v1042 = vmul.f32 1.0, %v1041
  %v1043 = vrcp.pop %v1002
  %v1044 = vmul.f32 1.0, %v1043
  %v1045 = vrcp.pop %v1003
  %v1046 = vmul.f32 1.0, %v1045
  %v1047 = vrcp.pop %v1004
  %v1048 = vmul.f32 1.0, %v1047
  %v1049 = vrcp.pop %v1005
  %v1050 = vmul.f32 1.0, %v1049
  %v1051 = vrcp.pop %v1006
  %v1052 = vmul.f32 1.0, %v1051
  %v1053 = vrcp.pop %v1007
  %v1054 = vmul.f32 1.0, %v1053
  %v1055 = vrcp.pop %v1008
  %v1056 = vmul.f32 1.0, %v1055
  %v1057 = vrcp.pop %v1009
  %v1058 = vmul.f32 1.0, %v1057
  %v1059 = vrcp.pop %v1010
  %v1060 = vmul.f32 1.0, %v1059
  %v1061 = vrcp.pop %v1011
  %v1062 = vmul.f32 1.0, %v1061
  %v1063 = vrcp.pop %v1012
  %v1064 = vmul.f32 1.0, %v1063
  %v1065 = vrcp.pop %v1013
  %v1066 = vmul.f32 1.0, %v1065
  %v1067 = vrcp.pop %v1014
  %v1068 = vmul.f32 1.0, %v1067
  %v1069 = vrcp.pop %v1015
  %v1070 = vmul.f32 1.0, %v1069
  %v1071 = vrcp.pop %v1016
  %v1072 = vmul.f32 1.0, %v1071
  %v1073 = vrcp.pop %v1017
  %v1074 = vmul.f32 1.0, %v1073
  %v1075 = vrcp.pop %v1018
  %v1076 = vmul.f32 1.0, %v1075
  %v1077 = vrcp.pop %v1019
  %v1078 = vmul.f32 1.0, %v1077
  %v1079 = vrcp.pop %v1020
  %v1080 = vmul.f32 1.0, %v1079
  %v1081 = vrcp.pop %v1021
  %v1082 = vmul.f32 1.0, %v1081
  %v1083 = vrcp.pop %v1022
  %v1084 = vmul.f32 1.0, %v1083
  %v1085 = vrcp.pop %v1023
  %v1086 = vmul.f32 1.0, %v1085
  %v1087 = vrcp.pop %v1024
  %v1088 = vmul.f32 1.0, %v1087
  %v1089 = vmul.f32 %v68, %v1026
  %v1090 = vmul.f32 %v69, %v1028
  %v1091 = vmul.f32 %v70, %v1030
  %v1092 = vmul.f32 %v71, %v1032
  %v1093 = vmul.f32 %v72, %v1034
  %v1094 = vmul.f32 %v73, %v1036
  %v1095 = vmul.f32 %v74, %v1038
  %v1096 = vmul.f32 %v75, %v1040
  %v1097 = vmul.f32 %v76, %v1042
  %v1098 = vmul.f32 %v77, %v1044
  %v1099 = vmul.f32 %v78, %v1046
  %v1100 = vmul.f32 %v79, %v1048
  %v1101 = vmul.f32 %v80, %v1050
  %v1102 = vmul.f32 %v81, %v1052
  %v1103 = vmul.f32 %v82, %v1054
  %v1104 = vmul.f32 %v83, %v1056
  %v1105 = vmul.f32 %v84, %v1058
  %v1106 = vmul.f32 %v85, %v1060
  %v1107 = vmul.f32 %v86, %v1062
  %v1108 = vmul.f32 %v87, %v1064
  %v1109 = vmul.f32 %v88, %v1066
  %v1110 = vmul.f32 %v89, %v1068
  %v1111 = vmul.f32 %v90, %v1070
  %v1112 = vmul.f32 %v91, %v1072
  %v1113 = vmul.f32 %v92, %v1074
  %v1114 = vmul.f32 %v93, %v1076
  %v1115 = vmul.f32 %v94, %v1078
  %v1116 = vmul.f32 %v95, %v1080
  %v1117 = vmul.f32 %v96, %v1082
  %v1118 = vmul.f32 %v97, %v1084
  %v1119 = vmul.f32 %v98, %v1086
  %v1120 = vmul.f32 %v99, %v1088
  %s1121 = scalar_lea.vmem %s3, 8
  %v1122 = vld [vmem:[%s1121] sm:$0xf]
  %v1123 = vld [vmem:[%s1121 + $0x4] sm:$0xf]
  %s1124 = scalar_lea.vmem %s4, 1
  %v1125 = vld [vmem:[%s1124] sm:$0x1]
  %v1127 = vlaneseq
  %v1128 = vshrl.u32 %v1127, 7
  %v1129 = vsub.s32 0, %v1128
  %v1130 = vrot.slane %v1125, %v1129
  %v1134 = vunpack.c.l.b16 %v1122
  %v1135 = vunpack.c.l.b16 %v1123
  %v1136 = vpack.c.b16 %v1135, %v1134
  %1138 = vmatprep.subr.bf16.mxu0 0
  %1139 = vmatpush1.bf16.msra.mxu0 %v1136
  %1140 = vmatprep.subr.bf16.mxu0 0
  %1141 = vmatpush1.bf16.msra.mxu0 0
  %1142 = vmatprep.subr.bf16.mxu0 0
  %1143 = vmatpush1.bf16.msra.mxu0 0
  %1144 = vmatprep.subr.bf16.mxu0 0
  %1145 = vmatpush1.bf16.msra.mxu0 0
  %1146 = vmatprep.subr.bf16.mxu0 0
  %1147 = vmatpush1.bf16.msra.mxu0 0
  %1148 = vmatprep.subr.bf16.mxu0 0
  %1149 = vmatpush1.bf16.msra.mxu0 0
  %1150 = vmatprep.subr.bf16.mxu0 0
  %1151 = vmatpush1.bf16.msra.mxu0 0
  %1152 = vmatprep.subr.bf16.mxu0 0
  %1153 = vmatpush1.bf16.msra.mxu0 0
  %1154 = vmatprep.subr.bf16.mxu0 0
  %1155 = vmatpush1.bf16.msra.mxu0 0
  %1156 = vmatprep.subr.bf16.mxu0 0
  %1157 = vmatpush1.bf16.msra.mxu0 0
  %1158 = vmatprep.subr.bf16.mxu0 0
  %1159 = vmatpush1.bf16.msra.mxu0 0
  %1160 = vmatprep.subr.bf16.mxu0 0
  %1161 = vmatpush1.bf16.msra.mxu0 0
  %1162 = vmatprep.subr.bf16.mxu0 0
  %1163 = vmatpush1.bf16.msra.mxu0 0
  %1164 = vmatprep.subr.bf16.mxu0 0
  %1165 = vmatpush1.bf16.msra.mxu0 0
  %1166 = vmatprep.subr.bf16.mxu0 0
  %1167 = vmatpush1.bf16.msra.mxu0 0
  %1168 = vmatprep.subr.bf16.mxu0 0
  %1169 = vmatpush1.bf16.msra.mxu0 0
  %1170 = vmatprep.mubr.bf16.mxu0 0
  %1171 = vmatmul.mubr.bf16.gmra.mrb[0].mxu0 %v689
  %v1172 = vpop.f32.mrb[0].mxu0
  %v1173 = vadd.f32 %v1130, %v1172
  %v1174 = vpop.f32.mrb[0].mxu0
  %v1175 = vpop.f32.mrb[0].mxu0
  %v1176 = vadd.f32 %v1130, %v1175
  %v1177 = vpop.f32.mrb[0].mxu0
  %1178 = vmatprep.mubr.bf16.mxu0 0
  %1179 = vmatmul.mubr.bf16.gmra.mrb[0].mxu0 %v692
  %v1180 = vpop.f32.mrb[0].mxu0
  %v1181 = vadd.f32 %v1130, %v1180
  %v1182 = vpop.f32.mrb[0].mxu0
  %v1183 = vpop.f32.mrb[0].mxu0
  %v1184 = vadd.f32 %v1130, %v1183
  %v1185 = vpop.f32.mrb[0].mxu0
  %1186 = vmatprep.mubr.bf16.mxu0 0
  %1187 = vmatmul.mubr.bf16.gmra.mrb[0].mxu0 %v695
  %v1188 = vpop.f32.mrb[0].mxu0
  %v1189 = vadd.f32 %v1130, %v1188
  %v1190 = vpop.f32.mrb[0].mxu0
  %v1191 = vpop.f32.mrb[0].mxu0
  %v1192 = vadd.f32 %v1130, %v1191
  %v1193 = vpop.f32.mrb[0].mxu0
  %1194 = vmatprep.mubr.bf16.mxu0 0
  %1195 = vmatmul.mubr.bf16.gmra.mrb[0].mxu0 %v698
  %v1196 = vpop.f32.mrb[0].mxu0
  %v1197 = vadd.f32 %v1130, %v1196
  %v1198 = vpop.f32.mrb[0].mxu0
  %v1199 = vpop.f32.mrb[0].mxu0
  %v1200 = vadd.f32 %v1130, %v1199
  %v1201 = vpop.f32.mrb[0].mxu0
  %1202 = vmatprep.mubr.bf16.mxu0 0
  %1203 = vmatmul.mubr.bf16.gmra.mrb[0].mxu0 %v701
  %v1204 = vpop.f32.mrb[0].mxu0
  %v1205 = vadd.f32 %v1130, %v1204
  %v1206 = vpop.f32.mrb[0].mxu0
  %v1207 = vpop.f32.mrb[0].mxu0
  %v1208 = vadd.f32 %v1130, %v1207
  %v1209 = vpop.f32.mrb[0].mxu0
  %1210 = vmatprep.mubr.bf16.mxu0 0
  %1211 = vmatmul.mubr.bf16.gmra.mrb[0].mxu0 %v704
  %v1212 = vpop.f32.mrb[0].mxu0
  %v1213 = vadd.f32 %v1130, %v1212
  %v1214 = vpop.f32.mrb[0].mxu0
  %v1215 = vpop.f32.mrb[0].mxu0
  %v1216 = vadd.f32 %v1130, %v1215
  %v1217 = vpop.f32.mrb[0].mxu0
  %1218 = vmatprep.mubr.bf16.mxu0 0
  %1219 = vmatmul.mubr.bf16.gmra.mrb[0].mxu0 %v707
  %v1220 = vpop.f32.mrb[0].mxu0
  %v1221 = vadd.f32 %v1130, %v1220
  %v1222 = vpop.f32.mrb[0].mxu0
  %v1223 = vpop.f32.mrb[0].mxu0
  %v1224 = vadd.f32 %v1130, %v1223
  %v1225 = vpop.f32.mrb[0].mxu0
  %1226 = vmatprep.mubr.bf16.mxu0 0
  %1227 = vmatmul.mubr.bf16.gmra.mrb[0].mxu0 %v710
  %v1228 = vpop.f32.mrb[0].mxu0
  %v1229 = vadd.f32 %v1130, %v1228
  %v1230 = vpop.f32.mrb[0].mxu0
  %v1231 = vpop.f32.mrb[0].mxu0
  %v1232 = vadd.f32 %v1130, %v1231
  %v1233 = vpop.f32.mrb[0].mxu0
  %1234 = vmatprep.mubr.bf16.mxu0 0
  %1235 = vmatmul.mubr.bf16.gmra.mrb[0].mxu0 %v713
  %v1236 = vpop.f32.mrb[0].mxu0
  %v1237 = vadd.f32 %v1130, %v1236
  %v1238 = vpop.f32.mrb[0].mxu0
  %v1239 = vpop.f32.mrb[0].mxu0
  %v1240 = vadd.f32 %v1130, %v1239
  %v1241 = vpop.f32.mrb[0].mxu0
  %1242 = vmatprep.mubr.bf16.mxu0 0
  %1243 = vmatmul.mubr.bf16.gmra.mrb[0].mxu0 %v716
  %v1244 = vpop.f32.mrb[0].mxu0
  %v1245 = vadd.f32 %v1130, %v1244
  %v1246 = vpop.f32.mrb[0].mxu0
  %v1247 = vpop.f32.mrb[0].mxu0
  %v1248 = vadd.f32 %v1130, %v1247
  %v1249 = vpop.f32.mrb[0].mxu0
  %1250 = vmatprep.mubr.bf16.mxu0 0
  %1251 = vmatmul.mubr.bf16.gmra.mrb[0].mxu0 %v719
  %v1252 = vpop.f32.mrb[0].mxu0
  %v1253 = vadd.f32 %v1130, %v1252
  %v1254 = vpop.f32.mrb[0].mxu0
  %v1255 = vpop.f32.mrb[0].mxu0
  %v1256 = vadd.f32 %v1130, %v1255
  %v1257 = vpop.f32.mrb[0].mxu0
  %1258 = vmatprep.mubr.bf16.mxu0 0
  %1259 = vmatmul.mubr.bf16.gmra.mrb[0].mxu0 %v722
  %v1260 = vpop.f32.mrb[0].mxu0
  %v1261 = vadd.f32 %v1130, %v1260
  %v1262 = vpop.f32.mrb[0].mxu0
  %v1263 = vpop.f32.mrb[0].mxu0
  %v1264 = vadd.f32 %v1130, %v1263
  %v1265 = vpop.f32.mrb[0].mxu0
  %1266 = vmatprep.mubr.bf16.mxu0 0
  %1267 = vmatmul.mubr.bf16.gmra.mrb[0].mxu0 %v725
  %v1268 = vpop.f32.mrb[0].mxu0
  %v1269 = vadd.f32 %v1130, %v1268
  %v1270 = vpop.f32.mrb[0].mxu0
  %v1271 = vpop.f32.mrb[0].mxu0
  %v1272 = vadd.f32 %v1130, %v1271
  %v1273 = vpop.f32.mrb[0].mxu0
  %1274 = vmatprep.mubr.bf16.mxu0 0
  %1275 = vmatmul.mubr.bf16.gmra.mrb[0].mxu0 %v728
  %v1276 = vpop.f32.mrb[0].mxu0
  %v1277 = vadd.f32 %v1130, %v1276
  %v1278 = vpop.f32.mrb[0].mxu0
  %v1279 = vpop.f32.mrb[0].mxu0
  %v1280 = vadd.f32 %v1130, %v1279
  %v1281 = vpop.f32.mrb[0].mxu0
  %1282 = vmatprep.mubr.bf16.mxu0 0
  %1283 = vmatmul.mubr.bf16.gmra.mrb[0].mxu0 %v731
  %v1284 = vpop.f32.mrb[0].mxu0
  %v1285 = vadd.f32 %v1130, %v1284
  %v1286 = vpop.f32.mrb[0].mxu0
  %v1287 = vpop.f32.mrb[0].mxu0
  %v1288 = vadd.f32 %v1130, %v1287
  %v1289 = vpop.f32.mrb[0].mxu0
  %1290 = vmatprep.mubr.bf16.mxu0 0
  %1291 = vmatmul.mubr.bf16.gmra.mrb[0].mxu0 %v734
  %v1292 = vpop.f32.mrb[0].mxu0
  %v1293 = vadd.f32 %v1130, %v1292
  %v1294 = vpop.f32.mrb[0].mxu0
  %v1295 = vpop.f32.mrb[0].mxu0
  %v1296 = vadd.f32 %v1130, %v1295
  %v1297 = vpop.f32.mrb[0].mxu0
  %1298 = vdwg.mxu0
  %v1299 = vxor.u32 %v1173, 2147483648
  %v1300 = vxor.u32 %v1176, 2147483648
  %v1301 = vxor.u32 %v1181, 2147483648
  %v1302 = vxor.u32 %v1184, 2147483648
  %v1303 = vxor.u32 %v1189, 2147483648
  %v1304 = vxor.u32 %v1192, 2147483648
  %v1305 = vxor.u32 %v1197, 2147483648
  %v1306 = vxor.u32 %v1200, 2147483648
  %v1307 = vxor.u32 %v1205, 2147483648
  %v1308 = vxor.u32 %v1208, 2147483648
  %v1309 = vxor.u32 %v1213, 2147483648
  %v1310 = vxor.u32 %v1216, 2147483648
  %v1311 = vxor.u32 %v1221, 2147483648
  %v1312 = vxor.u32 %v1224, 2147483648
  %v1313 = vxor.u32 %v1229, 2147483648
  %v1314 = vxor.u32 %v1232, 2147483648
  %v1315 = vxor.u32 %v1237, 2147483648
  %v1316 = vxor.u32 %v1240, 2147483648
  %v1317 = vxor.u32 %v1245, 2147483648
  %v1318 = vxor.u32 %v1248, 2147483648
  %v1319 = vxor.u32 %v1253, 2147483648
  %v1320 = vxor.u32 %v1256, 2147483648
  %v1321 = vxor.u32 %v1261, 2147483648
  %v1322 = vxor.u32 %v1264, 2147483648
  %v1323 = vxor.u32 %v1269, 2147483648
  %v1324 = vxor.u32 %v1272, 2147483648
  %v1325 = vxor.u32 %v1277, 2147483648
  %v1326 = vxor.u32 %v1280, 2147483648
  %v1327 = vxor.u32 %v1285, 2147483648
  %v1328 = vxor.u32 %v1288, 2147483648
  %v1329 = vxor.u32 %v1293, 2147483648
  %v1330 = vxor.u32 %v1296, 2147483648
  %v1331 = vmul.f32 %v1299, 1.442695
  %v1332 = vpow.pop %v1331
  %v1333 = vmul.f32 %v1300, 1.442695
  %v1334 = vpow.pop %v1333
  %v1335 = vmul.f32 %v1301, 1.442695
  %v1336 = vpow.pop %v1335
  %v1337 = vmul.f32 %v1302, 1.442695
  %v1338 = vpow.pop %v1337
  %v1339 = vmul.f32 %v1303, 1.442695
  %v1340 = vpow.pop %v1339
  %v1341 = vmul.f32 %v1304, 1.442695
  %v1342 = vpow.pop %v1341
  %v1343 = vmul.f32 %v1305, 1.442695
  %v1344 = vpow.pop %v1343
  %v1345 = vmul.f32 %v1306, 1.442695
  %v1346 = vpow.pop %v1345
  %v1347 = vmul.f32 %v1307, 1.442695
  %v1348 = vpow.pop %v1347
  %v1349 = vmul.f32 %v1308, 1.442695
  %v1350 = vpow.pop %v1349
  %v1351 = vmul.f32 %v1309, 1.442695
  %v1352 = vpow.pop %v1351
  %v1353 = vmul.f32 %v1310, 1.442695
  %v1354 = vpow.pop %v1353
  %v1355 = vmul.f32 %v1311, 1.442695
  %v1356 = vpow.pop %v1355
  %v1357 = vmul.f32 %v1312, 1.442695
  %v1358 = vpow.pop %v1357
  %v1359 = vmul.f32 %v1313, 1.442695
  %v1360 = vpow.pop %v1359
  %v1361 = vmul.f32 %v1314, 1.442695
  %v1362 = vpow.pop %v1361
  %v1363 = vmul.f32 %v1315, 1.442695
  %v1364 = vpow.pop %v1363
  %v1365 = vmul.f32 %v1316, 1.442695
  %v1366 = vpow.pop %v1365
  %v1367 = vmul.f32 %v1317, 1.442695
  %v1368 = vpow.pop %v1367
  %v1369 = vmul.f32 %v1318, 1.442695
  %v1370 = vpow.pop %v1369
  %v1371 = vmul.f32 %v1319, 1.442695
  %v1372 = vpow.pop %v1371
  %v1373 = vmul.f32 %v1320, 1.442695
  %v1374 = vpow.pop %v1373
  %v1375 = vmul.f32 %v1321, 1.442695
  %v1376 = vpow.pop %v1375
  %v1377 = vmul.f32 %v1322, 1.442695
  %v1378 = vpow.pop %v1377
  %v1379 = vmul.f32 %v1323, 1.442695
  %v1380 = vpow.pop %v1379
  %v1381 = vmul.f32 %v1324, 1.442695
  %v1382 = vpow.pop %v1381
  %v1383 = vmul.f32 %v1325, 1.442695
  %v1384 = vpow.pop %v1383
  %v1385 = vmul.f32 %v1326, 1.442695
  %v1386 = vpow.pop %v1385
  %v1387 = vmul.f32 %v1327, 1.442695
  %v1388 = vpow.pop %v1387
  %v1389 = vmul.f32 %v1328, 1.442695
  %v1390 = vpow.pop %v1389
  %v1391 = vmul.f32 %v1329, 1.442695
  %v1392 = vpow.pop %v1391
  %v1393 = vmul.f32 %v1330, 1.442695
  %v1394 = vpow.pop %v1393
  %v1395 = vadd.f32 %v1332, 1.0
  %v1396 = vadd.f32 %v1334, 1.0
  %v1397 = vadd.f32 %v1336, 1.0
  %v1398 = vadd.f32 %v1338, 1.0
  %v1399 = vadd.f32 %v1340, 1.0
  %v1400 = vadd.f32 %v1342, 1.0
  %v1401 = vadd.f32 %v1344, 1.0
  %v1402 = vadd.f32 %v1346, 1.0
  %v1403 = vadd.f32 %v1348, 1.0
  %v1404 = vadd.f32 %v1350, 1.0
  %v1405 = vadd.f32 %v1352, 1.0
  %v1406 = vadd.f32 %v1354, 1.0
  %v1407 = vadd.f32 %v1356, 1.0
  %v1408 = vadd.f32 %v1358, 1.0
  %v1409 = vadd.f32 %v1360, 1.0
  %v1410 = vadd.f32 %v1362, 1.0
  %v1411 = vadd.f32 %v1364, 1.0
  %v1412 = vadd.f32 %v1366, 1.0
  %v1413 = vadd.f32 %v1368, 1.0
  %v1414 = vadd.f32 %v1370, 1.0
  %v1415 = vadd.f32 %v1372, 1.0
  %v1416 = vadd.f32 %v1374, 1.0
  %v1417 = vadd.f32 %v1376, 1.0
  %v1418 = vadd.f32 %v1378, 1.0
  %v1419 = vadd.f32 %v1380, 1.0
  %v1420 = vadd.f32 %v1382, 1.0
  %v1421 = vadd.f32 %v1384, 1.0
  %v1422 = vadd.f32 %v1386, 1.0
  %v1423 = vadd.f32 %v1388, 1.0
  %v1424 = vadd.f32 %v1390, 1.0
  %v1425 = vadd.f32 %v1392, 1.0
  %v1426 = vadd.f32 %v1394, 1.0
  %v1427 = vrcp.pop %v1395
  %v1428 = vmul.f32 1.0, %v1427
  %v1429 = vrcp.pop %v1396
  %v1430 = vmul.f32 1.0, %v1429
  %v1431 = vrcp.pop %v1397
  %v1432 = vmul.f32 1.0, %v1431
  %v1433 = vrcp.pop %v1398
  %v1434 = vmul.f32 1.0, %v1433
  %v1435 = vrcp.pop %v1399
  %v1436 = vmul.f32 1.0, %v1435
  %v1437 = vrcp.pop %v1400
  %v1438 = vmul.f32 1.0, %v1437
  %v1439 = vrcp.pop %v1401
  %v1440 = vmul.f32 1.0, %v1439
  %v1441 = vrcp.pop %v1402
  %v1442 = vmul.f32 1.0, %v1441
  %v1443 = vrcp.pop %v1403
  %v1444 = vmul.f32 1.0, %v1443
  %v1445 = vrcp.pop %v1404
  %v1446 = vmul.f32 1.0, %v1445
  %v1447 = vrcp.pop %v1405
  %v1448 = vmul.f32 1.0, %v1447
  %v1449 = vrcp.pop %v1406
  %v1450 = vmul.f32 1.0, %v1449
  %v1451 = vrcp.pop %v1407
  %v1452 = vmul.f32 1.0, %v1451
  %v1453 = vrcp.pop %v1408
  %v1454 = vmul.f32 1.0, %v1453
  %v1455 = vrcp.pop %v1409
  %v1456 = vmul.f32 1.0, %v1455
  %v1457 = vrcp.pop %v1410
  %v1458 = vmul.f32 1.0, %v1457
  %v1459 = vrcp.pop %v1411
  %v1460 = vmul.f32 1.0, %v1459
  %v1461 = vrcp.pop %v1412
  %v1462 = vmul.f32 1.0, %v1461
  %v1463 = vrcp.pop %v1413
  %v1464 = vmul.f32 1.0, %v1463
  %v1465 = vrcp.pop %v1414
  %v1466 = vmul.f32 1.0, %v1465
  %v1467 = vrcp.pop %v1415
  %v1468 = vmul.f32 1.0, %v1467
  %v1469 = vrcp.pop %v1416
  %v1470 = vmul.f32 1.0, %v1469
  %v1471 = vrcp.pop %v1417
  %v1472 = vmul.f32 1.0, %v1471
  %v1473 = vrcp.pop %v1418
  %v1474 = vmul.f32 1.0, %v1473
  %v1475 = vrcp.pop %v1419
  %v1476 = vmul.f32 1.0, %v1475
  %v1477 = vrcp.pop %v1420
  %v1478 = vmul.f32 1.0, %v1477
  %v1479 = vrcp.pop %v1421
  %v1480 = vmul.f32 1.0, %v1479
  %v1481 = vrcp.pop %v1422
  %v1482 = vmul.f32 1.0, %v1481
  %v1483 = vrcp.pop %v1423
  %v1484 = vmul.f32 1.0, %v1483
  %v1485 = vrcp.pop %v1424
  %v1486 = vmul.f32 1.0, %v1485
  %v1487 = vrcp.pop %v1425
  %v1488 = vmul.f32 1.0, %v1487
  %v1489 = vrcp.pop %v1426
  %v1490 = vmul.f32 1.0, %v1489
  %v1491 = vmul.f32 %v133, %v1428
  %v1492 = vmul.f32 %v134, %v1430
  %v1493 = vmul.f32 %v135, %v1432
  %v1494 = vmul.f32 %v136, %v1434
  %v1495 = vmul.f32 %v137, %v1436
  %v1496 = vmul.f32 %v138, %v1438
  %v1497 = vmul.f32 %v139, %v1440
  %v1498 = vmul.f32 %v140, %v1442
  %v1499 = vmul.f32 %v141, %v1444
  %v1500 = vmul.f32 %v142, %v1446
  %v1501 = vmul.f32 %v143, %v1448
  %v1502 = vmul.f32 %v144, %v1450
  %v1503 = vmul.f32 %v145, %v1452
  %v1504 = vmul.f32 %v146, %v1454
  %v1505 = vmul.f32 %v147, %v1456
  %v1506 = vmul.f32 %v148, %v1458
  %v1507 = vmul.f32 %v149, %v1460
  %v1508 = vmul.f32 %v150, %v1462
  %v1509 = vmul.f32 %v151, %v1464
  %v1510 = vmul.f32 %v152, %v1466
  %v1511 = vmul.f32 %v153, %v1468
  %v1512 = vmul.f32 %v154, %v1470
  %v1513 = vmul.f32 %v155, %v1472
  %v1514 = vmul.f32 %v156, %v1474
  %v1515 = vmul.f32 %v157, %v1476
  %v1516 = vmul.f32 %v158, %v1478
  %v1517 = vmul.f32 %v159, %v1480
  %v1518 = vmul.f32 %v160, %v1482
  %v1519 = vmul.f32 %v161, %v1484
  %v1520 = vmul.f32 %v162, %v1486
  %v1521 = vmul.f32 %v163, %v1488
  %v1522 = vmul.f32 %v164, %v1490
  %v1523 = vadd.f32 %v1089, %v1491
  %v1524 = vadd.f32 %v1090, %v1492
  %v1525 = vadd.f32 %v1091, %v1493
  %v1526 = vadd.f32 %v1092, %v1494
  %v1527 = vadd.f32 %v1093, %v1495
  %v1528 = vadd.f32 %v1094, %v1496
  %v1529 = vadd.f32 %v1095, %v1497
  %v1530 = vadd.f32 %v1096, %v1498
  %v1531 = vadd.f32 %v1097, %v1499
  %v1532 = vadd.f32 %v1098, %v1500
  %v1533 = vadd.f32 %v1099, %v1501
  %v1534 = vadd.f32 %v1100, %v1502
  %v1535 = vadd.f32 %v1101, %v1503
  %v1536 = vadd.f32 %v1102, %v1504
  %v1537 = vadd.f32 %v1103, %v1505
  %v1538 = vadd.f32 %v1104, %v1506
  %v1539 = vadd.f32 %v1105, %v1507
  %v1540 = vadd.f32 %v1106, %v1508
  %v1541 = vadd.f32 %v1107, %v1509
  %v1542 = vadd.f32 %v1108, %v1510
  %v1543 = vadd.f32 %v1109, %v1511
  %v1544 = vadd.f32 %v1110, %v1512
  %v1545 = vadd.f32 %v1111, %v1513
  %v1546 = vadd.f32 %v1112, %v1514
  %v1547 = vadd.f32 %v1113, %v1515
  %v1548 = vadd.f32 %v1114, %v1516
  %v1549 = vadd.f32 %v1115, %v1517
  %v1550 = vadd.f32 %v1116, %v1518
  %v1551 = vadd.f32 %v1117, %v1519
  %v1552 = vadd.f32 %v1118, %v1520
  %v1553 = vadd.f32 %v1119, %v1521
  %v1554 = vadd.f32 %v1120, %v1522
  %s1555 = scalar_lea.vmem %s3, 16
  %v1556 = vld [vmem:[%s1555] sm:$0xf]
  %v1557 = vld [vmem:[%s1555 + $0x4] sm:$0xf]
  %s1558 = scalar_lea.vmem %s4, 2
  %v1559 = vld [vmem:[%s1558] sm:$0x1]
  %v1561 = vlaneseq
  %v1562 = vshrl.u32 %v1561, 7
  %v1563 = vsub.s32 0, %v1562
  %v1564 = vrot.slane %v1559, %v1563
  %v1568 = vunpack.c.l.b16 %v1556
  %v1569 = vunpack.c.l.b16 %v1557
  %v1570 = vpack.c.b16 %v1569, %v1568
  %1572 = vmatprep.subr.bf16.mxu0 0
  %1573 = vmatpush1.bf16.msra.mxu0 %v1570
  %1574 = vmatprep.subr.bf16.mxu0 0
  %1575 = vmatpush1.bf16.msra.mxu0 0
  %1576 = vmatprep.subr.bf16.mxu0 0
  %1577 = vmatpush1.bf16.msra.mxu0 0
  %1578 = vmatprep.subr.bf16.mxu0 0
  %1579 = vmatpush1.bf16.msra.mxu0 0
  %1580 = vmatprep.subr.bf16.mxu0 0
  %1581 = vmatpush1.bf16.msra.mxu0 0
  %1582 = vmatprep.subr.bf16.mxu0 0
  %1583 = vmatpush1.bf16.msra.mxu0 0
  %1584 = vmatprep.subr.bf16.mxu0 0
  %1585 = vmatpush1.bf16.msra.mxu0 0
  %1586 = vmatprep.subr.bf16.mxu0 0
  %1587 = vmatpush1.bf16.msra.mxu0 0
  %1588 = vmatprep.subr.bf16.mxu0 0
  %1589 = vmatpush1.bf16.msra.mxu0 0
  %1590 = vmatprep.subr.bf16.mxu0 0
  %1591 = vmatpush1.bf16.msra.mxu0 0
  %1592 = vmatprep.subr.bf16.mxu0 0
  %1593 = vmatpush1.bf16.msra.mxu0 0
  %1594 = vmatprep.subr.bf16.mxu0 0
  %1595 = vmatpush1.bf16.msra.mxu0 0
  %1596 = vmatprep.subr.bf16.mxu0 0
  %1597 = vmatpush1.bf16.msra.mxu0 0
  %1598 = vmatprep.subr.bf16.mxu0 0
  %1599 = vmatpush1.bf16.msra.mxu0 0
  %1600 = vmatprep.subr.bf16.mxu0 0
  %1601 = vmatpush1.bf16.msra.mxu0 0
  %1602 = vmatprep.subr.bf16.mxu0 0
  %1603 = vmatpush1.bf16.msra.mxu0 0
  %1604 = vmatprep.mubr.bf16.mxu0 0
  %1605 = vmatmul.mubr.bf16.gmra.mrb[0].mxu0 %v689
  %v1606 = vpop.f32.mrb[0].mxu0
  %v1607 = vadd.f32 %v1564, %v1606
  %v1608 = vpop.f32.mrb[0].mxu0
  %v1609 = vpop.f32.mrb[0].mxu0
  %v1610 = vadd.f32 %v1564, %v1609
  %v1611 = vpop.f32.mrb[0].mxu0
  %1612 = vmatprep.mubr.bf16.mxu0 0
  %1613 = vmatmul.mubr.bf16.gmra.mrb[0].mxu0 %v692
  %v1614 = vpop.f32.mrb[0].mxu0
  %v1615 = vadd.f32 %v1564, %v1614
  %v1616 = vpop.f32.mrb[0].mxu0
  %v1617 = vpop.f32.mrb[0].mxu0
  %v1618 = vadd.f32 %v1564, %v1617
  %v1619 = vpop.f32.mrb[0].mxu0
  %1620 = vmatprep.mubr.bf16.mxu0 0
  %1621 = vmatmul.mubr.bf16.gmra.mrb[0].mxu0 %v695
  %v1622 = vpop.f32.mrb[0].mxu0
  %v1623 = vadd.f32 %v1564, %v1622
  %v1624 = vpop.f32.mrb[0].mxu0
  %v1625 = vpop.f32.mrb[0].mxu0
  %v1626 = vadd.f32 %v1564, %v1625
  %v1627 = vpop.f32.mrb[0].mxu0
  %1628 = vmatprep.mubr.bf16.mxu0 0
  %1629 = vmatmul.mubr.bf16.gmra.mrb[0].mxu0 %v698
  %v1630 = vpop.f32.mrb[0].mxu0
  %v1631 = vadd.f32 %v1564, %v1630
  %v1632 = vpop.f32.mrb[0].mxu0
  %v1633 = vpop.f32.mrb[0].mxu0
  %v1634 = vadd.f32 %v1564, %v1633
  %v1635 = vpop.f32.mrb[0].mxu0
  %1636 = vmatprep.mubr.bf16.mxu0 0
  %1637 = vmatmul.mubr.bf16.gmra.mrb[0].mxu0 %v701
  %v1638 = vpop.f32.mrb[0].mxu0
  %v1639 = vadd.f32 %v1564, %v1638
  %v1640 = vpop.f32.mrb[0].mxu0
  %v1641 = vpop.f32.mrb[0].mxu0
  %v1642 = vadd.f32 %v1564, %v1641
  %v1643 = vpop.f32.mrb[0].mxu0
  %1644 = vmatprep.mubr.bf16.mxu0 0
  %1645 = vmatmul.mubr.bf16.gmra.mrb[0].mxu0 %v704
  %v1646 = vpop.f32.mrb[0].mxu0
  %v1647 = vadd.f32 %v1564, %v1646
  %v1648 = vpop.f32.mrb[0].mxu0
  %v1649 = vpop.f32.mrb[0].mxu0
  %v1650 = vadd.f32 %v1564, %v1649
  %v1651 = vpop.f32.mrb[0].mxu0
  %1652 = vmatprep.mubr.bf16.mxu0 0
  %1653 = vmatmul.mubr.bf16.gmra.mrb[0].mxu0 %v707
  %v1654 = vpop.f32.mrb[0].mxu0
  %v1655 = vadd.f32 %v1564, %v1654
  %v1656 = vpop.f32.mrb[0].mxu0
  %v1657 = vpop.f32.mrb[0].mxu0
  %v1658 = vadd.f32 %v1564, %v1657
  %v1659 = vpop.f32.mrb[0].mxu0
  %1660 = vmatprep.mubr.bf16.mxu0 0
  %1661 = vmatmul.mubr.bf16.gmra.mrb[0].mxu0 %v710
  %v1662 = vpop.f32.mrb[0].mxu0
  %v1663 = vadd.f32 %v1564, %v1662
  %v1664 = vpop.f32.mrb[0].mxu0
  %v1665 = vpop.f32.mrb[0].mxu0
  %v1666 = vadd.f32 %v1564, %v1665
  %v1667 = vpop.f32.mrb[0].mxu0
  %1668 = vmatprep.mubr.bf16.mxu0 0
  %1669 = vmatmul.mubr.bf16.gmra.mrb[0].mxu0 %v713
  %v1670 = vpop.f32.mrb[0].mxu0
  %v1671 = vadd.f32 %v1564, %v1670
  %v1672 = vpop.f32.mrb[0].mxu0
  %v1673 = vpop.f32.mrb[0].mxu0
  %v1674 = vadd.f32 %v1564, %v1673
  %v1675 = vpop.f32.mrb[0].mxu0
  %1676 = vmatprep.mubr.bf16.mxu0 0
  %1677 = vmatmul.mubr.bf16.gmra.mrb[0].mxu0 %v716
  %v1678 = vpop.f32.mrb[0].mxu0
  %v1679 = vadd.f32 %v1564, %v1678
  %v1680 = vpop.f32.mrb[0].mxu0
  %v1681 = vpop.f32.mrb[0].mxu0
  %v1682 = vadd.f32 %v1564, %v1681
  %v1683 = vpop.f32.mrb[0].mxu0
  %1684 = vmatprep.mubr.bf16.mxu0 0
  %1685 = vmatmul.mubr.bf16.gmra.mrb[0].mxu0 %v719
  %v1686 = vpop.f32.mrb[0].mxu0
  %v1687 = vadd.f32 %v1564, %v1686
  %v1688 = vpop.f32.mrb[0].mxu0
  %v1689 = vpop.f32.mrb[0].mxu0
  %v1690 = vadd.f32 %v1564, %v1689
  %v1691 = vpop.f32.mrb[0].mxu0
  %1692 = vmatprep.mubr.bf16.mxu0 0
  %1693 = vmatmul.mubr.bf16.gmra.mrb[0].mxu0 %v722
  %v1694 = vpop.f32.mrb[0].mxu0
  %v1695 = vadd.f32 %v1564, %v1694
  %v1696 = vpop.f32.mrb[0].mxu0
  %v1697 = vpop.f32.mrb[0].mxu0
  %v1698 = vadd.f32 %v1564, %v1697
  %v1699 = vpop.f32.mrb[0].mxu0
  %1700 = vmatprep.mubr.bf16.mxu0 0
  %1701 = vmatmul.mubr.bf16.gmra.mrb[0].mxu0 %v725
  %v1702 = vpop.f32.mrb[0].mxu0
  %v1703 = vadd.f32 %v1564, %v1702
  %v1704 = vpop.f32.mrb[0].mxu0
  %v1705 = vpop.f32.mrb[0].mxu0
  %v1706 = vadd.f32 %v1564, %v1705
  %v1707 = vpop.f32.mrb[0].mxu0
  %1708 = vmatprep.mubr.bf16.mxu0 0
  %1709 = vmatmul.mubr.bf16.gmra.mrb[0].mxu0 %v728
  %v1710 = vpop.f32.mrb[0].mxu0
  %v1711 = vadd.f32 %v1564, %v1710
  %v1712 = vpop.f32.mrb[0].mxu0
  %v1713 = vpop.f32.mrb[0].mxu0
  %v1714 = vadd.f32 %v1564, %v1713
  %v1715 = vpop.f32.mrb[0].mxu0
  %1716 = vmatprep.mubr.bf16.mxu0 0
  %1717 = vmatmul.mubr.bf16.gmra.mrb[0].mxu0 %v731
  %v1718 = vpop.f32.mrb[0].mxu0
  %v1719 = vadd.f32 %v1564, %v1718
  %v1720 = vpop.f32.mrb[0].mxu0
  %v1721 = vpop.f32.mrb[0].mxu0
  %v1722 = vadd.f32 %v1564, %v1721
  %v1723 = vpop.f32.mrb[0].mxu0
  %1724 = vmatprep.mubr.bf16.mxu0 0
  %1725 = vmatmul.mubr.bf16.gmra.mrb[0].mxu0 %v734
  %v1726 = vpop.f32.mrb[0].mxu0
  %v1727 = vadd.f32 %v1564, %v1726
  %v1728 = vpop.f32.mrb[0].mxu0
  %v1729 = vpop.f32.mrb[0].mxu0
  %v1730 = vadd.f32 %v1564, %v1729
  %v1731 = vpop.f32.mrb[0].mxu0
  %1732 = vdwg.mxu0
  %v1733 = vxor.u32 %v1607, 2147483648
  %v1734 = vxor.u32 %v1610, 2147483648
  %v1735 = vxor.u32 %v1615, 2147483648
  %v1736 = vxor.u32 %v1618, 2147483648
  %v1737 = vxor.u32 %v1623, 2147483648
  %v1738 = vxor.u32 %v1626, 2147483648
  %v1739 = vxor.u32 %v1631, 2147483648
  %v1740 = vxor.u32 %v1634, 2147483648
  %v1741 = vxor.u32 %v1639, 2147483648
  %v1742 = vxor.u32 %v1642, 2147483648
  %v1743 = vxor.u32 %v1647, 2147483648
  %v1744 = vxor.u32 %v1650, 2147483648
  %v1745 = vxor.u32 %v1655, 2147483648
  %v1746 = vxor.u32 %v1658, 2147483648
  %v1747 = vxor.u32 %v1663, 2147483648
  %v1748 = vxor.u32 %v1666, 2147483648
  %v1749 = vxor.u32 %v1671, 2147483648
  %v1750 = vxor.u32 %v1674, 2147483648
  %v1751 = vxor.u32 %v1679, 2147483648
  %v1752 = vxor.u32 %v1682, 2147483648
  %v1753 = vxor.u32 %v1687, 2147483648
  %v1754 = vxor.u32 %v1690, 2147483648
  %v1755 = vxor.u32 %v1695, 2147483648
  %v1756 = vxor.u32 %v1698, 2147483648
  %v1757 = vxor.u32 %v1703, 2147483648
  %v1758 = vxor.u32 %v1706, 2147483648
  %v1759 = vxor.u32 %v1711, 2147483648
  %v1760 = vxor.u32 %v1714, 2147483648
  %v1761 = vxor.u32 %v1719, 2147483648
  %v1762 = vxor.u32 %v1722, 2147483648
  %v1763 = vxor.u32 %v1727, 2147483648
  %v1764 = vxor.u32 %v1730, 2147483648
  %v1765 = vmul.f32 %v1733, 1.442695
  %v1766 = vpow.pop %v1765
  %v1767 = vmul.f32 %v1734, 1.442695
  %v1768 = vpow.pop %v1767
  %v1769 = vmul.f32 %v1735, 1.442695
  %v1770 = vpow.pop %v1769
  %v1771 = vmul.f32 %v1736, 1.442695
  %v1772 = vpow.pop %v1771
  %v1773 = vmul.f32 %v1737, 1.442695
  %v1774 = vpow.pop %v1773
  %v1775 = vmul.f32 %v1738, 1.442695
  %v1776 = vpow.pop %v1775
  %v1777 = vmul.f32 %v1739, 1.442695
  %v1778 = vpow.pop %v1777
  %v1779 = vmul.f32 %v1740, 1.442695
  %v1780 = vpow.pop %v1779
  %v1781 = vmul.f32 %v1741, 1.442695
  %v1782 = vpow.pop %v1781
  %v1783 = vmul.f32 %v1742, 1.442695
  %v1784 = vpow.pop %v1783
  %v1785 = vmul.f32 %v1743, 1.442695
  %v1786 = vpow.pop %v1785
  %v1787 = vmul.f32 %v1744, 1.442695
  %v1788 = vpow.pop %v1787
  %v1789 = vmul.f32 %v1745, 1.442695
  %v1790 = vpow.pop %v1789
  %v1791 = vmul.f32 %v1746, 1.442695
  %v1792 = vpow.pop %v1791
  %v1793 = vmul.f32 %v1747, 1.442695
  %v1794 = vpow.pop %v1793
  %v1795 = vmul.f32 %v1748, 1.442695
  %v1796 = vpow.pop %v1795
  %v1797 = vmul.f32 %v1749, 1.442695
  %v1798 = vpow.pop %v1797
  %v1799 = vmul.f32 %v1750, 1.442695
  %v1800 = vpow.pop %v1799
  %v1801 = vmul.f32 %v1751, 1.442695
  %v1802 = vpow.pop %v1801
  %v1803 = vmul.f32 %v1752, 1.442695
  %v1804 = vpow.pop %v1803
  %v1805 = vmul.f32 %v1753, 1.442695
  %v1806 = vpow.pop %v1805
  %v1807 = vmul.f32 %v1754, 1.442695
  %v1808 = vpow.pop %v1807
  %v1809 = vmul.f32 %v1755, 1.442695
  %v1810 = vpow.pop %v1809
  %v1811 = vmul.f32 %v1756, 1.442695
  %v1812 = vpow.pop %v1811
  %v1813 = vmul.f32 %v1757, 1.442695
  %v1814 = vpow.pop %v1813
  %v1815 = vmul.f32 %v1758, 1.442695
  %v1816 = vpow.pop %v1815
  %v1817 = vmul.f32 %v1759, 1.442695
  %v1818 = vpow.pop %v1817
  %v1819 = vmul.f32 %v1760, 1.442695
  %v1820 = vpow.pop %v1819
  %v1821 = vmul.f32 %v1761, 1.442695
  %v1822 = vpow.pop %v1821
  %v1823 = vmul.f32 %v1762, 1.442695
  %v1824 = vpow.pop %v1823
  %v1825 = vmul.f32 %v1763, 1.442695
  %v1826 = vpow.pop %v1825
  %v1827 = vmul.f32 %v1764, 1.442695
  %v1828 = vpow.pop %v1827
  %v1829 = vadd.f32 %v1766, 1.0
  %v1830 = vadd.f32 %v1768, 1.0
  %v1831 = vadd.f32 %v1770, 1.0
  %v1832 = vadd.f32 %v1772, 1.0
  %v1833 = vadd.f32 %v1774, 1.0
  %v1834 = vadd.f32 %v1776, 1.0
  %v1835 = vadd.f32 %v1778, 1.0
  %v1836 = vadd.f32 %v1780, 1.0
  %v1837 = vadd.f32 %v1782, 1.0
  %v1838 = vadd.f32 %v1784, 1.0
  %v1839 = vadd.f32 %v1786, 1.0
  %v1840 = vadd.f32 %v1788, 1.0
  %v1841 = vadd.f32 %v1790, 1.0
  %v1842 = vadd.f32 %v1792, 1.0
  %v1843 = vadd.f32 %v1794, 1.0
  %v1844 = vadd.f32 %v1796, 1.0
  %v1845 = vadd.f32 %v1798, 1.0
  %v1846 = vadd.f32 %v1800, 1.0
  %v1847 = vadd.f32 %v1802, 1.0
  %v1848 = vadd.f32 %v1804, 1.0
  %v1849 = vadd.f32 %v1806, 1.0
  %v1850 = vadd.f32 %v1808, 1.0
  %v1851 = vadd.f32 %v1810, 1.0
  %v1852 = vadd.f32 %v1812, 1.0
  %v1853 = vadd.f32 %v1814, 1.0
  %v1854 = vadd.f32 %v1816, 1.0
  %v1855 = vadd.f32 %v1818, 1.0
  %v1856 = vadd.f32 %v1820, 1.0
  %v1857 = vadd.f32 %v1822, 1.0
  %v1858 = vadd.f32 %v1824, 1.0
  %v1859 = vadd.f32 %v1826, 1.0
  %v1860 = vadd.f32 %v1828, 1.0
  %v1861 = vrcp.pop %v1829
  %v1862 = vmul.f32 1.0, %v1861
  %v1863 = vrcp.pop %v1830
  %v1864 = vmul.f32 1.0, %v1863
  %v1865 = vrcp.pop %v1831
  %v1866 = vmul.f32 1.0, %v1865
  %v1867 = vrcp.pop %v1832
  %v1868 = vmul.f32 1.0, %v1867
  %v1869 = vrcp.pop %v1833
  %v1870 = vmul.f32 1.0, %v1869
  %v1871 = vrcp.pop %v1834
  %v1872 = vmul.f32 1.0, %v1871
  %v1873 = vrcp.pop %v1835
  %v1874 = vmul.f32 1.0, %v1873
  %v1875 = vrcp.pop %v1836
  %v1876 = vmul.f32 1.0, %v1875
  %v1877 = vrcp.pop %v1837
  %v1878 = vmul.f32 1.0, %v1877
  %v1879 = vrcp.pop %v1838
  %v1880 = vmul.f32 1.0, %v1879
  %v1881 = vrcp.pop %v1839
  %v1882 = vmul.f32 1.0, %v1881
  %v1883 = vrcp.pop %v1840
  %v1884 = vmul.f32 1.0, %v1883
  %v1885 = vrcp.pop %v1841
  %v1886 = vmul.f32 1.0, %v1885
  %v1887 = vrcp.pop %v1842
  %v1888 = vmul.f32 1.0, %v1887
  %v1889 = vrcp.pop %v1843
  %v1890 = vmul.f32 1.0, %v1889
  %v1891 = vrcp.pop %v1844
  %v1892 = vmul.f32 1.0, %v1891
  %v1893 = vrcp.pop %v1845
  %v1894 = vmul.f32 1.0, %v1893
  %v1895 = vrcp.pop %v1846
  %v1896 = vmul.f32 1.0, %v1895
  %v1897 = vrcp.pop %v1847
  %v1898 = vmul.f32 1.0, %v1897
  %v1899 = vrcp.pop %v1848
  %v1900 = vmul.f32 1.0, %v1899
  %v1901 = vrcp.pop %v1849
  %v1902 = vmul.f32 1.0, %v1901
  %v1903 = vrcp.pop %v1850
  %v1904 = vmul.f32 1.0, %v1903
  %v1905 = vrcp.pop %v1851
  %v1906 = vmul.f32 1.0, %v1905
  %v1907 = vrcp.pop %v1852
  %v1908 = vmul.f32 1.0, %v1907
  %v1909 = vrcp.pop %v1853
  %v1910 = vmul.f32 1.0, %v1909
  %v1911 = vrcp.pop %v1854
  %v1912 = vmul.f32 1.0, %v1911
  %v1913 = vrcp.pop %v1855
  %v1914 = vmul.f32 1.0, %v1913
  %v1915 = vrcp.pop %v1856
  %v1916 = vmul.f32 1.0, %v1915
  %v1917 = vrcp.pop %v1857
  %v1918 = vmul.f32 1.0, %v1917
  %v1919 = vrcp.pop %v1858
  %v1920 = vmul.f32 1.0, %v1919
  %v1921 = vrcp.pop %v1859
  %v1922 = vmul.f32 1.0, %v1921
  %v1923 = vrcp.pop %v1860
  %v1924 = vmul.f32 1.0, %v1923
  %v1925 = vmul.f32 %v198, %v1862
  %v1926 = vmul.f32 %v199, %v1864
  %v1927 = vmul.f32 %v200, %v1866
  %v1928 = vmul.f32 %v201, %v1868
  %v1929 = vmul.f32 %v202, %v1870
  %v1930 = vmul.f32 %v203, %v1872
  %v1931 = vmul.f32 %v204, %v1874
  %v1932 = vmul.f32 %v205, %v1876
  %v1933 = vmul.f32 %v206, %v1878
  %v1934 = vmul.f32 %v207, %v1880
  %v1935 = vmul.f32 %v208, %v1882
  %v1936 = vmul.f32 %v209, %v1884
  %v1937 = vmul.f32 %v210, %v1886
  %v1938 = vmul.f32 %v211, %v1888
  %v1939 = vmul.f32 %v212, %v1890
  %v1940 = vmul.f32 %v213, %v1892
  %v1941 = vmul.f32 %v214, %v1894
  %v1942 = vmul.f32 %v215, %v1896
  %v1943 = vmul.f32 %v216, %v1898
  %v1944 = vmul.f32 %v217, %v1900
  %v1945 = vmul.f32 %v218, %v1902
  %v1946 = vmul.f32 %v219, %v1904
  %v1947 = vmul.f32 %v220, %v1906
  %v1948 = vmul.f32 %v221, %v1908
  %v1949 = vmul.f32 %v222, %v1910
  %v1950 = vmul.f32 %v223, %v1912
  %v1951 = vmul.f32 %v224, %v1914
  %v1952 = vmul.f32 %v225, %v1916
  %v1953 = vmul.f32 %v226, %v1918
  %v1954 = vmul.f32 %v227, %v1920
  %v1955 = vmul.f32 %v228, %v1922
  %v1956 = vmul.f32 %v229, %v1924
  %v1957 = vadd.f32 %v1523, %v1925
  %v1958 = vadd.f32 %v1524, %v1926
  %v1959 = vadd.f32 %v1525, %v1927
  %v1960 = vadd.f32 %v1526, %v1928
  %v1961 = vadd.f32 %v1527, %v1929
  %v1962 = vadd.f32 %v1528, %v1930
  %v1963 = vadd.f32 %v1529, %v1931
  %v1964 = vadd.f32 %v1530, %v1932
  %v1965 = vadd.f32 %v1531, %v1933
  %v1966 = vadd.f32 %v1532, %v1934
  %v1967 = vadd.f32 %v1533, %v1935
  %v1968 = vadd.f32 %v1534, %v1936
  %v1969 = vadd.f32 %v1535, %v1937
  %v1970 = vadd.f32 %v1536, %v1938
  %v1971 = vadd.f32 %v1537, %v1939
  %v1972 = vadd.f32 %v1538, %v1940
  %v1973 = vadd.f32 %v1539, %v1941
  %v1974 = vadd.f32 %v1540, %v1942
  %v1975 = vadd.f32 %v1541, %v1943
  %v1976 = vadd.f32 %v1542, %v1944
  %v1977 = vadd.f32 %v1543, %v1945
  %v1978 = vadd.f32 %v1544, %v1946
  %v1979 = vadd.f32 %v1545, %v1947
  %v1980 = vadd.f32 %v1546, %v1948
  %v1981 = vadd.f32 %v1547, %v1949
  %v1982 = vadd.f32 %v1548, %v1950
  %v1983 = vadd.f32 %v1549, %v1951
  %v1984 = vadd.f32 %v1550, %v1952
  %v1985 = vadd.f32 %v1551, %v1953
  %v1986 = vadd.f32 %v1552, %v1954
  %v1987 = vadd.f32 %v1553, %v1955
  %v1988 = vadd.f32 %v1554, %v1956
  %s1989 = scalar_lea.vmem %s3, 24
  %v1990 = vld [vmem:[%s1989] sm:$0xf]
  %v1991 = vld [vmem:[%s1989 + $0x4] sm:$0xf]
  %s1992 = scalar_lea.vmem %s4, 3
  %v1993 = vld [vmem:[%s1992] sm:$0x1]
  %v1995 = vlaneseq
  %v1996 = vshrl.u32 %v1995, 7
  %v1997 = vsub.s32 0, %v1996
  %v1998 = vrot.slane %v1993, %v1997
  %v2002 = vunpack.c.l.b16 %v1990
  %v2003 = vunpack.c.l.b16 %v1991
  %v2004 = vpack.c.b16 %v2003, %v2002
  %2006 = vmatprep.subr.bf16.mxu0 0
  %2007 = vmatpush1.bf16.msra.mxu0 %v2004
  %2008 = vmatprep.subr.bf16.mxu0 0
  %2009 = vmatpush1.bf16.msra.mxu0 0
  %2010 = vmatprep.subr.bf16.mxu0 0
  %2011 = vmatpush1.bf16.msra.mxu0 0
  %2012 = vmatprep.subr.bf16.mxu0 0
  %2013 = vmatpush1.bf16.msra.mxu0 0
  %2014 = vmatprep.subr.bf16.mxu0 0
  %2015 = vmatpush1.bf16.msra.mxu0 0
  %2016 = vmatprep.subr.bf16.mxu0 0
  %2017 = vmatpush1.bf16.msra.mxu0 0
  %2018 = vmatprep.subr.bf16.mxu0 0
  %2019 = vmatpush1.bf16.msra.mxu0 0
  %2020 = vmatprep.subr.bf16.mxu0 0
  %2021 = vmatpush1.bf16.msra.mxu0 0
  %2022 = vmatprep.subr.bf16.mxu0 0
  %2023 = vmatpush1.bf16.msra.mxu0 0
  %2024 = vmatprep.subr.bf16.mxu0 0
  %2025 = vmatpush1.bf16.msra.mxu0 0
  %2026 = vmatprep.subr.bf16.mxu0 0
  %2027 = vmatpush1.bf16.msra.mxu0 0
  %2028 = vmatprep.subr.bf16.mxu0 0
  %2029 = vmatpush1.bf16.msra.mxu0 0
  %2030 = vmatprep.subr.bf16.mxu0 0
  %2031 = vmatpush1.bf16.msra.mxu0 0
  %2032 = vmatprep.subr.bf16.mxu0 0
  %2033 = vmatpush1.bf16.msra.mxu0 0
  %2034 = vmatprep.subr.bf16.mxu0 0
  %2035 = vmatpush1.bf16.msra.mxu0 0
  %2036 = vmatprep.subr.bf16.mxu0 0
  %2037 = vmatpush1.bf16.msra.mxu0 0
  %2038 = vmatprep.mubr.bf16.mxu0 0
  %2039 = vmatmul.mubr.bf16.gmra.mrb[0].mxu0 %v689
  %v2040 = vpop.f32.mrb[0].mxu0
  %v2041 = vadd.f32 %v1998, %v2040
  %v2042 = vpop.f32.mrb[0].mxu0
  %v2043 = vpop.f32.mrb[0].mxu0
  %v2044 = vadd.f32 %v1998, %v2043
  %v2045 = vpop.f32.mrb[0].mxu0
  %2046 = vmatprep.mubr.bf16.mxu0 0
  %2047 = vmatmul.mubr.bf16.gmra.mrb[0].mxu0 %v692
  %v2048 = vpop.f32.mrb[0].mxu0
  %v2049 = vadd.f32 %v1998, %v2048
  %v2050 = vpop.f32.mrb[0].mxu0
  %v2051 = vpop.f32.mrb[0].mxu0
  %v2052 = vadd.f32 %v1998, %v2051
  %v2053 = vpop.f32.mrb[0].mxu0
  %2054 = vmatprep.mubr.bf16.mxu0 0
  %2055 = vmatmul.mubr.bf16.gmra.mrb[0].mxu0 %v695
  %v2056 = vpop.f32.mrb[0].mxu0
  %v2057 = vadd.f32 %v1998, %v2056
  %v2058 = vpop.f32.mrb[0].mxu0
  %v2059 = vpop.f32.mrb[0].mxu0
  %v2060 = vadd.f32 %v1998, %v2059
  %v2061 = vpop.f32.mrb[0].mxu0
  %2062 = vmatprep.mubr.bf16.mxu0 0
  %2063 = vmatmul.mubr.bf16.gmra.mrb[0].mxu0 %v698
  %v2064 = vpop.f32.mrb[0].mxu0
  %v2065 = vadd.f32 %v1998, %v2064
  %v2066 = vpop.f32.mrb[0].mxu0
  %v2067 = vpop.f32.mrb[0].mxu0
  %v2068 = vadd.f32 %v1998, %v2067
  %v2069 = vpop.f32.mrb[0].mxu0
  %2070 = vmatprep.mubr.bf16.mxu0 0
  %2071 = vmatmul.mubr.bf16.gmra.mrb[0].mxu0 %v701
  %v2072 = vpop.f32.mrb[0].mxu0
  %v2073 = vadd.f32 %v1998, %v2072
  %v2074 = vpop.f32.mrb[0].mxu0
  %v2075 = vpop.f32.mrb[0].mxu0
  %v2076 = vadd.f32 %v1998, %v2075
  %v2077 = vpop.f32.mrb[0].mxu0
  %2078 = vmatprep.mubr.bf16.mxu0 0
  %2079 = vmatmul.mubr.bf16.gmra.mrb[0].mxu0 %v704
  %v2080 = vpop.f32.mrb[0].mxu0
  %v2081 = vadd.f32 %v1998, %v2080
  %v2082 = vpop.f32.mrb[0].mxu0
  %v2083 = vpop.f32.mrb[0].mxu0
  %v2084 = vadd.f32 %v1998, %v2083
  %v2085 = vpop.f32.mrb[0].mxu0
  %2086 = vmatprep.mubr.bf16.mxu0 0
  %2087 = vmatmul.mubr.bf16.gmra.mrb[0].mxu0 %v707
  %v2088 = vpop.f32.mrb[0].mxu0
  %v2089 = vadd.f32 %v1998, %v2088
  %v2090 = vpop.f32.mrb[0].mxu0
  %v2091 = vpop.f32.mrb[0].mxu0
  %v2092 = vadd.f32 %v1998, %v2091
  %v2093 = vpop.f32.mrb[0].mxu0
  %2094 = vmatprep.mubr.bf16.mxu0 0
  %2095 = vmatmul.mubr.bf16.gmra.mrb[0].mxu0 %v710
  %v2096 = vpop.f32.mrb[0].mxu0
  %v2097 = vadd.f32 %v1998, %v2096
  %v2098 = vpop.f32.mrb[0].mxu0
  %v2099 = vpop.f32.mrb[0].mxu0
  %v2100 = vadd.f32 %v1998, %v2099
  %v2101 = vpop.f32.mrb[0].mxu0
  %2102 = vmatprep.mubr.bf16.mxu0 0
  %2103 = vmatmul.mubr.bf16.gmra.mrb[0].mxu0 %v713
  %v2104 = vpop.f32.mrb[0].mxu0
  %v2105 = vadd.f32 %v1998, %v2104
  %v2106 = vpop.f32.mrb[0].mxu0
  %v2107 = vpop.f32.mrb[0].mxu0
  %v2108 = vadd.f32 %v1998, %v2107
  %v2109 = vpop.f32.mrb[0].mxu0
  %2110 = vmatprep.mubr.bf16.mxu0 0
  %2111 = vmatmul.mubr.bf16.gmra.mrb[0].mxu0 %v716
  %v2112 = vpop.f32.mrb[0].mxu0
  %v2113 = vadd.f32 %v1998, %v2112
  %v2114 = vpop.f32.mrb[0].mxu0
  %v2115 = vpop.f32.mrb[0].mxu0
  %v2116 = vadd.f32 %v1998, %v2115
  %v2117 = vpop.f32.mrb[0].mxu0
  %2118 = vmatprep.mubr.bf16.mxu0 0
  %2119 = vmatmul.mubr.bf16.gmra.mrb[0].mxu0 %v719
  %v2120 = vpop.f32.mrb[0].mxu0
  %v2121 = vadd.f32 %v1998, %v2120
  %v2122 = vpop.f32.mrb[0].mxu0
  %v2123 = vpop.f32.mrb[0].mxu0
  %v2124 = vadd.f32 %v1998, %v2123
  %v2125 = vpop.f32.mrb[0].mxu0
  %2126 = vmatprep.mubr.bf16.mxu0 0
  %2127 = vmatmul.mubr.bf16.gmra.mrb[0].mxu0 %v722
  %v2128 = vpop.f32.mrb[0].mxu0
  %v2129 = vadd.f32 %v1998, %v2128
  %v2130 = vpop.f32.mrb[0].mxu0
  %v2131 = vpop.f32.mrb[0].mxu0
  %v2132 = vadd.f32 %v1998, %v2131
  %v2133 = vpop.f32.mrb[0].mxu0
  %2134 = vmatprep.mubr.bf16.mxu0 0
  %2135 = vmatmul.mubr.bf16.gmra.mrb[0].mxu0 %v725
  %v2136 = vpop.f32.mrb[0].mxu0
  %v2137 = vadd.f32 %v1998, %v2136
  %v2138 = vpop.f32.mrb[0].mxu0
  %v2139 = vpop.f32.mrb[0].mxu0
  %v2140 = vadd.f32 %v1998, %v2139
  %v2141 = vpop.f32.mrb[0].mxu0
  %2142 = vmatprep.mubr.bf16.mxu0 0
  %2143 = vmatmul.mubr.bf16.gmra.mrb[0].mxu0 %v728
  %v2144 = vpop.f32.mrb[0].mxu0
  %v2145 = vadd.f32 %v1998, %v2144
  %v2146 = vpop.f32.mrb[0].mxu0
  %v2147 = vpop.f32.mrb[0].mxu0
  %v2148 = vadd.f32 %v1998, %v2147
  %v2149 = vpop.f32.mrb[0].mxu0
  %2150 = vmatprep.mubr.bf16.mxu0 0
  %2151 = vmatmul.mubr.bf16.gmra.mrb[0].mxu0 %v731
  %v2152 = vpop.f32.mrb[0].mxu0
  %v2153 = vadd.f32 %v1998, %v2152
  %v2154 = vpop.f32.mrb[0].mxu0
  %v2155 = vpop.f32.mrb[0].mxu0
  %v2156 = vadd.f32 %v1998, %v2155
  %v2157 = vpop.f32.mrb[0].mxu0
  %2158 = vmatprep.mubr.bf16.mxu0 0
  %2159 = vmatmul.mubr.bf16.gmra.mrb[0].mxu0 %v734
  %v2160 = vpop.f32.mrb[0].mxu0
  %v2161 = vadd.f32 %v1998, %v2160
  %v2162 = vpop.f32.mrb[0].mxu0
  %v2163 = vpop.f32.mrb[0].mxu0
  %v2164 = vadd.f32 %v1998, %v2163
  %v2165 = vpop.f32.mrb[0].mxu0
  %2166 = vdwg.mxu0
  %v2167 = vxor.u32 %v2041, 2147483648
  %v2168 = vxor.u32 %v2044, 2147483648
  %v2169 = vxor.u32 %v2049, 2147483648
  %v2170 = vxor.u32 %v2052, 2147483648
  %v2171 = vxor.u32 %v2057, 2147483648
  %v2172 = vxor.u32 %v2060, 2147483648
  %v2173 = vxor.u32 %v2065, 2147483648
  %v2174 = vxor.u32 %v2068, 2147483648
  %v2175 = vxor.u32 %v2073, 2147483648
  %v2176 = vxor.u32 %v2076, 2147483648
  %v2177 = vxor.u32 %v2081, 2147483648
  %v2178 = vxor.u32 %v2084, 2147483648
  %v2179 = vxor.u32 %v2089, 2147483648
  %v2180 = vxor.u32 %v2092, 2147483648
  %v2181 = vxor.u32 %v2097, 2147483648
  %v2182 = vxor.u32 %v2100, 2147483648
  %v2183 = vxor.u32 %v2105, 2147483648
  %v2184 = vxor.u32 %v2108, 2147483648
  %v2185 = vxor.u32 %v2113, 2147483648
  %v2186 = vxor.u32 %v2116, 2147483648
  %v2187 = vxor.u32 %v2121, 2147483648
  %v2188 = vxor.u32 %v2124, 2147483648
  %v2189 = vxor.u32 %v2129, 2147483648
  %v2190 = vxor.u32 %v2132, 2147483648
  %v2191 = vxor.u32 %v2137, 2147483648
  %v2192 = vxor.u32 %v2140, 2147483648
  %v2193 = vxor.u32 %v2145, 2147483648
  %v2194 = vxor.u32 %v2148, 2147483648
  %v2195 = vxor.u32 %v2153, 2147483648
  %v2196 = vxor.u32 %v2156, 2147483648
  %v2197 = vxor.u32 %v2161, 2147483648
  %v2198 = vxor.u32 %v2164, 2147483648
  %v2199 = vmul.f32 %v2167, 1.442695
  %v2200 = vpow.pop %v2199
  %v2201 = vmul.f32 %v2168, 1.442695
  %v2202 = vpow.pop %v2201
  %v2203 = vmul.f32 %v2169, 1.442695
  %v2204 = vpow.pop %v2203
  %v2205 = vmul.f32 %v2170, 1.442695
  %v2206 = vpow.pop %v2205
  %v2207 = vmul.f32 %v2171, 1.442695
  %v2208 = vpow.pop %v2207
  %v2209 = vmul.f32 %v2172, 1.442695
  %v2210 = vpow.pop %v2209
  %v2211 = vmul.f32 %v2173, 1.442695
  %v2212 = vpow.pop %v2211
  %v2213 = vmul.f32 %v2174, 1.442695
  %v2214 = vpow.pop %v2213
  %v2215 = vmul.f32 %v2175, 1.442695
  %v2216 = vpow.pop %v2215
  %v2217 = vmul.f32 %v2176, 1.442695
  %v2218 = vpow.pop %v2217
  %v2219 = vmul.f32 %v2177, 1.442695
  %v2220 = vpow.pop %v2219
  %v2221 = vmul.f32 %v2178, 1.442695
  %v2222 = vpow.pop %v2221
  %v2223 = vmul.f32 %v2179, 1.442695
  %v2224 = vpow.pop %v2223
  %v2225 = vmul.f32 %v2180, 1.442695
  %v2226 = vpow.pop %v2225
  %v2227 = vmul.f32 %v2181, 1.442695
  %v2228 = vpow.pop %v2227
  %v2229 = vmul.f32 %v2182, 1.442695
  %v2230 = vpow.pop %v2229
  %v2231 = vmul.f32 %v2183, 1.442695
  %v2232 = vpow.pop %v2231
  %v2233 = vmul.f32 %v2184, 1.442695
  %v2234 = vpow.pop %v2233
  %v2235 = vmul.f32 %v2185, 1.442695
  %v2236 = vpow.pop %v2235
  %v2237 = vmul.f32 %v2186, 1.442695
  %v2238 = vpow.pop %v2237
  %v2239 = vmul.f32 %v2187, 1.442695
  %v2240 = vpow.pop %v2239
  %v2241 = vmul.f32 %v2188, 1.442695
  %v2242 = vpow.pop %v2241
  %v2243 = vmul.f32 %v2189, 1.442695
  %v2244 = vpow.pop %v2243
  %v2245 = vmul.f32 %v2190, 1.442695
  %v2246 = vpow.pop %v2245
  %v2247 = vmul.f32 %v2191, 1.442695
  %v2248 = vpow.pop %v2247
  %v2249 = vmul.f32 %v2192, 1.442695
  %v2250 = vpow.pop %v2249
  %v2251 = vmul.f32 %v2193, 1.442695
  %v2252 = vpow.pop %v2251
  %v2253 = vmul.f32 %v2194, 1.442695
  %v2254 = vpow.pop %v2253
  %v2255 = vmul.f32 %v2195, 1.442695
  %v2256 = vpow.pop %v2255
  %v2257 = vmul.f32 %v2196, 1.442695
  %v2258 = vpow.pop %v2257
  %v2259 = vmul.f32 %v2197, 1.442695
  %v2260 = vpow.pop %v2259
  %v2261 = vmul.f32 %v2198, 1.442695
  %v2262 = vpow.pop %v2261
  %v2263 = vadd.f32 %v2200, 1.0
  %v2264 = vadd.f32 %v2202, 1.0
  %v2265 = vadd.f32 %v2204, 1.0
  %v2266 = vadd.f32 %v2206, 1.0
  %v2267 = vadd.f32 %v2208, 1.0
  %v2268 = vadd.f32 %v2210, 1.0
  %v2269 = vadd.f32 %v2212, 1.0
  %v2270 = vadd.f32 %v2214, 1.0
  %v2271 = vadd.f32 %v2216, 1.0
  %v2272 = vadd.f32 %v2218, 1.0
  %v2273 = vadd.f32 %v2220, 1.0
  %v2274 = vadd.f32 %v2222, 1.0
  %v2275 = vadd.f32 %v2224, 1.0
  %v2276 = vadd.f32 %v2226, 1.0
  %v2277 = vadd.f32 %v2228, 1.0
  %v2278 = vadd.f32 %v2230, 1.0
  %v2279 = vadd.f32 %v2232, 1.0
  %v2280 = vadd.f32 %v2234, 1.0
  %v2281 = vadd.f32 %v2236, 1.0
  %v2282 = vadd.f32 %v2238, 1.0
  %v2283 = vadd.f32 %v2240, 1.0
  %v2284 = vadd.f32 %v2242, 1.0
  %v2285 = vadd.f32 %v2244, 1.0
  %v2286 = vadd.f32 %v2246, 1.0
  %v2287 = vadd.f32 %v2248, 1.0
  %v2288 = vadd.f32 %v2250, 1.0
  %v2289 = vadd.f32 %v2252, 1.0
  %v2290 = vadd.f32 %v2254, 1.0
  %v2291 = vadd.f32 %v2256, 1.0
  %v2292 = vadd.f32 %v2258, 1.0
  %v2293 = vadd.f32 %v2260, 1.0
  %v2294 = vadd.f32 %v2262, 1.0
  %v2295 = vrcp.pop %v2263
  %v2296 = vmul.f32 1.0, %v2295
  %v2297 = vrcp.pop %v2264
  %v2298 = vmul.f32 1.0, %v2297
  %v2299 = vrcp.pop %v2265
  %v2300 = vmul.f32 1.0, %v2299
  %v2301 = vrcp.pop %v2266
  %v2302 = vmul.f32 1.0, %v2301
  %v2303 = vrcp.pop %v2267
  %v2304 = vmul.f32 1.0, %v2303
  %v2305 = vrcp.pop %v2268
  %v2306 = vmul.f32 1.0, %v2305
  %v2307 = vrcp.pop %v2269
  %v2308 = vmul.f32 1.0, %v2307
  %v2309 = vrcp.pop %v2270
  %v2310 = vmul.f32 1.0, %v2309
  %v2311 = vrcp.pop %v2271
  %v2312 = vmul.f32 1.0, %v2311
  %v2313 = vrcp.pop %v2272
  %v2314 = vmul.f32 1.0, %v2313
  %v2315 = vrcp.pop %v2273
  %v2316 = vmul.f32 1.0, %v2315
  %v2317 = vrcp.pop %v2274
  %v2318 = vmul.f32 1.0, %v2317
  %v2319 = vrcp.pop %v2275
  %v2320 = vmul.f32 1.0, %v2319
  %v2321 = vrcp.pop %v2276
  %v2322 = vmul.f32 1.0, %v2321
  %v2323 = vrcp.pop %v2277
  %v2324 = vmul.f32 1.0, %v2323
  %v2325 = vrcp.pop %v2278
  %v2326 = vmul.f32 1.0, %v2325
  %v2327 = vrcp.pop %v2279
  %v2328 = vmul.f32 1.0, %v2327
  %v2329 = vrcp.pop %v2280
  %v2330 = vmul.f32 1.0, %v2329
  %v2331 = vrcp.pop %v2281
  %v2332 = vmul.f32 1.0, %v2331
  %v2333 = vrcp.pop %v2282
  %v2334 = vmul.f32 1.0, %v2333
  %v2335 = vrcp.pop %v2283
  %v2336 = vmul.f32 1.0, %v2335
  %v2337 = vrcp.pop %v2284
  %v2338 = vmul.f32 1.0, %v2337
  %v2339 = vrcp.pop %v2285
  %v2340 = vmul.f32 1.0, %v2339
  %v2341 = vrcp.pop %v2286
  %v2342 = vmul.f32 1.0, %v2341
  %v2343 = vrcp.pop %v2287
  %v2344 = vmul.f32 1.0, %v2343
  %v2345 = vrcp.pop %v2288
  %v2346 = vmul.f32 1.0, %v2345
  %v2347 = vrcp.pop %v2289
  %v2348 = vmul.f32 1.0, %v2347
  %v2349 = vrcp.pop %v2290
  %v2350 = vmul.f32 1.0, %v2349
  %v2351 = vrcp.pop %v2291
  %v2352 = vmul.f32 1.0, %v2351
  %v2353 = vrcp.pop %v2292
  %v2354 = vmul.f32 1.0, %v2353
  %v2355 = vrcp.pop %v2293
  %v2356 = vmul.f32 1.0, %v2355
  %v2357 = vrcp.pop %v2294
  %v2358 = vmul.f32 1.0, %v2357
  %v2359 = vmul.f32 %v263, %v2296
  %v2360 = vmul.f32 %v264, %v2298
  %v2361 = vmul.f32 %v265, %v2300
  %v2362 = vmul.f32 %v266, %v2302
  %v2363 = vmul.f32 %v267, %v2304
  %v2364 = vmul.f32 %v268, %v2306
  %v2365 = vmul.f32 %v269, %v2308
  %v2366 = vmul.f32 %v270, %v2310
  %v2367 = vmul.f32 %v271, %v2312
  %v2368 = vmul.f32 %v272, %v2314
  %v2369 = vmul.f32 %v273, %v2316
  %v2370 = vmul.f32 %v274, %v2318
  %v2371 = vmul.f32 %v275, %v2320
  %v2372 = vmul.f32 %v276, %v2322
  %v2373 = vmul.f32 %v277, %v2324
  %v2374 = vmul.f32 %v278, %v2326
  %v2375 = vmul.f32 %v279, %v2328
  %v2376 = vmul.f32 %v280, %v2330
  %v2377 = vmul.f32 %v281, %v2332
  %v2378 = vmul.f32 %v282, %v2334
  %v2379 = vmul.f32 %v283, %v2336
  %v2380 = vmul.f32 %v284, %v2338
  %v2381 = vmul.f32 %v285, %v2340
  %v2382 = vmul.f32 %v286, %v2342
  %v2383 = vmul.f32 %v287, %v2344
  %v2384 = vmul.f32 %v288, %v2346
  %v2385 = vmul.f32 %v289, %v2348
  %v2386 = vmul.f32 %v290, %v2350
  %v2387 = vmul.f32 %v291, %v2352
  %v2388 = vmul.f32 %v292, %v2354
  %v2389 = vmul.f32 %v293, %v2356
  %v2390 = vmul.f32 %v294, %v2358
  %v2391 = vadd.f32 %v1957, %v2359
  %v2392 = vadd.f32 %v1958, %v2360
  %v2393 = vadd.f32 %v1959, %v2361
  %v2394 = vadd.f32 %v1960, %v2362
  %v2395 = vadd.f32 %v1961, %v2363
  %v2396 = vadd.f32 %v1962, %v2364
  %v2397 = vadd.f32 %v1963, %v2365
  %v2398 = vadd.f32 %v1964, %v2366
  %v2399 = vadd.f32 %v1965, %v2367
  %v2400 = vadd.f32 %v1966, %v2368
  %v2401 = vadd.f32 %v1967, %v2369
  %v2402 = vadd.f32 %v1968, %v2370
  %v2403 = vadd.f32 %v1969, %v2371
  %v2404 = vadd.f32 %v1970, %v2372
  %v2405 = vadd.f32 %v1971, %v2373
  %v2406 = vadd.f32 %v1972, %v2374
  %v2407 = vadd.f32 %v1973, %v2375
  %v2408 = vadd.f32 %v1974, %v2376
  %v2409 = vadd.f32 %v1975, %v2377
  %v2410 = vadd.f32 %v1976, %v2378
  %v2411 = vadd.f32 %v1977, %v2379
  %v2412 = vadd.f32 %v1978, %v2380
  %v2413 = vadd.f32 %v1979, %v2381
  %v2414 = vadd.f32 %v1980, %v2382
  %v2415 = vadd.f32 %v1981, %v2383
  %v2416 = vadd.f32 %v1982, %v2384
  %v2417 = vadd.f32 %v1983, %v2385
  %v2418 = vadd.f32 %v1984, %v2386
  %v2419 = vadd.f32 %v1985, %v2387
  %v2420 = vadd.f32 %v1986, %v2388
  %v2421 = vadd.f32 %v1987, %v2389
  %v2422 = vadd.f32 %v1988, %v2390
  %v2423 = vpack.c.bf16 %v2392, %v2391
  %v2424 = vpack.c.bf16 %v2394, %v2393
  %v2425 = vpack.c.bf16 %v2396, %v2395
  %v2426 = vpack.c.bf16 %v2398, %v2397
  %v2427 = vpack.c.bf16 %v2400, %v2399
  %v2428 = vpack.c.bf16 %v2402, %v2401
  %v2429 = vpack.c.bf16 %v2404, %v2403
  %v2430 = vpack.c.bf16 %v2406, %v2405
  %v2431 = vpack.c.bf16 %v2408, %v2407
  %v2432 = vpack.c.bf16 %v2410, %v2409
  %v2433 = vpack.c.bf16 %v2412, %v2411
  %v2434 = vpack.c.bf16 %v2414, %v2413
  %v2435 = vpack.c.bf16 %v2416, %v2415
  %v2436 = vpack.c.bf16 %v2418, %v2417
  %v2437 = vpack.c.bf16 %v2420, %v2419
  %v2438 = vpack.c.bf16 %v2422, %v2421
  %v2439 = vld [vmem:[%s5] sm:$0xf]
  %v2440 = vld [vmem:[%s5 + $0x4] sm:$0xf]
  %v2443 = vunpack.c.l.b16 %v2439
  %v2444 = vunpack.c.l.b16 %v2440
  %v2445 = vpack.c.b16 %v2444, %v2443
  %v2448 = vsel %vm415, %v2423, 0
  %v2451 = vsel %vm415, %v2424, 0
  %v2454 = vsel %vm415, %v2425, 0
  %v2457 = vsel %vm415, %v2426, 0
  %v2460 = vsel %vm415, %v2427, 0
  %v2463 = vsel %vm415, %v2428, 0
  %v2466 = vsel %vm415, %v2429, 0
  %v2469 = vsel %vm415, %v2430, 0
  %v2472 = vsel %vm415, %v2431, 0
  %v2475 = vsel %vm415, %v2432, 0
  %v2478 = vsel %vm415, %v2433, 0
  %v2481 = vsel %vm415, %v2434, 0
  %v2484 = vsel %vm415, %v2435, 0
  %v2487 = vsel %vm415, %v2436, 0
  %v2490 = vsel %vm415, %v2437, 0
  %v2493 = vsel %vm415, %v2438, 0
  %2495 = vmatprep.subr.bf16.mxu0 0
  %2496 = vmatpush1.bf16.msra.mxu0 %v2445
  %2497 = vmatprep.subr.bf16.mxu0 0
  %2498 = vmatpush1.bf16.msra.mxu0 0
  %2499 = vmatprep.subr.bf16.mxu0 0
  %2500 = vmatpush1.bf16.msra.mxu0 0
  %2501 = vmatprep.subr.bf16.mxu0 0
  %2502 = vmatpush1.bf16.msra.mxu0 0
  %2503 = vmatprep.subr.bf16.mxu0 0
  %2504 = vmatpush1.bf16.msra.mxu0 0
  %2505 = vmatprep.subr.bf16.mxu0 0
  %2506 = vmatpush1.bf16.msra.mxu0 0
  %2507 = vmatprep.subr.bf16.mxu0 0
  %2508 = vmatpush1.bf16.msra.mxu0 0
  %2509 = vmatprep.subr.bf16.mxu0 0
  %2510 = vmatpush1.bf16.msra.mxu0 0
  %2511 = vmatprep.subr.bf16.mxu0 0
  %2512 = vmatpush1.bf16.msra.mxu0 0
  %2513 = vmatprep.subr.bf16.mxu0 0
  %2514 = vmatpush1.bf16.msra.mxu0 0
  %2515 = vmatprep.subr.bf16.mxu0 0
  %2516 = vmatpush1.bf16.msra.mxu0 0
  %2517 = vmatprep.subr.bf16.mxu0 0
  %2518 = vmatpush1.bf16.msra.mxu0 0
  %2519 = vmatprep.subr.bf16.mxu0 0
  %2520 = vmatpush1.bf16.msra.mxu0 0
  %2521 = vmatprep.subr.bf16.mxu0 0
  %2522 = vmatpush1.bf16.msra.mxu0 0
  %2523 = vmatprep.subr.bf16.mxu0 0
  %2524 = vmatpush1.bf16.msra.mxu0 0
  %2525 = vmatprep.subr.bf16.mxu0 0
  %2526 = vmatpush1.bf16.msra.mxu0 0
  %2527 = vmatprep.mubr.bf16.mxu0 0
  %2528 = vmatmul.mubr.bf16.gmra.mrb[0].mxu0 %v2448
  %v2529 = vpop.f32.mrb[0].mxu0
  %v2530 = vadd.f32 0.0, %v2529
  %v2531 = vpop.f32.mrb[0].mxu0
  %v2532 = vpop.f32.mrb[0].mxu0
  %v2533 = vadd.f32 0.0, %v2532
  %v2534 = vpop.f32.mrb[0].mxu0
  %2535 = vmatprep.mubr.bf16.mxu0 0
  %2536 = vmatmul.mubr.bf16.gmra.mrb[0].mxu0 %v2451
  %v2537 = vpop.f32.mrb[0].mxu0
  %v2538 = vadd.f32 0.0, %v2537
  %v2539 = vpop.f32.mrb[0].mxu0
  %v2540 = vpop.f32.mrb[0].mxu0
  %v2541 = vadd.f32 0.0, %v2540
  %v2542 = vpop.f32.mrb[0].mxu0
  %2543 = vmatprep.mubr.bf16.mxu0 0
  %2544 = vmatmul.mubr.bf16.gmra.mrb[0].mxu0 %v2454
  %v2545 = vpop.f32.mrb[0].mxu0
  %v2546 = vadd.f32 0.0, %v2545
  %v2547 = vpop.f32.mrb[0].mxu0
  %v2548 = vpop.f32.mrb[0].mxu0
  %v2549 = vadd.f32 0.0, %v2548
  %v2550 = vpop.f32.mrb[0].mxu0
  %2551 = vmatprep.mubr.bf16.mxu0 0
  %2552 = vmatmul.mubr.bf16.gmra.mrb[0].mxu0 %v2457
  %v2553 = vpop.f32.mrb[0].mxu0
  %v2554 = vadd.f32 0.0, %v2553
  %v2555 = vpop.f32.mrb[0].mxu0
  %v2556 = vpop.f32.mrb[0].mxu0
  %v2557 = vadd.f32 0.0, %v2556
  %v2558 = vpop.f32.mrb[0].mxu0
  %2559 = vmatprep.mubr.bf16.mxu0 0
  %2560 = vmatmul.mubr.bf16.gmra.mrb[0].mxu0 %v2460
  %v2561 = vpop.f32.mrb[0].mxu0
  %v2562 = vadd.f32 0.0, %v2561
  %v2563 = vpop.f32.mrb[0].mxu0
  %v2564 = vpop.f32.mrb[0].mxu0
  %v2565 = vadd.f32 0.0, %v2564
  %v2566 = vpop.f32.mrb[0].mxu0
  %2567 = vmatprep.mubr.bf16.mxu0 0
  %2568 = vmatmul.mubr.bf16.gmra.mrb[0].mxu0 %v2463
  %v2569 = vpop.f32.mrb[0].mxu0
  %v2570 = vadd.f32 0.0, %v2569
  %v2571 = vpop.f32.mrb[0].mxu0
  %v2572 = vpop.f32.mrb[0].mxu0
  %v2573 = vadd.f32 0.0, %v2572
  %v2574 = vpop.f32.mrb[0].mxu0
  %2575 = vmatprep.mubr.bf16.mxu0 0
  %2576 = vmatmul.mubr.bf16.gmra.mrb[0].mxu0 %v2466
  %v2577 = vpop.f32.mrb[0].mxu0
  %v2578 = vadd.f32 0.0, %v2577
  %v2579 = vpop.f32.mrb[0].mxu0
  %v2580 = vpop.f32.mrb[0].mxu0
  %v2581 = vadd.f32 0.0, %v2580
  %v2582 = vpop.f32.mrb[0].mxu0
  %2583 = vmatprep.mubr.bf16.mxu0 0
  %2584 = vmatmul.mubr.bf16.gmra.mrb[0].mxu0 %v2469
  %v2585 = vpop.f32.mrb[0].mxu0
  %v2586 = vadd.f32 0.0, %v2585
  %v2587 = vpop.f32.mrb[0].mxu0
  %v2588 = vpop.f32.mrb[0].mxu0
  %v2589 = vadd.f32 0.0, %v2588
  %v2590 = vpop.f32.mrb[0].mxu0
  %2591 = vmatprep.mubr.bf16.mxu0 0
  %2592 = vmatmul.mubr.bf16.gmra.mrb[0].mxu0 %v2472
  %v2593 = vpop.f32.mrb[0].mxu0
  %v2594 = vadd.f32 0.0, %v2593
  %v2595 = vpop.f32.mrb[0].mxu0
  %v2596 = vpop.f32.mrb[0].mxu0
  %v2597 = vadd.f32 0.0, %v2596
  %v2598 = vpop.f32.mrb[0].mxu0
  %2599 = vmatprep.mubr.bf16.mxu0 0
  %2600 = vmatmul.mubr.bf16.gmra.mrb[0].mxu0 %v2475
  %v2601 = vpop.f32.mrb[0].mxu0
  %v2602 = vadd.f32 0.0, %v2601
  %v2603 = vpop.f32.mrb[0].mxu0
  %v2604 = vpop.f32.mrb[0].mxu0
  %v2605 = vadd.f32 0.0, %v2604
  %v2606 = vpop.f32.mrb[0].mxu0
  %2607 = vmatprep.mubr.bf16.mxu0 0
  %2608 = vmatmul.mubr.bf16.gmra.mrb[0].mxu0 %v2478
  %v2609 = vpop.f32.mrb[0].mxu0
  %v2610 = vadd.f32 0.0, %v2609
  %v2611 = vpop.f32.mrb[0].mxu0
  %v2612 = vpop.f32.mrb[0].mxu0
  %v2613 = vadd.f32 0.0, %v2612
  %v2614 = vpop.f32.mrb[0].mxu0
  %2615 = vmatprep.mubr.bf16.mxu0 0
  %2616 = vmatmul.mubr.bf16.gmra.mrb[0].mxu0 %v2481
  %v2617 = vpop.f32.mrb[0].mxu0
  %v2618 = vadd.f32 0.0, %v2617
  %v2619 = vpop.f32.mrb[0].mxu0
  %v2620 = vpop.f32.mrb[0].mxu0
  %v2621 = vadd.f32 0.0, %v2620
  %v2622 = vpop.f32.mrb[0].mxu0
  %2623 = vmatprep.mubr.bf16.mxu0 0
  %2624 = vmatmul.mubr.bf16.gmra.mrb[0].mxu0 %v2484
  %v2625 = vpop.f32.mrb[0].mxu0
  %v2626 = vadd.f32 0.0, %v2625
  %v2627 = vpop.f32.mrb[0].mxu0
  %v2628 = vpop.f32.mrb[0].mxu0
  %v2629 = vadd.f32 0.0, %v2628
  %v2630 = vpop.f32.mrb[0].mxu0
  %2631 = vmatprep.mubr.bf16.mxu0 0
  %2632 = vmatmul.mubr.bf16.gmra.mrb[0].mxu0 %v2487
  %v2633 = vpop.f32.mrb[0].mxu0
  %v2634 = vadd.f32 0.0, %v2633
  %v2635 = vpop.f32.mrb[0].mxu0
  %v2636 = vpop.f32.mrb[0].mxu0
  %v2637 = vadd.f32 0.0, %v2636
  %v2638 = vpop.f32.mrb[0].mxu0
  %2639 = vmatprep.mubr.bf16.mxu0 0
  %2640 = vmatmul.mubr.bf16.gmra.mrb[0].mxu0 %v2490
  %v2641 = vpop.f32.mrb[0].mxu0
  %v2642 = vadd.f32 0.0, %v2641
  %v2643 = vpop.f32.mrb[0].mxu0
  %v2644 = vpop.f32.mrb[0].mxu0
  %v2645 = vadd.f32 0.0, %v2644
  %v2646 = vpop.f32.mrb[0].mxu0
  %2647 = vmatprep.mubr.bf16.mxu0 0
  %2648 = vmatmul.mubr.bf16.gmra.mrb[0].mxu0 %v2493
  %v2649 = vpop.f32.mrb[0].mxu0
  %v2650 = vadd.f32 0.0, %v2649
  %v2651 = vpop.f32.mrb[0].mxu0
  %v2652 = vpop.f32.mrb[0].mxu0
  %v2653 = vadd.f32 0.0, %v2652
  %v2654 = vpop.f32.mrb[0].mxu0
  %2655 = vdwg.mxu0
  %v2656 = vld [vmem:[%s1] sm:$0xff]
  %v2657 = vld [vmem:[%s1 + $0x8] sm:$0xff]
  %v2658 = vld [vmem:[%s1 + $0x10] sm:$0xff]
  %v2659 = vld [vmem:[%s1 + $0x18] sm:$0xff]
  %v2660 = vld [vmem:[%s1 + $0x20] sm:$0xff]
  %v2661 = vld [vmem:[%s1 + $0x28] sm:$0xff]
  %v2662 = vld [vmem:[%s1 + $0x30] sm:$0xff]
  %v2663 = vld [vmem:[%s1 + $0x38] sm:$0xff]
  %v2664 = vld [vmem:[%s1 + $0x40] sm:$0xff]
  %v2665 = vld [vmem:[%s1 + $0x48] sm:$0xff]
  %v2666 = vld [vmem:[%s1 + $0x50] sm:$0xff]
  %v2667 = vld [vmem:[%s1 + $0x58] sm:$0xff]
  %v2668 = vld [vmem:[%s1 + $0x60] sm:$0xff]
  %v2669 = vld [vmem:[%s1 + $0x68] sm:$0xff]
  %v2670 = vld [vmem:[%s1 + $0x70] sm:$0xff]
  %v2671 = vld [vmem:[%s1 + $0x78] sm:$0xff]
  %v2672 = vld [vmem:[%s1 + $0x80] sm:$0xff]
  %v2673 = vld [vmem:[%s1 + $0x88] sm:$0xff]
  %v2674 = vld [vmem:[%s1 + $0x90] sm:$0xff]
  %v2675 = vld [vmem:[%s1 + $0x98] sm:$0xff]
  %v2676 = vld [vmem:[%s1 + $0xa0] sm:$0xff]
  %v2677 = vld [vmem:[%s1 + $0xa8] sm:$0xff]
  %v2678 = vld [vmem:[%s1 + $0xb0] sm:$0xff]
  %v2679 = vld [vmem:[%s1 + $0xb8] sm:$0xff]
  %v2680 = vld [vmem:[%s1 + $0xc0] sm:$0xff]
  %v2681 = vld [vmem:[%s1 + $0xc8] sm:$0xff]
  %v2682 = vld [vmem:[%s1 + $0xd0] sm:$0xff]
  %v2683 = vld [vmem:[%s1 + $0xd8] sm:$0xff]
  %v2684 = vld [vmem:[%s1 + $0xe0] sm:$0xff]
  %v2685 = vld [vmem:[%s1 + $0xe8] sm:$0xff]
  %v2686 = vld [vmem:[%s1 + $0xf0] sm:$0xff]
  %v2687 = vld [vmem:[%s1 + $0xf8] sm:$0xff]
  %v2688 = vpack.c.bf16 %v2657, %v2656
  %v2689 = vpack.c.bf16 %v2659, %v2658
  %v2690 = vpack.c.bf16 %v2661, %v2660
  %v2691 = vpack.c.bf16 %v2663, %v2662
  %v2692 = vpack.c.bf16 %v2665, %v2664
  %v2693 = vpack.c.bf16 %v2667, %v2666
  %v2694 = vpack.c.bf16 %v2669, %v2668
  %v2695 = vpack.c.bf16 %v2671, %v2670
  %v2696 = vpack.c.bf16 %v2673, %v2672
  %v2697 = vpack.c.bf16 %v2675, %v2674
  %v2698 = vpack.c.bf16 %v2677, %v2676
  %v2699 = vpack.c.bf16 %v2679, %v2678
  %v2700 = vpack.c.bf16 %v2681, %v2680
  %v2701 = vpack.c.bf16 %v2683, %v2682
  %v2702 = vpack.c.bf16 %v2685, %v2684
  %v2703 = vpack.c.bf16 %v2687, %v2686
  %v2704 = vld [vmem:[%s6] sm:$0xf]
  %v2705 = vld [vmem:[%s6 + $0x4] sm:$0xf]
  %v2706 = vld [vmem:[%s6 + $0x8] sm:$0xf]
  %v2707 = vld [vmem:[%s6 + $0xc] sm:$0xf]
  %v2708 = vpack.c.bf16 %v2533, %v2530
  %v2709 = vpack.c.bf16 %v2541, %v2538
  %v2710 = vpack.c.bf16 %v2549, %v2546
  %v2711 = vpack.c.bf16 %v2557, %v2554
  %v2712 = vpack.c.bf16 %v2565, %v2562
  %v2713 = vpack.c.bf16 %v2573, %v2570
  %v2714 = vpack.c.bf16 %v2581, %v2578
  %v2715 = vpack.c.bf16 %v2589, %v2586
  %v2716 = vpack.c.bf16 %v2597, %v2594
  %v2717 = vpack.c.bf16 %v2605, %v2602
  %v2718 = vpack.c.bf16 %v2613, %v2610
  %v2719 = vpack.c.bf16 %v2621, %v2618
  %v2720 = vpack.c.bf16 %v2629, %v2626
  %v2721 = vpack.c.bf16 %v2637, %v2634
  %v2722 = vpack.c.bf16 %v2645, %v2642
  %v2723 = vpack.c.bf16 %v2653, %v2650
  %v2724 = vld [vmem:[%s7] sm:$0xf]
  %v2725 = vld [vmem:[%s7 + $0x4] sm:$0xf]
  %v2726 = vld [vmem:[%s7 + $0x8] sm:$0xf]
  %v2727 = vld [vmem:[%s7 + $0xc] sm:$0xf]
  %v2732 = vunpack.c.l.b16 %v2724
  %v2733 = vunpack.c.l.b16 %v2725
  %v2734 = vunpack.c.l.b16 %v2726
  %v2735 = vunpack.c.l.b16 %v2727
  %v2736 = vpack.c.b16 %v2733, %v2732
  %v2737 = vpack.c.b16 %v2735, %v2734
  %vm2740 = vcmask 261120
  %v2742 = vsel %vm2740, %v2708, 0
  %v2745 = vsel %vm2740, %v2709, 0
  %v2748 = vsel %vm2740, %v2710, 0
  %v2751 = vsel %vm2740, %v2711, 0
  %v2754 = vsel %vm2740, %v2712, 0
  %v2757 = vsel %vm2740, %v2713, 0
  %v2760 = vsel %vm2740, %v2714, 0
  %v2763 = vsel %vm2740, %v2715, 0
  %v2766 = vsel %vm2740, %v2716, 0
  %v2769 = vsel %vm2740, %v2717, 0
  %v2772 = vsel %vm2740, %v2718, 0
  %v2775 = vsel %vm2740, %v2719, 0
  %v2778 = vsel %vm2740, %v2720, 0
  %v2781 = vsel %vm2740, %v2721, 0
  %v2784 = vsel %vm2740, %v2722, 0
  %v2787 = vsel %vm2740, %v2723, 0
  %2789 = vmatprep.subr.bf16.mxu0 0
  %2790 = vmatpush1.bf16.msra.mxu0 %v2736
  %2791 = vmatprep.subr.bf16.mxu0 0
  %2792 = vmatpush1.bf16.msra.mxu0 %v2737
  %2793 = vmatprep.subr.bf16.mxu0 0
  %2794 = vmatpush1.bf16.msra.mxu0 0
  %2795 = vmatprep.subr.bf16.mxu0 0
  %2796 = vmatpush1.bf16.msra.mxu0 0
  %2797 = vmatprep.subr.bf16.mxu0 0
  %2798 = vmatpush1.bf16.msra.mxu0 0
  %2799 = vmatprep.subr.bf16.mxu0 0
  %2800 = vmatpush1.bf16.msra.mxu0 0
  %2801 = vmatprep.subr.bf16.mxu0 0
  %2802 = vmatpush1.bf16.msra.mxu0 0
  %2803 = vmatprep.subr.bf16.mxu0 0
  %2804 = vmatpush1.bf16.msra.mxu0 0
  %2805 = vmatprep.subr.bf16.mxu0 0
  %2806 = vmatpush1.bf16.msra.mxu0 0
  %2807 = vmatprep.subr.bf16.mxu0 0
  %2808 = vmatpush1.bf16.msra.mxu0 0
  %2809 = vmatprep.subr.bf16.mxu0 0
  %2810 = vmatpush1.bf16.msra.mxu0 0
  %2811 = vmatprep.subr.bf16.mxu0 0
  %2812 = vmatpush1.bf16.msra.mxu0 0
  %2813 = vmatprep.subr.bf16.mxu0 0
  %2814 = vmatpush1.bf16.msra.mxu0 0
  %2815 = vmatprep.subr.bf16.mxu0 0
  %2816 = vmatpush1.bf16.msra.mxu0 0
  %2817 = vmatprep.subr.bf16.mxu0 0
  %2818 = vmatpush1.bf16.msra.mxu0 0
  %2819 = vmatprep.subr.bf16.mxu0 0
  %2820 = vmatpush1.bf16.msra.mxu0 0
  %2821 = vmatprep.mubr.bf16.mxu0 0
  %2822 = vmatmul.mubr.bf16.gmra.mrb[0].mxu0 %v2742
  %v2823 = vpop.f32.mrb[0].mxu0
  %v2824 = vadd.f32 0.0, %v2823
  %v2825 = vpop.f32.mrb[0].mxu0
  %v2826 = vpop.f32.mrb[0].mxu0
  %v2827 = vadd.f32 0.0, %v2826
  %v2828 = vpop.f32.mrb[0].mxu0
  %2829 = vmatprep.mubr.bf16.mxu0 0
  %2830 = vmatmul.mubr.bf16.gmra.mrb[0].mxu0 %v2745
  %v2831 = vpop.f32.mrb[0].mxu0
  %v2832 = vadd.f32 0.0, %v2831
  %v2833 = vpop.f32.mrb[0].mxu0
  %v2834 = vpop.f32.mrb[0].mxu0
  %v2835 = vadd.f32 0.0, %v2834
  %v2836 = vpop.f32.mrb[0].mxu0
  %2837 = vmatprep.mubr.bf16.mxu0 0
  %2838 = vmatmul.mubr.bf16.gmra.mrb[0].mxu0 %v2748
  %v2839 = vpop.f32.mrb[0].mxu0
  %v2840 = vadd.f32 0.0, %v2839
  %v2841 = vpop.f32.mrb[0].mxu0
  %v2842 = vpop.f32.mrb[0].mxu0
  %v2843 = vadd.f32 0.0, %v2842
  %v2844 = vpop.f32.mrb[0].mxu0
  %2845 = vmatprep.mubr.bf16.mxu0 0
  %2846 = vmatmul.mubr.bf16.gmra.mrb[0].mxu0 %v2751
  %v2847 = vpop.f32.mrb[0].mxu0
  %v2848 = vadd.f32 0.0, %v2847
  %v2849 = vpop.f32.mrb[0].mxu0
  %v2850 = vpop.f32.mrb[0].mxu0
  %v2851 = vadd.f32 0.0, %v2850
  %v2852 = vpop.f32.mrb[0].mxu0
  %2853 = vmatprep.mubr.bf16.mxu0 0
  %2854 = vmatmul.mubr.bf16.gmra.mrb[0].mxu0 %v2754
  %v2855 = vpop.f32.mrb[0].mxu0
  %v2856 = vadd.f32 0.0, %v2855
  %v2857 = vpop.f32.mrb[0].mxu0
  %v2858 = vpop.f32.mrb[0].mxu0
  %v2859 = vadd.f32 0.0, %v2858
  %v2860 = vpop.f32.mrb[0].mxu0
  %2861 = vmatprep.mubr.bf16.mxu0 0
  %2862 = vmatmul.mubr.bf16.gmra.mrb[0].mxu0 %v2757
  %v2863 = vpop.f32.mrb[0].mxu0
  %v2864 = vadd.f32 0.0, %v2863
  %v2865 = vpop.f32.mrb[0].mxu0
  %v2866 = vpop.f32.mrb[0].mxu0
  %v2867 = vadd.f32 0.0, %v2866
  %v2868 = vpop.f32.mrb[0].mxu0
  %2869 = vmatprep.mubr.bf16.mxu0 0
  %2870 = vmatmul.mubr.bf16.gmra.mrb[0].mxu0 %v2760
  %v2871 = vpop.f32.mrb[0].mxu0
  %v2872 = vadd.f32 0.0, %v2871
  %v2873 = vpop.f32.mrb[0].mxu0
  %v2874 = vpop.f32.mrb[0].mxu0
  %v2875 = vadd.f32 0.0, %v2874
  %v2876 = vpop.f32.mrb[0].mxu0
  %2877 = vmatprep.mubr.bf16.mxu0 0
  %2878 = vmatmul.mubr.bf16.gmra.mrb[0].mxu0 %v2763
  %v2879 = vpop.f32.mrb[0].mxu0
  %v2880 = vadd.f32 0.0, %v2879
  %v2881 = vpop.f32.mrb[0].mxu0
  %v2882 = vpop.f32.mrb[0].mxu0
  %v2883 = vadd.f32 0.0, %v2882
  %v2884 = vpop.f32.mrb[0].mxu0
  %2885 = vmatprep.mubr.bf16.mxu0 0
  %2886 = vmatmul.mubr.bf16.gmra.mrb[0].mxu0 %v2766
  %v2887 = vpop.f32.mrb[0].mxu0
  %v2888 = vadd.f32 0.0, %v2887
  %v2889 = vpop.f32.mrb[0].mxu0
  %v2890 = vpop.f32.mrb[0].mxu0
  %v2891 = vadd.f32 0.0, %v2890
  %v2892 = vpop.f32.mrb[0].mxu0
  %2893 = vmatprep.mubr.bf16.mxu0 0
  %2894 = vmatmul.mubr.bf16.gmra.mrb[0].mxu0 %v2769
  %v2895 = vpop.f32.mrb[0].mxu0
  %v2896 = vadd.f32 0.0, %v2895
  %v2897 = vpop.f32.mrb[0].mxu0
  %v2898 = vpop.f32.mrb[0].mxu0
  %v2899 = vadd.f32 0.0, %v2898
  %v2900 = vpop.f32.mrb[0].mxu0
  %2901 = vmatprep.mubr.bf16.mxu0 0
  %2902 = vmatmul.mubr.bf16.gmra.mrb[0].mxu0 %v2772
  %v2903 = vpop.f32.mrb[0].mxu0
  %v2904 = vadd.f32 0.0, %v2903
  %v2905 = vpop.f32.mrb[0].mxu0
  %v2906 = vpop.f32.mrb[0].mxu0
  %v2907 = vadd.f32 0.0, %v2906
  %v2908 = vpop.f32.mrb[0].mxu0
  %2909 = vmatprep.mubr.bf16.mxu0 0
  %2910 = vmatmul.mubr.bf16.gmra.mrb[0].mxu0 %v2775
  %v2911 = vpop.f32.mrb[0].mxu0
  %v2912 = vadd.f32 0.0, %v2911
  %v2913 = vpop.f32.mrb[0].mxu0
  %v2914 = vpop.f32.mrb[0].mxu0
  %v2915 = vadd.f32 0.0, %v2914
  %v2916 = vpop.f32.mrb[0].mxu0
  %2917 = vmatprep.mubr.bf16.mxu0 0
  %2918 = vmatmul.mubr.bf16.gmra.mrb[0].mxu0 %v2778
  %v2919 = vpop.f32.mrb[0].mxu0
  %v2920 = vadd.f32 0.0, %v2919
  %v2921 = vpop.f32.mrb[0].mxu0
  %v2922 = vpop.f32.mrb[0].mxu0
  %v2923 = vadd.f32 0.0, %v2922
  %v2924 = vpop.f32.mrb[0].mxu0
  %2925 = vmatprep.mubr.bf16.mxu0 0
  %2926 = vmatmul.mubr.bf16.gmra.mrb[0].mxu0 %v2781
  %v2927 = vpop.f32.mrb[0].mxu0
  %v2928 = vadd.f32 0.0, %v2927
  %v2929 = vpop.f32.mrb[0].mxu0
  %v2930 = vpop.f32.mrb[0].mxu0
  %v2931 = vadd.f32 0.0, %v2930
  %v2932 = vpop.f32.mrb[0].mxu0
  %2933 = vmatprep.mubr.bf16.mxu0 0
  %2934 = vmatmul.mubr.bf16.gmra.mrb[0].mxu0 %v2784
  %v2935 = vpop.f32.mrb[0].mxu0
  %v2936 = vadd.f32 0.0, %v2935
  %v2937 = vpop.f32.mrb[0].mxu0
  %v2938 = vpop.f32.mrb[0].mxu0
  %v2939 = vadd.f32 0.0, %v2938
  %v2940 = vpop.f32.mrb[0].mxu0
  %2941 = vmatprep.mubr.bf16.mxu0 0
  %2942 = vmatmul.mubr.bf16.gmra.mrb[0].mxu0 %v2787
  %v2943 = vpop.f32.mrb[0].mxu0
  %v2944 = vadd.f32 0.0, %v2943
  %v2945 = vpop.f32.mrb[0].mxu0
  %v2946 = vpop.f32.mrb[0].mxu0
  %v2947 = vadd.f32 0.0, %v2946
  %v2948 = vpop.f32.mrb[0].mxu0
  %2949 = vdwg.mxu0
  %v2954 = vunpack.c.l.b16 %v2704
  %v2955 = vunpack.c.l.b16 %v2705
  %v2956 = vunpack.c.l.b16 %v2706
  %v2957 = vunpack.c.l.b16 %v2707
  %v2958 = vpack.c.b16 %v2955, %v2954
  %v2959 = vpack.c.b16 %v2957, %v2956
  %v2963 = vsel %vm2740, %v2688, 0
  %v2966 = vsel %vm2740, %v2689, 0
  %v2969 = vsel %vm2740, %v2690, 0
  %v2972 = vsel %vm2740, %v2691, 0
  %v2975 = vsel %vm2740, %v2692, 0
  %v2978 = vsel %vm2740, %v2693, 0
  %v2981 = vsel %vm2740, %v2694, 0
  %v2984 = vsel %vm2740, %v2695, 0
  %v2987 = vsel %vm2740, %v2696, 0
  %v2990 = vsel %vm2740, %v2697, 0
  %v2993 = vsel %vm2740, %v2698, 0
  %v2996 = vsel %vm2740, %v2699, 0
  %v2999 = vsel %vm2740, %v2700, 0
  %v3002 = vsel %vm2740, %v2701, 0
  %v3005 = vsel %vm2740, %v2702, 0
  %v3008 = vsel %vm2740, %v2703, 0
  %3010 = vmatprep.subr.bf16.mxu0 0
  %3011 = vmatpush1.bf16.msra.mxu0 %v2958
  %3012 = vmatprep.subr.bf16.mxu0 0
  %3013 = vmatpush1.bf16.msra.mxu0 %v2959
  %3014 = vmatprep.subr.bf16.mxu0 0
  %3015 = vmatpush1.bf16.msra.mxu0 0
  %3016 = vmatprep.subr.bf16.mxu0 0
  %3017 = vmatpush1.bf16.msra.mxu0 0
  %3018 = vmatprep.subr.bf16.mxu0 0
  %3019 = vmatpush1.bf16.msra.mxu0 0
  %3020 = vmatprep.subr.bf16.mxu0 0
  %3021 = vmatpush1.bf16.msra.mxu0 0
  %3022 = vmatprep.subr.bf16.mxu0 0
  %3023 = vmatpush1.bf16.msra.mxu0 0
  %3024 = vmatprep.subr.bf16.mxu0 0
  %3025 = vmatpush1.bf16.msra.mxu0 0
  %3026 = vmatprep.subr.bf16.mxu0 0
  %3027 = vmatpush1.bf16.msra.mxu0 0
  %3028 = vmatprep.subr.bf16.mxu0 0
  %3029 = vmatpush1.bf16.msra.mxu0 0
  %3030 = vmatprep.subr.bf16.mxu0 0
  %3031 = vmatpush1.bf16.msra.mxu0 0
  %3032 = vmatprep.subr.bf16.mxu0 0
  %3033 = vmatpush1.bf16.msra.mxu0 0
  %3034 = vmatprep.subr.bf16.mxu0 0
  %3035 = vmatpush1.bf16.msra.mxu0 0
  %3036 = vmatprep.subr.bf16.mxu0 0
  %3037 = vmatpush1.bf16.msra.mxu0 0
  %3038 = vmatprep.subr.bf16.mxu0 0
  %3039 = vmatpush1.bf16.msra.mxu0 0
  %3040 = vmatprep.subr.bf16.mxu0 0
  %3041 = vmatpush1.bf16.msra.mxu0 0
  %3042 = vmatprep.mubr.bf16.mxu0 0
  %3043 = vmatmul.mubr.bf16.gmra.mrb[0].mxu0 %v2963
  %v3044 = vpop.f32.mrb[0].mxu0
  %v3045 = vadd.f32 %v2824, %v3044
  %v3046 = vpop.f32.mrb[0].mxu0
  %v3047 = vpop.f32.mrb[0].mxu0
  %v3048 = vadd.f32 %v2827, %v3047
  %v3049 = vpop.f32.mrb[0].mxu0
  %3050 = vmatprep.mubr.bf16.mxu0 0
  %3051 = vmatmul.mubr.bf16.gmra.mrb[0].mxu0 %v2966
  %v3052 = vpop.f32.mrb[0].mxu0
  %v3053 = vadd.f32 %v2832, %v3052
  %v3054 = vpop.f32.mrb[0].mxu0
  %v3055 = vpop.f32.mrb[0].mxu0
  %v3056 = vadd.f32 %v2835, %v3055
  %v3057 = vpop.f32.mrb[0].mxu0
  %3058 = vmatprep.mubr.bf16.mxu0 0
  %3059 = vmatmul.mubr.bf16.gmra.mrb[0].mxu0 %v2969
  %v3060 = vpop.f32.mrb[0].mxu0
  %v3061 = vadd.f32 %v2840, %v3060
  %v3062 = vpop.f32.mrb[0].mxu0
  %v3063 = vpop.f32.mrb[0].mxu0
  %v3064 = vadd.f32 %v2843, %v3063
  %v3065 = vpop.f32.mrb[0].mxu0
  %3066 = vmatprep.mubr.bf16.mxu0 0
  %3067 = vmatmul.mubr.bf16.gmra.mrb[0].mxu0 %v2972
  %v3068 = vpop.f32.mrb[0].mxu0
  %v3069 = vadd.f32 %v2848, %v3068
  %v3070 = vpop.f32.mrb[0].mxu0
  %v3071 = vpop.f32.mrb[0].mxu0
  %v3072 = vadd.f32 %v2851, %v3071
  %v3073 = vpop.f32.mrb[0].mxu0
  %3074 = vmatprep.mubr.bf16.mxu0 0
  %3075 = vmatmul.mubr.bf16.gmra.mrb[0].mxu0 %v2975
  %v3076 = vpop.f32.mrb[0].mxu0
  %v3077 = vadd.f32 %v2856, %v3076
  %v3078 = vpop.f32.mrb[0].mxu0
  %v3079 = vpop.f32.mrb[0].mxu0
  %v3080 = vadd.f32 %v2859, %v3079
  %v3081 = vpop.f32.mrb[0].mxu0
  %3082 = vmatprep.mubr.bf16.mxu0 0
  %3083 = vmatmul.mubr.bf16.gmra.mrb[0].mxu0 %v2978
  %v3084 = vpop.f32.mrb[0].mxu0
  %v3085 = vadd.f32 %v2864, %v3084
  %v3086 = vpop.f32.mrb[0].mxu0
  %v3087 = vpop.f32.mrb[0].mxu0
  %v3088 = vadd.f32 %v2867, %v3087
  %v3089 = vpop.f32.mrb[0].mxu0
  %3090 = vmatprep.mubr.bf16.mxu0 0
  %3091 = vmatmul.mubr.bf16.gmra.mrb[0].mxu0 %v2981
  %v3092 = vpop.f32.mrb[0].mxu0
  %v3093 = vadd.f32 %v2872, %v3092
  %v3094 = vpop.f32.mrb[0].mxu0
  %v3095 = vpop.f32.mrb[0].mxu0
  %v3096 = vadd.f32 %v2875, %v3095
  %v3097 = vpop.f32.mrb[0].mxu0
  %3098 = vmatprep.mubr.bf16.mxu0 0
  %3099 = vmatmul.mubr.bf16.gmra.mrb[0].mxu0 %v2984
  %v3100 = vpop.f32.mrb[0].mxu0
  %v3101 = vadd.f32 %v2880, %v3100
  %v3102 = vpop.f32.mrb[0].mxu0
  %v3103 = vpop.f32.mrb[0].mxu0
  %v3104 = vadd.f32 %v2883, %v3103
  %v3105 = vpop.f32.mrb[0].mxu0
  %3106 = vmatprep.mubr.bf16.mxu0 0
  %3107 = vmatmul.mubr.bf16.gmra.mrb[0].mxu0 %v2987
  %v3108 = vpop.f32.mrb[0].mxu0
  %v3109 = vadd.f32 %v2888, %v3108
  %v3110 = vpop.f32.mrb[0].mxu0
  %v3111 = vpop.f32.mrb[0].mxu0
  %v3112 = vadd.f32 %v2891, %v3111
  %v3113 = vpop.f32.mrb[0].mxu0
  %3114 = vmatprep.mubr.bf16.mxu0 0
  %3115 = vmatmul.mubr.bf16.gmra.mrb[0].mxu0 %v2990
  %v3116 = vpop.f32.mrb[0].mxu0
  %v3117 = vadd.f32 %v2896, %v3116
  %v3118 = vpop.f32.mrb[0].mxu0
  %v3119 = vpop.f32.mrb[0].mxu0
  %v3120 = vadd.f32 %v2899, %v3119
  %v3121 = vpop.f32.mrb[0].mxu0
  %3122 = vmatprep.mubr.bf16.mxu0 0
  %3123 = vmatmul.mubr.bf16.gmra.mrb[0].mxu0 %v2993
  %v3124 = vpop.f32.mrb[0].mxu0
  %v3125 = vadd.f32 %v2904, %v3124
  %v3126 = vpop.f32.mrb[0].mxu0
  %v3127 = vpop.f32.mrb[0].mxu0
  %v3128 = vadd.f32 %v2907, %v3127
  %v3129 = vpop.f32.mrb[0].mxu0
  %3130 = vmatprep.mubr.bf16.mxu0 0
  %3131 = vmatmul.mubr.bf16.gmra.mrb[0].mxu0 %v2996
  %v3132 = vpop.f32.mrb[0].mxu0
  %v3133 = vadd.f32 %v2912, %v3132
  %v3134 = vpop.f32.mrb[0].mxu0
  %v3135 = vpop.f32.mrb[0].mxu0
  %v3136 = vadd.f32 %v2915, %v3135
  %v3137 = vpop.f32.mrb[0].mxu0
  %3138 = vmatprep.mubr.bf16.mxu0 0
  %3139 = vmatmul.mubr.bf16.gmra.mrb[0].mxu0 %v2999
  %v3140 = vpop.f32.mrb[0].mxu0
  %v3141 = vadd.f32 %v2920, %v3140
  %v3142 = vpop.f32.mrb[0].mxu0
  %v3143 = vpop.f32.mrb[0].mxu0
  %v3144 = vadd.f32 %v2923, %v3143
  %v3145 = vpop.f32.mrb[0].mxu0
  %3146 = vmatprep.mubr.bf16.mxu0 0
  %3147 = vmatmul.mubr.bf16.gmra.mrb[0].mxu0 %v3002
  %v3148 = vpop.f32.mrb[0].mxu0
  %v3149 = vadd.f32 %v2928, %v3148
  %v3150 = vpop.f32.mrb[0].mxu0
  %v3151 = vpop.f32.mrb[0].mxu0
  %v3152 = vadd.f32 %v2931, %v3151
  %v3153 = vpop.f32.mrb[0].mxu0
  %3154 = vmatprep.mubr.bf16.mxu0 0
  %3155 = vmatmul.mubr.bf16.gmra.mrb[0].mxu0 %v3005
  %v3156 = vpop.f32.mrb[0].mxu0
  %v3157 = vadd.f32 %v2936, %v3156
  %v3158 = vpop.f32.mrb[0].mxu0
  %v3159 = vpop.f32.mrb[0].mxu0
  %v3160 = vadd.f32 %v2939, %v3159
  %v3161 = vpop.f32.mrb[0].mxu0
  %3162 = vmatprep.mubr.bf16.mxu0 0
  %3163 = vmatmul.mubr.bf16.gmra.mrb[0].mxu0 %v3008
  %v3164 = vpop.f32.mrb[0].mxu0
  %v3165 = vadd.f32 %v2944, %v3164
  %v3166 = vpop.f32.mrb[0].mxu0
  %v3167 = vpop.f32.mrb[0].mxu0
  %v3168 = vadd.f32 %v2947, %v3167
  %v3169 = vpop.f32.mrb[0].mxu0
  %3170 = vdwg.mxu0
  %v3171 = vmax.f32 %v3045, 0.0
  %v3172 = vmax.f32 %v3048, 0.0
  %v3173 = vmax.f32 %v3053, 0.0
  %v3174 = vmax.f32 %v3056, 0.0
  %v3175 = vmax.f32 %v3061, 0.0
  %v3176 = vmax.f32 %v3064, 0.0
  %v3177 = vmax.f32 %v3069, 0.0
  %v3178 = vmax.f32 %v3072, 0.0
  %v3179 = vmax.f32 %v3077, 0.0
  %v3180 = vmax.f32 %v3080, 0.0
  %v3181 = vmax.f32 %v3085, 0.0
  %v3182 = vmax.f32 %v3088, 0.0
  %v3183 = vmax.f32 %v3093, 0.0
  %v3184 = vmax.f32 %v3096, 0.0
  %v3185 = vmax.f32 %v3101, 0.0
  %v3186 = vmax.f32 %v3104, 0.0
  %v3187 = vmax.f32 %v3109, 0.0
  %v3188 = vmax.f32 %v3112, 0.0
  %v3189 = vmax.f32 %v3117, 0.0
  %v3190 = vmax.f32 %v3120, 0.0
  %v3191 = vmax.f32 %v3125, 0.0
  %v3192 = vmax.f32 %v3128, 0.0
  %v3193 = vmax.f32 %v3133, 0.0
  %v3194 = vmax.f32 %v3136, 0.0
  %v3195 = vmax.f32 %v3141, 0.0
  %v3196 = vmax.f32 %v3144, 0.0
  %v3197 = vmax.f32 %v3149, 0.0
  %v3198 = vmax.f32 %v3152, 0.0
  %v3199 = vmax.f32 %v3157, 0.0
  %v3200 = vmax.f32 %v3160, 0.0
  %v3201 = vmax.f32 %v3165, 0.0
  %v3202 = vmax.f32 %v3168, 0.0
  %v3203 = vpack.c.bf16 %v3172, %v3171
  %v3204 = vpack.c.bf16 %v3174, %v3173
  %v3205 = vpack.c.bf16 %v3176, %v3175
  %v3206 = vpack.c.bf16 %v3178, %v3177
  %v3207 = vpack.c.bf16 %v3180, %v3179
  %v3208 = vpack.c.bf16 %v3182, %v3181
  %v3209 = vpack.c.bf16 %v3184, %v3183
  %v3210 = vpack.c.bf16 %v3186, %v3185
  %v3211 = vpack.c.bf16 %v3188, %v3187
  %v3212 = vpack.c.bf16 %v3190, %v3189
  %v3213 = vpack.c.bf16 %v3192, %v3191
  %v3214 = vpack.c.bf16 %v3194, %v3193
  %v3215 = vpack.c.bf16 %v3196, %v3195
  %v3216 = vpack.c.bf16 %v3198, %v3197
  %v3217 = vpack.c.bf16 %v3200, %v3199
  %v3218 = vpack.c.bf16 %v3202, %v3201
  %v3219 = vld [vmem:[%s8] sm:$0xf]
  %v3220 = vld [vmem:[%s8 + $0x4] sm:$0xf]
  %v3221 = vld [vmem:[%s8 + $0x8] sm:$0xf]
  %v3222 = vld [vmem:[%s8 + $0xc] sm:$0xf]
  %v3223 = vld [vmem:[%s9] sm:$0x1]
  %v3225 = vlaneseq
  %v3226 = vshrl.u32 %v3225, 7
  %v3227 = vsub.s32 0, %v3226
  %v3228 = vrot.slane %v3223, %v3227
  %v3234 = vunpack.c.l.b16 %v3219
  %v3235 = vunpack.c.l.b16 %v3220
  %v3236 = vunpack.c.l.b16 %v3221
  %v3237 = vunpack.c.l.b16 %v3222
  %v3238 = vpack.c.b16 %v3235, %v3234
  %v3239 = vpack.c.b16 %v3237, %v3236
  %v3243 = vsel %vm2740, %v3203, 0
  %v3246 = vsel %vm2740, %v3204, 0
  %v3249 = vsel %vm2740, %v3205, 0
  %v3252 = vsel %vm2740, %v3206, 0
  %v3255 = vsel %vm2740, %v3207, 0
  %v3258 = vsel %vm2740, %v3208, 0
  %v3261 = vsel %vm2740, %v3209, 0
  %v3264 = vsel %vm2740, %v3210, 0
  %v3267 = vsel %vm2740, %v3211, 0
  %v3270 = vsel %vm2740, %v3212, 0
  %v3273 = vsel %vm2740, %v3213, 0
  %v3276 = vsel %vm2740, %v3214, 0
  %v3279 = vsel %vm2740, %v3215, 0
  %v3282 = vsel %vm2740, %v3216, 0
  %v3285 = vsel %vm2740, %v3217, 0
  %v3288 = vsel %vm2740, %v3218, 0
  %3290 = vmatprep.subr.bf16.mxu0 0
  %3291 = vmatpush1.bf16.msra.mxu0 %v3238
  %3292 = vmatprep.subr.bf16.mxu0 0
  %3293 = vmatpush1.bf16.msra.mxu0 %v3239
  %3294 = vmatprep.subr.bf16.mxu0 0
  %3295 = vmatpush1.bf16.msra.mxu0 0
  %3296 = vmatprep.subr.bf16.mxu0 0
  %3297 = vmatpush1.bf16.msra.mxu0 0
  %3298 = vmatprep.subr.bf16.mxu0 0
  %3299 = vmatpush1.bf16.msra.mxu0 0
  %3300 = vmatprep.subr.bf16.mxu0 0
  %3301 = vmatpush1.bf16.msra.mxu0 0
  %3302 = vmatprep.subr.bf16.mxu0 0
  %3303 = vmatpush1.bf16.msra.mxu0 0
  %3304 = vmatprep.subr.bf16.mxu0 0
  %3305 = vmatpush1.bf16.msra.mxu0 0
  %3306 = vmatprep.subr.bf16.mxu0 0
  %3307 = vmatpush1.bf16.msra.mxu0 0
  %3308 = vmatprep.subr.bf16.mxu0 0
  %3309 = vmatpush1.bf16.msra.mxu0 0
  %3310 = vmatprep.subr.bf16.mxu0 0
  %3311 = vmatpush1.bf16.msra.mxu0 0
  %3312 = vmatprep.subr.bf16.mxu0 0
  %3313 = vmatpush1.bf16.msra.mxu0 0
  %3314 = vmatprep.subr.bf16.mxu0 0
  %3315 = vmatpush1.bf16.msra.mxu0 0
  %3316 = vmatprep.subr.bf16.mxu0 0
  %3317 = vmatpush1.bf16.msra.mxu0 0
  %3318 = vmatprep.subr.bf16.mxu0 0
  %3319 = vmatpush1.bf16.msra.mxu0 0
  %3320 = vmatprep.subr.bf16.mxu0 0
  %3321 = vmatpush1.bf16.msra.mxu0 0
  %3322 = vmatprep.mubr.bf16.mxu0 0
  %3323 = vmatmul.mubr.bf16.gmra.mrb[0].mxu0 %v3243
  %v3324 = vpop.f32.mrb[0].mxu0
  %v3325 = vadd.f32 %v3228, %v3324
  %v3326 = vpop.f32.mrb[0].mxu0
  %v3327 = vpop.f32.mrb[0].mxu0
  %v3328 = vadd.f32 %v3228, %v3327
  %v3329 = vpop.f32.mrb[0].mxu0
  %3330 = vmatprep.mubr.bf16.mxu0 0
  %3331 = vmatmul.mubr.bf16.gmra.mrb[0].mxu0 %v3246
  %v3332 = vpop.f32.mrb[0].mxu0
  %v3333 = vadd.f32 %v3228, %v3332
  %v3334 = vpop.f32.mrb[0].mxu0
  %v3335 = vpop.f32.mrb[0].mxu0
  %v3336 = vadd.f32 %v3228, %v3335
  %v3337 = vpop.f32.mrb[0].mxu0
  %3338 = vmatprep.mubr.bf16.mxu0 0
  %3339 = vmatmul.mubr.bf16.gmra.mrb[0].mxu0 %v3249
  %v3340 = vpop.f32.mrb[0].mxu0
  %v3341 = vadd.f32 %v3228, %v3340
  %v3342 = vpop.f32.mrb[0].mxu0
  %v3343 = vpop.f32.mrb[0].mxu0
  %v3344 = vadd.f32 %v3228, %v3343
  %v3345 = vpop.f32.mrb[0].mxu0
  %3346 = vmatprep.mubr.bf16.mxu0 0
  %3347 = vmatmul.mubr.bf16.gmra.mrb[0].mxu0 %v3252
  %v3348 = vpop.f32.mrb[0].mxu0
  %v3349 = vadd.f32 %v3228, %v3348
  %v3350 = vpop.f32.mrb[0].mxu0
  %v3351 = vpop.f32.mrb[0].mxu0
  %v3352 = vadd.f32 %v3228, %v3351
  %v3353 = vpop.f32.mrb[0].mxu0
  %3354 = vmatprep.mubr.bf16.mxu0 0
  %3355 = vmatmul.mubr.bf16.gmra.mrb[0].mxu0 %v3255
  %v3356 = vpop.f32.mrb[0].mxu0
  %v3357 = vadd.f32 %v3228, %v3356
  %v3358 = vpop.f32.mrb[0].mxu0
  %v3359 = vpop.f32.mrb[0].mxu0
  %v3360 = vadd.f32 %v3228, %v3359
  %v3361 = vpop.f32.mrb[0].mxu0
  %3362 = vmatprep.mubr.bf16.mxu0 0
  %3363 = vmatmul.mubr.bf16.gmra.mrb[0].mxu0 %v3258
  %v3364 = vpop.f32.mrb[0].mxu0
  %v3365 = vadd.f32 %v3228, %v3364
  %v3366 = vpop.f32.mrb[0].mxu0
  %v3367 = vpop.f32.mrb[0].mxu0
  %v3368 = vadd.f32 %v3228, %v3367
  %v3369 = vpop.f32.mrb[0].mxu0
  %3370 = vmatprep.mubr.bf16.mxu0 0
  %3371 = vmatmul.mubr.bf16.gmra.mrb[0].mxu0 %v3261
  %v3372 = vpop.f32.mrb[0].mxu0
  %v3373 = vadd.f32 %v3228, %v3372
  %v3374 = vpop.f32.mrb[0].mxu0
  %v3375 = vpop.f32.mrb[0].mxu0
  %v3376 = vadd.f32 %v3228, %v3375
  %v3377 = vpop.f32.mrb[0].mxu0
  %3378 = vmatprep.mubr.bf16.mxu0 0
  %3379 = vmatmul.mubr.bf16.gmra.mrb[0].mxu0 %v3264
  %v3380 = vpop.f32.mrb[0].mxu0
  %v3381 = vadd.f32 %v3228, %v3380
  %v3382 = vpop.f32.mrb[0].mxu0
  %v3383 = vpop.f32.mrb[0].mxu0
  %v3384 = vadd.f32 %v3228, %v3383
  %v3385 = vpop.f32.mrb[0].mxu0
  %3386 = vmatprep.mubr.bf16.mxu0 0
  %3387 = vmatmul.mubr.bf16.gmra.mrb[0].mxu0 %v3267
  %v3388 = vpop.f32.mrb[0].mxu0
  %v3389 = vadd.f32 %v3228, %v3388
  %v3390 = vpop.f32.mrb[0].mxu0
  %v3391 = vpop.f32.mrb[0].mxu0
  %v3392 = vadd.f32 %v3228, %v3391
  %v3393 = vpop.f32.mrb[0].mxu0
  %3394 = vmatprep.mubr.bf16.mxu0 0
  %3395 = vmatmul.mubr.bf16.gmra.mrb[0].mxu0 %v3270
  %v3396 = vpop.f32.mrb[0].mxu0
  %v3397 = vadd.f32 %v3228, %v3396
  %v3398 = vpop.f32.mrb[0].mxu0
  %v3399 = vpop.f32.mrb[0].mxu0
  %v3400 = vadd.f32 %v3228, %v3399
  %v3401 = vpop.f32.mrb[0].mxu0
  %3402 = vmatprep.mubr.bf16.mxu0 0
  %3403 = vmatmul.mubr.bf16.gmra.mrb[0].mxu0 %v3273
  %v3404 = vpop.f32.mrb[0].mxu0
  %v3405 = vadd.f32 %v3228, %v3404
  %v3406 = vpop.f32.mrb[0].mxu0
  %v3407 = vpop.f32.mrb[0].mxu0
  %v3408 = vadd.f32 %v3228, %v3407
  %v3409 = vpop.f32.mrb[0].mxu0
  %3410 = vmatprep.mubr.bf16.mxu0 0
  %3411 = vmatmul.mubr.bf16.gmra.mrb[0].mxu0 %v3276
  %v3412 = vpop.f32.mrb[0].mxu0
  %v3413 = vadd.f32 %v3228, %v3412
  %v3414 = vpop.f32.mrb[0].mxu0
  %v3415 = vpop.f32.mrb[0].mxu0
  %v3416 = vadd.f32 %v3228, %v3415
  %v3417 = vpop.f32.mrb[0].mxu0
  %3418 = vmatprep.mubr.bf16.mxu0 0
  %3419 = vmatmul.mubr.bf16.gmra.mrb[0].mxu0 %v3279
  %v3420 = vpop.f32.mrb[0].mxu0
  %v3421 = vadd.f32 %v3228, %v3420
  %v3422 = vpop.f32.mrb[0].mxu0
  %v3423 = vpop.f32.mrb[0].mxu0
  %v3424 = vadd.f32 %v3228, %v3423
  %v3425 = vpop.f32.mrb[0].mxu0
  %3426 = vmatprep.mubr.bf16.mxu0 0
  %3427 = vmatmul.mubr.bf16.gmra.mrb[0].mxu0 %v3282
  %v3428 = vpop.f32.mrb[0].mxu0
  %v3429 = vadd.f32 %v3228, %v3428
  %v3430 = vpop.f32.mrb[0].mxu0
  %v3431 = vpop.f32.mrb[0].mxu0
  %v3432 = vadd.f32 %v3228, %v3431
  %v3433 = vpop.f32.mrb[0].mxu0
  %3434 = vmatprep.mubr.bf16.mxu0 0
  %3435 = vmatmul.mubr.bf16.gmra.mrb[0].mxu0 %v3285
  %v3436 = vpop.f32.mrb[0].mxu0
  %v3437 = vadd.f32 %v3228, %v3436
  %v3438 = vpop.f32.mrb[0].mxu0
  %v3439 = vpop.f32.mrb[0].mxu0
  %v3440 = vadd.f32 %v3228, %v3439
  %v3441 = vpop.f32.mrb[0].mxu0
  %3442 = vmatprep.mubr.bf16.mxu0 0
  %3443 = vmatmul.mubr.bf16.gmra.mrb[0].mxu0 %v3288
  %v3444 = vpop.f32.mrb[0].mxu0
  %v3445 = vadd.f32 %v3228, %v3444
  %v3446 = vpop.f32.mrb[0].mxu0
  %v3447 = vpop.f32.mrb[0].mxu0
  %v3448 = vadd.f32 %v3228, %v3447
  %v3449 = vpop.f32.mrb[0].mxu0
  %3450 = vdwg.mxu0
  %3451 = vst.msk [vmem:[%s10] sm:$0xff] %vm2740, %v3325
  %3452 = vst.msk [vmem:[%s10 + $0x8] sm:$0xff] %vm2740, %v3328
  %3453 = vst.msk [vmem:[%s10 + $0x10] sm:$0xff] %vm2740, %v3333
  %3454 = vst.msk [vmem:[%s10 + $0x18] sm:$0xff] %vm2740, %v3336
  %3455 = vst.msk [vmem:[%s10 + $0x20] sm:$0xff] %vm2740, %v3341
  %3456 = vst.msk [vmem:[%s10 + $0x28] sm:$0xff] %vm2740, %v3344
  %3457 = vst.msk [vmem:[%s10 + $0x30] sm:$0xff] %vm2740, %v3349
  %3458 = vst.msk [vmem:[%s10 + $0x38] sm:$0xff] %vm2740, %v3352
  %3459 = vst.msk [vmem:[%s10 + $0x40] sm:$0xff] %vm2740, %v3357
  %3460 = vst.msk [vmem:[%s10 + $0x48] sm:$0xff] %vm2740, %v3360
  %3461 = vst.msk [vmem:[%s10 + $0x50] sm:$0xff] %vm2740, %v3365
  %3462 = vst.msk [vmem:[%s10 + $0x58] sm:$0xff] %vm2740, %v3368
  %3463 = vst.msk [vmem:[%s10 + $0x60] sm:$0xff] %vm2740, %v3373
  %3464 = vst.msk [vmem:[%s10 + $0x68] sm:$0xff] %vm2740, %v3376
  %3465 = vst.msk [vmem:[%s10 + $0x70] sm:$0xff] %vm2740, %v3381
  %3466 = vst.msk [vmem:[%s10 + $0x78] sm:$0xff] %vm2740, %v3384
  %3467 = vst.msk [vmem:[%s10 + $0x80] sm:$0xff] %vm2740, %v3389
  %3468 = vst.msk [vmem:[%s10 + $0x88] sm:$0xff] %vm2740, %v3392
  %3469 = vst.msk [vmem:[%s10 + $0x90] sm:$0xff] %vm2740, %v3397
  %3470 = vst.msk [vmem:[%s10 + $0x98] sm:$0xff] %vm2740, %v3400
  %3471 = vst.msk [vmem:[%s10 + $0xa0] sm:$0xff] %vm2740, %v3405
  %3472 = vst.msk [vmem:[%s10 + $0xa8] sm:$0xff] %vm2740, %v3408
  %3473 = vst.msk [vmem:[%s10 + $0xb0] sm:$0xff] %vm2740, %v3413
  %3474 = vst.msk [vmem:[%s10 + $0xb8] sm:$0xff] %vm2740, %v3416
  %3475 = vst.msk [vmem:[%s10 + $0xc0] sm:$0xff] %vm2740, %v3421
  %3476 = vst.msk [vmem:[%s10 + $0xc8] sm:$0xff] %vm2740, %v3424
  %3477 = vst.msk [vmem:[%s10 + $0xd0] sm:$0xff] %vm2740, %v3429
  %3478 = vst.msk [vmem:[%s10 + $0xd8] sm:$0xff] %vm2740, %v3432
  %3479 = vst.msk [vmem:[%s10 + $0xe0] sm:$0xff] %vm2740, %v3437
  %3480 = vst.msk [vmem:[%s10 + $0xe8] sm:$0xff] %vm2740, %v3440
  %3481 = vst.msk [vmem:[%s10 + $0xf0] sm:$0xff] %vm2740, %v3445
  %3482 = vst.msk [vmem:[%s10 + $0xf8] sm:$0xff] %vm2740, %v3448
  // Predicated region
  $region42: #{_sgb_forward_impl.15} parent=0 // pred_check
    _
  $region43: #{_sgb_forward_impl.15} parent=0 // pred_check_branch
    %3484 = sbr.rel (0) target = $region45
  $region44: #{_sgb_forward_impl.15} parent=0 // pred_region
    _
  $region45: #{_sgb_forward_impl.15} parent=0 // pred_fallthru
    _
  // Predicated region
  $region46: #{_sgb_forward_impl.15} parent=0 // pred_check
    _
  $region47: #{_sgb_forward_impl.15} parent=0 // pred_check_branch
    %3486 = sbr.rel (0) target = $region49
  $region48: #{_sgb_forward_impl.15} parent=0 // pred_region
    _
  $region49: #{_sgb_forward_impl.15} parent=0 // pred_fallthru
    _

// kernel: _sgb_forward_impl.21
$region0: #{_sgb_forward_impl.21}
  #allocation0 [shape = 'u32[]', space=smem, size = 0x4, offset = 0x4, fixed_abs, tag = 'smem constant byte address 0x4 - core index']
  #allocation1 [shape = 'u32[144,128]{1,0:T(1,128)}', space=vmem, size = 0x12000, scoped, tag = 'internal scratch']
  %s0 = inlined_call_operand.vmem [shape: f32[256,32], index: 0, kind: input, shape index: {}]
  %s1 = inlined_call_operand.vmem [shape: f32[256,32], index: 1, kind: input, shape index: {}]
  %s2 = inlined_call_operand.vmem [shape: f32[256,32], index: 2, kind: input, shape index: {}]
  %s3 = inlined_call_operand.vmem [shape: bf16[32,32], index: 3, kind: input, shape index: {}]
  %s4 = inlined_call_operand.vmem [shape: bf16[32,32], index: 4, kind: input, shape index: {}]
  %s5 = inlined_call_operand.vmem [shape: bf16[32,32], index: 5, kind: input, shape index: {}]
  %s6 = inlined_call_operand.vmem [shape: f32[1,32], index: 6, kind: input, shape index: {}]
  %s7 = inlined_call_operand.vmem [shape: f32[256,32], index: 7, kind: output, shape index: {}]
  %s8 = sld [smem:[#allocation0]]
  $region38: #{_sgb_forward_impl.21} parent=0
    _
  %s10 = ssub.s32 1, %s8
  %s11 = scalar_select 0, %s10, %s8
  // Predicated region
  $region2: #{_sgb_forward_impl.21} parent=0 // pred_check
    _
  $region3: #{_sgb_forward_impl.21} parent=0 // pred_check_branch
    %13 = sbr.rel (0) target = $region5
  $region4: #{_sgb_forward_impl.21} parent=0 // pred_region
    _
  $region5: #{_sgb_forward_impl.21} parent=0 // pred_fallthru
    _
  // Predicated region
  $region6: #{_sgb_forward_impl.21} parent=0 // pred_check
    _
  $region7: #{_sgb_forward_impl.21} parent=0 // pred_check_branch
    %15 = sbr.rel (0) target = $region9
  $region8: #{_sgb_forward_impl.21} parent=0 // pred_region
    _
  $region9: #{_sgb_forward_impl.21} parent=0 // pred_fallthru
    _
  // Predicated region
  $region10: #{_sgb_forward_impl.21} parent=0 // pred_check
    _
  $region11: #{_sgb_forward_impl.21} parent=0 // pred_check_branch
    %17 = sbr.rel (0) target = $region13
  $region12: #{_sgb_forward_impl.21} parent=0 // pred_region
    _
  $region13: #{_sgb_forward_impl.21} parent=0 // pred_fallthru
    _
  // Predicated region
  $region14: #{_sgb_forward_impl.21} parent=0 // pred_check
    _
  $region15: #{_sgb_forward_impl.21} parent=0 // pred_check_branch
    %19 = sbr.rel (0) target = $region17
  $region16: #{_sgb_forward_impl.21} parent=0 // pred_region
    _
  $region17: #{_sgb_forward_impl.21} parent=0 // pred_fallthru
    _
  // Predicated region
  $region18: #{_sgb_forward_impl.21} parent=0 // pred_check
    _
  $region19: #{_sgb_forward_impl.21} parent=0 // pred_check_branch
    %21 = sbr.rel (0) target = $region21
  $region20: #{_sgb_forward_impl.21} parent=0 // pred_region
    _
  $region21: #{_sgb_forward_impl.21} parent=0 // pred_fallthru
    _
  // Predicated region
  $region22: #{_sgb_forward_impl.21} parent=0 // pred_check
    _
  $region23: #{_sgb_forward_impl.21} parent=0 // pred_check_branch
    %23 = sbr.rel (0) target = $region25
  $region24: #{_sgb_forward_impl.21} parent=0 // pred_region
    _
  $region25: #{_sgb_forward_impl.21} parent=0 // pred_fallthru
    _
  // Predicated region
  $region26: #{_sgb_forward_impl.21} parent=0 // pred_check
    _
  $region27: #{_sgb_forward_impl.21} parent=0 // pred_check_branch
    %25 = sbr.rel (0) target = $region29
  $region28: #{_sgb_forward_impl.21} parent=0 // pred_region
    _
  $region29: #{_sgb_forward_impl.21} parent=0 // pred_fallthru
    _
  %v27 = vld [vmem:[%s0] sm:$0xff]
  %v28 = vld [vmem:[%s0 + $0x8] sm:$0xff]
  %v29 = vld [vmem:[%s0 + $0x10] sm:$0xff]
  %v30 = vld [vmem:[%s0 + $0x18] sm:$0xff]
  %v31 = vld [vmem:[%s0 + $0x20] sm:$0xff]
  %v32 = vld [vmem:[%s0 + $0x28] sm:$0xff]
  %v33 = vld [vmem:[%s0 + $0x30] sm:$0xff]
  %v34 = vld [vmem:[%s0 + $0x38] sm:$0xff]
  %v35 = vld [vmem:[%s0 + $0x40] sm:$0xff]
  %v36 = vld [vmem:[%s0 + $0x48] sm:$0xff]
  %v37 = vld [vmem:[%s0 + $0x50] sm:$0xff]
  %v38 = vld [vmem:[%s0 + $0x58] sm:$0xff]
  %v39 = vld [vmem:[%s0 + $0x60] sm:$0xff]
  %v40 = vld [vmem:[%s0 + $0x68] sm:$0xff]
  %v41 = vld [vmem:[%s0 + $0x70] sm:$0xff]
  %v42 = vld [vmem:[%s0 + $0x78] sm:$0xff]
  %v43 = vld [vmem:[%s0 + $0x80] sm:$0xff]
  %v44 = vld [vmem:[%s0 + $0x88] sm:$0xff]
  %v45 = vld [vmem:[%s0 + $0x90] sm:$0xff]
  %v46 = vld [vmem:[%s0 + $0x98] sm:$0xff]
  %v47 = vld [vmem:[%s0 + $0xa0] sm:$0xff]
  %v48 = vld [vmem:[%s0 + $0xa8] sm:$0xff]
  %v49 = vld [vmem:[%s0 + $0xb0] sm:$0xff]
  %v50 = vld [vmem:[%s0 + $0xb8] sm:$0xff]
  %v51 = vld [vmem:[%s0 + $0xc0] sm:$0xff]
  %v52 = vld [vmem:[%s0 + $0xc8] sm:$0xff]
  %v53 = vld [vmem:[%s0 + $0xd0] sm:$0xff]
  %v54 = vld [vmem:[%s0 + $0xd8] sm:$0xff]
  %v55 = vld [vmem:[%s0 + $0xe0] sm:$0xff]
  %v56 = vld [vmem:[%s0 + $0xe8] sm:$0xff]
  %v57 = vld [vmem:[%s0 + $0xf0] sm:$0xff]
  %v58 = vld [vmem:[%s0 + $0xf8] sm:$0xff]
  %v59 = vpack.c.bf16 %v28, %v27
  %v60 = vpack.c.bf16 %v30, %v29
  %v61 = vpack.c.bf16 %v32, %v31
  %v62 = vpack.c.bf16 %v34, %v33
  %v63 = vpack.c.bf16 %v36, %v35
  %v64 = vpack.c.bf16 %v38, %v37
  %v65 = vpack.c.bf16 %v40, %v39
  %v66 = vpack.c.bf16 %v42, %v41
  %v67 = vpack.c.bf16 %v44, %v43
  %v68 = vpack.c.bf16 %v46, %v45
  %v69 = vpack.c.bf16 %v48, %v47
  %v70 = vpack.c.bf16 %v50, %v49
  %v71 = vpack.c.bf16 %v52, %v51
  %v72 = vpack.c.bf16 %v54, %v53
  %v73 = vpack.c.bf16 %v56, %v55
  %v74 = vpack.c.bf16 %v58, %v57
  %v75 = vld [vmem:[%s3] sm:$0xf]
  %v76 = vld [vmem:[%s3 + $0x4] sm:$0xf]
  %v77 = vld [vmem:[%s3 + $0x8] sm:$0xf]
  %v78 = vld [vmem:[%s3 + $0xc] sm:$0xf]
  %v79 = vld [vmem:[%s1] sm:$0xff]
  %v80 = vld [vmem:[%s1 + $0x8] sm:$0xff]
  %v81 = vld [vmem:[%s1 + $0x10] sm:$0xff]
  %v82 = vld [vmem:[%s1 + $0x18] sm:$0xff]
  %v83 = vld [vmem:[%s1 + $0x20] sm:$0xff]
  %v84 = vld [vmem:[%s1 + $0x28] sm:$0xff]
  %v85 = vld [vmem:[%s1 + $0x30] sm:$0xff]
  %v86 = vld [vmem:[%s1 + $0x38] sm:$0xff]
  %v87 = vld [vmem:[%s1 + $0x40] sm:$0xff]
  %v88 = vld [vmem:[%s1 + $0x48] sm:$0xff]
  %v89 = vld [vmem:[%s1 + $0x50] sm:$0xff]
  %v90 = vld [vmem:[%s1 + $0x58] sm:$0xff]
  %v91 = vld [vmem:[%s1 + $0x60] sm:$0xff]
  %v92 = vld [vmem:[%s1 + $0x68] sm:$0xff]
  %v93 = vld [vmem:[%s1 + $0x70] sm:$0xff]
  %v94 = vld [vmem:[%s1 + $0x78] sm:$0xff]
  %v95 = vld [vmem:[%s1 + $0x80] sm:$0xff]
  %v96 = vld [vmem:[%s1 + $0x88] sm:$0xff]
  %v97 = vld [vmem:[%s1 + $0x90] sm:$0xff]
  %v98 = vld [vmem:[%s1 + $0x98] sm:$0xff]
  %v99 = vld [vmem:[%s1 + $0xa0] sm:$0xff]
  %v100 = vld [vmem:[%s1 + $0xa8] sm:$0xff]
  %v101 = vld [vmem:[%s1 + $0xb0] sm:$0xff]
  %v102 = vld [vmem:[%s1 + $0xb8] sm:$0xff]
  %v103 = vld [vmem:[%s1 + $0xc0] sm:$0xff]
  %v104 = vld [vmem:[%s1 + $0xc8] sm:$0xff]
  %v105 = vld [vmem:[%s1 + $0xd0] sm:$0xff]
  %v106 = vld [vmem:[%s1 + $0xd8] sm:$0xff]
  %v107 = vld [vmem:[%s1 + $0xe0] sm:$0xff]
  %v108 = vld [vmem:[%s1 + $0xe8] sm:$0xff]
  %v109 = vld [vmem:[%s1 + $0xf0] sm:$0xff]
  %v110 = vld [vmem:[%s1 + $0xf8] sm:$0xff]
  %v111 = vpack.c.bf16 %v80, %v79
  %v112 = vpack.c.bf16 %v82, %v81
  %v113 = vpack.c.bf16 %v84, %v83
  %v114 = vpack.c.bf16 %v86, %v85
  %v115 = vpack.c.bf16 %v88, %v87
  %v116 = vpack.c.bf16 %v90, %v89
  %v117 = vpack.c.bf16 %v92, %v91
  %v118 = vpack.c.bf16 %v94, %v93
  %v119 = vpack.c.bf16 %v96, %v95
  %v120 = vpack.c.bf16 %v98, %v97
  %v121 = vpack.c.bf16 %v100, %v99
  %v122 = vpack.c.bf16 %v102, %v101
  %v123 = vpack.c.bf16 %v104, %v103
  %v124 = vpack.c.bf16 %v106, %v105
  %v125 = vpack.c.bf16 %v108, %v107
  %v126 = vpack.c.bf16 %v110, %v109
  %v127 = vld [vmem:[%s4] sm:$0xf]
  %v128 = vld [vmem:[%s4 + $0x4] sm:$0xf]
  %v129 = vld [vmem:[%s4 + $0x8] sm:$0xf]
  %v130 = vld [vmem:[%s4 + $0xc] sm:$0xf]
  %v135 = vunpack.c.l.b16 %v127
  %v136 = vunpack.c.l.b16 %v128
  %v137 = vunpack.c.l.b16 %v129
  %v138 = vunpack.c.l.b16 %v130
  %v139 = vpack.c.b16 %v136, %v135
  %v140 = vpack.c.b16 %v138, %v137
  %vm143 = vcmask 261120
  %v145 = vsel %vm143, %v111, 0
  %v148 = vsel %vm143, %v112, 0
  %v151 = vsel %vm143, %v113, 0
  %v154 = vsel %vm143, %v114, 0
  %v157 = vsel %vm143, %v115, 0
  %v160 = vsel %vm143, %v116, 0
  %v163 = vsel %vm143, %v117, 0
  %v166 = vsel %vm143, %v118, 0
  %v169 = vsel %vm143, %v119, 0
  %v172 = vsel %vm143, %v120, 0
  %v175 = vsel %vm143, %v121, 0
  %v178 = vsel %vm143, %v122, 0
  %v181 = vsel %vm143, %v123, 0
  %v184 = vsel %vm143, %v124, 0
  %v187 = vsel %vm143, %v125, 0
  %v190 = vsel %vm143, %v126, 0
  %192 = vmatprep.subr.bf16.mxu0 0
  %193 = vmatpush1.bf16.msra.mxu0 %v139
  %194 = vmatprep.subr.bf16.mxu0 0
  %195 = vmatpush1.bf16.msra.mxu0 %v140
  %196 = vmatprep.subr.bf16.mxu0 0
  %197 = vmatpush1.bf16.msra.mxu0 0
  %198 = vmatprep.subr.bf16.mxu0 0
  %199 = vmatpush1.bf16.msra.mxu0 0
  %200 = vmatprep.subr.bf16.mxu0 0
  %201 = vmatpush1.bf16.msra.mxu0 0
  %202 = vmatprep.subr.bf16.mxu0 0
  %203 = vmatpush1.bf16.msra.mxu0 0
  %204 = vmatprep.subr.bf16.mxu0 0
  %205 = vmatpush1.bf16.msra.mxu0 0
  %206 = vmatprep.subr.bf16.mxu0 0
  %207 = vmatpush1.bf16.msra.mxu0 0
  %208 = vmatprep.subr.bf16.mxu0 0
  %209 = vmatpush1.bf16.msra.mxu0 0
  %210 = vmatprep.subr.bf16.mxu0 0
  %211 = vmatpush1.bf16.msra.mxu0 0
  %212 = vmatprep.subr.bf16.mxu0 0
  %213 = vmatpush1.bf16.msra.mxu0 0
  %214 = vmatprep.subr.bf16.mxu0 0
  %215 = vmatpush1.bf16.msra.mxu0 0
  %216 = vmatprep.subr.bf16.mxu0 0
  %217 = vmatpush1.bf16.msra.mxu0 0
  %218 = vmatprep.subr.bf16.mxu0 0
  %219 = vmatpush1.bf16.msra.mxu0 0
  %220 = vmatprep.subr.bf16.mxu0 0
  %221 = vmatpush1.bf16.msra.mxu0 0
  %222 = vmatprep.subr.bf16.mxu0 0
  %223 = vmatpush1.bf16.msra.mxu0 0
  %224 = vmatprep.mubr.bf16.mxu0 0
  %225 = vmatmul.mubr.bf16.gmra.mrb[0].mxu0 %v145
  %v226 = vpop.f32.mrb[0].mxu0
  %v227 = vadd.f32 0.0, %v226
  %v228 = vpop.f32.mrb[0].mxu0
  %v229 = vpop.f32.mrb[0].mxu0
  %v230 = vadd.f32 0.0, %v229
  %v231 = vpop.f32.mrb[0].mxu0
  %232 = vmatprep.mubr.bf16.mxu0 0
  %233 = vmatmul.mubr.bf16.gmra.mrb[0].mxu0 %v148
  %v234 = vpop.f32.mrb[0].mxu0
  %v235 = vadd.f32 0.0, %v234
  %v236 = vpop.f32.mrb[0].mxu0
  %v237 = vpop.f32.mrb[0].mxu0
  %v238 = vadd.f32 0.0, %v237
  %v239 = vpop.f32.mrb[0].mxu0
  %240 = vmatprep.mubr.bf16.mxu0 0
  %241 = vmatmul.mubr.bf16.gmra.mrb[0].mxu0 %v151
  %v242 = vpop.f32.mrb[0].mxu0
  %v243 = vadd.f32 0.0, %v242
  %v244 = vpop.f32.mrb[0].mxu0
  %v245 = vpop.f32.mrb[0].mxu0
  %v246 = vadd.f32 0.0, %v245
  %v247 = vpop.f32.mrb[0].mxu0
  %248 = vmatprep.mubr.bf16.mxu0 0
  %249 = vmatmul.mubr.bf16.gmra.mrb[0].mxu0 %v154
  %v250 = vpop.f32.mrb[0].mxu0
  %v251 = vadd.f32 0.0, %v250
  %v252 = vpop.f32.mrb[0].mxu0
  %v253 = vpop.f32.mrb[0].mxu0
  %v254 = vadd.f32 0.0, %v253
  %v255 = vpop.f32.mrb[0].mxu0
  %256 = vmatprep.mubr.bf16.mxu0 0
  %257 = vmatmul.mubr.bf16.gmra.mrb[0].mxu0 %v157
  %v258 = vpop.f32.mrb[0].mxu0
  %v259 = vadd.f32 0.0, %v258
  %v260 = vpop.f32.mrb[0].mxu0
  %v261 = vpop.f32.mrb[0].mxu0
  %v262 = vadd.f32 0.0, %v261
  %v263 = vpop.f32.mrb[0].mxu0
  %264 = vmatprep.mubr.bf16.mxu0 0
  %265 = vmatmul.mubr.bf16.gmra.mrb[0].mxu0 %v160
  %v266 = vpop.f32.mrb[0].mxu0
  %v267 = vadd.f32 0.0, %v266
  %v268 = vpop.f32.mrb[0].mxu0
  %v269 = vpop.f32.mrb[0].mxu0
  %v270 = vadd.f32 0.0, %v269
  %v271 = vpop.f32.mrb[0].mxu0
  %272 = vmatprep.mubr.bf16.mxu0 0
  %273 = vmatmul.mubr.bf16.gmra.mrb[0].mxu0 %v163
  %v274 = vpop.f32.mrb[0].mxu0
  %v275 = vadd.f32 0.0, %v274
  %v276 = vpop.f32.mrb[0].mxu0
  %v277 = vpop.f32.mrb[0].mxu0
  %v278 = vadd.f32 0.0, %v277
  %v279 = vpop.f32.mrb[0].mxu0
  %280 = vmatprep.mubr.bf16.mxu0 0
  %281 = vmatmul.mubr.bf16.gmra.mrb[0].mxu0 %v166
  %v282 = vpop.f32.mrb[0].mxu0
  %v283 = vadd.f32 0.0, %v282
  %v284 = vpop.f32.mrb[0].mxu0
  %v285 = vpop.f32.mrb[0].mxu0
  %v286 = vadd.f32 0.0, %v285
  %v287 = vpop.f32.mrb[0].mxu0
  %288 = vmatprep.mubr.bf16.mxu0 0
  %289 = vmatmul.mubr.bf16.gmra.mrb[0].mxu0 %v169
  %v290 = vpop.f32.mrb[0].mxu0
  %v291 = vadd.f32 0.0, %v290
  %v292 = vpop.f32.mrb[0].mxu0
  %v293 = vpop.f32.mrb[0].mxu0
  %v294 = vadd.f32 0.0, %v293
  %v295 = vpop.f32.mrb[0].mxu0
  %296 = vmatprep.mubr.bf16.mxu0 0
  %297 = vmatmul.mubr.bf16.gmra.mrb[0].mxu0 %v172
  %v298 = vpop.f32.mrb[0].mxu0
  %v299 = vadd.f32 0.0, %v298
  %v300 = vpop.f32.mrb[0].mxu0
  %v301 = vpop.f32.mrb[0].mxu0
  %v302 = vadd.f32 0.0, %v301
  %v303 = vpop.f32.mrb[0].mxu0
  %304 = vmatprep.mubr.bf16.mxu0 0
  %305 = vmatmul.mubr.bf16.gmra.mrb[0].mxu0 %v175
  %v306 = vpop.f32.mrb[0].mxu0
  %v307 = vadd.f32 0.0, %v306
  %v308 = vpop.f32.mrb[0].mxu0
  %v309 = vpop.f32.mrb[0].mxu0
  %v310 = vadd.f32 0.0, %v309
  %v311 = vpop.f32.mrb[0].mxu0
  %312 = vmatprep.mubr.bf16.mxu0 0
  %313 = vmatmul.mubr.bf16.gmra.mrb[0].mxu0 %v178
  %v314 = vpop.f32.mrb[0].mxu0
  %v315 = vadd.f32 0.0, %v314
  %v316 = vpop.f32.mrb[0].mxu0
  %v317 = vpop.f32.mrb[0].mxu0
  %v318 = vadd.f32 0.0, %v317
  %v319 = vpop.f32.mrb[0].mxu0
  %320 = vmatprep.mubr.bf16.mxu0 0
  %321 = vmatmul.mubr.bf16.gmra.mrb[0].mxu0 %v181
  %v322 = vpop.f32.mrb[0].mxu0
  %v323 = vadd.f32 0.0, %v322
  %v324 = vpop.f32.mrb[0].mxu0
  %v325 = vpop.f32.mrb[0].mxu0
  %v326 = vadd.f32 0.0, %v325
  %v327 = vpop.f32.mrb[0].mxu0
  %328 = vmatprep.mubr.bf16.mxu0 0
  %329 = vmatmul.mubr.bf16.gmra.mrb[0].mxu0 %v184
  %v330 = vpop.f32.mrb[0].mxu0
  %v331 = vadd.f32 0.0, %v330
  %v332 = vpop.f32.mrb[0].mxu0
  %v333 = vpop.f32.mrb[0].mxu0
  %v334 = vadd.f32 0.0, %v333
  %v335 = vpop.f32.mrb[0].mxu0
  %336 = vmatprep.mubr.bf16.mxu0 0
  %337 = vmatmul.mubr.bf16.gmra.mrb[0].mxu0 %v187
  %v338 = vpop.f32.mrb[0].mxu0
  %v339 = vadd.f32 0.0, %v338
  %v340 = vpop.f32.mrb[0].mxu0
  %v341 = vpop.f32.mrb[0].mxu0
  %v342 = vadd.f32 0.0, %v341
  %v343 = vpop.f32.mrb[0].mxu0
  %344 = vmatprep.mubr.bf16.mxu0 0
  %345 = vmatmul.mubr.bf16.gmra.mrb[0].mxu0 %v190
  %v346 = vpop.f32.mrb[0].mxu0
  %v347 = vadd.f32 0.0, %v346
  %v348 = vpop.f32.mrb[0].mxu0
  %v349 = vpop.f32.mrb[0].mxu0
  %v350 = vadd.f32 0.0, %v349
  %v351 = vpop.f32.mrb[0].mxu0
  %352 = vdwg.mxu0
  %v357 = vunpack.c.l.b16 %v75
  %v358 = vunpack.c.l.b16 %v76
  %v359 = vunpack.c.l.b16 %v77
  %v360 = vunpack.c.l.b16 %v78
  %v361 = vpack.c.b16 %v358, %v357
  %v362 = vpack.c.b16 %v360, %v359
  %v366 = vsel %vm143, %v59, 0
  %v369 = vsel %vm143, %v60, 0
  %v372 = vsel %vm143, %v61, 0
  %v375 = vsel %vm143, %v62, 0
  %v378 = vsel %vm143, %v63, 0
  %v381 = vsel %vm143, %v64, 0
  %v384 = vsel %vm143, %v65, 0
  %v387 = vsel %vm143, %v66, 0
  %v390 = vsel %vm143, %v67, 0
  %v393 = vsel %vm143, %v68, 0
  %v396 = vsel %vm143, %v69, 0
  %v399 = vsel %vm143, %v70, 0
  %v402 = vsel %vm143, %v71, 0
  %v405 = vsel %vm143, %v72, 0
  %v408 = vsel %vm143, %v73, 0
  %v411 = vsel %vm143, %v74, 0
  %413 = vmatprep.subr.bf16.mxu0 0
  %414 = vmatpush1.bf16.msra.mxu0 %v361
  %415 = vmatprep.subr.bf16.mxu0 0
  %416 = vmatpush1.bf16.msra.mxu0 %v362
  %417 = vmatprep.subr.bf16.mxu0 0
  %418 = vmatpush1.bf16.msra.mxu0 0
  %419 = vmatprep.subr.bf16.mxu0 0
  %420 = vmatpush1.bf16.msra.mxu0 0
  %421 = vmatprep.subr.bf16.mxu0 0
  %422 = vmatpush1.bf16.msra.mxu0 0
  %423 = vmatprep.subr.bf16.mxu0 0
  %424 = vmatpush1.bf16.msra.mxu0 0
  %425 = vmatprep.subr.bf16.mxu0 0
  %426 = vmatpush1.bf16.msra.mxu0 0
  %427 = vmatprep.subr.bf16.mxu0 0
  %428 = vmatpush1.bf16.msra.mxu0 0
  %429 = vmatprep.subr.bf16.mxu0 0
  %430 = vmatpush1.bf16.msra.mxu0 0
  %431 = vmatprep.subr.bf16.mxu0 0
  %432 = vmatpush1.bf16.msra.mxu0 0
  %433 = vmatprep.subr.bf16.mxu0 0
  %434 = vmatpush1.bf16.msra.mxu0 0
  %435 = vmatprep.subr.bf16.mxu0 0
  %436 = vmatpush1.bf16.msra.mxu0 0
  %437 = vmatprep.subr.bf16.mxu0 0
  %438 = vmatpush1.bf16.msra.mxu0 0
  %439 = vmatprep.subr.bf16.mxu0 0
  %440 = vmatpush1.bf16.msra.mxu0 0
  %441 = vmatprep.subr.bf16.mxu0 0
  %442 = vmatpush1.bf16.msra.mxu0 0
  %443 = vmatprep.subr.bf16.mxu0 0
  %444 = vmatpush1.bf16.msra.mxu0 0
  %445 = vmatprep.mubr.bf16.mxu0 0
  %446 = vmatmul.mubr.bf16.gmra.mrb[0].mxu0 %v366
  %v447 = vpop.f32.mrb[0].mxu0
  %v448 = vadd.f32 %v227, %v447
  %v449 = vpop.f32.mrb[0].mxu0
  %v450 = vpop.f32.mrb[0].mxu0
  %v451 = vadd.f32 %v230, %v450
  %v452 = vpop.f32.mrb[0].mxu0
  %453 = vmatprep.mubr.bf16.mxu0 0
  %454 = vmatmul.mubr.bf16.gmra.mrb[0].mxu0 %v369
  %v455 = vpop.f32.mrb[0].mxu0
  %v456 = vadd.f32 %v235, %v455
  %v457 = vpop.f32.mrb[0].mxu0
  %v458 = vpop.f32.mrb[0].mxu0
  %v459 = vadd.f32 %v238, %v458
  %v460 = vpop.f32.mrb[0].mxu0
  %461 = vmatprep.mubr.bf16.mxu0 0
  %462 = vmatmul.mubr.bf16.gmra.mrb[0].mxu0 %v372
  %v463 = vpop.f32.mrb[0].mxu0
  %v464 = vadd.f32 %v243, %v463
  %v465 = vpop.f32.mrb[0].mxu0
  %v466 = vpop.f32.mrb[0].mxu0
  %v467 = vadd.f32 %v246, %v466
  %v468 = vpop.f32.mrb[0].mxu0
  %469 = vmatprep.mubr.bf16.mxu0 0
  %470 = vmatmul.mubr.bf16.gmra.mrb[0].mxu0 %v375
  %v471 = vpop.f32.mrb[0].mxu0
  %v472 = vadd.f32 %v251, %v471
  %v473 = vpop.f32.mrb[0].mxu0
  %v474 = vpop.f32.mrb[0].mxu0
  %v475 = vadd.f32 %v254, %v474
  %v476 = vpop.f32.mrb[0].mxu0
  %477 = vmatprep.mubr.bf16.mxu0 0
  %478 = vmatmul.mubr.bf16.gmra.mrb[0].mxu0 %v378
  %v479 = vpop.f32.mrb[0].mxu0
  %v480 = vadd.f32 %v259, %v479
  %v481 = vpop.f32.mrb[0].mxu0
  %v482 = vpop.f32.mrb[0].mxu0
  %v483 = vadd.f32 %v262, %v482
  %v484 = vpop.f32.mrb[0].mxu0
  %485 = vmatprep.mubr.bf16.mxu0 0
  %486 = vmatmul.mubr.bf16.gmra.mrb[0].mxu0 %v381
  %v487 = vpop.f32.mrb[0].mxu0
  %v488 = vadd.f32 %v267, %v487
  %v489 = vpop.f32.mrb[0].mxu0
  %v490 = vpop.f32.mrb[0].mxu0
  %v491 = vadd.f32 %v270, %v490
  %v492 = vpop.f32.mrb[0].mxu0
  %493 = vmatprep.mubr.bf16.mxu0 0
  %494 = vmatmul.mubr.bf16.gmra.mrb[0].mxu0 %v384
  %v495 = vpop.f32.mrb[0].mxu0
  %v496 = vadd.f32 %v275, %v495
  %v497 = vpop.f32.mrb[0].mxu0
  %v498 = vpop.f32.mrb[0].mxu0
  %v499 = vadd.f32 %v278, %v498
  %v500 = vpop.f32.mrb[0].mxu0
  %501 = vmatprep.mubr.bf16.mxu0 0
  %502 = vmatmul.mubr.bf16.gmra.mrb[0].mxu0 %v387
  %v503 = vpop.f32.mrb[0].mxu0
  %v504 = vadd.f32 %v283, %v503
  %v505 = vpop.f32.mrb[0].mxu0
  %v506 = vpop.f32.mrb[0].mxu0
  %v507 = vadd.f32 %v286, %v506
  %v508 = vpop.f32.mrb[0].mxu0
  %509 = vmatprep.mubr.bf16.mxu0 0
  %510 = vmatmul.mubr.bf16.gmra.mrb[0].mxu0 %v390
  %v511 = vpop.f32.mrb[0].mxu0
  %v512 = vadd.f32 %v291, %v511
  %v513 = vpop.f32.mrb[0].mxu0
  %v514 = vpop.f32.mrb[0].mxu0
  %v515 = vadd.f32 %v294, %v514
  %v516 = vpop.f32.mrb[0].mxu0
  %517 = vmatprep.mubr.bf16.mxu0 0
  %518 = vmatmul.mubr.bf16.gmra.mrb[0].mxu0 %v393
  %v519 = vpop.f32.mrb[0].mxu0
  %v520 = vadd.f32 %v299, %v519
  %v521 = vpop.f32.mrb[0].mxu0
  %v522 = vpop.f32.mrb[0].mxu0
  %v523 = vadd.f32 %v302, %v522
  %v524 = vpop.f32.mrb[0].mxu0
  %525 = vmatprep.mubr.bf16.mxu0 0
  %526 = vmatmul.mubr.bf16.gmra.mrb[0].mxu0 %v396
  %v527 = vpop.f32.mrb[0].mxu0
  %v528 = vadd.f32 %v307, %v527
  %v529 = vpop.f32.mrb[0].mxu0
  %v530 = vpop.f32.mrb[0].mxu0
  %v531 = vadd.f32 %v310, %v530
  %v532 = vpop.f32.mrb[0].mxu0
  %533 = vmatprep.mubr.bf16.mxu0 0
  %534 = vmatmul.mubr.bf16.gmra.mrb[0].mxu0 %v399
  %v535 = vpop.f32.mrb[0].mxu0
  %v536 = vadd.f32 %v315, %v535
  %v537 = vpop.f32.mrb[0].mxu0
  %v538 = vpop.f32.mrb[0].mxu0
  %v539 = vadd.f32 %v318, %v538
  %v540 = vpop.f32.mrb[0].mxu0
  %541 = vmatprep.mubr.bf16.mxu0 0
  %542 = vmatmul.mubr.bf16.gmra.mrb[0].mxu0 %v402
  %v543 = vpop.f32.mrb[0].mxu0
  %v544 = vadd.f32 %v323, %v543
  %v545 = vpop.f32.mrb[0].mxu0
  %v546 = vpop.f32.mrb[0].mxu0
  %v547 = vadd.f32 %v326, %v546
  %v548 = vpop.f32.mrb[0].mxu0
  %549 = vmatprep.mubr.bf16.mxu0 0
  %550 = vmatmul.mubr.bf16.gmra.mrb[0].mxu0 %v405
  %v551 = vpop.f32.mrb[0].mxu0
  %v552 = vadd.f32 %v331, %v551
  %v553 = vpop.f32.mrb[0].mxu0
  %v554 = vpop.f32.mrb[0].mxu0
  %v555 = vadd.f32 %v334, %v554
  %v556 = vpop.f32.mrb[0].mxu0
  %557 = vmatprep.mubr.bf16.mxu0 0
  %558 = vmatmul.mubr.bf16.gmra.mrb[0].mxu0 %v408
  %v559 = vpop.f32.mrb[0].mxu0
  %v560 = vadd.f32 %v339, %v559
  %v561 = vpop.f32.mrb[0].mxu0
  %v562 = vpop.f32.mrb[0].mxu0
  %v563 = vadd.f32 %v342, %v562
  %v564 = vpop.f32.mrb[0].mxu0
  %565 = vmatprep.mubr.bf16.mxu0 0
  %566 = vmatmul.mubr.bf16.gmra.mrb[0].mxu0 %v411
  %v567 = vpop.f32.mrb[0].mxu0
  %v568 = vadd.f32 %v347, %v567
  %v569 = vpop.f32.mrb[0].mxu0
  %v570 = vpop.f32.mrb[0].mxu0
  %v571 = vadd.f32 %v350, %v570
  %v572 = vpop.f32.mrb[0].mxu0
  %573 = vdwg.mxu0
  %v574 = vld [vmem:[%s2] sm:$0xff]
  %v575 = vld [vmem:[%s2 + $0x8] sm:$0xff]
  %v576 = vld [vmem:[%s2 + $0x10] sm:$0xff]
  %v577 = vld [vmem:[%s2 + $0x18] sm:$0xff]
  %v578 = vld [vmem:[%s2 + $0x20] sm:$0xff]
  %v579 = vld [vmem:[%s2 + $0x28] sm:$0xff]
  %v580 = vld [vmem:[%s2 + $0x30] sm:$0xff]
  %v581 = vld [vmem:[%s2 + $0x38] sm:$0xff]
  %v582 = vld [vmem:[%s2 + $0x40] sm:$0xff]
  %v583 = vld [vmem:[%s2 + $0x48] sm:$0xff]
  %v584 = vld [vmem:[%s2 + $0x50] sm:$0xff]
  %v585 = vld [vmem:[%s2 + $0x58] sm:$0xff]
  %v586 = vld [vmem:[%s2 + $0x60] sm:$0xff]
  %v587 = vld [vmem:[%s2 + $0x68] sm:$0xff]
  %v588 = vld [vmem:[%s2 + $0x70] sm:$0xff]
  %v589 = vld [vmem:[%s2 + $0x78] sm:$0xff]
  %v590 = vld [vmem:[%s2 + $0x80] sm:$0xff]
  %v591 = vld [vmem:[%s2 + $0x88] sm:$0xff]
  %v592 = vld [vmem:[%s2 + $0x90] sm:$0xff]
  %v593 = vld [vmem:[%s2 + $0x98] sm:$0xff]
  %v594 = vld [vmem:[%s2 + $0xa0] sm:$0xff]
  %v595 = vld [vmem:[%s2 + $0xa8] sm:$0xff]
  %v596 = vld [vmem:[%s2 + $0xb0] sm:$0xff]
  %v597 = vld [vmem:[%s2 + $0xb8] sm:$0xff]
  %v598 = vld [vmem:[%s2 + $0xc0] sm:$0xff]
  %v599 = vld [vmem:[%s2 + $0xc8] sm:$0xff]
  %v600 = vld [vmem:[%s2 + $0xd0] sm:$0xff]
  %v601 = vld [vmem:[%s2 + $0xd8] sm:$0xff]
  %v602 = vld [vmem:[%s2 + $0xe0] sm:$0xff]
  %v603 = vld [vmem:[%s2 + $0xe8] sm:$0xff]
  %v604 = vld [vmem:[%s2 + $0xf0] sm:$0xff]
  %v605 = vld [vmem:[%s2 + $0xf8] sm:$0xff]
  %v606 = vpack.c.bf16 %v575, %v574
  %v607 = vpack.c.bf16 %v577, %v576
  %v608 = vpack.c.bf16 %v579, %v578
  %v609 = vpack.c.bf16 %v581, %v580
  %v610 = vpack.c.bf16 %v583, %v582
  %v611 = vpack.c.bf16 %v585, %v584
  %v612 = vpack.c.bf16 %v587, %v586
  %v613 = vpack.c.bf16 %v589, %v588
  %v614 = vpack.c.bf16 %v591, %v590
  %v615 = vpack.c.bf16 %v593, %v592
  %v616 = vpack.c.bf16 %v595, %v594
  %v617 = vpack.c.bf16 %v597, %v596
  %v618 = vpack.c.bf16 %v599, %v598
  %v619 = vpack.c.bf16 %v601, %v600
  %v620 = vpack.c.bf16 %v603, %v602
  %v621 = vpack.c.bf16 %v605, %v604
  %v622 = vld [vmem:[%s5] sm:$0xf]
  %v623 = vld [vmem:[%s5 + $0x4] sm:$0xf]
  %v624 = vld [vmem:[%s5 + $0x8] sm:$0xf]
  %v625 = vld [vmem:[%s5 + $0xc] sm:$0xf]
  %v630 = vunpack.c.l.b16 %v622
  %v631 = vunpack.c.l.b16 %v623
  %v632 = vunpack.c.l.b16 %v624
  %v633 = vunpack.c.l.b16 %v625
  %v634 = vpack.c.b16 %v631, %v630
  %v635 = vpack.c.b16 %v633, %v632
  %v639 = vsel %vm143, %v606, 0
  %v642 = vsel %vm143, %v607, 0
  %v645 = vsel %vm143, %v608, 0
  %v648 = vsel %vm143, %v609, 0
  %v651 = vsel %vm143, %v610, 0
  %v654 = vsel %vm143, %v611, 0
  %v657 = vsel %vm143, %v612, 0
  %v660 = vsel %vm143, %v613, 0
  %v663 = vsel %vm143, %v614, 0
  %v666 = vsel %vm143, %v615, 0
  %v669 = vsel %vm143, %v616, 0
  %v672 = vsel %vm143, %v617, 0
  %v675 = vsel %vm143, %v618, 0
  %v678 = vsel %vm143, %v619, 0
  %v681 = vsel %vm143, %v620, 0
  %v684 = vsel %vm143, %v621, 0
  %686 = vmatprep.subr.bf16.mxu0 0
  %687 = vmatpush1.bf16.msra.mxu0 %v634
  %688 = vmatprep.subr.bf16.mxu0 0
  %689 = vmatpush1.bf16.msra.mxu0 %v635
  %690 = vmatprep.subr.bf16.mxu0 0
  %691 = vmatpush1.bf16.msra.mxu0 0
  %692 = vmatprep.subr.bf16.mxu0 0
  %693 = vmatpush1.bf16.msra.mxu0 0
  %694 = vmatprep.subr.bf16.mxu0 0
  %695 = vmatpush1.bf16.msra.mxu0 0
  %696 = vmatprep.subr.bf16.mxu0 0
  %697 = vmatpush1.bf16.msra.mxu0 0
  %698 = vmatprep.subr.bf16.mxu0 0
  %699 = vmatpush1.bf16.msra.mxu0 0
  %700 = vmatprep.subr.bf16.mxu0 0
  %701 = vmatpush1.bf16.msra.mxu0 0
  %702 = vmatprep.subr.bf16.mxu0 0
  %703 = vmatpush1.bf16.msra.mxu0 0
  %704 = vmatprep.subr.bf16.mxu0 0
  %705 = vmatpush1.bf16.msra.mxu0 0
  %706 = vmatprep.subr.bf16.mxu0 0
  %707 = vmatpush1.bf16.msra.mxu0 0
  %708 = vmatprep.subr.bf16.mxu0 0
  %709 = vmatpush1.bf16.msra.mxu0 0
  %710 = vmatprep.subr.bf16.mxu0 0
  %711 = vmatpush1.bf16.msra.mxu0 0
  %712 = vmatprep.subr.bf16.mxu0 0
  %713 = vmatpush1.bf16.msra.mxu0 0
  %714 = vmatprep.subr.bf16.mxu0 0
  %715 = vmatpush1.bf16.msra.mxu0 0
  %716 = vmatprep.subr.bf16.mxu0 0
  %717 = vmatpush1.bf16.msra.mxu0 0
  %718 = vmatprep.mubr.bf16.mxu0 0
  %719 = vmatmul.mubr.bf16.gmra.mrb[0].mxu0 %v639
  %v720 = vpop.f32.mrb[0].mxu0
  %v721 = vadd.f32 0.0, %v720
  %v722 = vpop.f32.mrb[0].mxu0
  %v723 = vpop.f32.mrb[0].mxu0
  %v724 = vadd.f32 0.0, %v723
  %v725 = vpop.f32.mrb[0].mxu0
  %726 = vmatprep.mubr.bf16.mxu0 0
  %727 = vmatmul.mubr.bf16.gmra.mrb[0].mxu0 %v642
  %v728 = vpop.f32.mrb[0].mxu0
  %v729 = vadd.f32 0.0, %v728
  %v730 = vpop.f32.mrb[0].mxu0
  %v731 = vpop.f32.mrb[0].mxu0
  %v732 = vadd.f32 0.0, %v731
  %v733 = vpop.f32.mrb[0].mxu0
  %734 = vmatprep.mubr.bf16.mxu0 0
  %735 = vmatmul.mubr.bf16.gmra.mrb[0].mxu0 %v645
  %v736 = vpop.f32.mrb[0].mxu0
  %v737 = vadd.f32 0.0, %v736
  %v738 = vpop.f32.mrb[0].mxu0
  %v739 = vpop.f32.mrb[0].mxu0
  %v740 = vadd.f32 0.0, %v739
  %v741 = vpop.f32.mrb[0].mxu0
  %742 = vmatprep.mubr.bf16.mxu0 0
  %743 = vmatmul.mubr.bf16.gmra.mrb[0].mxu0 %v648
  %v744 = vpop.f32.mrb[0].mxu0
  %v745 = vadd.f32 0.0, %v744
  %v746 = vpop.f32.mrb[0].mxu0
  %v747 = vpop.f32.mrb[0].mxu0
  %v748 = vadd.f32 0.0, %v747
  %v749 = vpop.f32.mrb[0].mxu0
  %750 = vmatprep.mubr.bf16.mxu0 0
  %751 = vmatmul.mubr.bf16.gmra.mrb[0].mxu0 %v651
  %v752 = vpop.f32.mrb[0].mxu0
  %v753 = vadd.f32 0.0, %v752
  %v754 = vpop.f32.mrb[0].mxu0
  %v755 = vpop.f32.mrb[0].mxu0
  %v756 = vadd.f32 0.0, %v755
  %v757 = vpop.f32.mrb[0].mxu0
  %758 = vmatprep.mubr.bf16.mxu0 0
  %759 = vmatmul.mubr.bf16.gmra.mrb[0].mxu0 %v654
  %v760 = vpop.f32.mrb[0].mxu0
  %v761 = vadd.f32 0.0, %v760
  %v762 = vpop.f32.mrb[0].mxu0
  %v763 = vpop.f32.mrb[0].mxu0
  %v764 = vadd.f32 0.0, %v763
  %v765 = vpop.f32.mrb[0].mxu0
  %766 = vmatprep.mubr.bf16.mxu0 0
  %767 = vmatmul.mubr.bf16.gmra.mrb[0].mxu0 %v657
  %v768 = vpop.f32.mrb[0].mxu0
  %v769 = vadd.f32 0.0, %v768
  %v770 = vpop.f32.mrb[0].mxu0
  %v771 = vpop.f32.mrb[0].mxu0
  %v772 = vadd.f32 0.0, %v771
  %v773 = vpop.f32.mrb[0].mxu0
  %774 = vmatprep.mubr.bf16.mxu0 0
  %775 = vmatmul.mubr.bf16.gmra.mrb[0].mxu0 %v660
  %v776 = vpop.f32.mrb[0].mxu0
  %v777 = vadd.f32 0.0, %v776
  %v778 = vpop.f32.mrb[0].mxu0
  %v779 = vpop.f32.mrb[0].mxu0
  %v780 = vadd.f32 0.0, %v779
  %v781 = vpop.f32.mrb[0].mxu0
  %782 = vmatprep.mubr.bf16.mxu0 0
  %783 = vmatmul.mubr.bf16.gmra.mrb[0].mxu0 %v663
  %v784 = vpop.f32.mrb[0].mxu0
  %v785 = vadd.f32 0.0, %v784
  %v786 = vpop.f32.mrb[0].mxu0
  %v787 = vpop.f32.mrb[0].mxu0
  %v788 = vadd.f32 0.0, %v787
  %v789 = vpop.f32.mrb[0].mxu0
  %790 = vmatprep.mubr.bf16.mxu0 0
  %791 = vmatmul.mubr.bf16.gmra.mrb[0].mxu0 %v666
  %v792 = vpop.f32.mrb[0].mxu0
  %v793 = vadd.f32 0.0, %v792
  %v794 = vpop.f32.mrb[0].mxu0
  %v795 = vpop.f32.mrb[0].mxu0
  %v796 = vadd.f32 0.0, %v795
  %v797 = vpop.f32.mrb[0].mxu0
  %798 = vmatprep.mubr.bf16.mxu0 0
  %799 = vmatmul.mubr.bf16.gmra.mrb[0].mxu0 %v669
  %v800 = vpop.f32.mrb[0].mxu0
  %v801 = vadd.f32 0.0, %v800
  %v802 = vpop.f32.mrb[0].mxu0
  %v803 = vpop.f32.mrb[0].mxu0
  %v804 = vadd.f32 0.0, %v803
  %v805 = vpop.f32.mrb[0].mxu0
  %806 = vmatprep.mubr.bf16.mxu0 0
  %807 = vmatmul.mubr.bf16.gmra.mrb[0].mxu0 %v672
  %v808 = vpop.f32.mrb[0].mxu0
  %v809 = vadd.f32 0.0, %v808
  %v810 = vpop.f32.mrb[0].mxu0
  %v811 = vpop.f32.mrb[0].mxu0
  %v812 = vadd.f32 0.0, %v811
  %v813 = vpop.f32.mrb[0].mxu0
  %814 = vmatprep.mubr.bf16.mxu0 0
  %815 = vmatmul.mubr.bf16.gmra.mrb[0].mxu0 %v675
  %v816 = vpop.f32.mrb[0].mxu0
  %v817 = vadd.f32 0.0, %v816
  %v818 = vpop.f32.mrb[0].mxu0
  %v819 = vpop.f32.mrb[0].mxu0
  %v820 = vadd.f32 0.0, %v819
  %v821 = vpop.f32.mrb[0].mxu0
  %822 = vmatprep.mubr.bf16.mxu0 0
  %823 = vmatmul.mubr.bf16.gmra.mrb[0].mxu0 %v678
  %v824 = vpop.f32.mrb[0].mxu0
  %v825 = vadd.f32 0.0, %v824
  %v826 = vpop.f32.mrb[0].mxu0
  %v827 = vpop.f32.mrb[0].mxu0
  %v828 = vadd.f32 0.0, %v827
  %v829 = vpop.f32.mrb[0].mxu0
  %830 = vmatprep.mubr.bf16.mxu0 0
  %831 = vmatmul.mubr.bf16.gmra.mrb[0].mxu0 %v681
  %v832 = vpop.f32.mrb[0].mxu0
  %v833 = vadd.f32 0.0, %v832
  %v834 = vpop.f32.mrb[0].mxu0
  %v835 = vpop.f32.mrb[0].mxu0
  %v836 = vadd.f32 0.0, %v835
  %v837 = vpop.f32.mrb[0].mxu0
  %838 = vmatprep.mubr.bf16.mxu0 0
  %839 = vmatmul.mubr.bf16.gmra.mrb[0].mxu0 %v684
  %v840 = vpop.f32.mrb[0].mxu0
  %v841 = vadd.f32 0.0, %v840
  %v842 = vpop.f32.mrb[0].mxu0
  %v843 = vpop.f32.mrb[0].mxu0
  %v844 = vadd.f32 0.0, %v843
  %v845 = vpop.f32.mrb[0].mxu0
  %846 = vdwg.mxu0
  %v847 = vadd.f32 %v448, %v721
  %v848 = vadd.f32 %v451, %v724
  %v849 = vadd.f32 %v456, %v729
  %v850 = vadd.f32 %v459, %v732
  %v851 = vadd.f32 %v464, %v737
  %v852 = vadd.f32 %v467, %v740
  %v853 = vadd.f32 %v472, %v745
  %v854 = vadd.f32 %v475, %v748
  %v855 = vadd.f32 %v480, %v753
  %v856 = vadd.f32 %v483, %v756
  %v857 = vadd.f32 %v488, %v761
  %v858 = vadd.f32 %v491, %v764
  %v859 = vadd.f32 %v496, %v769
  %v860 = vadd.f32 %v499, %v772
  %v861 = vadd.f32 %v504, %v777
  %v862 = vadd.f32 %v507, %v780
  %v863 = vadd.f32 %v512, %v785
  %v864 = vadd.f32 %v515, %v788
  %v865 = vadd.f32 %v520, %v793
  %v866 = vadd.f32 %v523, %v796
  %v867 = vadd.f32 %v528, %v801
  %v868 = vadd.f32 %v531, %v804
  %v869 = vadd.f32 %v536, %v809
  %v870 = vadd.f32 %v539, %v812
  %v871 = vadd.f32 %v544, %v817
  %v872 = vadd.f32 %v547, %v820
  %v873 = vadd.f32 %v552, %v825
  %v874 = vadd.f32 %v555, %v828
  %v875 = vadd.f32 %v560, %v833
  %v876 = vadd.f32 %v563, %v836
  %v877 = vadd.f32 %v568, %v841
  %v878 = vadd.f32 %v571, %v844
  %v879 = vld [vmem:[%s6] sm:$0x1]
  %v881 = vlaneseq
  %v882 = vshrl.u32 %v881, 7
  %v883 = vsub.s32 0, %v882
  %v884 = vrot.slane %v879, %v883
  %v886 = vadd.f32 %v847, %v884
  %v887 = vadd.f32 %v848, %v884
  %v888 = vadd.f32 %v849, %v884
  %v889 = vadd.f32 %v850, %v884
  %v890 = vadd.f32 %v851, %v884
  %v891 = vadd.f32 %v852, %v884
  %v892 = vadd.f32 %v853, %v884
  %v893 = vadd.f32 %v854, %v884
  %v894 = vadd.f32 %v855, %v884
  %v895 = vadd.f32 %v856, %v884
  %v896 = vadd.f32 %v857, %v884
  %v897 = vadd.f32 %v858, %v884
  %v898 = vadd.f32 %v859, %v884
  %v899 = vadd.f32 %v860, %v884
  %v900 = vadd.f32 %v861, %v884
  %v901 = vadd.f32 %v862, %v884
  %v902 = vadd.f32 %v863, %v884
  %v903 = vadd.f32 %v864, %v884
  %v904 = vadd.f32 %v865, %v884
  %v905 = vadd.f32 %v866, %v884
  %v906 = vadd.f32 %v867, %v884
  %v907 = vadd.f32 %v868, %v884
  %v908 = vadd.f32 %v869, %v884
  %v909 = vadd.f32 %v870, %v884
  %v910 = vadd.f32 %v871, %v884
  %v911 = vadd.f32 %v872, %v884
  %v912 = vadd.f32 %v873, %v884
  %v913 = vadd.f32 %v874, %v884
  %v914 = vadd.f32 %v875, %v884
  %v915 = vadd.f32 %v876, %v884
  %v916 = vadd.f32 %v877, %v884
  %v917 = vadd.f32 %v878, %v884
  %918 = vst.msk [vmem:[%s7] sm:$0xff] %vm143, %v886
  %919 = vst.msk [vmem:[%s7 + $0x8] sm:$0xff] %vm143, %v887
  %920 = vst.msk [vmem:[%s7 + $0x10] sm:$0xff] %vm143, %v888
  %921 = vst.msk [vmem:[%s7 + $0x18] sm:$0xff] %vm143, %v889
  %922 = vst.msk [vmem:[%s7 + $0x20] sm:$0xff] %vm143, %v890
  %923 = vst.msk [vmem:[%s7 + $0x28] sm:$0xff] %vm143, %v891
  %924 = vst.msk [vmem:[%s7 + $0x30] sm:$0xff] %vm143, %v892
  %925 = vst.msk [vmem:[%s7 + $0x38] sm:$0xff] %vm143, %v893
  %926 = vst.msk [vmem:[%s7 + $0x40] sm:$0xff] %vm143, %v894
  %927 = vst.msk [vmem:[%s7 + $0x48] sm:$0xff] %vm143, %v895
  %928 = vst.msk [vmem:[%s7 + $0x50] sm:$0xff] %vm143, %v896
  %929 = vst.msk [vmem:[%s7 + $0x58] sm:$0xff] %vm143, %v897
  %930 = vst.msk [vmem:[%s7 + $0x60] sm:$0xff] %vm143, %v898
  %931 = vst.msk [vmem:[%s7 + $0x68] sm:$0xff] %vm143, %v899
  %932 = vst.msk [vmem:[%s7 + $0x70] sm:$0xff] %vm143, %v900
  %933 = vst.msk [vmem:[%s7 + $0x78] sm:$0xff] %vm143, %v901
  %934 = vst.msk [vmem:[%s7 + $0x80] sm:$0xff] %vm143, %v902
  %935 = vst.msk [vmem:[%s7 + $0x88] sm:$0xff] %vm143, %v903
  %936 = vst.msk [vmem:[%s7 + $0x90] sm:$0xff] %vm143, %v904
  %937 = vst.msk [vmem:[%s7 + $0x98] sm:$0xff] %vm143, %v905
  %938 = vst.msk [vmem:[%s7 + $0xa0] sm:$0xff] %vm143, %v906
  %939 = vst.msk [vmem:[%s7 + $0xa8] sm:$0xff] %vm143, %v907
  %940 = vst.msk [vmem:[%s7 + $0xb0] sm:$0xff] %vm143, %v908
  %941 = vst.msk [vmem:[%s7 + $0xb8] sm:$0xff] %vm143, %v909
  %942 = vst.msk [vmem:[%s7 + $0xc0] sm:$0xff] %vm143, %v910
  %943 = vst.msk [vmem:[%s7 + $0xc8] sm:$0xff] %vm143, %v911
  %944 = vst.msk [vmem:[%s7 + $0xd0] sm:$0xff] %vm143, %v912
  %945 = vst.msk [vmem:[%s7 + $0xd8] sm:$0xff] %vm143, %v913
  %946 = vst.msk [vmem:[%s7 + $0xe0] sm:$0xff] %vm143, %v914
  %947 = vst.msk [vmem:[%s7 + $0xe8] sm:$0xff] %vm143, %v915
  %948 = vst.msk [vmem:[%s7 + $0xf0] sm:$0xff] %vm143, %v916
  %949 = vst.msk [vmem:[%s7 + $0xf8] sm:$0xff] %vm143, %v917
  // Predicated region
  $region30: #{_sgb_forward_impl.21} parent=0 // pred_check
    _
  $region31: #{_sgb_forward_impl.21} parent=0 // pred_check_branch
    %951 = sbr.rel (0) target = $region33
  $region32: #{_sgb_forward_impl.21} parent=0 // pred_region
    _
  $region33: #{_sgb_forward_impl.21} parent=0 // pred_fallthru
    _
  // Predicated region
  $region34: #{_sgb_forward_impl.21} parent=0 // pred_check
    _
  $region35: #{_sgb_forward_impl.21} parent=0 // pred_check_branch
    %953 = sbr.rel (0) target = $region37
  $region36: #{_sgb_forward_impl.21} parent=0 // pred_region
    _
  $region37: #{_sgb_forward_impl.21} parent=0 // pred_fallthru
    _

</llo_original>
